<compile_context>
chip_gen: v6e
topology: v6e:2x2x1
jax: 0.10.0
libtpu: 0.0.40
codegen_flags: <defaults>
</compile_context>

<pallas_src>
import math

import jax
import jax.numpy as jnp
from jax.experimental import pallas as pl
from jax.experimental.pallas import tpu as pltpu


# ----------------------------------------------------------------------------
# glue helpers (plain JAX, outside the kernel)
# ----------------------------------------------------------------------------
def _sinusoidal_positions(S, E, min_timescale=1.0, max_timescale=1.0e4):
    """AllenNLP add_positional_features sinusoid table, shape (S, E)."""
    positions = jnp.arange(S, dtype=jnp.float32)
    num_timescales = E // 2
    log_inc = math.log(max_timescale / min_timescale) / float(num_timescales - 1)
    inv = min_timescale * jnp.exp(
        jnp.arange(num_timescales, dtype=jnp.float32) * -log_inc)
    scaled = positions[:, None] * inv[None, :]
    sinusoids = jnp.concatenate([jnp.sin(scaled), jnp.cos(scaled)], axis=1)
    if E % 2 != 0:
        sinusoids = jnp.concatenate(
            [sinusoids, jnp.zeros((S, 1), jnp.float32)], axis=1)
    return sinusoids


# ----------------------------------------------------------------------------
# Pallas kernel: fused TK forward hot path, one batch element per grid step
# ----------------------------------------------------------------------------
def make_tk_fused_kernel(B, QL, DL, E, FF, P, H, L, K):
    dk = P // H
    inv_log2 = 1.0 / math.log(2.0)

    def _layer_norm(t, g, b):
        # AllenNLP LayerNorm: gamma * (x - mean) / (std + eps) + beta
        # torch.std default is the unbiased (N-1) estimator; eps = 1e-6.
        mean = jnp.mean(t, axis=-1, keepdims=True)
        var = jnp.sum(jnp.square(t - mean), axis=-1,
                      keepdims=True) * (1.0 / float(E - 1))
        inv = pl.reciprocal(jnp.sqrt(var) + 1e-6, approx=True)
        return g * (t - mean) * inv + b

    def _masked_softmax(sims, amask):
        # AllenNLP masked_softmax (memory_efficient=False):
        #   softmax(v * m) * m / (sum(softmax(v * m) * m) + 1e-13)
        # merged algebraically: e*m / (sum(e*m) + 1e-13 * sum(e))
        sm = sims * amask
        sm = sm - jnp.max(sm, axis=-1, keepdims=True)
        e = jnp.exp(sm)
        s_all = jnp.sum(e, axis=-1, keepdims=True)
        em = e * amask
        s_msk = jnp.sum(em, axis=-1, keepdims=True)
        return em * pl.reciprocal(s_msk + 1e-13 * s_all, approx=True)

    def kernel(q_in_ref, d_in_ref, posq_ref, posd_ref,
               qm_col_ref, qm_row_ref, dm_col_ref, dm_row_ref,
               mu_ref, inv2s2_ref,
               w1_ref, b1_ref, w2_ref, b2_ref, gff_ref, bff_ref,
               wq_ref, bq_ref, wk_ref, bk_ref, wv_ref, bv_ref,
               wo_ref, bo_ref, gat_ref, bat_ref,
               scalars_ref,                 # SMEM (2,): [mixer, nn_scaler]
               pk_ref, pkm_ref):            # (K,1) per-batch outputs
        mixer = scalars_ref[0]
        scaler = scalars_ref[1]

        def encode(x, amask):
            # StackedSelfAttentionEncoder layer: FF -> LN -> MHSA -> LN.
            h = x
            for l in range(L):
                t = jnp.dot(h, w1_ref[l],
                            preferred_element_type=jnp.float32) + b1_ref[l]
                t = jnp.maximum(t, 0.0)
                ff = jnp.dot(t, w2_ref[l],
                             preferred_element_type=jnp.float32) + b2_ref[l]
                ff = _layer_norm(ff + h, gff_ref[l], bff_ref[l])

                # fused full-width projections (1/scale folded into wq/bq)
                qp = jnp.dot(ff, wq_ref[l],
                             preferred_element_type=jnp.float32) + bq_ref[l]
                kp = jnp.dot(ff, wk_ref[l],
                             preferred_element_type=jnp.float32) + bk_ref[l]
                vp = jnp.dot(ff, wv_ref[l],
                             preferred_element_type=jnp.float32) + bv_ref[l]

                ctx_heads = []
                for hh in range(H):
                    lo, hi = hh * dk, (hh + 1) * dk
                    qh = qp[:, lo:hi]
                    kh = kp[:, lo:hi]
                    vh = vp[:, lo:hi]
                    sims = jnp.einsum('qd,kd->qk', qh, kh,
                                      preferred_element_type=jnp.float32)
                    attn = _masked_softmax(sims, amask)
                    ctx_heads.append(
                        jnp.dot(attn, vh, preferred_element_type=jnp.float32))
                ctx = jnp.concatenate(ctx_heads, axis=-1)          # (rows, P)
                att = jnp.dot(ctx, wo_ref[l],
                              preferred_element_type=jnp.float32) + bo_ref[l]
                h = _layer_norm(att + ff, gat_ref[l], bat_ref[l])
            return h

        q_in = q_in_ref[...]                       # (QL, E), already masked
        d_in = d_in_ref[...]                       # (DL, E), already masked
        qm_col = qm_col_ref[...]                   # (QL, 1)
        qm_row = qm_row_ref[...]                   # (1, QL)
        dm_col = dm_col_ref[...]                   # (DL, 1)
        dm_row = dm_row_ref[...]                   # (1, DL)

        # key-validity attention masks built in kernel from 1-D mask vectors
        amask_q = jnp.broadcast_to(qm_row, (QL, QL))
        amask_d = jnp.broadcast_to(dm_row, (DL, DL))

        q_ctx = encode(q_in + posq_ref[...], amask_q)
        d_ctx = encode(d_in + posd_ref[...], amask_d)

        q_mix = (mixer * q_in + (1.0 - mixer) * q_ctx) * qm_col
        d_mix = (mixer * d_in + (1.0 - mixer) * d_ctx) * dm_col

        # CosineMatrixAttention
        qn = q_mix / (jnp.sqrt(jnp.sum(q_mix * q_mix, axis=-1,
                                       keepdims=True)) + 1e-13)
        dn = d_mix / (jnp.sqrt(jnp.sum(d_mix * d_mix, axis=-1,
                                       keepdims=True)) + 1e-13)
        cos = jnp.einsum('qe,de->qd', qn, dn,
                         preferred_element_type=jnp.float32)       # (QL, DL)

        pm = qm_col * dm_row                                       # (QL, DL)
        cosm = cos * pm

        # Gaussian soft-histogram kernels, vectorized over K (leading axis).
        mu3 = mu_ref[...].reshape(K, 1, 1)
        w3 = inv2s2_ref[...].reshape(K, 1, 1)                      # 1/(2*sigma^2)
        diff = cosm[None, :, :] - mu3
        rk = jnp.exp(-(diff * diff) * w3) * pm[None, :, :]         # (K, QL, DL)
        pkq = jnp.sum(rk, axis=-1)                                 # (K, QL)

        logp = jnp.log(jnp.maximum(pkq, 1e-10)) * inv_log2 * scaler * qm_row
        pk_ref[...] = jnp.sum(logp, axis=-1, keepdims=True)        # (K, 1)

        dlen = jnp.sum(dm_row, axis=-1, keepdims=True)             # (1, 1)
        meanp = pkq * pl.reciprocal(dlen + 1.0, approx=True) * scaler * qm_row
        pkm_ref[...] = jnp.sum(meanp, axis=-1, keepdims=True)      # (K, 1)

    # ---- BlockSpecs ---------------------------------------------------------
    def b3(d1, d2):          # per-batch block, batch dim squeezed
        return pl.BlockSpec((None, d1, d2), lambda b: (b, 0, 0))

    def s2(d1, d2):          # shared 2-D input (same block every grid step)
        return pl.BlockSpec((d1, d2), lambda b: (0, 0))

    def wsp(d1, d2):         # stacked weight, constant index -> VMEM resident
        return pl.BlockSpec((L, d1, d2), lambda b: (0, 0, 0))

    in_specs = [
        b3(QL, E), b3(DL, E),                      # q_in, d_in
        s2(QL, E), s2(DL, E),                      # posq, posd
        b3(QL, 1), b3(1, QL), b3(DL, 1), b3(1, DL),  # masks (col/row layouts)
        s2(K, 1), s2(K, 1),                        # mu, 1/(2*sigma^2)
        wsp(E, FF), wsp(1, FF),                    # w1, b1
        wsp(FF, E), wsp(1, E),                     # w2, b2
        wsp(1, E), wsp(1, E),                      # ff layer-norm g, b
        wsp(E, P), wsp(1, P),                      # wq, bq
        wsp(E, P), wsp(1, P),                      # wk, bk
        wsp(E, P), wsp(1, P),                      # wv, bv
        wsp(P, E), wsp(1, E),                      # wo, bo
        wsp(1, E), wsp(1, E),                      # attn layer-norm g, b
        pl.BlockSpec(memory_space=pltpu.MemorySpace.SMEM),   # [mixer, scaler]
    ]
    out_specs = (
        pl.BlockSpec((None, K, 1), lambda b: (b, 0, 0)),
        pl.BlockSpec((None, K, 1), lambda b: (b, 0, 0)),
    )
    return pl.pallas_call(
        kernel,
        grid=(B,),
        in_specs=in_specs,
        out_specs=out_specs,
        out_shape=(jax.ShapeDtypeStruct((B, K, 1), jnp.float32),
                   jax.ShapeDtypeStruct((B, K, 1), jnp.float32)),
        compiler_params=pltpu.CompilerParams(
            dimension_semantics=("parallel",),          # v7x: 2 TCs share batch
            vmem_limit_bytes=32 * 1024 * 1024),
    )


# ----------------------------------------------------------------------------
# Full TK_v1 forward (primary score path)
# ----------------------------------------------------------------------------
def tk_forward(params, q_emb, d_emb, q_mask, d_mask, *,
               heads, proj_dim, ff_dim, mu, sigma):
    q_emb = q_emb.astype(jnp.float32)
    d_emb = d_emb.astype(jnp.float32)
    q_mask = q_mask.astype(jnp.float32)
    d_mask = d_mask.astype(jnp.float32)

    B, QL, E = q_emb.shape
    DL = d_emb.shape[1]
    K = len(mu)
    H = heads
    P = proj_dim
    L = params['w1'].shape[0]
    scale = math.sqrt(E // H)            # AllenNLP: (input_dim // heads) ** 0.5

    q_in = q_emb * q_mask[..., None]                  # (B, QL, E)
    d_in = d_emb * d_mask[..., None]                  # (B, DL, E)
    posq = _sinusoidal_positions(QL, E)               # (QL, E), shared
    posd = _sinusoidal_positions(DL, E)               # (DL, E), shared

    qm_col = q_mask[:, :, None]                       # (B, QL, 1)
    qm_row = q_mask[:, None, :]                       # (B, 1, QL)
    dm_col = d_mask[:, :, None]                       # (B, DL, 1)
    dm_row = d_mask[:, None, :]                       # (B, 1, DL)

    mu_col = jnp.asarray(mu, jnp.float32).reshape(K, 1)
    inv2s2_col = (1.0 / (2.0 * jnp.square(
        jnp.asarray(sigma, jnp.float32)))).reshape(K, 1)

    # fold 1/scale into the (already combined-projection-shaped) Q weights
    wq = params['wq'] / scale                         # (L, E, P)
    bq = params['bq'] / scale                         # (L, 1, P)

    scalars = jnp.stack([params['mixer'], params['nn_scaler']]).astype(jnp.float32)

    fused = make_tk_fused_kernel(B, QL, DL, E, ff_dim, P, H, L, K)
    pk, pkm = fused(q_in, d_in, posq, posd,
                    qm_col, qm_row, dm_col, dm_row,
                    mu_col, inv2s2_col,
                    params['w1'], params['b1'], params['w2'], params['b2'],
                    params['ff_g'], params['ff_b'],
                    wq, bq, params['wk'], params['bk'],
                    params['wv'], params['bv'],
                    params['wo'], params['bo'],
                    params['at_g'], params['at_b'],
                    scalars)

    per_kernel = pk[:, :, 0]                          # (B, K)
    per_kernel_mean = pkm[:, :, 0]                    # (B, K)

    dense_out = per_kernel @ params['w_dense']                  # (B, 1)
    dense_mean_out = per_kernel_mean @ params['w_dense_mean']   # (B, 1)
    dense_comb_out = jnp.concatenate([dense_out, dense_mean_out],
                                     axis=1) @ params['w_comb']
    return dense_comb_out[:, 0]                                 # (B,)
    # TODO(synk): output_secondary_output dict / get_param_stats are not ported.


# ----------------------------------------------------------------------------
# deterministic synthetic parameters (mirror module shapes / init ranges)
# ----------------------------------------------------------------------------
def _uniform(key, fan_in, shape):
    bound = 1.0 / math.sqrt(fan_in)
    return jax.random.uniform(key, shape, jnp.float32, -bound, bound)


def init_params(key, E, FF, P, H, L, K):
    ks = jax.random.split(key, 15)
    return dict(
        w1=_uniform(ks[0], E, (L, E, FF)),   b1=_uniform(ks[1], E, (L, 1, FF)),
        w2=_uniform(ks[2], FF, (L, FF, E)),  b2=_uniform(ks[3], FF, (L, 1, E)),
        ff_g=jnp.ones((L, 1, E), jnp.float32),
        ff_b=jnp.zeros((L, 1, E), jnp.float32),
        # combined-projection layout: (E, P) per layer, heads along last axis
        wq=_uniform(ks[4], E, (L, E, P)), bq=_uniform(ks[5], E, (L, 1, P)),
        wk=_uniform(ks[6], E, (L, E, P)), bk=_uniform(ks[7], E, (L, 1, P)),
        wv=_uniform(ks[8], E, (L, E, P)), bv=_uniform(ks[9], E, (L, 1, P)),
        wo=_uniform(ks[10], P, (L, P, E)), bo=_uniform(ks[11], P, (L, 1, E)),
        at_g=jnp.ones((L, 1, E), jnp.float32),
        at_b=jnp.zeros((L, 1, E), jnp.float32),
        nn_scaler=jnp.float32(0.01),
        mixer=jnp.float32(0.5),
        w_dense=jax.random.uniform(ks[12], (K, 1), jnp.float32, -0.014, 0.014),
        w_dense_mean=jax.random.uniform(ks[13], (K, 1), jnp.float32, -0.014, 0.014),
        w_comb=jax.random.uniform(ks[14], (2, 1), jnp.float32,
                                  -1.0 / math.sqrt(2.0), 1.0 / math.sqrt(2.0)),
    )


if __name__ == "__main__":
    # small config consistent with TK_v1: 11 kernels, 2-layer / 2-head encoder
    B, QL, DL, E = 2, 8, 16, 32
    HEADS, PROJ, FF, LAYERS = 2, 32, 64, 2
    MU = [1.0, 0.9, 0.7, 0.5, 0.3, 0.1, -0.1, -0.3, -0.5, -0.7, -0.9]
    SIGMA = [0.001] + [0.1] * 10
    K = len(MU)

    key = jax.random.PRNGKey(0)
    kp, kq, kd = jax.random.split(key, 3)

    params = init_params(kp, E, FF, PROJ, HEADS, LAYERS, K)
    q_emb = jax.random.normal(kq, (B, QL, E), jnp.float32)
    d_emb = jax.random.normal(kd, (B, DL, E), jnp.float32)
    q_mask = (jnp.arange(QL)[None, :] <
              jnp.array([QL, 5])[:, None]).astype(jnp.float32)
    d_mask = (jnp.arange(DL)[None, :] <
              jnp.array([DL, 11])[:, None]).astype(jnp.float32)

    fwd = jax.jit(lambda p, qe, de, qm, dm: tk_forward(
        p, qe, de, qm, dm,
        heads=HEADS, proj_dim=PROJ, ff_dim=FF, mu=MU, sigma=SIGMA))

    score = fwd(params, q_emb, d_emb, q_mask, d_mask)
    jax.block_until_ready(score)
    assert score.shape == (B,)
    assert bool(jnp.all(jnp.isfinite(score)))
    print("KERNEL_OK")
</pallas_src>

<mosaic_0001>
module attributes {stable_mosaic.version = 11 : i64} {
  func.func @kernel(%arg0: i32, %arg1: memref<1x8x32xf32, #tpu.memory_space<vmem>>, %arg2: memref<1x16x32xf32, #tpu.memory_space<vmem>>, %arg3: memref<8x32xf32, #tpu.memory_space<vmem>>, %arg4: memref<16x32xf32, #tpu.memory_space<vmem>>, %arg5: memref<1x8x1xf32, #tpu.memory_space<vmem>>, %arg6: memref<1x1x8xf32, #tpu.memory_space<vmem>>, %arg7: memref<1x16x1xf32, #tpu.memory_space<vmem>>, %arg8: memref<1x1x16xf32, #tpu.memory_space<vmem>>, %arg9: memref<11x1xf32, #tpu.memory_space<vmem>>, %arg10: memref<11x1xf32, #tpu.memory_space<vmem>>, %arg11: memref<2x32x64xf32, #tpu.memory_space<vmem>>, %arg12: memref<2x1x64xf32, #tpu.memory_space<vmem>>, %arg13: memref<2x64x32xf32, #tpu.memory_space<vmem>>, %arg14: memref<2x1x32xf32, #tpu.memory_space<vmem>>, %arg15: memref<2x1x32xf32, #tpu.memory_space<vmem>>, %arg16: memref<2x1x32xf32, #tpu.memory_space<vmem>>, %arg17: memref<2x32x32xf32, #tpu.memory_space<vmem>>, %arg18: memref<2x1x32xf32, #tpu.memory_space<vmem>>, %arg19: memref<2x32x32xf32, #tpu.memory_space<vmem>>, %arg20: memref<2x1x32xf32, #tpu.memory_space<vmem>>, %arg21: memref<2x32x32xf32, #tpu.memory_space<vmem>>, %arg22: memref<2x1x32xf32, #tpu.memory_space<vmem>>, %arg23: memref<2x32x32xf32, #tpu.memory_space<vmem>>, %arg24: memref<2x1x32xf32, #tpu.memory_space<vmem>>, %arg25: memref<2x1x32xf32, #tpu.memory_space<vmem>>, %arg26: memref<2x1x32xf32, #tpu.memory_space<vmem>>, %arg27: memref<2xf32, #tpu.memory_space<smem>>, %arg28: memref<1x11x1xf32, #tpu.memory_space<vmem>>, %arg29: memref<1x11x1xf32, #tpu.memory_space<vmem>>) attributes {dimension_semantics = [#tpu.dimension_semantics<parallel>], iteration_bounds = array<i64: 2>, scalar_prefetch = 0 : i64, scratch_operands = 0 : i64, tpu.core_type = #tpu.core_type<tc>, window_params = [{transform_indices = @transform_0, window_bounds = array<i64: 1, 8, 32>}, {transform_indices = @transform_1, window_bounds = array<i64: 1, 16, 32>}, {pipeline_mode = #tpu.pipeline_mode<synchronous>, transform_indices = @transform_2, window_bounds = array<i64: 8, 32>}, {pipeline_mode = #tpu.pipeline_mode<synchronous>, transform_indices = @transform_3, window_bounds = array<i64: 16, 32>}, {transform_indices = @transform_4, window_bounds = array<i64: 1, 8, 1>}, {transform_indices = @transform_5, window_bounds = array<i64: 1, 1, 8>}, {transform_indices = @transform_6, window_bounds = array<i64: 1, 16, 1>}, {transform_indices = @transform_7, window_bounds = array<i64: 1, 1, 16>}, {pipeline_mode = #tpu.pipeline_mode<synchronous>, transform_indices = @transform_8, window_bounds = array<i64: 11, 1>}, {pipeline_mode = #tpu.pipeline_mode<synchronous>, transform_indices = @transform_9, window_bounds = array<i64: 11, 1>}, {pipeline_mode = #tpu.pipeline_mode<synchronous>, transform_indices = @transform_10, window_bounds = array<i64: 2, 32, 64>}, {pipeline_mode = #tpu.pipeline_mode<synchronous>, transform_indices = @transform_11, window_bounds = array<i64: 2, 1, 64>}, {pipeline_mode = #tpu.pipeline_mode<synchronous>, transform_indices = @transform_12, window_bounds = array<i64: 2, 64, 32>}, {pipeline_mode = #tpu.pipeline_mode<synchronous>, transform_indices = @transform_13, window_bounds = array<i64: 2, 1, 32>}, {pipeline_mode = #tpu.pipeline_mode<synchronous>, transform_indices = @transform_14, window_bounds = array<i64: 2, 1, 32>}, {pipeline_mode = #tpu.pipeline_mode<synchronous>, transform_indices = @transform_15, window_bounds = array<i64: 2, 1, 32>}, {pipeline_mode = #tpu.pipeline_mode<synchronous>, transform_indices = @transform_16, window_bounds = array<i64: 2, 32, 32>}, {pipeline_mode = #tpu.pipeline_mode<synchronous>, transform_indices = @transform_17, window_bounds = array<i64: 2, 1, 32>}, {pipeline_mode = #tpu.pipeline_mode<synchronous>, transform_indices = @transform_18, window_bounds = array<i64: 2, 32, 32>}, {pipeline_mode = #tpu.pipeline_mode<synchronous>, transform_indices = @transform_19, window_bounds = array<i64: 2, 1, 32>}, {pipeline_mode = #tpu.pipeline_mode<synchronous>, transform_indices = @transform_20, window_bounds = array<i64: 2, 32, 32>}, {pipeline_mode = #tpu.pipeline_mode<synchronous>, transform_indices = @transform_21, window_bounds = array<i64: 2, 1, 32>}, {pipeline_mode = #tpu.pipeline_mode<synchronous>, transform_indices = @transform_22, window_bounds = array<i64: 2, 32, 32>}, {pipeline_mode = #tpu.pipeline_mode<synchronous>, transform_indices = @transform_23, window_bounds = array<i64: 2, 1, 32>}, {pipeline_mode = #tpu.pipeline_mode<synchronous>, transform_indices = @transform_24, window_bounds = array<i64: 2, 1, 32>}, {pipeline_mode = #tpu.pipeline_mode<synchronous>, transform_indices = @transform_25, window_bounds = array<i64: 2, 1, 32>}, {transform_indices = @transform_26, window_bounds = array<i64: 2>}, {transform_indices = @transform_27, window_bounds = array<i64: 1, 11, 1>}, {transform_indices = @transform_28, window_bounds = array<i64: 1, 11, 1>}]} {
    %c0 = arith.constant 0 : index
    %0 = memref.load %arg27[%c0] : memref<2xf32, #tpu.memory_space<smem>>
    %c1 = arith.constant 1 : index
    %1 = memref.load %arg27[%c1] : memref<2xf32, #tpu.memory_space<smem>>
    %c0_0 = arith.constant 0 : index
    %c0_1 = arith.constant 0 : index
    %c0_2 = arith.constant 0 : index
    %2 = vector.load %arg1[%c0_0, %c0_1, %c0_2] : memref<1x8x32xf32, #tpu.memory_space<vmem>>, vector<1x8x32xf32>
    %3 = vector.shape_cast %2 : vector<1x8x32xf32> to vector<8x32xf32>
    %c0_3 = arith.constant 0 : index
    %c0_4 = arith.constant 0 : index
    %c0_5 = arith.constant 0 : index
    %4 = vector.load %arg2[%c0_3, %c0_4, %c0_5] : memref<1x16x32xf32, #tpu.memory_space<vmem>>, vector<1x16x32xf32>
    %5 = vector.shape_cast %4 : vector<1x16x32xf32> to vector<16x32xf32>
    %c0_6 = arith.constant 0 : index
    %c0_7 = arith.constant 0 : index
    %c0_8 = arith.constant 0 : index
    %6 = vector.load %arg5[%c0_6, %c0_7, %c0_8] : memref<1x8x1xf32, #tpu.memory_space<vmem>>, vector<1x8x1xf32>
    %7 = vector.shape_cast %6 : vector<1x8x1xf32> to vector<8x1xf32>
    %c0_9 = arith.constant 0 : index
    %c0_10 = arith.constant 0 : index
    %c0_11 = arith.constant 0 : index
    %8 = vector.load %arg6[%c0_9, %c0_10, %c0_11] : memref<1x1x8xf32, #tpu.memory_space<vmem>>, vector<1x1x8xf32>
    %9 = vector.shape_cast %8 : vector<1x1x8xf32> to vector<1x8xf32>
    %c0_12 = arith.constant 0 : index
    %c0_13 = arith.constant 0 : index
    %c0_14 = arith.constant 0 : index
    %10 = vector.load %arg7[%c0_12, %c0_13, %c0_14] : memref<1x16x1xf32, #tpu.memory_space<vmem>>, vector<1x16x1xf32>
    %11 = vector.shape_cast %10 : vector<1x16x1xf32> to vector<16x1xf32>
    %c0_15 = arith.constant 0 : index
    %c0_16 = arith.constant 0 : index
    %c0_17 = arith.constant 0 : index
    %12 = vector.load %arg8[%c0_15, %c0_16, %c0_17] : memref<1x1x16xf32, #tpu.memory_space<vmem>>, vector<1x1x16xf32>
    %13 = vector.shape_cast %12 : vector<1x1x16xf32> to vector<1x16xf32>
    %14 = vector.shape_cast %9 : vector<1x8xf32> to vector<1x8xf32>
    %15 = vector.broadcast %14 : vector<1x8xf32> to vector<8x8xf32>
    %16 = vector.shape_cast %13 : vector<1x16xf32> to vector<1x16xf32>
    %17 = vector.broadcast %16 : vector<1x16xf32> to vector<16x16xf32>
    %c0_18 = arith.constant 0 : index
    %c0_19 = arith.constant 0 : index
    %18 = vector.load %arg3[%c0_18, %c0_19] : memref<8x32xf32, #tpu.memory_space<vmem>>, vector<8x32xf32>
    %19 = arith.addf %3, %18 : vector<8x32xf32>
    %c0_20 = arith.constant 0 : index
    %c0_21 = arith.constant 0 : index
    %c0_22 = arith.constant 0 : index
    %20 = vector.load %arg11[%c0_20, %c0_21, %c0_22] : memref<2x32x64xf32, #tpu.memory_space<vmem>>, vector<1x32x64xf32>
    %21 = vector.shape_cast %20 : vector<1x32x64xf32> to vector<32x64xf32>
    %cst = arith.constant dense<0.000000e+00> : vector<8x64xf32>
    %22 = tpu.matmul %19, %21, %cst {dimension_numbers = #tpu.dot_dimension_numbers<[1], [0], [0], [1], [0, 0, 1, 1], [], []>} : vector<8x32xf32>, vector<32x64xf32>, vector<8x64xf32> -> vector<8x64xf32>
    %c0_23 = arith.constant 0 : index
    %c0_24 = arith.constant 0 : index
    %c0_25 = arith.constant 0 : index
    %23 = vector.load %arg12[%c0_23, %c0_24, %c0_25] : memref<2x1x64xf32, #tpu.memory_space<vmem>>, vector<1x1x64xf32>
    %24 = vector.shape_cast %23 : vector<1x1x64xf32> to vector<1x64xf32>
    %25 = vector.broadcast %24 : vector<1x64xf32> to vector<8x64xf32>
    %26 = arith.addf %22, %25 : vector<8x64xf32>
    %cst_26 = arith.constant 0.000000e+00 : f32
    %27 = vector.broadcast %cst_26 : f32 to vector<8x64xf32>
    %28 = arith.maximumf %26, %27 : vector<8x64xf32>
    %c0_27 = arith.constant 0 : index
    %c0_28 = arith.constant 0 : index
    %c0_29 = arith.constant 0 : index
    %29 = vector.load %arg13[%c0_27, %c0_28, %c0_29] : memref<2x64x32xf32, #tpu.memory_space<vmem>>, vector<1x64x32xf32>
    %30 = vector.shape_cast %29 : vector<1x64x32xf32> to vector<64x32xf32>
    %cst_30 = arith.constant dense<0.000000e+00> : vector<8x32xf32>
    %31 = tpu.matmul %28, %30, %cst_30 {dimension_numbers = #tpu.dot_dimension_numbers<[1], [0], [0], [1], [0, 0, 1, 1], [], []>} : vector<8x64xf32>, vector<64x32xf32>, vector<8x32xf32> -> vector<8x32xf32>
    %c0_31 = arith.constant 0 : index
    %c0_32 = arith.constant 0 : index
    %c0_33 = arith.constant 0 : index
    %32 = vector.load %arg14[%c0_31, %c0_32, %c0_33] : memref<2x1x32xf32, #tpu.memory_space<vmem>>, vector<1x1x32xf32>
    %33 = vector.shape_cast %32 : vector<1x1x32xf32> to vector<1x32xf32>
    %34 = vector.broadcast %33 : vector<1x32xf32> to vector<8x32xf32>
    %35 = arith.addf %31, %34 : vector<8x32xf32>
    %36 = arith.addf %35, %19 : vector<8x32xf32>
    %c0_34 = arith.constant 0 : index
    %c0_35 = arith.constant 0 : index
    %c0_36 = arith.constant 0 : index
    %37 = vector.load %arg15[%c0_34, %c0_35, %c0_36] : memref<2x1x32xf32, #tpu.memory_space<vmem>>, vector<1x1x32xf32>
    %38 = vector.shape_cast %37 : vector<1x1x32xf32> to vector<1x32xf32>
    %c0_37 = arith.constant 0 : index
    %c0_38 = arith.constant 0 : index
    %c0_39 = arith.constant 0 : index
    %39 = vector.load %arg16[%c0_37, %c0_38, %c0_39] : memref<2x1x32xf32, #tpu.memory_space<vmem>>, vector<1x1x32xf32>
    %40 = vector.shape_cast %39 : vector<1x1x32xf32> to vector<1x32xf32>
    %cst_40 = arith.constant dense<0.000000e+00> : vector<8xf32>
    %41 = vector.multi_reduction <add>, %36, %cst_40 [1] : vector<8x32xf32> to vector<8xf32>
    %42 = vector.shape_cast %41 : vector<8xf32> to vector<8x1xf32>
    %cst_41 = arith.constant 3.200000e+01 : f32
    %43 = vector.broadcast %cst_41 : f32 to vector<8x1xf32>
    %44 = arith.divf %42, %43 : vector<8x1xf32>
    %45 = vector.broadcast %44 : vector<8x1xf32> to vector<8x32xf32>
    %46 = arith.subf %36, %45 : vector<8x32xf32>
    %47 = arith.mulf %46, %46 : vector<8x32xf32>
    %cst_42 = arith.constant dense<0.000000e+00> : vector<8xf32>
    %48 = vector.multi_reduction <add>, %47, %cst_42 [1] : vector<8x32xf32> to vector<8xf32>
    %49 = vector.shape_cast %48 : vector<8xf32> to vector<8x1xf32>
    %cst_43 = arith.constant 0.0322580636 : f32
    %50 = vector.broadcast %cst_43 : f32 to vector<8x1xf32>
    %51 = arith.mulf %49, %50 : vector<8x1xf32>
    %52 = math.sqrt %51 : vector<8x1xf32>
    %cst_44 = arith.constant 9.99999997E-7 : f32
    %53 = vector.broadcast %cst_44 : f32 to vector<8x1xf32>
    %54 = arith.addf %52, %53 : vector<8x1xf32>
    %55 = tpu.reciprocal %54 {approx = true} : vector<8x1xf32> -> vector<8x1xf32>
    %56 = vector.broadcast %44 : vector<8x1xf32> to vector<8x32xf32>
    %57 = arith.subf %36, %56 : vector<8x32xf32>
    %58 = vector.broadcast %38 : vector<1x32xf32> to vector<8x32xf32>
    %59 = arith.mulf %58, %57 : vector<8x32xf32>
    %60 = vector.broadcast %55 : vector<8x1xf32> to vector<8x32xf32>
    %61 = arith.mulf %59, %60 : vector<8x32xf32>
    %62 = vector.broadcast %40 : vector<1x32xf32> to vector<8x32xf32>
    %63 = arith.addf %61, %62 : vector<8x32xf32>
    %c0_45 = arith.constant 0 : index
    %c0_46 = arith.constant 0 : index
    %c0_47 = arith.constant 0 : index
    %64 = vector.load %arg17[%c0_45, %c0_46, %c0_47] : memref<2x32x32xf32, #tpu.memory_space<vmem>>, vector<1x32x32xf32>
    %65 = vector.shape_cast %64 : vector<1x32x32xf32> to vector<32x32xf32>
    %cst_48 = arith.constant dense<0.000000e+00> : vector<8x32xf32>
    %66 = tpu.matmul %63, %65, %cst_48 {dimension_numbers = #tpu.dot_dimension_numbers<[1], [0], [0], [1], [0, 0, 1, 1], [], []>} : vector<8x32xf32>, vector<32x32xf32>, vector<8x32xf32> -> vector<8x32xf32>
    %c0_49 = arith.constant 0 : index
    %c0_50 = arith.constant 0 : index
    %c0_51 = arith.constant 0 : index
    %67 = vector.load %arg18[%c0_49, %c0_50, %c0_51] : memref<2x1x32xf32, #tpu.memory_space<vmem>>, vector<1x1x32xf32>
    %68 = vector.shape_cast %67 : vector<1x1x32xf32> to vector<1x32xf32>
    %69 = vector.broadcast %68 : vector<1x32xf32> to vector<8x32xf32>
    %70 = arith.addf %66, %69 : vector<8x32xf32>
    %c0_52 = arith.constant 0 : index
    %c0_53 = arith.constant 0 : index
    %c0_54 = arith.constant 0 : index
    %71 = vector.load %arg19[%c0_52, %c0_53, %c0_54] : memref<2x32x32xf32, #tpu.memory_space<vmem>>, vector<1x32x32xf32>
    %72 = vector.shape_cast %71 : vector<1x32x32xf32> to vector<32x32xf32>
    %cst_55 = arith.constant dense<0.000000e+00> : vector<8x32xf32>
    %73 = tpu.matmul %63, %72, %cst_55 {dimension_numbers = #tpu.dot_dimension_numbers<[1], [0], [0], [1], [0, 0, 1, 1], [], []>} : vector<8x32xf32>, vector<32x32xf32>, vector<8x32xf32> -> vector<8x32xf32>
    %c0_56 = arith.constant 0 : index
    %c0_57 = arith.constant 0 : index
    %c0_58 = arith.constant 0 : index
    %74 = vector.load %arg20[%c0_56, %c0_57, %c0_58] : memref<2x1x32xf32, #tpu.memory_space<vmem>>, vector<1x1x32xf32>
    %75 = vector.shape_cast %74 : vector<1x1x32xf32> to vector<1x32xf32>
    %76 = vector.broadcast %75 : vector<1x32xf32> to vector<8x32xf32>
    %77 = arith.addf %73, %76 : vector<8x32xf32>
    %c0_59 = arith.constant 0 : index
    %c0_60 = arith.constant 0 : index
    %c0_61 = arith.constant 0 : index
    %78 = vector.load %arg21[%c0_59, %c0_60, %c0_61] : memref<2x32x32xf32, #tpu.memory_space<vmem>>, vector<1x32x32xf32>
    %79 = vector.shape_cast %78 : vector<1x32x32xf32> to vector<32x32xf32>
    %cst_62 = arith.constant dense<0.000000e+00> : vector<8x32xf32>
    %80 = tpu.matmul %63, %79, %cst_62 {dimension_numbers = #tpu.dot_dimension_numbers<[1], [0], [0], [1], [0, 0, 1, 1], [], []>} : vector<8x32xf32>, vector<32x32xf32>, vector<8x32xf32> -> vector<8x32xf32>
    %c0_63 = arith.constant 0 : index
    %c0_64 = arith.constant 0 : index
    %c0_65 = arith.constant 0 : index
    %81 = vector.load %arg22[%c0_63, %c0_64, %c0_65] : memref<2x1x32xf32, #tpu.memory_space<vmem>>, vector<1x1x32xf32>
    %82 = vector.shape_cast %81 : vector<1x1x32xf32> to vector<1x32xf32>
    %83 = vector.broadcast %82 : vector<1x32xf32> to vector<8x32xf32>
    %84 = arith.addf %80, %83 : vector<8x32xf32>
    %85 = vector.extract_strided_slice %70 {offsets = [0, 0], sizes = [8, 16], strides = [1, 1]} : vector<8x32xf32> to vector<8x16xf32>
    %86 = vector.extract_strided_slice %77 {offsets = [0, 0], sizes = [8, 16], strides = [1, 1]} : vector<8x32xf32> to vector<8x16xf32>
    %87 = vector.extract_strided_slice %84 {offsets = [0, 0], sizes = [8, 16], strides = [1, 1]} : vector<8x32xf32> to vector<8x16xf32>
    "tpu.trace_start"() <{level = 10 : i32, message = "qd,kd->qk"}> : () -> ()
    %cst_66 = arith.constant dense<0.000000e+00> : vector<8x8xf32>
    %88 = tpu.matmul %85, %86, %cst_66 {dimension_numbers = #tpu.dot_dimension_numbers<[1], [1], [0], [0], [0, 0, 1, 0], [], []>} : vector<8x16xf32>, vector<8x16xf32>, vector<8x8xf32> -> vector<8x8xf32>
    "tpu.trace_stop"() : () -> ()
    %89 = arith.mulf %88, %15 : vector<8x8xf32>
    %cst_67 = arith.constant dense<0xFF800000> : vector<8xf32>
    %90 = vector.multi_reduction <maximumf>, %89, %cst_67 [1] : vector<8x8xf32> to vector<8xf32>
    %91 = vector.shape_cast %90 : vector<8xf32> to vector<8x1xf32>
    %92 = vector.broadcast %91 : vector<8x1xf32> to vector<8x8xf32>
    %93 = arith.subf %89, %92 : vector<8x8xf32>
    %94 = math.exp %93 : vector<8x8xf32>
    %cst_68 = arith.constant dense<0.000000e+00> : vector<8xf32>
    %95 = vector.multi_reduction <add>, %94, %cst_68 [1] : vector<8x8xf32> to vector<8xf32>
    %96 = vector.shape_cast %95 : vector<8xf32> to vector<8x1xf32>
    %97 = arith.mulf %94, %15 : vector<8x8xf32>
    %cst_69 = arith.constant dense<0.000000e+00> : vector<8xf32>
    %98 = vector.multi_reduction <add>, %97, %cst_69 [1] : vector<8x8xf32> to vector<8xf32>
    %99 = vector.shape_cast %98 : vector<8xf32> to vector<8x1xf32>
    %cst_70 = arith.constant 9.99999982E-14 : f32
    %100 = vector.broadcast %cst_70 : f32 to vector<8x1xf32>
    %101 = arith.mulf %100, %96 : vector<8x1xf32>
    %102 = arith.addf %99, %101 : vector<8x1xf32>
    %103 = tpu.reciprocal %102 {approx = true} : vector<8x1xf32> -> vector<8x1xf32>
    %104 = vector.broadcast %103 : vector<8x1xf32> to vector<8x8xf32>
    %105 = arith.mulf %97, %104 : vector<8x8xf32>
    %cst_71 = arith.constant dense<0.000000e+00> : vector<8x16xf32>
    %106 = tpu.matmul %105, %87, %cst_71 {dimension_numbers = #tpu.dot_dimension_numbers<[1], [0], [0], [1], [0, 0, 1, 1], [], []>} : vector<8x8xf32>, vector<8x16xf32>, vector<8x16xf32> -> vector<8x16xf32>
    %107 = vector.extract_strided_slice %70 {offsets = [0, 16], sizes = [8, 16], strides = [1, 1]} : vector<8x32xf32> to vector<8x16xf32>
    %108 = vector.extract_strided_slice %77 {offsets = [0, 16], sizes = [8, 16], strides = [1, 1]} : vector<8x32xf32> to vector<8x16xf32>
    %109 = vector.extract_strided_slice %84 {offsets = [0, 16], sizes = [8, 16], strides = [1, 1]} : vector<8x32xf32> to vector<8x16xf32>
    "tpu.trace_start"() <{level = 10 : i32, message = "qd,kd->qk"}> : () -> ()
    %cst_72 = arith.constant dense<0.000000e+00> : vector<8x8xf32>
    %110 = tpu.matmul %107, %108, %cst_72 {dimension_numbers = #tpu.dot_dimension_numbers<[1], [1], [0], [0], [0, 0, 1, 0], [], []>} : vector<8x16xf32>, vector<8x16xf32>, vector<8x8xf32> -> vector<8x8xf32>
    "tpu.trace_stop"() : () -> ()
    %111 = arith.mulf %110, %15 : vector<8x8xf32>
    %cst_73 = arith.constant dense<0xFF800000> : vector<8xf32>
    %112 = vector.multi_reduction <maximumf>, %111, %cst_73 [1] : vector<8x8xf32> to vector<8xf32>
    %113 = vector.shape_cast %112 : vector<8xf32> to vector<8x1xf32>
    %114 = vector.broadcast %113 : vector<8x1xf32> to vector<8x8xf32>
    %115 = arith.subf %111, %114 : vector<8x8xf32>
    %116 = math.exp %115 : vector<8x8xf32>
    %cst_74 = arith.constant dense<0.000000e+00> : vector<8xf32>
    %117 = vector.multi_reduction <add>, %116, %cst_74 [1] : vector<8x8xf32> to vector<8xf32>
    %118 = vector.shape_cast %117 : vector<8xf32> to vector<8x1xf32>
    %119 = arith.mulf %116, %15 : vector<8x8xf32>
    %cst_75 = arith.constant dense<0.000000e+00> : vector<8xf32>
    %120 = vector.multi_reduction <add>, %119, %cst_75 [1] : vector<8x8xf32> to vector<8xf32>
    %121 = vector.shape_cast %120 : vector<8xf32> to vector<8x1xf32>
    %cst_76 = arith.constant 9.99999982E-14 : f32
    %122 = vector.broadcast %cst_76 : f32 to vector<8x1xf32>
    %123 = arith.mulf %122, %118 : vector<8x1xf32>
    %124 = arith.addf %121, %123 : vector<8x1xf32>
    %125 = tpu.reciprocal %124 {approx = true} : vector<8x1xf32> -> vector<8x1xf32>
    %126 = vector.broadcast %125 : vector<8x1xf32> to vector<8x8xf32>
    %127 = arith.mulf %119, %126 : vector<8x8xf32>
    %cst_77 = arith.constant dense<0.000000e+00> : vector<8x16xf32>
    %128 = tpu.matmul %127, %109, %cst_77 {dimension_numbers = #tpu.dot_dimension_numbers<[1], [0], [0], [1], [0, 0, 1, 1], [], []>} : vector<8x8xf32>, vector<8x16xf32>, vector<8x16xf32> -> vector<8x16xf32>
    %129 = tpu.concatenate %106, %128 in 1 : vector<8x16xf32>, vector<8x16xf32> -> vector<8x32xf32>
    %c0_78 = arith.constant 0 : index
    %c0_79 = arith.constant 0 : index
    %c0_80 = arith.constant 0 : index
    %130 = vector.load %arg23[%c0_78, %c0_79, %c0_80] : memref<2x32x32xf32, #tpu.memory_space<vmem>>, vector<1x32x32xf32>
    %131 = vector.shape_cast %130 : vector<1x32x32xf32> to vector<32x32xf32>
    %cst_81 = arith.constant dense<0.000000e+00> : vector<8x32xf32>
    %132 = tpu.matmul %129, %131, %cst_81 {dimension_numbers = #tpu.dot_dimension_numbers<[1], [0], [0], [1], [0, 0, 1, 1], [], []>} : vector<8x32xf32>, vector<32x32xf32>, vector<8x32xf32> -> vector<8x32xf32>
    %c0_82 = arith.constant 0 : index
    %c0_83 = arith.constant 0 : index
    %c0_84 = arith.constant 0 : index
    %133 = vector.load %arg24[%c0_82, %c0_83, %c0_84] : memref<2x1x32xf32, #tpu.memory_space<vmem>>, vector<1x1x32xf32>
    %134 = vector.shape_cast %133 : vector<1x1x32xf32> to vector<1x32xf32>
    %135 = vector.broadcast %134 : vector<1x32xf32> to vector<8x32xf32>
    %136 = arith.addf %132, %135 : vector<8x32xf32>
    %137 = arith.addf %136, %63 : vector<8x32xf32>
    %c0_85 = arith.constant 0 : index
    %c0_86 = arith.constant 0 : index
    %c0_87 = arith.constant 0 : index
    %138 = vector.load %arg25[%c0_85, %c0_86, %c0_87] : memref<2x1x32xf32, #tpu.memory_space<vmem>>, vector<1x1x32xf32>
    %139 = vector.shape_cast %138 : vector<1x1x32xf32> to vector<1x32xf32>
    %c0_88 = arith.constant 0 : index
    %c0_89 = arith.constant 0 : index
    %c0_90 = arith.constant 0 : index
    %140 = vector.load %arg26[%c0_88, %c0_89, %c0_90] : memref<2x1x32xf32, #tpu.memory_space<vmem>>, vector<1x1x32xf32>
    %141 = vector.shape_cast %140 : vector<1x1x32xf32> to vector<1x32xf32>
    %cst_91 = arith.constant dense<0.000000e+00> : vector<8xf32>
    %142 = vector.multi_reduction <add>, %137, %cst_91 [1] : vector<8x32xf32> to vector<8xf32>
    %143 = vector.shape_cast %142 : vector<8xf32> to vector<8x1xf32>
    %cst_92 = arith.constant 3.200000e+01 : f32
    %144 = vector.broadcast %cst_92 : f32 to vector<8x1xf32>
    %145 = arith.divf %143, %144 : vector<8x1xf32>
    %146 = vector.broadcast %145 : vector<8x1xf32> to vector<8x32xf32>
    %147 = arith.subf %137, %146 : vector<8x32xf32>
    %148 = arith.mulf %147, %147 : vector<8x32xf32>
    %cst_93 = arith.constant dense<0.000000e+00> : vector<8xf32>
    %149 = vector.multi_reduction <add>, %148, %cst_93 [1] : vector<8x32xf32> to vector<8xf32>
    %150 = vector.shape_cast %149 : vector<8xf32> to vector<8x1xf32>
    %cst_94 = arith.constant 0.0322580636 : f32
    %151 = vector.broadcast %cst_94 : f32 to vector<8x1xf32>
    %152 = arith.mulf %150, %151 : vector<8x1xf32>
    %153 = math.sqrt %152 : vector<8x1xf32>
    %cst_95 = arith.constant 9.99999997E-7 : f32
    %154 = vector.broadcast %cst_95 : f32 to vector<8x1xf32>
    %155 = arith.addf %153, %154 : vector<8x1xf32>
    %156 = tpu.reciprocal %155 {approx = true} : vector<8x1xf32> -> vector<8x1xf32>
    %157 = vector.broadcast %145 : vector<8x1xf32> to vector<8x32xf32>
    %158 = arith.subf %137, %157 : vector<8x32xf32>
    %159 = vector.broadcast %139 : vector<1x32xf32> to vector<8x32xf32>
    %160 = arith.mulf %159, %158 : vector<8x32xf32>
    %161 = vector.broadcast %156 : vector<8x1xf32> to vector<8x32xf32>
    %162 = arith.mulf %160, %161 : vector<8x32xf32>
    %163 = vector.broadcast %141 : vector<1x32xf32> to vector<8x32xf32>
    %164 = arith.addf %162, %163 : vector<8x32xf32>
    %c1_96 = arith.constant 1 : index
    %c0_97 = arith.constant 0 : index
    %c0_98 = arith.constant 0 : index
    %165 = vector.load %arg11[%c1_96, %c0_97, %c0_98] : memref<2x32x64xf32, #tpu.memory_space<vmem>>, vector<1x32x64xf32>
    %166 = vector.shape_cast %165 : vector<1x32x64xf32> to vector<32x64xf32>
    %cst_99 = arith.constant dense<0.000000e+00> : vector<8x64xf32>
    %167 = tpu.matmul %164, %166, %cst_99 {dimension_numbers = #tpu.dot_dimension_numbers<[1], [0], [0], [1], [0, 0, 1, 1], [], []>} : vector<8x32xf32>, vector<32x64xf32>, vector<8x64xf32> -> vector<8x64xf32>
    %c1_100 = arith.constant 1 : index
    %c0_101 = arith.constant 0 : index
    %c0_102 = arith.constant 0 : index
    %168 = vector.load %arg12[%c1_100, %c0_101, %c0_102] : memref<2x1x64xf32, #tpu.memory_space<vmem>>, vector<1x1x64xf32>
    %169 = vector.shape_cast %168 : vector<1x1x64xf32> to vector<1x64xf32>
    %170 = vector.broadcast %169 : vector<1x64xf32> to vector<8x64xf32>
    %171 = arith.addf %167, %170 : vector<8x64xf32>
    %cst_103 = arith.constant 0.000000e+00 : f32
    %172 = vector.broadcast %cst_103 : f32 to vector<8x64xf32>
    %173 = arith.maximumf %171, %172 : vector<8x64xf32>
    %c1_104 = arith.constant 1 : index
    %c0_105 = arith.constant 0 : index
    %c0_106 = arith.constant 0 : index
    %174 = vector.load %arg13[%c1_104, %c0_105, %c0_106] : memref<2x64x32xf32, #tpu.memory_space<vmem>>, vector<1x64x32xf32>
    %175 = vector.shape_cast %174 : vector<1x64x32xf32> to vector<64x32xf32>
    %cst_107 = arith.constant dense<0.000000e+00> : vector<8x32xf32>
    %176 = tpu.matmul %173, %175, %cst_107 {dimension_numbers = #tpu.dot_dimension_numbers<[1], [0], [0], [1], [0, 0, 1, 1], [], []>} : vector<8x64xf32>, vector<64x32xf32>, vector<8x32xf32> -> vector<8x32xf32>
    %c1_108 = arith.constant 1 : index
    %c0_109 = arith.constant 0 : index
    %c0_110 = arith.constant 0 : index
    %177 = vector.load %arg14[%c1_108, %c0_109, %c0_110] : memref<2x1x32xf32, #tpu.memory_space<vmem>>, vector<1x1x32xf32>
    %178 = vector.shape_cast %177 : vector<1x1x32xf32> to vector<1x32xf32>
    %179 = vector.broadcast %178 : vector<1x32xf32> to vector<8x32xf32>
    %180 = arith.addf %176, %179 : vector<8x32xf32>
    %181 = arith.addf %180, %164 : vector<8x32xf32>
    %c1_111 = arith.constant 1 : index
    %c0_112 = arith.constant 0 : index
    %c0_113 = arith.constant 0 : index
    %182 = vector.load %arg15[%c1_111, %c0_112, %c0_113] : memref<2x1x32xf32, #tpu.memory_space<vmem>>, vector<1x1x32xf32>
    %183 = vector.shape_cast %182 : vector<1x1x32xf32> to vector<1x32xf32>
    %c1_114 = arith.constant 1 : index
    %c0_115 = arith.constant 0 : index
    %c0_116 = arith.constant 0 : index
    %184 = vector.load %arg16[%c1_114, %c0_115, %c0_116] : memref<2x1x32xf32, #tpu.memory_space<vmem>>, vector<1x1x32xf32>
    %185 = vector.shape_cast %184 : vector<1x1x32xf32> to vector<1x32xf32>
    %cst_117 = arith.constant dense<0.000000e+00> : vector<8xf32>
    %186 = vector.multi_reduction <add>, %181, %cst_117 [1] : vector<8x32xf32> to vector<8xf32>
    %187 = vector.shape_cast %186 : vector<8xf32> to vector<8x1xf32>
    %cst_118 = arith.constant 3.200000e+01 : f32
    %188 = vector.broadcast %cst_118 : f32 to vector<8x1xf32>
    %189 = arith.divf %187, %188 : vector<8x1xf32>
    %190 = vector.broadcast %189 : vector<8x1xf32> to vector<8x32xf32>
    %191 = arith.subf %181, %190 : vector<8x32xf32>
    %192 = arith.mulf %191, %191 : vector<8x32xf32>
    %cst_119 = arith.constant dense<0.000000e+00> : vector<8xf32>
    %193 = vector.multi_reduction <add>, %192, %cst_119 [1] : vector<8x32xf32> to vector<8xf32>
    %194 = vector.shape_cast %193 : vector<8xf32> to vector<8x1xf32>
    %cst_120 = arith.constant 0.0322580636 : f32
    %195 = vector.broadcast %cst_120 : f32 to vector<8x1xf32>
    %196 = arith.mulf %194, %195 : vector<8x1xf32>
    %197 = math.sqrt %196 : vector<8x1xf32>
    %cst_121 = arith.constant 9.99999997E-7 : f32
    %198 = vector.broadcast %cst_121 : f32 to vector<8x1xf32>
    %199 = arith.addf %197, %198 : vector<8x1xf32>
    %200 = tpu.reciprocal %199 {approx = true} : vector<8x1xf32> -> vector<8x1xf32>
    %201 = vector.broadcast %189 : vector<8x1xf32> to vector<8x32xf32>
    %202 = arith.subf %181, %201 : vector<8x32xf32>
    %203 = vector.broadcast %183 : vector<1x32xf32> to vector<8x32xf32>
    %204 = arith.mulf %203, %202 : vector<8x32xf32>
    %205 = vector.broadcast %200 : vector<8x1xf32> to vector<8x32xf32>
    %206 = arith.mulf %204, %205 : vector<8x32xf32>
    %207 = vector.broadcast %185 : vector<1x32xf32> to vector<8x32xf32>
    %208 = arith.addf %206, %207 : vector<8x32xf32>
    %c1_122 = arith.constant 1 : index
    %c0_123 = arith.constant 0 : index
    %c0_124 = arith.constant 0 : index
    %209 = vector.load %arg17[%c1_122, %c0_123, %c0_124] : memref<2x32x32xf32, #tpu.memory_space<vmem>>, vector<1x32x32xf32>
    %210 = vector.shape_cast %209 : vector<1x32x32xf32> to vector<32x32xf32>
    %cst_125 = arith.constant dense<0.000000e+00> : vector<8x32xf32>
    %211 = tpu.matmul %208, %210, %cst_125 {dimension_numbers = #tpu.dot_dimension_numbers<[1], [0], [0], [1], [0, 0, 1, 1], [], []>} : vector<8x32xf32>, vector<32x32xf32>, vector<8x32xf32> -> vector<8x32xf32>
    %c1_126 = arith.constant 1 : index
    %c0_127 = arith.constant 0 : index
    %c0_128 = arith.constant 0 : index
    %212 = vector.load %arg18[%c1_126, %c0_127, %c0_128] : memref<2x1x32xf32, #tpu.memory_space<vmem>>, vector<1x1x32xf32>
    %213 = vector.shape_cast %212 : vector<1x1x32xf32> to vector<1x32xf32>
    %214 = vector.broadcast %213 : vector<1x32xf32> to vector<8x32xf32>
    %215 = arith.addf %211, %214 : vector<8x32xf32>
    %c1_129 = arith.constant 1 : index
    %c0_130 = arith.constant 0 : index
    %c0_131 = arith.constant 0 : index
    %216 = vector.load %arg19[%c1_129, %c0_130, %c0_131] : memref<2x32x32xf32, #tpu.memory_space<vmem>>, vector<1x32x32xf32>
    %217 = vector.shape_cast %216 : vector<1x32x32xf32> to vector<32x32xf32>
    %cst_132 = arith.constant dense<0.000000e+00> : vector<8x32xf32>
    %218 = tpu.matmul %208, %217, %cst_132 {dimension_numbers = #tpu.dot_dimension_numbers<[1], [0], [0], [1], [0, 0, 1, 1], [], []>} : vector<8x32xf32>, vector<32x32xf32>, vector<8x32xf32> -> vector<8x32xf32>
    %c1_133 = arith.constant 1 : index
    %c0_134 = arith.constant 0 : index
    %c0_135 = arith.constant 0 : index
    %219 = vector.load %arg20[%c1_133, %c0_134, %c0_135] : memref<2x1x32xf32, #tpu.memory_space<vmem>>, vector<1x1x32xf32>
    %220 = vector.shape_cast %219 : vector<1x1x32xf32> to vector<1x32xf32>
    %221 = vector.broadcast %220 : vector<1x32xf32> to vector<8x32xf32>
    %222 = arith.addf %218, %221 : vector<8x32xf32>
    %c1_136 = arith.constant 1 : index
    %c0_137 = arith.constant 0 : index
    %c0_138 = arith.constant 0 : index
    %223 = vector.load %arg21[%c1_136, %c0_137, %c0_138] : memref<2x32x32xf32, #tpu.memory_space<vmem>>, vector<1x32x32xf32>
    %224 = vector.shape_cast %223 : vector<1x32x32xf32> to vector<32x32xf32>
    %cst_139 = arith.constant dense<0.000000e+00> : vector<8x32xf32>
    %225 = tpu.matmul %208, %224, %cst_139 {dimension_numbers = #tpu.dot_dimension_numbers<[1], [0], [0], [1], [0, 0, 1, 1], [], []>} : vector<8x32xf32>, vector<32x32xf32>, vector<8x32xf32> -> vector<8x32xf32>
    %c1_140 = arith.constant 1 : index
    %c0_141 = arith.constant 0 : index
    %c0_142 = arith.constant 0 : index
    %226 = vector.load %arg22[%c1_140, %c0_141, %c0_142] : memref<2x1x32xf32, #tpu.memory_space<vmem>>, vector<1x1x32xf32>
    %227 = vector.shape_cast %226 : vector<1x1x32xf32> to vector<1x32xf32>
    %228 = vector.broadcast %227 : vector<1x32xf32> to vector<8x32xf32>
    %229 = arith.addf %225, %228 : vector<8x32xf32>
    %230 = vector.extract_strided_slice %215 {offsets = [0, 0], sizes = [8, 16], strides = [1, 1]} : vector<8x32xf32> to vector<8x16xf32>
    %231 = vector.extract_strided_slice %222 {offsets = [0, 0], sizes = [8, 16], strides = [1, 1]} : vector<8x32xf32> to vector<8x16xf32>
    %232 = vector.extract_strided_slice %229 {offsets = [0, 0], sizes = [8, 16], strides = [1, 1]} : vector<8x32xf32> to vector<8x16xf32>
    "tpu.trace_start"() <{level = 10 : i32, message = "qd,kd->qk"}> : () -> ()
    %cst_143 = arith.constant dense<0.000000e+00> : vector<8x8xf32>
    %233 = tpu.matmul %230, %231, %cst_143 {dimension_numbers = #tpu.dot_dimension_numbers<[1], [1], [0], [0], [0, 0, 1, 0], [], []>} : vector<8x16xf32>, vector<8x16xf32>, vector<8x8xf32> -> vector<8x8xf32>
    "tpu.trace_stop"() : () -> ()
    %234 = arith.mulf %233, %15 : vector<8x8xf32>
    %cst_144 = arith.constant dense<0xFF800000> : vector<8xf32>
    %235 = vector.multi_reduction <maximumf>, %234, %cst_144 [1] : vector<8x8xf32> to vector<8xf32>
    %236 = vector.shape_cast %235 : vector<8xf32> to vector<8x1xf32>
    %237 = vector.broadcast %236 : vector<8x1xf32> to vector<8x8xf32>
    %238 = arith.subf %234, %237 : vector<8x8xf32>
    %239 = math.exp %238 : vector<8x8xf32>
    %cst_145 = arith.constant dense<0.000000e+00> : vector<8xf32>
    %240 = vector.multi_reduction <add>, %239, %cst_145 [1] : vector<8x8xf32> to vector<8xf32>
    %241 = vector.shape_cast %240 : vector<8xf32> to vector<8x1xf32>
    %242 = arith.mulf %239, %15 : vector<8x8xf32>
    %cst_146 = arith.constant dense<0.000000e+00> : vector<8xf32>
    %243 = vector.multi_reduction <add>, %242, %cst_146 [1] : vector<8x8xf32> to vector<8xf32>
    %244 = vector.shape_cast %243 : vector<8xf32> to vector<8x1xf32>
    %cst_147 = arith.constant 9.99999982E-14 : f32
    %245 = vector.broadcast %cst_147 : f32 to vector<8x1xf32>
    %246 = arith.mulf %245, %241 : vector<8x1xf32>
    %247 = arith.addf %244, %246 : vector<8x1xf32>
    %248 = tpu.reciprocal %247 {approx = true} : vector<8x1xf32> -> vector<8x1xf32>
    %249 = vector.broadcast %248 : vector<8x1xf32> to vector<8x8xf32>
    %250 = arith.mulf %242, %249 : vector<8x8xf32>
    %cst_148 = arith.constant dense<0.000000e+00> : vector<8x16xf32>
    %251 = tpu.matmul %250, %232, %cst_148 {dimension_numbers = #tpu.dot_dimension_numbers<[1], [0], [0], [1], [0, 0, 1, 1], [], []>} : vector<8x8xf32>, vector<8x16xf32>, vector<8x16xf32> -> vector<8x16xf32>
    %252 = vector.extract_strided_slice %215 {offsets = [0, 16], sizes = [8, 16], strides = [1, 1]} : vector<8x32xf32> to vector<8x16xf32>
    %253 = vector.extract_strided_slice %222 {offsets = [0, 16], sizes = [8, 16], strides = [1, 1]} : vector<8x32xf32> to vector<8x16xf32>
    %254 = vector.extract_strided_slice %229 {offsets = [0, 16], sizes = [8, 16], strides = [1, 1]} : vector<8x32xf32> to vector<8x16xf32>
    "tpu.trace_start"() <{level = 10 : i32, message = "qd,kd->qk"}> : () -> ()
    %cst_149 = arith.constant dense<0.000000e+00> : vector<8x8xf32>
    %255 = tpu.matmul %252, %253, %cst_149 {dimension_numbers = #tpu.dot_dimension_numbers<[1], [1], [0], [0], [0, 0, 1, 0], [], []>} : vector<8x16xf32>, vector<8x16xf32>, vector<8x8xf32> -> vector<8x8xf32>
    "tpu.trace_stop"() : () -> ()
    %256 = arith.mulf %255, %15 : vector<8x8xf32>
    %cst_150 = arith.constant dense<0xFF800000> : vector<8xf32>
    %257 = vector.multi_reduction <maximumf>, %256, %cst_150 [1] : vector<8x8xf32> to vector<8xf32>
    %258 = vector.shape_cast %257 : vector<8xf32> to vector<8x1xf32>
    %259 = vector.broadcast %258 : vector<8x1xf32> to vector<8x8xf32>
    %260 = arith.subf %256, %259 : vector<8x8xf32>
    %261 = math.exp %260 : vector<8x8xf32>
    %cst_151 = arith.constant dense<0.000000e+00> : vector<8xf32>
    %262 = vector.multi_reduction <add>, %261, %cst_151 [1] : vector<8x8xf32> to vector<8xf32>
    %263 = vector.shape_cast %262 : vector<8xf32> to vector<8x1xf32>
    %264 = arith.mulf %261, %15 : vector<8x8xf32>
    %cst_152 = arith.constant dense<0.000000e+00> : vector<8xf32>
    %265 = vector.multi_reduction <add>, %264, %cst_152 [1] : vector<8x8xf32> to vector<8xf32>
    %266 = vector.shape_cast %265 : vector<8xf32> to vector<8x1xf32>
    %cst_153 = arith.constant 9.99999982E-14 : f32
    %267 = vector.broadcast %cst_153 : f32 to vector<8x1xf32>
    %268 = arith.mulf %267, %263 : vector<8x1xf32>
    %269 = arith.addf %266, %268 : vector<8x1xf32>
    %270 = tpu.reciprocal %269 {approx = true} : vector<8x1xf32> -> vector<8x1xf32>
    %271 = vector.broadcast %270 : vector<8x1xf32> to vector<8x8xf32>
    %272 = arith.mulf %264, %271 : vector<8x8xf32>
    %cst_154 = arith.constant dense<0.000000e+00> : vector<8x16xf32>
    %273 = tpu.matmul %272, %254, %cst_154 {dimension_numbers = #tpu.dot_dimension_numbers<[1], [0], [0], [1], [0, 0, 1, 1], [], []>} : vector<8x8xf32>, vector<8x16xf32>, vector<8x16xf32> -> vector<8x16xf32>
    %274 = tpu.concatenate %251, %273 in 1 : vector<8x16xf32>, vector<8x16xf32> -> vector<8x32xf32>
    %c1_155 = arith.constant 1 : index
    %c0_156 = arith.constant 0 : index
    %c0_157 = arith.constant 0 : index
    %275 = vector.load %arg23[%c1_155, %c0_156, %c0_157] : memref<2x32x32xf32, #tpu.memory_space<vmem>>, vector<1x32x32xf32>
    %276 = vector.shape_cast %275 : vector<1x32x32xf32> to vector<32x32xf32>
    %cst_158 = arith.constant dense<0.000000e+00> : vector<8x32xf32>
    %277 = tpu.matmul %274, %276, %cst_158 {dimension_numbers = #tpu.dot_dimension_numbers<[1], [0], [0], [1], [0, 0, 1, 1], [], []>} : vector<8x32xf32>, vector<32x32xf32>, vector<8x32xf32> -> vector<8x32xf32>
    %c1_159 = arith.constant 1 : index
    %c0_160 = arith.constant 0 : index
    %c0_161 = arith.constant 0 : index
    %278 = vector.load %arg24[%c1_159, %c0_160, %c0_161] : memref<2x1x32xf32, #tpu.memory_space<vmem>>, vector<1x1x32xf32>
    %279 = vector.shape_cast %278 : vector<1x1x32xf32> to vector<1x32xf32>
    %280 = vector.broadcast %279 : vector<1x32xf32> to vector<8x32xf32>
    %281 = arith.addf %277, %280 : vector<8x32xf32>
    %282 = arith.addf %281, %208 : vector<8x32xf32>
    %c1_162 = arith.constant 1 : index
    %c0_163 = arith.constant 0 : index
    %c0_164 = arith.constant 0 : index
    %283 = vector.load %arg25[%c1_162, %c0_163, %c0_164] : memref<2x1x32xf32, #tpu.memory_space<vmem>>, vector<1x1x32xf32>
    %284 = vector.shape_cast %283 : vector<1x1x32xf32> to vector<1x32xf32>
    %c1_165 = arith.constant 1 : index
    %c0_166 = arith.constant 0 : index
    %c0_167 = arith.constant 0 : index
    %285 = vector.load %arg26[%c1_165, %c0_166, %c0_167] : memref<2x1x32xf32, #tpu.memory_space<vmem>>, vector<1x1x32xf32>
    %286 = vector.shape_cast %285 : vector<1x1x32xf32> to vector<1x32xf32>
    %cst_168 = arith.constant dense<0.000000e+00> : vector<8xf32>
    %287 = vector.multi_reduction <add>, %282, %cst_168 [1] : vector<8x32xf32> to vector<8xf32>
    %288 = vector.shape_cast %287 : vector<8xf32> to vector<8x1xf32>
    %cst_169 = arith.constant 3.200000e+01 : f32
    %289 = vector.broadcast %cst_169 : f32 to vector<8x1xf32>
    %290 = arith.divf %288, %289 : vector<8x1xf32>
    %291 = vector.broadcast %290 : vector<8x1xf32> to vector<8x32xf32>
    %292 = arith.subf %282, %291 : vector<8x32xf32>
    %293 = arith.mulf %292, %292 : vector<8x32xf32>
    %cst_170 = arith.constant dense<0.000000e+00> : vector<8xf32>
    %294 = vector.multi_reduction <add>, %293, %cst_170 [1] : vector<8x32xf32> to vector<8xf32>
    %295 = vector.shape_cast %294 : vector<8xf32> to vector<8x1xf32>
    %cst_171 = arith.constant 0.0322580636 : f32
    %296 = vector.broadcast %cst_171 : f32 to vector<8x1xf32>
    %297 = arith.mulf %295, %296 : vector<8x1xf32>
    %298 = math.sqrt %297 : vector<8x1xf32>
    %cst_172 = arith.constant 9.99999997E-7 : f32
    %299 = vector.broadcast %cst_172 : f32 to vector<8x1xf32>
    %300 = arith.addf %298, %299 : vector<8x1xf32>
    %301 = tpu.reciprocal %300 {approx = true} : vector<8x1xf32> -> vector<8x1xf32>
    %302 = vector.broadcast %290 : vector<8x1xf32> to vector<8x32xf32>
    %303 = arith.subf %282, %302 : vector<8x32xf32>
    %304 = vector.broadcast %284 : vector<1x32xf32> to vector<8x32xf32>
    %305 = arith.mulf %304, %303 : vector<8x32xf32>
    %306 = vector.broadcast %301 : vector<8x1xf32> to vector<8x32xf32>
    %307 = arith.mulf %305, %306 : vector<8x32xf32>
    %308 = vector.broadcast %286 : vector<1x32xf32> to vector<8x32xf32>
    %309 = arith.addf %307, %308 : vector<8x32xf32>
    %c0_173 = arith.constant 0 : index
    %c0_174 = arith.constant 0 : index
    %310 = vector.load %arg4[%c0_173, %c0_174] : memref<16x32xf32, #tpu.memory_space<vmem>>, vector<16x32xf32>
    %311 = arith.addf %5, %310 : vector<16x32xf32>
    %c0_175 = arith.constant 0 : index
    %c0_176 = arith.constant 0 : index
    %c0_177 = arith.constant 0 : index
    %312 = vector.load %arg11[%c0_175, %c0_176, %c0_177] : memref<2x32x64xf32, #tpu.memory_space<vmem>>, vector<1x32x64xf32>
    %313 = vector.shape_cast %312 : vector<1x32x64xf32> to vector<32x64xf32>
    %cst_178 = arith.constant dense<0.000000e+00> : vector<16x64xf32>
    %314 = tpu.matmul %311, %313, %cst_178 {dimension_numbers = #tpu.dot_dimension_numbers<[1], [0], [0], [1], [0, 0, 1, 1], [], []>} : vector<16x32xf32>, vector<32x64xf32>, vector<16x64xf32> -> vector<16x64xf32>
    %c0_179 = arith.constant 0 : index
    %c0_180 = arith.constant 0 : index
    %c0_181 = arith.constant 0 : index
    %315 = vector.load %arg12[%c0_179, %c0_180, %c0_181] : memref<2x1x64xf32, #tpu.memory_space<vmem>>, vector<1x1x64xf32>
    %316 = vector.shape_cast %315 : vector<1x1x64xf32> to vector<1x64xf32>
    %317 = vector.broadcast %316 : vector<1x64xf32> to vector<16x64xf32>
    %318 = arith.addf %314, %317 : vector<16x64xf32>
    %cst_182 = arith.constant 0.000000e+00 : f32
    %319 = vector.broadcast %cst_182 : f32 to vector<16x64xf32>
    %320 = arith.maximumf %318, %319 : vector<16x64xf32>
    %c0_183 = arith.constant 0 : index
    %c0_184 = arith.constant 0 : index
    %c0_185 = arith.constant 0 : index
    %321 = vector.load %arg13[%c0_183, %c0_184, %c0_185] : memref<2x64x32xf32, #tpu.memory_space<vmem>>, vector<1x64x32xf32>
    %322 = vector.shape_cast %321 : vector<1x64x32xf32> to vector<64x32xf32>
    %cst_186 = arith.constant dense<0.000000e+00> : vector<16x32xf32>
    %323 = tpu.matmul %320, %322, %cst_186 {dimension_numbers = #tpu.dot_dimension_numbers<[1], [0], [0], [1], [0, 0, 1, 1], [], []>} : vector<16x64xf32>, vector<64x32xf32>, vector<16x32xf32> -> vector<16x32xf32>
    %c0_187 = arith.constant 0 : index
    %c0_188 = arith.constant 0 : index
    %c0_189 = arith.constant 0 : index
    %324 = vector.load %arg14[%c0_187, %c0_188, %c0_189] : memref<2x1x32xf32, #tpu.memory_space<vmem>>, vector<1x1x32xf32>
    %325 = vector.shape_cast %324 : vector<1x1x32xf32> to vector<1x32xf32>
    %326 = vector.broadcast %325 : vector<1x32xf32> to vector<16x32xf32>
    %327 = arith.addf %323, %326 : vector<16x32xf32>
    %328 = arith.addf %327, %311 : vector<16x32xf32>
    %c0_190 = arith.constant 0 : index
    %c0_191 = arith.constant 0 : index
    %c0_192 = arith.constant 0 : index
    %329 = vector.load %arg15[%c0_190, %c0_191, %c0_192] : memref<2x1x32xf32, #tpu.memory_space<vmem>>, vector<1x1x32xf32>
    %330 = vector.shape_cast %329 : vector<1x1x32xf32> to vector<1x32xf32>
    %c0_193 = arith.constant 0 : index
    %c0_194 = arith.constant 0 : index
    %c0_195 = arith.constant 0 : index
    %331 = vector.load %arg16[%c0_193, %c0_194, %c0_195] : memref<2x1x32xf32, #tpu.memory_space<vmem>>, vector<1x1x32xf32>
    %332 = vector.shape_cast %331 : vector<1x1x32xf32> to vector<1x32xf32>
    %cst_196 = arith.constant dense<0.000000e+00> : vector<16xf32>
    %333 = vector.multi_reduction <add>, %328, %cst_196 [1] : vector<16x32xf32> to vector<16xf32>
    %334 = vector.shape_cast %333 : vector<16xf32> to vector<16x1xf32>
    %cst_197 = arith.constant 3.200000e+01 : f32
    %335 = vector.broadcast %cst_197 : f32 to vector<16x1xf32>
    %336 = arith.divf %334, %335 : vector<16x1xf32>
    %337 = vector.broadcast %336 : vector<16x1xf32> to vector<16x32xf32>
    %338 = arith.subf %328, %337 : vector<16x32xf32>
    %339 = arith.mulf %338, %338 : vector<16x32xf32>
    %cst_198 = arith.constant dense<0.000000e+00> : vector<16xf32>
    %340 = vector.multi_reduction <add>, %339, %cst_198 [1] : vector<16x32xf32> to vector<16xf32>
    %341 = vector.shape_cast %340 : vector<16xf32> to vector<16x1xf32>
    %cst_199 = arith.constant 0.0322580636 : f32
    %342 = vector.broadcast %cst_199 : f32 to vector<16x1xf32>
    %343 = arith.mulf %341, %342 : vector<16x1xf32>
    %344 = math.sqrt %343 : vector<16x1xf32>
    %cst_200 = arith.constant 9.99999997E-7 : f32
    %345 = vector.broadcast %cst_200 : f32 to vector<16x1xf32>
    %346 = arith.addf %344, %345 : vector<16x1xf32>
    %347 = tpu.reciprocal %346 {approx = true} : vector<16x1xf32> -> vector<16x1xf32>
    %348 = vector.broadcast %336 : vector<16x1xf32> to vector<16x32xf32>
    %349 = arith.subf %328, %348 : vector<16x32xf32>
    %350 = vector.broadcast %330 : vector<1x32xf32> to vector<16x32xf32>
    %351 = arith.mulf %350, %349 : vector<16x32xf32>
    %352 = vector.broadcast %347 : vector<16x1xf32> to vector<16x32xf32>
    %353 = arith.mulf %351, %352 : vector<16x32xf32>
    %354 = vector.broadcast %332 : vector<1x32xf32> to vector<16x32xf32>
    %355 = arith.addf %353, %354 : vector<16x32xf32>
    %c0_201 = arith.constant 0 : index
    %c0_202 = arith.constant 0 : index
    %c0_203 = arith.constant 0 : index
    %356 = vector.load %arg17[%c0_201, %c0_202, %c0_203] : memref<2x32x32xf32, #tpu.memory_space<vmem>>, vector<1x32x32xf32>
    %357 = vector.shape_cast %356 : vector<1x32x32xf32> to vector<32x32xf32>
    %cst_204 = arith.constant dense<0.000000e+00> : vector<16x32xf32>
    %358 = tpu.matmul %355, %357, %cst_204 {dimension_numbers = #tpu.dot_dimension_numbers<[1], [0], [0], [1], [0, 0, 1, 1], [], []>} : vector<16x32xf32>, vector<32x32xf32>, vector<16x32xf32> -> vector<16x32xf32>
    %c0_205 = arith.constant 0 : index
    %c0_206 = arith.constant 0 : index
    %c0_207 = arith.constant 0 : index
    %359 = vector.load %arg18[%c0_205, %c0_206, %c0_207] : memref<2x1x32xf32, #tpu.memory_space<vmem>>, vector<1x1x32xf32>
    %360 = vector.shape_cast %359 : vector<1x1x32xf32> to vector<1x32xf32>
    %361 = vector.broadcast %360 : vector<1x32xf32> to vector<16x32xf32>
    %362 = arith.addf %358, %361 : vector<16x32xf32>
    %c0_208 = arith.constant 0 : index
    %c0_209 = arith.constant 0 : index
    %c0_210 = arith.constant 0 : index
    %363 = vector.load %arg19[%c0_208, %c0_209, %c0_210] : memref<2x32x32xf32, #tpu.memory_space<vmem>>, vector<1x32x32xf32>
    %364 = vector.shape_cast %363 : vector<1x32x32xf32> to vector<32x32xf32>
    %cst_211 = arith.constant dense<0.000000e+00> : vector<16x32xf32>
    %365 = tpu.matmul %355, %364, %cst_211 {dimension_numbers = #tpu.dot_dimension_numbers<[1], [0], [0], [1], [0, 0, 1, 1], [], []>} : vector<16x32xf32>, vector<32x32xf32>, vector<16x32xf32> -> vector<16x32xf32>
    %c0_212 = arith.constant 0 : index
    %c0_213 = arith.constant 0 : index
    %c0_214 = arith.constant 0 : index
    %366 = vector.load %arg20[%c0_212, %c0_213, %c0_214] : memref<2x1x32xf32, #tpu.memory_space<vmem>>, vector<1x1x32xf32>
    %367 = vector.shape_cast %366 : vector<1x1x32xf32> to vector<1x32xf32>
    %368 = vector.broadcast %367 : vector<1x32xf32> to vector<16x32xf32>
    %369 = arith.addf %365, %368 : vector<16x32xf32>
    %c0_215 = arith.constant 0 : index
    %c0_216 = arith.constant 0 : index
    %c0_217 = arith.constant 0 : index
    %370 = vector.load %arg21[%c0_215, %c0_216, %c0_217] : memref<2x32x32xf32, #tpu.memory_space<vmem>>, vector<1x32x32xf32>
    %371 = vector.shape_cast %370 : vector<1x32x32xf32> to vector<32x32xf32>
    %cst_218 = arith.constant dense<0.000000e+00> : vector<16x32xf32>
    %372 = tpu.matmul %355, %371, %cst_218 {dimension_numbers = #tpu.dot_dimension_numbers<[1], [0], [0], [1], [0, 0, 1, 1], [], []>} : vector<16x32xf32>, vector<32x32xf32>, vector<16x32xf32> -> vector<16x32xf32>
    %c0_219 = arith.constant 0 : index
    %c0_220 = arith.constant 0 : index
    %c0_221 = arith.constant 0 : index
    %373 = vector.load %arg22[%c0_219, %c0_220, %c0_221] : memref<2x1x32xf32, #tpu.memory_space<vmem>>, vector<1x1x32xf32>
    %374 = vector.shape_cast %373 : vector<1x1x32xf32> to vector<1x32xf32>
    %375 = vector.broadcast %374 : vector<1x32xf32> to vector<16x32xf32>
    %376 = arith.addf %372, %375 : vector<16x32xf32>
    %377 = vector.extract_strided_slice %362 {offsets = [0, 0], sizes = [16, 16], strides = [1, 1]} : vector<16x32xf32> to vector<16x16xf32>
    %378 = vector.extract_strided_slice %369 {offsets = [0, 0], sizes = [16, 16], strides = [1, 1]} : vector<16x32xf32> to vector<16x16xf32>
    %379 = vector.extract_strided_slice %376 {offsets = [0, 0], sizes = [16, 16], strides = [1, 1]} : vector<16x32xf32> to vector<16x16xf32>
    "tpu.trace_start"() <{level = 10 : i32, message = "qd,kd->qk"}> : () -> ()
    %cst_222 = arith.constant dense<0.000000e+00> : vector<16x16xf32>
    %380 = tpu.matmul %377, %378, %cst_222 {dimension_numbers = #tpu.dot_dimension_numbers<[1], [1], [0], [0], [0, 0, 1, 0], [], []>} : vector<16x16xf32>, vector<16x16xf32>, vector<16x16xf32> -> vector<16x16xf32>
    "tpu.trace_stop"() : () -> ()
    %381 = arith.mulf %380, %17 : vector<16x16xf32>
    %cst_223 = arith.constant dense<0xFF800000> : vector<16xf32>
    %382 = vector.multi_reduction <maximumf>, %381, %cst_223 [1] : vector<16x16xf32> to vector<16xf32>
    %383 = vector.shape_cast %382 : vector<16xf32> to vector<16x1xf32>
    %384 = vector.broadcast %383 : vector<16x1xf32> to vector<16x16xf32>
    %385 = arith.subf %381, %384 : vector<16x16xf32>
    %386 = math.exp %385 : vector<16x16xf32>
    %cst_224 = arith.constant dense<0.000000e+00> : vector<16xf32>
    %387 = vector.multi_reduction <add>, %386, %cst_224 [1] : vector<16x16xf32> to vector<16xf32>
    %388 = vector.shape_cast %387 : vector<16xf32> to vector<16x1xf32>
    %389 = arith.mulf %386, %17 : vector<16x16xf32>
    %cst_225 = arith.constant dense<0.000000e+00> : vector<16xf32>
    %390 = vector.multi_reduction <add>, %389, %cst_225 [1] : vector<16x16xf32> to vector<16xf32>
    %391 = vector.shape_cast %390 : vector<16xf32> to vector<16x1xf32>
    %cst_226 = arith.constant 9.99999982E-14 : f32
    %392 = vector.broadcast %cst_226 : f32 to vector<16x1xf32>
    %393 = arith.mulf %392, %388 : vector<16x1xf32>
    %394 = arith.addf %391, %393 : vector<16x1xf32>
    %395 = tpu.reciprocal %394 {approx = true} : vector<16x1xf32> -> vector<16x1xf32>
    %396 = vector.broadcast %395 : vector<16x1xf32> to vector<16x16xf32>
    %397 = arith.mulf %389, %396 : vector<16x16xf32>
    %cst_227 = arith.constant dense<0.000000e+00> : vector<16x16xf32>
    %398 = tpu.matmul %397, %379, %cst_227 {dimension_numbers = #tpu.dot_dimension_numbers<[1], [0], [0], [1], [0, 0, 1, 1], [], []>} : vector<16x16xf32>, vector<16x16xf32>, vector<16x16xf32> -> vector<16x16xf32>
    %399 = vector.extract_strided_slice %362 {offsets = [0, 16], sizes = [16, 16], strides = [1, 1]} : vector<16x32xf32> to vector<16x16xf32>
    %400 = vector.extract_strided_slice %369 {offsets = [0, 16], sizes = [16, 16], strides = [1, 1]} : vector<16x32xf32> to vector<16x16xf32>
    %401 = vector.extract_strided_slice %376 {offsets = [0, 16], sizes = [16, 16], strides = [1, 1]} : vector<16x32xf32> to vector<16x16xf32>
    "tpu.trace_start"() <{level = 10 : i32, message = "qd,kd->qk"}> : () -> ()
    %cst_228 = arith.constant dense<0.000000e+00> : vector<16x16xf32>
    %402 = tpu.matmul %399, %400, %cst_228 {dimension_numbers = #tpu.dot_dimension_numbers<[1], [1], [0], [0], [0, 0, 1, 0], [], []>} : vector<16x16xf32>, vector<16x16xf32>, vector<16x16xf32> -> vector<16x16xf32>
    "tpu.trace_stop"() : () -> ()
    %403 = arith.mulf %402, %17 : vector<16x16xf32>
    %cst_229 = arith.constant dense<0xFF800000> : vector<16xf32>
    %404 = vector.multi_reduction <maximumf>, %403, %cst_229 [1] : vector<16x16xf32> to vector<16xf32>
    %405 = vector.shape_cast %404 : vector<16xf32> to vector<16x1xf32>
    %406 = vector.broadcast %405 : vector<16x1xf32> to vector<16x16xf32>
    %407 = arith.subf %403, %406 : vector<16x16xf32>
    %408 = math.exp %407 : vector<16x16xf32>
    %cst_230 = arith.constant dense<0.000000e+00> : vector<16xf32>
    %409 = vector.multi_reduction <add>, %408, %cst_230 [1] : vector<16x16xf32> to vector<16xf32>
    %410 = vector.shape_cast %409 : vector<16xf32> to vector<16x1xf32>
    %411 = arith.mulf %408, %17 : vector<16x16xf32>
    %cst_231 = arith.constant dense<0.000000e+00> : vector<16xf32>
    %412 = vector.multi_reduction <add>, %411, %cst_231 [1] : vector<16x16xf32> to vector<16xf32>
    %413 = vector.shape_cast %412 : vector<16xf32> to vector<16x1xf32>
    %cst_232 = arith.constant 9.99999982E-14 : f32
    %414 = vector.broadcast %cst_232 : f32 to vector<16x1xf32>
    %415 = arith.mulf %414, %410 : vector<16x1xf32>
    %416 = arith.addf %413, %415 : vector<16x1xf32>
    %417 = tpu.reciprocal %416 {approx = true} : vector<16x1xf32> -> vector<16x1xf32>
    %418 = vector.broadcast %417 : vector<16x1xf32> to vector<16x16xf32>
    %419 = arith.mulf %411, %418 : vector<16x16xf32>
    %cst_233 = arith.constant dense<0.000000e+00> : vector<16x16xf32>
    %420 = tpu.matmul %419, %401, %cst_233 {dimension_numbers = #tpu.dot_dimension_numbers<[1], [0], [0], [1], [0, 0, 1, 1], [], []>} : vector<16x16xf32>, vector<16x16xf32>, vector<16x16xf32> -> vector<16x16xf32>
    %421 = tpu.concatenate %398, %420 in 1 : vector<16x16xf32>, vector<16x16xf32> -> vector<16x32xf32>
    %c0_234 = arith.constant 0 : index
    %c0_235 = arith.constant 0 : index
    %c0_236 = arith.constant 0 : index
    %422 = vector.load %arg23[%c0_234, %c0_235, %c0_236] : memref<2x32x32xf32, #tpu.memory_space<vmem>>, vector<1x32x32xf32>
    %423 = vector.shape_cast %422 : vector<1x32x32xf32> to vector<32x32xf32>
    %cst_237 = arith.constant dense<0.000000e+00> : vector<16x32xf32>
    %424 = tpu.matmul %421, %423, %cst_237 {dimension_numbers = #tpu.dot_dimension_numbers<[1], [0], [0], [1], [0, 0, 1, 1], [], []>} : vector<16x32xf32>, vector<32x32xf32>, vector<16x32xf32> -> vector<16x32xf32>
    %c0_238 = arith.constant 0 : index
    %c0_239 = arith.constant 0 : index
    %c0_240 = arith.constant 0 : index
    %425 = vector.load %arg24[%c0_238, %c0_239, %c0_240] : memref<2x1x32xf32, #tpu.memory_space<vmem>>, vector<1x1x32xf32>
    %426 = vector.shape_cast %425 : vector<1x1x32xf32> to vector<1x32xf32>
    %427 = vector.broadcast %426 : vector<1x32xf32> to vector<16x32xf32>
    %428 = arith.addf %424, %427 : vector<16x32xf32>
    %429 = arith.addf %428, %355 : vector<16x32xf32>
    %c0_241 = arith.constant 0 : index
    %c0_242 = arith.constant 0 : index
    %c0_243 = arith.constant 0 : index
    %430 = vector.load %arg25[%c0_241, %c0_242, %c0_243] : memref<2x1x32xf32, #tpu.memory_space<vmem>>, vector<1x1x32xf32>
    %431 = vector.shape_cast %430 : vector<1x1x32xf32> to vector<1x32xf32>
    %c0_244 = arith.constant 0 : index
    %c0_245 = arith.constant 0 : index
    %c0_246 = arith.constant 0 : index
    %432 = vector.load %arg26[%c0_244, %c0_245, %c0_246] : memref<2x1x32xf32, #tpu.memory_space<vmem>>, vector<1x1x32xf32>
    %433 = vector.shape_cast %432 : vector<1x1x32xf32> to vector<1x32xf32>
    %cst_247 = arith.constant dense<0.000000e+00> : vector<16xf32>
    %434 = vector.multi_reduction <add>, %429, %cst_247 [1] : vector<16x32xf32> to vector<16xf32>
    %435 = vector.shape_cast %434 : vector<16xf32> to vector<16x1xf32>
    %cst_248 = arith.constant 3.200000e+01 : f32
    %436 = vector.broadcast %cst_248 : f32 to vector<16x1xf32>
    %437 = arith.divf %435, %436 : vector<16x1xf32>
    %438 = vector.broadcast %437 : vector<16x1xf32> to vector<16x32xf32>
    %439 = arith.subf %429, %438 : vector<16x32xf32>
    %440 = arith.mulf %439, %439 : vector<16x32xf32>
    %cst_249 = arith.constant dense<0.000000e+00> : vector<16xf32>
    %441 = vector.multi_reduction <add>, %440, %cst_249 [1] : vector<16x32xf32> to vector<16xf32>
    %442 = vector.shape_cast %441 : vector<16xf32> to vector<16x1xf32>
    %cst_250 = arith.constant 0.0322580636 : f32
    %443 = vector.broadcast %cst_250 : f32 to vector<16x1xf32>
    %444 = arith.mulf %442, %443 : vector<16x1xf32>
    %445 = math.sqrt %444 : vector<16x1xf32>
    %cst_251 = arith.constant 9.99999997E-7 : f32
    %446 = vector.broadcast %cst_251 : f32 to vector<16x1xf32>
    %447 = arith.addf %445, %446 : vector<16x1xf32>
    %448 = tpu.reciprocal %447 {approx = true} : vector<16x1xf32> -> vector<16x1xf32>
    %449 = vector.broadcast %437 : vector<16x1xf32> to vector<16x32xf32>
    %450 = arith.subf %429, %449 : vector<16x32xf32>
    %451 = vector.broadcast %431 : vector<1x32xf32> to vector<16x32xf32>
    %452 = arith.mulf %451, %450 : vector<16x32xf32>
    %453 = vector.broadcast %448 : vector<16x1xf32> to vector<16x32xf32>
    %454 = arith.mulf %452, %453 : vector<16x32xf32>
    %455 = vector.broadcast %433 : vector<1x32xf32> to vector<16x32xf32>
    %456 = arith.addf %454, %455 : vector<16x32xf32>
    %c1_252 = arith.constant 1 : index
    %c0_253 = arith.constant 0 : index
    %c0_254 = arith.constant 0 : index
    %457 = vector.load %arg11[%c1_252, %c0_253, %c0_254] : memref<2x32x64xf32, #tpu.memory_space<vmem>>, vector<1x32x64xf32>
    %458 = vector.shape_cast %457 : vector<1x32x64xf32> to vector<32x64xf32>
    %cst_255 = arith.constant dense<0.000000e+00> : vector<16x64xf32>
    %459 = tpu.matmul %456, %458, %cst_255 {dimension_numbers = #tpu.dot_dimension_numbers<[1], [0], [0], [1], [0, 0, 1, 1], [], []>} : vector<16x32xf32>, vector<32x64xf32>, vector<16x64xf32> -> vector<16x64xf32>
    %c1_256 = arith.constant 1 : index
    %c0_257 = arith.constant 0 : index
    %c0_258 = arith.constant 0 : index
    %460 = vector.load %arg12[%c1_256, %c0_257, %c0_258] : memref<2x1x64xf32, #tpu.memory_space<vmem>>, vector<1x1x64xf32>
    %461 = vector.shape_cast %460 : vector<1x1x64xf32> to vector<1x64xf32>
    %462 = vector.broadcast %461 : vector<1x64xf32> to vector<16x64xf32>
    %463 = arith.addf %459, %462 : vector<16x64xf32>
    %cst_259 = arith.constant 0.000000e+00 : f32
    %464 = vector.broadcast %cst_259 : f32 to vector<16x64xf32>
    %465 = arith.maximumf %463, %464 : vector<16x64xf32>
    %c1_260 = arith.constant 1 : index
    %c0_261 = arith.constant 0 : index
    %c0_262 = arith.constant 0 : index
    %466 = vector.load %arg13[%c1_260, %c0_261, %c0_262] : memref<2x64x32xf32, #tpu.memory_space<vmem>>, vector<1x64x32xf32>
    %467 = vector.shape_cast %466 : vector<1x64x32xf32> to vector<64x32xf32>
    %cst_263 = arith.constant dense<0.000000e+00> : vector<16x32xf32>
    %468 = tpu.matmul %465, %467, %cst_263 {dimension_numbers = #tpu.dot_dimension_numbers<[1], [0], [0], [1], [0, 0, 1, 1], [], []>} : vector<16x64xf32>, vector<64x32xf32>, vector<16x32xf32> -> vector<16x32xf32>
    %c1_264 = arith.constant 1 : index
    %c0_265 = arith.constant 0 : index
    %c0_266 = arith.constant 0 : index
    %469 = vector.load %arg14[%c1_264, %c0_265, %c0_266] : memref<2x1x32xf32, #tpu.memory_space<vmem>>, vector<1x1x32xf32>
    %470 = vector.shape_cast %469 : vector<1x1x32xf32> to vector<1x32xf32>
    %471 = vector.broadcast %470 : vector<1x32xf32> to vector<16x32xf32>
    %472 = arith.addf %468, %471 : vector<16x32xf32>
    %473 = arith.addf %472, %456 : vector<16x32xf32>
    %c1_267 = arith.constant 1 : index
    %c0_268 = arith.constant 0 : index
    %c0_269 = arith.constant 0 : index
    %474 = vector.load %arg15[%c1_267, %c0_268, %c0_269] : memref<2x1x32xf32, #tpu.memory_space<vmem>>, vector<1x1x32xf32>
    %475 = vector.shape_cast %474 : vector<1x1x32xf32> to vector<1x32xf32>
    %c1_270 = arith.constant 1 : index
    %c0_271 = arith.constant 0 : index
    %c0_272 = arith.constant 0 : index
    %476 = vector.load %arg16[%c1_270, %c0_271, %c0_272] : memref<2x1x32xf32, #tpu.memory_space<vmem>>, vector<1x1x32xf32>
    %477 = vector.shape_cast %476 : vector<1x1x32xf32> to vector<1x32xf32>
    %cst_273 = arith.constant dense<0.000000e+00> : vector<16xf32>
    %478 = vector.multi_reduction <add>, %473, %cst_273 [1] : vector<16x32xf32> to vector<16xf32>
    %479 = vector.shape_cast %478 : vector<16xf32> to vector<16x1xf32>
    %cst_274 = arith.constant 3.200000e+01 : f32
    %480 = vector.broadcast %cst_274 : f32 to vector<16x1xf32>
    %481 = arith.divf %479, %480 : vector<16x1xf32>
    %482 = vector.broadcast %481 : vector<16x1xf32> to vector<16x32xf32>
    %483 = arith.subf %473, %482 : vector<16x32xf32>
    %484 = arith.mulf %483, %483 : vector<16x32xf32>
    %cst_275 = arith.constant dense<0.000000e+00> : vector<16xf32>
    %485 = vector.multi_reduction <add>, %484, %cst_275 [1] : vector<16x32xf32> to vector<16xf32>
    %486 = vector.shape_cast %485 : vector<16xf32> to vector<16x1xf32>
    %cst_276 = arith.constant 0.0322580636 : f32
    %487 = vector.broadcast %cst_276 : f32 to vector<16x1xf32>
    %488 = arith.mulf %486, %487 : vector<16x1xf32>
    %489 = math.sqrt %488 : vector<16x1xf32>
    %cst_277 = arith.constant 9.99999997E-7 : f32
    %490 = vector.broadcast %cst_277 : f32 to vector<16x1xf32>
    %491 = arith.addf %489, %490 : vector<16x1xf32>
    %492 = tpu.reciprocal %491 {approx = true} : vector<16x1xf32> -> vector<16x1xf32>
    %493 = vector.broadcast %481 : vector<16x1xf32> to vector<16x32xf32>
    %494 = arith.subf %473, %493 : vector<16x32xf32>
    %495 = vector.broadcast %475 : vector<1x32xf32> to vector<16x32xf32>
    %496 = arith.mulf %495, %494 : vector<16x32xf32>
    %497 = vector.broadcast %492 : vector<16x1xf32> to vector<16x32xf32>
    %498 = arith.mulf %496, %497 : vector<16x32xf32>
    %499 = vector.broadcast %477 : vector<1x32xf32> to vector<16x32xf32>
    %500 = arith.addf %498, %499 : vector<16x32xf32>
    %c1_278 = arith.constant 1 : index
    %c0_279 = arith.constant 0 : index
    %c0_280 = arith.constant 0 : index
    %501 = vector.load %arg17[%c1_278, %c0_279, %c0_280] : memref<2x32x32xf32, #tpu.memory_space<vmem>>, vector<1x32x32xf32>
    %502 = vector.shape_cast %501 : vector<1x32x32xf32> to vector<32x32xf32>
    %cst_281 = arith.constant dense<0.000000e+00> : vector<16x32xf32>
    %503 = tpu.matmul %500, %502, %cst_281 {dimension_numbers = #tpu.dot_dimension_numbers<[1], [0], [0], [1], [0, 0, 1, 1], [], []>} : vector<16x32xf32>, vector<32x32xf32>, vector<16x32xf32> -> vector<16x32xf32>
    %c1_282 = arith.constant 1 : index
    %c0_283 = arith.constant 0 : index
    %c0_284 = arith.constant 0 : index
    %504 = vector.load %arg18[%c1_282, %c0_283, %c0_284] : memref<2x1x32xf32, #tpu.memory_space<vmem>>, vector<1x1x32xf32>
    %505 = vector.shape_cast %504 : vector<1x1x32xf32> to vector<1x32xf32>
    %506 = vector.broadcast %505 : vector<1x32xf32> to vector<16x32xf32>
    %507 = arith.addf %503, %506 : vector<16x32xf32>
    %c1_285 = arith.constant 1 : index
    %c0_286 = arith.constant 0 : index
    %c0_287 = arith.constant 0 : index
    %508 = vector.load %arg19[%c1_285, %c0_286, %c0_287] : memref<2x32x32xf32, #tpu.memory_space<vmem>>, vector<1x32x32xf32>
    %509 = vector.shape_cast %508 : vector<1x32x32xf32> to vector<32x32xf32>
    %cst_288 = arith.constant dense<0.000000e+00> : vector<16x32xf32>
    %510 = tpu.matmul %500, %509, %cst_288 {dimension_numbers = #tpu.dot_dimension_numbers<[1], [0], [0], [1], [0, 0, 1, 1], [], []>} : vector<16x32xf32>, vector<32x32xf32>, vector<16x32xf32> -> vector<16x32xf32>
    %c1_289 = arith.constant 1 : index
    %c0_290 = arith.constant 0 : index
    %c0_291 = arith.constant 0 : index
    %511 = vector.load %arg20[%c1_289, %c0_290, %c0_291] : memref<2x1x32xf32, #tpu.memory_space<vmem>>, vector<1x1x32xf32>
    %512 = vector.shape_cast %511 : vector<1x1x32xf32> to vector<1x32xf32>
    %513 = vector.broadcast %512 : vector<1x32xf32> to vector<16x32xf32>
    %514 = arith.addf %510, %513 : vector<16x32xf32>
    %c1_292 = arith.constant 1 : index
    %c0_293 = arith.constant 0 : index
    %c0_294 = arith.constant 0 : index
    %515 = vector.load %arg21[%c1_292, %c0_293, %c0_294] : memref<2x32x32xf32, #tpu.memory_space<vmem>>, vector<1x32x32xf32>
    %516 = vector.shape_cast %515 : vector<1x32x32xf32> to vector<32x32xf32>
    %cst_295 = arith.constant dense<0.000000e+00> : vector<16x32xf32>
    %517 = tpu.matmul %500, %516, %cst_295 {dimension_numbers = #tpu.dot_dimension_numbers<[1], [0], [0], [1], [0, 0, 1, 1], [], []>} : vector<16x32xf32>, vector<32x32xf32>, vector<16x32xf32> -> vector<16x32xf32>
    %c1_296 = arith.constant 1 : index
    %c0_297 = arith.constant 0 : index
    %c0_298 = arith.constant 0 : index
    %518 = vector.load %arg22[%c1_296, %c0_297, %c0_298] : memref<2x1x32xf32, #tpu.memory_space<vmem>>, vector<1x1x32xf32>
    %519 = vector.shape_cast %518 : vector<1x1x32xf32> to vector<1x32xf32>
    %520 = vector.broadcast %519 : vector<1x32xf32> to vector<16x32xf32>
    %521 = arith.addf %517, %520 : vector<16x32xf32>
    %522 = vector.extract_strided_slice %507 {offsets = [0, 0], sizes = [16, 16], strides = [1, 1]} : vector<16x32xf32> to vector<16x16xf32>
    %523 = vector.extract_strided_slice %514 {offsets = [0, 0], sizes = [16, 16], strides = [1, 1]} : vector<16x32xf32> to vector<16x16xf32>
    %524 = vector.extract_strided_slice %521 {offsets = [0, 0], sizes = [16, 16], strides = [1, 1]} : vector<16x32xf32> to vector<16x16xf32>
    "tpu.trace_start"() <{level = 10 : i32, message = "qd,kd->qk"}> : () -> ()
    %cst_299 = arith.constant dense<0.000000e+00> : vector<16x16xf32>
    %525 = tpu.matmul %522, %523, %cst_299 {dimension_numbers = #tpu.dot_dimension_numbers<[1], [1], [0], [0], [0, 0, 1, 0], [], []>} : vector<16x16xf32>, vector<16x16xf32>, vector<16x16xf32> -> vector<16x16xf32>
    "tpu.trace_stop"() : () -> ()
    %526 = arith.mulf %525, %17 : vector<16x16xf32>
    %cst_300 = arith.constant dense<0xFF800000> : vector<16xf32>
    %527 = vector.multi_reduction <maximumf>, %526, %cst_300 [1] : vector<16x16xf32> to vector<16xf32>
    %528 = vector.shape_cast %527 : vector<16xf32> to vector<16x1xf32>
    %529 = vector.broadcast %528 : vector<16x1xf32> to vector<16x16xf32>
    %530 = arith.subf %526, %529 : vector<16x16xf32>
    %531 = math.exp %530 : vector<16x16xf32>
    %cst_301 = arith.constant dense<0.000000e+00> : vector<16xf32>
    %532 = vector.multi_reduction <add>, %531, %cst_301 [1] : vector<16x16xf32> to vector<16xf32>
    %533 = vector.shape_cast %532 : vector<16xf32> to vector<16x1xf32>
    %534 = arith.mulf %531, %17 : vector<16x16xf32>
    %cst_302 = arith.constant dense<0.000000e+00> : vector<16xf32>
    %535 = vector.multi_reduction <add>, %534, %cst_302 [1] : vector<16x16xf32> to vector<16xf32>
    %536 = vector.shape_cast %535 : vector<16xf32> to vector<16x1xf32>
    %cst_303 = arith.constant 9.99999982E-14 : f32
    %537 = vector.broadcast %cst_303 : f32 to vector<16x1xf32>
    %538 = arith.mulf %537, %533 : vector<16x1xf32>
    %539 = arith.addf %536, %538 : vector<16x1xf32>
    %540 = tpu.reciprocal %539 {approx = true} : vector<16x1xf32> -> vector<16x1xf32>
    %541 = vector.broadcast %540 : vector<16x1xf32> to vector<16x16xf32>
    %542 = arith.mulf %534, %541 : vector<16x16xf32>
    %cst_304 = arith.constant dense<0.000000e+00> : vector<16x16xf32>
    %543 = tpu.matmul %542, %524, %cst_304 {dimension_numbers = #tpu.dot_dimension_numbers<[1], [0], [0], [1], [0, 0, 1, 1], [], []>} : vector<16x16xf32>, vector<16x16xf32>, vector<16x16xf32> -> vector<16x16xf32>
    %544 = vector.extract_strided_slice %507 {offsets = [0, 16], sizes = [16, 16], strides = [1, 1]} : vector<16x32xf32> to vector<16x16xf32>
    %545 = vector.extract_strided_slice %514 {offsets = [0, 16], sizes = [16, 16], strides = [1, 1]} : vector<16x32xf32> to vector<16x16xf32>
    %546 = vector.extract_strided_slice %521 {offsets = [0, 16], sizes = [16, 16], strides = [1, 1]} : vector<16x32xf32> to vector<16x16xf32>
    "tpu.trace_start"() <{level = 10 : i32, message = "qd,kd->qk"}> : () -> ()
    %cst_305 = arith.constant dense<0.000000e+00> : vector<16x16xf32>
    %547 = tpu.matmul %544, %545, %cst_305 {dimension_numbers = #tpu.dot_dimension_numbers<[1], [1], [0], [0], [0, 0, 1, 0], [], []>} : vector<16x16xf32>, vector<16x16xf32>, vector<16x16xf32> -> vector<16x16xf32>
    "tpu.trace_stop"() : () -> ()
    %548 = arith.mulf %547, %17 : vector<16x16xf32>
    %cst_306 = arith.constant dense<0xFF800000> : vector<16xf32>
    %549 = vector.multi_reduction <maximumf>, %548, %cst_306 [1] : vector<16x16xf32> to vector<16xf32>
    %550 = vector.shape_cast %549 : vector<16xf32> to vector<16x1xf32>
    %551 = vector.broadcast %550 : vector<16x1xf32> to vector<16x16xf32>
    %552 = arith.subf %548, %551 : vector<16x16xf32>
    %553 = math.exp %552 : vector<16x16xf32>
    %cst_307 = arith.constant dense<0.000000e+00> : vector<16xf32>
    %554 = vector.multi_reduction <add>, %553, %cst_307 [1] : vector<16x16xf32> to vector<16xf32>
    %555 = vector.shape_cast %554 : vector<16xf32> to vector<16x1xf32>
    %556 = arith.mulf %553, %17 : vector<16x16xf32>
    %cst_308 = arith.constant dense<0.000000e+00> : vector<16xf32>
    %557 = vector.multi_reduction <add>, %556, %cst_308 [1] : vector<16x16xf32> to vector<16xf32>
    %558 = vector.shape_cast %557 : vector<16xf32> to vector<16x1xf32>
    %cst_309 = arith.constant 9.99999982E-14 : f32
    %559 = vector.broadcast %cst_309 : f32 to vector<16x1xf32>
    %560 = arith.mulf %559, %555 : vector<16x1xf32>
    %561 = arith.addf %558, %560 : vector<16x1xf32>
    %562 = tpu.reciprocal %561 {approx = true} : vector<16x1xf32> -> vector<16x1xf32>
    %563 = vector.broadcast %562 : vector<16x1xf32> to vector<16x16xf32>
    %564 = arith.mulf %556, %563 : vector<16x16xf32>
    %cst_310 = arith.constant dense<0.000000e+00> : vector<16x16xf32>
    %565 = tpu.matmul %564, %546, %cst_310 {dimension_numbers = #tpu.dot_dimension_numbers<[1], [0], [0], [1], [0, 0, 1, 1], [], []>} : vector<16x16xf32>, vector<16x16xf32>, vector<16x16xf32> -> vector<16x16xf32>
    %566 = tpu.concatenate %543, %565 in 1 : vector<16x16xf32>, vector<16x16xf32> -> vector<16x32xf32>
    %c1_311 = arith.constant 1 : index
    %c0_312 = arith.constant 0 : index
    %c0_313 = arith.constant 0 : index
    %567 = vector.load %arg23[%c1_311, %c0_312, %c0_313] : memref<2x32x32xf32, #tpu.memory_space<vmem>>, vector<1x32x32xf32>
    %568 = vector.shape_cast %567 : vector<1x32x32xf32> to vector<32x32xf32>
    %cst_314 = arith.constant dense<0.000000e+00> : vector<16x32xf32>
    %569 = tpu.matmul %566, %568, %cst_314 {dimension_numbers = #tpu.dot_dimension_numbers<[1], [0], [0], [1], [0, 0, 1, 1], [], []>} : vector<16x32xf32>, vector<32x32xf32>, vector<16x32xf32> -> vector<16x32xf32>
    %c1_315 = arith.constant 1 : index
    %c0_316 = arith.constant 0 : index
    %c0_317 = arith.constant 0 : index
    %570 = vector.load %arg24[%c1_315, %c0_316, %c0_317] : memref<2x1x32xf32, #tpu.memory_space<vmem>>, vector<1x1x32xf32>
    %571 = vector.shape_cast %570 : vector<1x1x32xf32> to vector<1x32xf32>
    %572 = vector.broadcast %571 : vector<1x32xf32> to vector<16x32xf32>
    %573 = arith.addf %569, %572 : vector<16x32xf32>
    %574 = arith.addf %573, %500 : vector<16x32xf32>
    %c1_318 = arith.constant 1 : index
    %c0_319 = arith.constant 0 : index
    %c0_320 = arith.constant 0 : index
    %575 = vector.load %arg25[%c1_318, %c0_319, %c0_320] : memref<2x1x32xf32, #tpu.memory_space<vmem>>, vector<1x1x32xf32>
    %576 = vector.shape_cast %575 : vector<1x1x32xf32> to vector<1x32xf32>
    %c1_321 = arith.constant 1 : index
    %c0_322 = arith.constant 0 : index
    %c0_323 = arith.constant 0 : index
    %577 = vector.load %arg26[%c1_321, %c0_322, %c0_323] : memref<2x1x32xf32, #tpu.memory_space<vmem>>, vector<1x1x32xf32>
    %578 = vector.shape_cast %577 : vector<1x1x32xf32> to vector<1x32xf32>
    %cst_324 = arith.constant dense<0.000000e+00> : vector<16xf32>
    %579 = vector.multi_reduction <add>, %574, %cst_324 [1] : vector<16x32xf32> to vector<16xf32>
    %580 = vector.shape_cast %579 : vector<16xf32> to vector<16x1xf32>
    %cst_325 = arith.constant 3.200000e+01 : f32
    %581 = vector.broadcast %cst_325 : f32 to vector<16x1xf32>
    %582 = arith.divf %580, %581 : vector<16x1xf32>
    %583 = vector.broadcast %582 : vector<16x1xf32> to vector<16x32xf32>
    %584 = arith.subf %574, %583 : vector<16x32xf32>
    %585 = arith.mulf %584, %584 : vector<16x32xf32>
    %cst_326 = arith.constant dense<0.000000e+00> : vector<16xf32>
    %586 = vector.multi_reduction <add>, %585, %cst_326 [1] : vector<16x32xf32> to vector<16xf32>
    %587 = vector.shape_cast %586 : vector<16xf32> to vector<16x1xf32>
    %cst_327 = arith.constant 0.0322580636 : f32
    %588 = vector.broadcast %cst_327 : f32 to vector<16x1xf32>
    %589 = arith.mulf %587, %588 : vector<16x1xf32>
    %590 = math.sqrt %589 : vector<16x1xf32>
    %cst_328 = arith.constant 9.99999997E-7 : f32
    %591 = vector.broadcast %cst_328 : f32 to vector<16x1xf32>
    %592 = arith.addf %590, %591 : vector<16x1xf32>
    %593 = tpu.reciprocal %592 {approx = true} : vector<16x1xf32> -> vector<16x1xf32>
    %594 = vector.broadcast %582 : vector<16x1xf32> to vector<16x32xf32>
    %595 = arith.subf %574, %594 : vector<16x32xf32>
    %596 = vector.broadcast %576 : vector<1x32xf32> to vector<16x32xf32>
    %597 = arith.mulf %596, %595 : vector<16x32xf32>
    %598 = vector.broadcast %593 : vector<16x1xf32> to vector<16x32xf32>
    %599 = arith.mulf %597, %598 : vector<16x32xf32>
    %600 = vector.broadcast %578 : vector<1x32xf32> to vector<16x32xf32>
    %601 = arith.addf %599, %600 : vector<16x32xf32>
    %602 = vector.broadcast %0 : f32 to vector<8x32xf32>
    %603 = arith.mulf %602, %3 : vector<8x32xf32>
    %cst_329 = arith.constant 1.000000e+00 : f32
    %604 = arith.subf %cst_329, %0 : f32
    %605 = vector.broadcast %604 : f32 to vector<8x32xf32>
    %606 = arith.mulf %605, %309 : vector<8x32xf32>
    %607 = arith.addf %603, %606 : vector<8x32xf32>
    %608 = vector.broadcast %7 : vector<8x1xf32> to vector<8x32xf32>
    %609 = arith.mulf %607, %608 : vector<8x32xf32>
    %610 = vector.broadcast %0 : f32 to vector<16x32xf32>
    %611 = arith.mulf %610, %5 : vector<16x32xf32>
    %cst_330 = arith.constant 1.000000e+00 : f32
    %612 = arith.subf %cst_330, %0 : f32
    %613 = vector.broadcast %612 : f32 to vector<16x32xf32>
    %614 = arith.mulf %613, %601 : vector<16x32xf32>
    %615 = arith.addf %611, %614 : vector<16x32xf32>
    %616 = vector.broadcast %11 : vector<16x1xf32> to vector<16x32xf32>
    %617 = arith.mulf %615, %616 : vector<16x32xf32>
    %618 = arith.mulf %609, %609 : vector<8x32xf32>
    %cst_331 = arith.constant dense<0.000000e+00> : vector<8xf32>
    %619 = vector.multi_reduction <add>, %618, %cst_331 [1] : vector<8x32xf32> to vector<8xf32>
    %620 = vector.shape_cast %619 : vector<8xf32> to vector<8x1xf32>
    %621 = math.sqrt %620 : vector<8x1xf32>
    %cst_332 = arith.constant 9.99999982E-14 : f32
    %622 = vector.broadcast %cst_332 : f32 to vector<8x1xf32>
    %623 = arith.addf %621, %622 : vector<8x1xf32>
    %624 = vector.broadcast %623 : vector<8x1xf32> to vector<8x32xf32>
    %625 = arith.divf %609, %624 : vector<8x32xf32>
    %626 = arith.mulf %617, %617 : vector<16x32xf32>
    %cst_333 = arith.constant dense<0.000000e+00> : vector<16xf32>
    %627 = vector.multi_reduction <add>, %626, %cst_333 [1] : vector<16x32xf32> to vector<16xf32>
    %628 = vector.shape_cast %627 : vector<16xf32> to vector<16x1xf32>
    %629 = math.sqrt %628 : vector<16x1xf32>
    %cst_334 = arith.constant 9.99999982E-14 : f32
    %630 = vector.broadcast %cst_334 : f32 to vector<16x1xf32>
    %631 = arith.addf %629, %630 : vector<16x1xf32>
    %632 = vector.broadcast %631 : vector<16x1xf32> to vector<16x32xf32>
    %633 = arith.divf %617, %632 : vector<16x32xf32>
    "tpu.trace_start"() <{level = 10 : i32, message = "qe,de->qd"}> : () -> ()
    %cst_335 = arith.constant dense<0.000000e+00> : vector<8x16xf32>
    %634 = tpu.matmul %625, %633, %cst_335 {dimension_numbers = #tpu.dot_dimension_numbers<[1], [1], [0], [0], [0, 0, 1, 0], [], []>} : vector<8x32xf32>, vector<16x32xf32>, vector<8x16xf32> -> vector<8x16xf32>
    "tpu.trace_stop"() : () -> ()
    %635 = vector.broadcast %7 : vector<8x1xf32> to vector<8x16xf32>
    %636 = vector.broadcast %13 : vector<1x16xf32> to vector<8x16xf32>
    %637 = arith.mulf %635, %636 : vector<8x16xf32>
    %638 = arith.mulf %634, %637 : vector<8x16xf32>
    %c0_336 = arith.constant 0 : index
    %c0_337 = arith.constant 0 : index
    %639 = vector.load %arg9[%c0_336, %c0_337] : memref<11x1xf32, #tpu.memory_space<vmem>>, vector<11x1xf32>
    %640 = vector.shape_cast %639 : vector<11x1xf32> to vector<11x1x1xf32>
    %c0_338 = arith.constant 0 : index
    %c0_339 = arith.constant 0 : index
    %641 = vector.load %arg10[%c0_338, %c0_339] : memref<11x1xf32, #tpu.memory_space<vmem>>, vector<11x1xf32>
    %642 = vector.shape_cast %641 : vector<11x1xf32> to vector<11x1x1xf32>
    %643 = vector.shape_cast %638 : vector<8x16xf32> to vector<1x8x16xf32>
    %644 = vector.broadcast %643 : vector<1x8x16xf32> to vector<11x8x16xf32>
    %645 = vector.broadcast %640 : vector<11x1x1xf32> to vector<11x8x16xf32>
    %646 = arith.subf %644, %645 : vector<11x8x16xf32>
    %647 = arith.mulf %646, %646 : vector<11x8x16xf32>
    %cst_340 = arith.constant 0.000000e+00 : f32
    %648 = vector.broadcast %cst_340 : f32 to vector<11x8x16xf32>
    %649 = arith.subf %648, %647 : vector<11x8x16xf32>
    %650 = vector.broadcast %642 : vector<11x1x1xf32> to vector<11x8x16xf32>
    %651 = arith.mulf %649, %650 : vector<11x8x16xf32>
    %652 = math.exp %651 : vector<11x8x16xf32>
    %653 = vector.shape_cast %637 : vector<8x16xf32> to vector<1x8x16xf32>
    %654 = vector.broadcast %653 : vector<1x8x16xf32> to vector<11x8x16xf32>
    %655 = arith.mulf %652, %654 : vector<11x8x16xf32>
    %cst_341 = arith.constant dense<0.000000e+00> : vector<11x8xf32>
    %656 = vector.multi_reduction <add>, %655, %cst_341 [2] : vector<11x8x16xf32> to vector<11x8xf32>
    %cst_342 = arith.constant 1.000000e-10 : f32
    %657 = vector.broadcast %cst_342 : f32 to vector<11x8xf32>
    %658 = arith.maximumf %656, %657 : vector<11x8xf32>
    %659 = math.log %658 : vector<11x8xf32>
    %cst_343 = arith.constant 1.44269502 : f32
    %660 = vector.broadcast %cst_343 : f32 to vector<11x8xf32>
    %661 = arith.mulf %659, %660 : vector<11x8xf32>
    %662 = vector.broadcast %1 : f32 to vector<11x8xf32>
    %663 = arith.mulf %661, %662 : vector<11x8xf32>
    %664 = vector.broadcast %9 : vector<1x8xf32> to vector<11x8xf32>
    %665 = arith.mulf %663, %664 : vector<11x8xf32>
    %cst_344 = arith.constant dense<0.000000e+00> : vector<11xf32>
    %666 = vector.multi_reduction <add>, %665, %cst_344 [1] : vector<11x8xf32> to vector<11xf32>
    %667 = vector.shape_cast %666 : vector<11xf32> to vector<11x1xf32>
    %c0_345 = arith.constant 0 : index
    %c0_346 = arith.constant 0 : index
    %c0_347 = arith.constant 0 : index
    %668 = vector.load %arg28[%c0_345, %c0_346, %c0_347] : memref<1x11x1xf32, #tpu.memory_space<vmem>>, vector<1x11x1xf32>
    %669 = vector.shape_cast %668 : vector<1x11x1xf32> to vector<11x1xf32>
    %670 = vector.shape_cast %667 : vector<11x1xf32> to vector<1x11x1xf32>
    tpu.vector_store %arg28[%c0_345, %c0_346, %c0_347], %670 {strides = array<i32>} : memref<1x11x1xf32, #tpu.memory_space<vmem>>, vector<1x11x1xf32>,
    %cst_348 = arith.constant dense<0.000000e+00> : vector<1xf32>
    %671 = vector.multi_reduction <add>, %13, %cst_348 [1] : vector<1x16xf32> to vector<1xf32>
    %672 = vector.shape_cast %671 : vector<1xf32> to vector<1x1xf32>
    %cst_349 = arith.constant 1.000000e+00 : f32
    %673 = vector.broadcast %cst_349 : f32 to vector<1x1xf32>
    %674 = arith.addf %672, %673 : vector<1x1xf32>
    %675 = tpu.reciprocal %674 {approx = true} : vector<1x1xf32> -> vector<1x1xf32>
    %676 = vector.broadcast %675 : vector<1x1xf32> to vector<11x8xf32>
    %677 = arith.mulf %656, %676 : vector<11x8xf32>
    %678 = vector.broadcast %1 : f32 to vector<11x8xf32>
    %679 = arith.mulf %677, %678 : vector<11x8xf32>
    %680 = vector.broadcast %9 : vector<1x8xf32> to vector<11x8xf32>
    %681 = arith.mulf %679, %680 : vector<11x8xf32>
    %cst_350 = arith.constant dense<0.000000e+00> : vector<11xf32>
    %682 = vector.multi_reduction <add>, %681, %cst_350 [1] : vector<11x8xf32> to vector<11xf32>
    %683 = vector.shape_cast %682 : vector<11xf32> to vector<11x1xf32>
    %c0_351 = arith.constant 0 : index
    %c0_352 = arith.constant 0 : index
    %c0_353 = arith.constant 0 : index
    %684 = vector.load %arg29[%c0_351, %c0_352, %c0_353] : memref<1x11x1xf32, #tpu.memory_space<vmem>>, vector<1x11x1xf32>
    %685 = vector.shape_cast %684 : vector<1x11x1xf32> to vector<11x1xf32>
    %686 = vector.shape_cast %683 : vector<11x1xf32> to vector<1x11x1xf32>
    tpu.vector_store %arg29[%c0_351, %c0_352, %c0_353], %686 {strides = array<i32>} : memref<1x11x1xf32, #tpu.memory_space<vmem>>, vector<1x11x1xf32>,
    return
  }
  func.func @transform_0(%arg0: i32) -> (i32, i32, i32) {
    %c0_i32 = arith.constant 0 : i32
    %c0_i32_0 = arith.constant 0 : i32
    %c0_i32_1 = arith.constant 0 : i32
    return %arg0, %c0_i32, %c0_i32_0 : i32, i32, i32
  }
  func.func @transform_1(%arg0: i32) -> (i32, i32, i32) {
    %c0_i32 = arith.constant 0 : i32
    %c0_i32_0 = arith.constant 0 : i32
    %c0_i32_1 = arith.constant 0 : i32
    return %arg0, %c0_i32, %c0_i32_0 : i32, i32, i32
  }
  func.func @transform_2(%arg0: i32) -> (i32, i32) {
    %c0_i32 = arith.constant 0 : i32
    %c0_i32_0 = arith.constant 0 : i32
    %c0_i32_1 = arith.constant 0 : i32
    return %c0_i32, %c0_i32_0 : i32, i32
  }
  func.func @transform_3(%arg0: i32) -> (i32, i32) {
    %c0_i32 = arith.constant 0 : i32
    %c0_i32_0 = arith.constant 0 : i32
    %c0_i32_1 = arith.constant 0 : i32
    return %c0_i32, %c0_i32_0 : i32, i32
  }
  func.func @transform_4(%arg0: i32) -> (i32, i32, i32) {
    %c0_i32 = arith.constant 0 : i32
    %c0_i32_0 = arith.constant 0 : i32
    %c0_i32_1 = arith.constant 0 : i32
    return %arg0, %c0_i32, %c0_i32_0 : i32, i32, i32
  }
  func.func @transform_5(%arg0: i32) -> (i32, i32, i32) {
    %c0_i32 = arith.constant 0 : i32
    %c0_i32_0 = arith.constant 0 : i32
    %c0_i32_1 = arith.constant 0 : i32
    return %arg0, %c0_i32, %c0_i32_0 : i32, i32, i32
  }
  func.func @transform_6(%arg0: i32) -> (i32, i32, i32) {
    %c0_i32 = arith.constant 0 : i32
    %c0_i32_0 = arith.constant 0 : i32
    %c0_i32_1 = arith.constant 0 : i32
    return %arg0, %c0_i32, %c0_i32_0 : i32, i32, i32
  }
  func.func @transform_7(%arg0: i32) -> (i32, i32, i32) {
    %c0_i32 = arith.constant 0 : i32
    %c0_i32_0 = arith.constant 0 : i32
    %c0_i32_1 = arith.constant 0 : i32
    return %arg0, %c0_i32, %c0_i32_0 : i32, i32, i32
  }
  func.func @transform_8(%arg0: i32) -> (i32, i32) {
    %c0_i32 = arith.constant 0 : i32
    %c0_i32_0 = arith.constant 0 : i32
    %c0_i32_1 = arith.constant 0 : i32
    return %c0_i32, %c0_i32_0 : i32, i32
  }
  func.func @transform_9(%arg0: i32) -> (i32, i32) {
    %c0_i32 = arith.constant 0 : i32
    %c0_i32_0 = arith.constant 0 : i32
    %c0_i32_1 = arith.constant 0 : i32
    return %c0_i32, %c0_i32_0 : i32, i32
  }
  func.func @transform_10(%arg0: i32) -> (i32, i32, i32) {
    %c0_i32 = arith.constant 0 : i32
    %c0_i32_0 = arith.constant 0 : i32
    %c0_i32_1 = arith.constant 0 : i32
    %c0_i32_2 = arith.constant 0 : i32
    return %c0_i32, %c0_i32_0, %c0_i32_1 : i32, i32, i32
  }
  func.func @transform_11(%arg0: i32) -> (i32, i32, i32) {
    %c0_i32 = arith.constant 0 : i32
    %c0_i32_0 = arith.constant 0 : i32
    %c0_i32_1 = arith.constant 0 : i32
    %c0_i32_2 = arith.constant 0 : i32
    return %c0_i32, %c0_i32_0, %c0_i32_1 : i32, i32, i32
  }
  func.func @transform_12(%arg0: i32) -> (i32, i32, i32) {
    %c0_i32 = arith.constant 0 : i32
    %c0_i32_0 = arith.constant 0 : i32
    %c0_i32_1 = arith.constant 0 : i32
    %c0_i32_2 = arith.constant 0 : i32
    return %c0_i32, %c0_i32_0, %c0_i32_1 : i32, i32, i32
  }
  func.func @transform_13(%arg0: i32) -> (i32, i32, i32) {
    %c0_i32 = arith.constant 0 : i32
    %c0_i32_0 = arith.constant 0 : i32
    %c0_i32_1 = arith.constant 0 : i32
    %c0_i32_2 = arith.constant 0 : i32
    return %c0_i32, %c0_i32_0, %c0_i32_1 : i32, i32, i32
  }
  func.func @transform_14(%arg0: i32) -> (i32, i32, i32) {
    %c0_i32 = arith.constant 0 : i32
    %c0_i32_0 = arith.constant 0 : i32
    %c0_i32_1 = arith.constant 0 : i32
    %c0_i32_2 = arith.constant 0 : i32
    return %c0_i32, %c0_i32_0, %c0_i32_1 : i32, i32, i32
  }
  func.func @transform_15(%arg0: i32) -> (i32, i32, i32) {
    %c0_i32 = arith.constant 0 : i32
    %c0_i32_0 = arith.constant 0 : i32
    %c0_i32_1 = arith.constant 0 : i32
    %c0_i32_2 = arith.constant 0 : i32
    return %c0_i32, %c0_i32_0, %c0_i32_1 : i32, i32, i32
  }
  func.func @transform_16(%arg0: i32) -> (i32, i32, i32) {
    %c0_i32 = arith.constant 0 : i32
    %c0_i32_0 = arith.constant 0 : i32
    %c0_i32_1 = arith.constant 0 : i32
    %c0_i32_2 = arith.constant 0 : i32
    return %c0_i32, %c0_i32_0, %c0_i32_1 : i32, i32, i32
  }
  func.func @transform_17(%arg0: i32) -> (i32, i32, i32) {
    %c0_i32 = arith.constant 0 : i32
    %c0_i32_0 = arith.constant 0 : i32
    %c0_i32_1 = arith.constant 0 : i32
    %c0_i32_2 = arith.constant 0 : i32
    return %c0_i32, %c0_i32_0, %c0_i32_1 : i32, i32, i32
  }
  func.func @transform_18(%arg0: i32) -> (i32, i32, i32) {
    %c0_i32 = arith.constant 0 : i32
    %c0_i32_0 = arith.constant 0 : i32
    %c0_i32_1 = arith.constant 0 : i32
    %c0_i32_2 = arith.constant 0 : i32
    return %c0_i32, %c0_i32_0, %c0_i32_1 : i32, i32, i32
  }
  func.func @transform_19(%arg0: i32) -> (i32, i32, i32) {
    %c0_i32 = arith.constant 0 : i32
    %c0_i32_0 = arith.constant 0 : i32
    %c0_i32_1 = arith.constant 0 : i32
    %c0_i32_2 = arith.constant 0 : i32
    return %c0_i32, %c0_i32_0, %c0_i32_1 : i32, i32, i32
  }
  func.func @transform_20(%arg0: i32) -> (i32, i32, i32) {
    %c0_i32 = arith.constant 0 : i32
    %c0_i32_0 = arith.constant 0 : i32
    %c0_i32_1 = arith.constant 0 : i32
    %c0_i32_2 = arith.constant 0 : i32
    return %c0_i32, %c0_i32_0, %c0_i32_1 : i32, i32, i32
  }
  func.func @transform_21(%arg0: i32) -> (i32, i32, i32) {
    %c0_i32 = arith.constant 0 : i32
    %c0_i32_0 = arith.constant 0 : i32
    %c0_i32_1 = arith.constant 0 : i32
    %c0_i32_2 = arith.constant 0 : i32
    return %c0_i32, %c0_i32_0, %c0_i32_1 : i32, i32, i32
  }
  func.func @transform_22(%arg0: i32) -> (i32, i32, i32) {
    %c0_i32 = arith.constant 0 : i32
    %c0_i32_0 = arith.constant 0 : i32
    %c0_i32_1 = arith.constant 0 : i32
    %c0_i32_2 = arith.constant 0 : i32
    return %c0_i32, %c0_i32_0, %c0_i32_1 : i32, i32, i32
  }
  func.func @transform_23(%arg0: i32) -> (i32, i32, i32) {
    %c0_i32 = arith.constant 0 : i32
    %c0_i32_0 = arith.constant 0 : i32
    %c0_i32_1 = arith.constant 0 : i32
    %c0_i32_2 = arith.constant 0 : i32
    return %c0_i32, %c0_i32_0, %c0_i32_1 : i32, i32, i32
  }
  func.func @transform_24(%arg0: i32) -> (i32, i32, i32) {
    %c0_i32 = arith.constant 0 : i32
    %c0_i32_0 = arith.constant 0 : i32
    %c0_i32_1 = arith.constant 0 : i32
    %c0_i32_2 = arith.constant 0 : i32
    return %c0_i32, %c0_i32_0, %c0_i32_1 : i32, i32, i32
  }
  func.func @transform_25(%arg0: i32) -> (i32, i32, i32) {
    %c0_i32 = arith.constant 0 : i32
    %c0_i32_0 = arith.constant 0 : i32
    %c0_i32_1 = arith.constant 0 : i32
    %c0_i32_2 = arith.constant 0 : i32
    return %c0_i32, %c0_i32_0, %c0_i32_1 : i32, i32, i32
  }
  func.func @transform_26(%arg0: i32) -> i32 {
    %c0_i32 = arith.constant 0 : i32
    %c0_i32_0 = arith.constant 0 : i32
    return %c0_i32 : i32
  }
  func.func @transform_27(%arg0: i32) -> (i32, i32, i32) {
    %c0_i32 = arith.constant 0 : i32
    %c0_i32_0 = arith.constant 0 : i32
    %c0_i32_1 = arith.constant 0 : i32
    return %arg0, %c0_i32, %c0_i32_0 : i32, i32, i32
  }
  func.func @transform_28(%arg0: i32) -> (i32, i32, i32) {
    %c0_i32 = arith.constant 0 : i32
    %c0_i32_0 = arith.constant 0 : i32
    %c0_i32_1 = arith.constant 0 : i32
    return %arg0, %c0_i32, %c0_i32_0 : i32, i32, i32
  }
}

</mosaic_0001>

<llo_original>
// kernel: _lambda_.1
$region0: #{_lambda_.1}
  #allocation0 [shape = 'u32[]', space=smem, size = 0x4, offset = 0x4, fixed_abs, tag = 'smem constant byte address 0x4 - core index']
  #allocation1 [shape = 'u32[144,128]{1,0:T(1,128)}', space=vmem, size = 0x12000, scoped, tag = 'internal scratch']
  %s0 = inlined_call_operand.vmem [shape: f32[2,8,32], index: 0, kind: input, shape index: {}]
  %s1 = inlined_call_operand.vmem [shape: f32[2,16,32], index: 1, kind: input, shape index: {}]
  %s2 = inlined_call_operand.vmem [shape: f32[8,32], index: 2, kind: input, shape index: {}]
  %s3 = inlined_call_operand.vmem [shape: f32[16,32], index: 3, kind: input, shape index: {}]
  %s4 = inlined_call_operand.vmem [shape: f32[2,8,1], index: 4, kind: input, shape index: {}]
  %s5 = inlined_call_operand.vmem [shape: f32[2,1,8], index: 5, kind: input, shape index: {}]
  %s6 = inlined_call_operand.vmem [shape: f32[2,16,1], index: 6, kind: input, shape index: {}]
  %s7 = inlined_call_operand.vmem [shape: f32[2,1,16], index: 7, kind: input, shape index: {}]
  %s8 = inlined_call_operand.vmem [shape: f32[11,1], index: 8, kind: input, shape index: {}]
  %s9 = inlined_call_operand.vmem [shape: f32[11,1], index: 9, kind: input, shape index: {}]
  %s10 = inlined_call_operand.vmem [shape: f32[2,32,64], index: 10, kind: input, shape index: {}]
  %s11 = inlined_call_operand.vmem [shape: f32[2,1,64], index: 11, kind: input, shape index: {}]
  %s12 = inlined_call_operand.vmem [shape: f32[2,64,32], index: 12, kind: input, shape index: {}]
  %s13 = inlined_call_operand.vmem [shape: f32[2,1,32], index: 13, kind: input, shape index: {}]
  %s14 = inlined_call_operand.vmem [shape: f32[2,1,32], index: 14, kind: input, shape index: {}]
  %s15 = inlined_call_operand.vmem [shape: f32[2,1,32], index: 15, kind: input, shape index: {}]
  %s16 = inlined_call_operand.vmem [shape: f32[2,32,32], index: 16, kind: input, shape index: {}]
  %s17 = inlined_call_operand.vmem [shape: f32[2,1,32], index: 17, kind: input, shape index: {}]
  %s18 = inlined_call_operand.vmem [shape: f32[2,32,32], index: 18, kind: input, shape index: {}]
  %s19 = inlined_call_operand.vmem [shape: f32[2,1,32], index: 19, kind: input, shape index: {}]
  %s20 = inlined_call_operand.vmem [shape: f32[2,32,32], index: 20, kind: input, shape index: {}]
  %s21 = inlined_call_operand.vmem [shape: f32[2,1,32], index: 21, kind: input, shape index: {}]
  %s22 = inlined_call_operand.vmem [shape: f32[2,32,32], index: 22, kind: input, shape index: {}]
  %s23 = inlined_call_operand.vmem [shape: f32[2,1,32], index: 23, kind: input, shape index: {}]
  %s24 = inlined_call_operand.vmem [shape: f32[2,1,32], index: 24, kind: input, shape index: {}]
  %s25 = inlined_call_operand.vmem [shape: f32[2,1,32], index: 25, kind: input, shape index: {}]
  %s26 = inlined_call_operand.vmem [shape: f32[2], index: 26, kind: input, shape index: {}]
  %s27 = inlined_call_operand.vmem [shape: f32[2,11,1], index: 27, kind: output, shape index: {0}]
  %s28 = inlined_call_operand.vmem [shape: f32[2,11,1], index: 28, kind: output, shape index: {1}]
  %29 = xla_tuple %s27, %s28
  %s30 = sld [smem:[#allocation0]]
  $region153: #{_lambda_.1} parent=0
    _
  %s32 = ssub.s32 1, %s30
  %s33 = scalar_select 0, %s32, %s30
  $region1: #{_lambda_.1} parent=0
    #allocation2 [shape = 'u8[512]{0}', space=smem, size = 0x200, scoped, tag = 'input window, operand 26, single buffered']
    #allocation3 [shape = 's32[2]{0}', space=sflag, size = 0x8, scoped, tag = 'scoped memory for _lambda_.1']
    %34 = vsyncpa [#allocation3], 0
    loop: start=0, step=1, limit=4
    $region2: #{_lambda_.1} parent=1 // loop_pre_header
      _
    $region3: #{_lambda_.1} parent=1 // loop_header
      %s36 = sphi 0, %s40
      %p37 = scmp.ge.s32.totalorder %s36, 4
      %s46 = sphi 0, %s48
      %s49 = sphi 0, %s46
      %s50 = sphi 0, %s49
      %s66 = sphi 0, %s50
      %s72 = sphi 0, %s74
      %s75 = sphi 0, %s72
      %s76 = sphi 0, %s75
      %s92 = sphi 0, %s76
      %s96 = sphi 0, %s96
      %s98 = sphi 0, %s96
      %s99 = sphi 0, %s98
      %s113 = sphi 0, %s99
      %s117 = sphi 0, %s117
      %s119 = sphi 0, %s117
      %s120 = sphi 0, %s119
      %s134 = sphi 0, %s120
      %s140 = sphi 0, %s142
      %s143 = sphi 0, %s140
      %s144 = sphi 0, %s143
      %s160 = sphi 0, %s144
      %s166 = sphi 0, %s168
      %s169 = sphi 0, %s166
      %s170 = sphi 0, %s169
      %s186 = sphi 0, %s170
      %s192 = sphi 0, %s194
      %s195 = sphi 0, %s192
      %s196 = sphi 0, %s195
      %s212 = sphi 0, %s196
      %s218 = sphi 0, %s220
      %s221 = sphi 0, %s218
      %s222 = sphi 0, %s221
      %s238 = sphi 0, %s222
      %s242 = sphi 0, %s242
      %s244 = sphi 0, %s242
      %s245 = sphi 0, %s244
      %s259 = sphi 0, %s245
      %s263 = sphi 0, %s263
      %s265 = sphi 0, %s263
      %s266 = sphi 0, %s265
      %s280 = sphi 0, %s266
      %s284 = sphi 0, %s284
      %s286 = sphi 0, %s284
      %s287 = sphi 0, %s286
      %s301 = sphi 0, %s287
      %s305 = sphi 0, %s305
      %s307 = sphi 0, %s305
      %s308 = sphi 0, %s307
      %s322 = sphi 0, %s308
      %s326 = sphi 0, %s326
      %s328 = sphi 0, %s326
      %s329 = sphi 0, %s328
      %s343 = sphi 0, %s329
      %s347 = sphi 0, %s347
      %s349 = sphi 0, %s347
      %s350 = sphi 0, %s349
      %s364 = sphi 0, %s350
      %s368 = sphi 0, %s368
      %s370 = sphi 0, %s368
      %s371 = sphi 0, %s370
      %s385 = sphi 0, %s371
      %s389 = sphi 0, %s389
      %s391 = sphi 0, %s389
      %s392 = sphi 0, %s391
      %s406 = sphi 0, %s392
      %s410 = sphi 0, %s410
      %s412 = sphi 0, %s410
      %s413 = sphi 0, %s412
      %s427 = sphi 0, %s413
      %s431 = sphi 0, %s431
      %s433 = sphi 0, %s431
      %s434 = sphi 0, %s433
      %s448 = sphi 0, %s434
      %s452 = sphi 0, %s452
      %s454 = sphi 0, %s452
      %s455 = sphi 0, %s454
      %s469 = sphi 0, %s455
      %s473 = sphi 0, %s473
      %s475 = sphi 0, %s473
      %s476 = sphi 0, %s475
      %s490 = sphi 0, %s476
      %s494 = sphi 0, %s494
      %s496 = sphi 0, %s494
      %s497 = sphi 0, %s496
      %s511 = sphi 0, %s497
      %s515 = sphi 0, %s515
      %s517 = sphi 0, %s515
      %s518 = sphi 0, %s517
      %s532 = sphi 0, %s518
      %s536 = sphi 0, %s536
      %s538 = sphi 0, %s536
      %s539 = sphi 0, %s538
      %s553 = sphi 0, %s539
      %s557 = sphi 0, %s557
      %s559 = sphi 0, %s557
      %s560 = sphi 0, %s559
      %s574 = sphi 0, %s560
      %s578 = sphi 0, %s578
      %s580 = sphi 0, %s578
      %s581 = sphi 0, %s580
      %s595 = sphi 0, %s581
      %s599 = sphi 0, %s599
      %s601 = sphi 0, %s599
      %s602 = sphi 0, %s601
      %s616 = sphi 0, %s602
      %s620 = sphi 0, %s620
      %s622 = sphi 0, %s620
      %s623 = sphi 0, %s622
      %s637 = sphi 0, %s623
      %s643 = sphi 0, %s645
      %s646 = sphi 0, %s643
      %s647 = sphi 0, %s646
      %s663 = sphi 0, %s647
      %s669 = sphi 0, %s671
      %s672 = sphi 0, %s669
      %s673 = sphi 0, %s672
      %s689 = sphi 0, %s673
    $region4: #{_lambda_.1} parent=1 // loop_header_branch
      %39 = sbr.rel (%p37) target = $region8
    $region5: #{_lambda_.1} parent=1 // loop_body
      %s41 = ssub.s32 %s36, 1
      %s42 = ssub.s32 %s36, 2
      %s43 = sadd.s32 %s36, 1
      %s44 = ssub.s32 %s36, %s43
      %p45 = scmp.eq.s32.totalorder %s44, 0
      %s47 = sadd.s32 %s46, 1
      %s48 = scalar_select %p45, %s46, %s47
      %p51 = pneg %p45
      %p52 = scmp.eq.s32.totalorder %s36, 1
      %p53 = por %p51, %p52
      %p54 = scmp.ne.s32.totalorder %s46, %s49
      %p55 = scmp.eq.s32.totalorder %s36, 0
      %p56 = por %p54, %p55
      %p57 = scmp.ne.s32.totalorder %s46, %s49
      %p58 = scmp.eq.s32.totalorder %s41, 1
      %p59 = por %p57, %p58
      %p60 = scmp.ne.s32.totalorder %s49, %s50
      %p61 = scmp.eq.s32.totalorder %s41, 0
      %p62 = por %p60, %p61
      %p63 = scmp.ne.s32.totalorder %s49, %s50
      %p64 = scmp.eq.s32.totalorder %s42, 1
      %p65 = por %p63, %p64
      %p67 = scmp.ne.s32.totalorder %s50, %s66
      %p68 = scmp.eq.s32.totalorder %s42, 0
      %p69 = por %p67, %p68
      %s70 = ssub.s32 %s36, %s43
      %p71 = scmp.eq.s32.totalorder %s70, 0
      %s73 = sadd.s32 %s72, 1
      %s74 = scalar_select %p71, %s72, %s73
      %p77 = pneg %p71
      %p78 = scmp.eq.s32.totalorder %s36, 1
      %p79 = por %p77, %p78
      %p80 = scmp.ne.s32.totalorder %s72, %s75
      %p81 = scmp.eq.s32.totalorder %s36, 0
      %p82 = por %p80, %p81
      %p83 = scmp.ne.s32.totalorder %s72, %s75
      %p84 = scmp.eq.s32.totalorder %s41, 1
      %p85 = por %p83, %p84
      %p86 = scmp.ne.s32.totalorder %s75, %s76
      %p87 = scmp.eq.s32.totalorder %s41, 0
      %p88 = por %p86, %p87
      %p89 = scmp.ne.s32.totalorder %s75, %s76
      %p90 = scmp.eq.s32.totalorder %s42, 1
      %p91 = por %p89, %p90
      %p93 = scmp.ne.s32.totalorder %s76, %s92
      %p94 = scmp.eq.s32.totalorder %s42, 0
      %p95 = por %p93, %p94
      %s97 = sadd.s32 %s96, 1
      %p100 = scmp.eq.s32.totalorder %s36, 1
      %p101 = scmp.ne.s32.totalorder %s96, %s98
      %p102 = scmp.eq.s32.totalorder %s36, 0
      %p103 = por %p101, %p102
      %p104 = scmp.ne.s32.totalorder %s96, %s98
      %p105 = scmp.eq.s32.totalorder %s41, 1
      %p106 = por %p104, %p105
      %p107 = scmp.ne.s32.totalorder %s98, %s99
      %p108 = scmp.eq.s32.totalorder %s41, 0
      %p109 = por %p107, %p108
      %p110 = scmp.ne.s32.totalorder %s98, %s99
      %p111 = scmp.eq.s32.totalorder %s42, 1
      %p112 = por %p110, %p111
      %p114 = scmp.ne.s32.totalorder %s99, %s113
      %p115 = scmp.eq.s32.totalorder %s42, 0
      %p116 = por %p114, %p115
      %s118 = sadd.s32 %s117, 1
      %p121 = scmp.eq.s32.totalorder %s36, 1
      %p122 = scmp.ne.s32.totalorder %s117, %s119
      %p123 = scmp.eq.s32.totalorder %s36, 0
      %p124 = por %p122, %p123
      %p125 = scmp.ne.s32.totalorder %s117, %s119
      %p126 = scmp.eq.s32.totalorder %s41, 1
      %p127 = por %p125, %p126
      %p128 = scmp.ne.s32.totalorder %s119, %s120
      %p129 = scmp.eq.s32.totalorder %s41, 0
      %p130 = por %p128, %p129
      %p131 = scmp.ne.s32.totalorder %s119, %s120
      %p132 = scmp.eq.s32.totalorder %s42, 1
      %p133 = por %p131, %p132
      %p135 = scmp.ne.s32.totalorder %s120, %s134
      %p136 = scmp.eq.s32.totalorder %s42, 0
      %p137 = por %p135, %p136
      %s138 = ssub.s32 %s36, %s43
      %p139 = scmp.eq.s32.totalorder %s138, 0
      %s141 = sadd.s32 %s140, 1
      %s142 = scalar_select %p139, %s140, %s141
      %p145 = pneg %p139
      %p146 = scmp.eq.s32.totalorder %s36, 1
      %p147 = por %p145, %p146
      %p148 = scmp.ne.s32.totalorder %s140, %s143
      %p149 = scmp.eq.s32.totalorder %s36, 0
      %p150 = por %p148, %p149
      %p151 = scmp.ne.s32.totalorder %s140, %s143
      %p152 = scmp.eq.s32.totalorder %s41, 1
      %p153 = por %p151, %p152
      %p154 = scmp.ne.s32.totalorder %s143, %s144
      %p155 = scmp.eq.s32.totalorder %s41, 0
      %p156 = por %p154, %p155
      %p157 = scmp.ne.s32.totalorder %s143, %s144
      %p158 = scmp.eq.s32.totalorder %s42, 1
      %p159 = por %p157, %p158
      %p161 = scmp.ne.s32.totalorder %s144, %s160
      %p162 = scmp.eq.s32.totalorder %s42, 0
      %p163 = por %p161, %p162
      %s164 = ssub.s32 %s36, %s43
      %p165 = scmp.eq.s32.totalorder %s164, 0
      %s167 = sadd.s32 %s166, 1
      %s168 = scalar_select %p165, %s166, %s167
      %p171 = pneg %p165
      %p172 = scmp.eq.s32.totalorder %s36, 1
      %p173 = por %p171, %p172
      %p174 = scmp.ne.s32.totalorder %s166, %s169
      %p175 = scmp.eq.s32.totalorder %s36, 0
      %p176 = por %p174, %p175
      %p177 = scmp.ne.s32.totalorder %s166, %s169
      %p178 = scmp.eq.s32.totalorder %s41, 1
      %p179 = por %p177, %p178
      %p180 = scmp.ne.s32.totalorder %s169, %s170
      %p181 = scmp.eq.s32.totalorder %s41, 0
      %p182 = por %p180, %p181
      %p183 = scmp.ne.s32.totalorder %s169, %s170
      %p184 = scmp.eq.s32.totalorder %s42, 1
      %p185 = por %p183, %p184
      %p187 = scmp.ne.s32.totalorder %s170, %s186
      %p188 = scmp.eq.s32.totalorder %s42, 0
      %p189 = por %p187, %p188
      %s190 = ssub.s32 %s36, %s43
      %p191 = scmp.eq.s32.totalorder %s190, 0
      %s193 = sadd.s32 %s192, 1
      %s194 = scalar_select %p191, %s192, %s193
      %p197 = pneg %p191
      %p198 = scmp.eq.s32.totalorder %s36, 1
      %p199 = por %p197, %p198
      %p200 = scmp.ne.s32.totalorder %s192, %s195
      %p201 = scmp.eq.s32.totalorder %s36, 0
      %p202 = por %p200, %p201
      %p203 = scmp.ne.s32.totalorder %s192, %s195
      %p204 = scmp.eq.s32.totalorder %s41, 1
      %p205 = por %p203, %p204
      %p206 = scmp.ne.s32.totalorder %s195, %s196
      %p207 = scmp.eq.s32.totalorder %s41, 0
      %p208 = por %p206, %p207
      %p209 = scmp.ne.s32.totalorder %s195, %s196
      %p210 = scmp.eq.s32.totalorder %s42, 1
      %p211 = por %p209, %p210
      %p213 = scmp.ne.s32.totalorder %s196, %s212
      %p214 = scmp.eq.s32.totalorder %s42, 0
      %p215 = por %p213, %p214
      %s216 = ssub.s32 %s36, %s43
      %p217 = scmp.eq.s32.totalorder %s216, 0
      %s219 = sadd.s32 %s218, 1
      %s220 = scalar_select %p217, %s218, %s219
      %p223 = pneg %p217
      %p224 = scmp.eq.s32.totalorder %s36, 1
      %p225 = por %p223, %p224
      %p226 = scmp.ne.s32.totalorder %s218, %s221
      %p227 = scmp.eq.s32.totalorder %s36, 0
      %p228 = por %p226, %p227
      %p229 = scmp.ne.s32.totalorder %s218, %s221
      %p230 = scmp.eq.s32.totalorder %s41, 1
      %p231 = por %p229, %p230
      %p232 = scmp.ne.s32.totalorder %s221, %s222
      %p233 = scmp.eq.s32.totalorder %s41, 0
      %p234 = por %p232, %p233
      %p235 = scmp.ne.s32.totalorder %s221, %s222
      %p236 = scmp.eq.s32.totalorder %s42, 1
      %p237 = por %p235, %p236
      %p239 = scmp.ne.s32.totalorder %s222, %s238
      %p240 = scmp.eq.s32.totalorder %s42, 0
      %p241 = por %p239, %p240
      %s243 = sadd.s32 %s242, 1
      %p246 = scmp.eq.s32.totalorder %s36, 1
      %p247 = scmp.ne.s32.totalorder %s242, %s244
      %p248 = scmp.eq.s32.totalorder %s36, 0
      %p249 = por %p247, %p248
      %p250 = scmp.ne.s32.totalorder %s242, %s244
      %p251 = scmp.eq.s32.totalorder %s41, 1
      %p252 = por %p250, %p251
      %p253 = scmp.ne.s32.totalorder %s244, %s245
      %p254 = scmp.eq.s32.totalorder %s41, 0
      %p255 = por %p253, %p254
      %p256 = scmp.ne.s32.totalorder %s244, %s245
      %p257 = scmp.eq.s32.totalorder %s42, 1
      %p258 = por %p256, %p257
      %p260 = scmp.ne.s32.totalorder %s245, %s259
      %p261 = scmp.eq.s32.totalorder %s42, 0
      %p262 = por %p260, %p261
      %s264 = sadd.s32 %s263, 1
      %p267 = scmp.eq.s32.totalorder %s36, 1
      %p268 = scmp.ne.s32.totalorder %s263, %s265
      %p269 = scmp.eq.s32.totalorder %s36, 0
      %p270 = por %p268, %p269
      %p271 = scmp.ne.s32.totalorder %s263, %s265
      %p272 = scmp.eq.s32.totalorder %s41, 1
      %p273 = por %p271, %p272
      %p274 = scmp.ne.s32.totalorder %s265, %s266
      %p275 = scmp.eq.s32.totalorder %s41, 0
      %p276 = por %p274, %p275
      %p277 = scmp.ne.s32.totalorder %s265, %s266
      %p278 = scmp.eq.s32.totalorder %s42, 1
      %p279 = por %p277, %p278
      %p281 = scmp.ne.s32.totalorder %s266, %s280
      %p282 = scmp.eq.s32.totalorder %s42, 0
      %p283 = por %p281, %p282
      %s285 = sadd.s32 %s284, 1
      %p288 = scmp.eq.s32.totalorder %s36, 1
      %p289 = scmp.ne.s32.totalorder %s284, %s286
      %p290 = scmp.eq.s32.totalorder %s36, 0
      %p291 = por %p289, %p290
      %p292 = scmp.ne.s32.totalorder %s284, %s286
      %p293 = scmp.eq.s32.totalorder %s41, 1
      %p294 = por %p292, %p293
      %p295 = scmp.ne.s32.totalorder %s286, %s287
      %p296 = scmp.eq.s32.totalorder %s41, 0
      %p297 = por %p295, %p296
      %p298 = scmp.ne.s32.totalorder %s286, %s287
      %p299 = scmp.eq.s32.totalorder %s42, 1
      %p300 = por %p298, %p299
      %p302 = scmp.ne.s32.totalorder %s287, %s301
      %p303 = scmp.eq.s32.totalorder %s42, 0
      %p304 = por %p302, %p303
      %s306 = sadd.s32 %s305, 1
      %p309 = scmp.eq.s32.totalorder %s36, 1
      %p310 = scmp.ne.s32.totalorder %s305, %s307
      %p311 = scmp.eq.s32.totalorder %s36, 0
      %p312 = por %p310, %p311
      %p313 = scmp.ne.s32.totalorder %s305, %s307
      %p314 = scmp.eq.s32.totalorder %s41, 1
      %p315 = por %p313, %p314
      %p316 = scmp.ne.s32.totalorder %s307, %s308
      %p317 = scmp.eq.s32.totalorder %s41, 0
      %p318 = por %p316, %p317
      %p319 = scmp.ne.s32.totalorder %s307, %s308
      %p320 = scmp.eq.s32.totalorder %s42, 1
      %p321 = por %p319, %p320
      %p323 = scmp.ne.s32.totalorder %s308, %s322
      %p324 = scmp.eq.s32.totalorder %s42, 0
      %p325 = por %p323, %p324
      %s327 = sadd.s32 %s326, 1
      %p330 = scmp.eq.s32.totalorder %s36, 1
      %p331 = scmp.ne.s32.totalorder %s326, %s328
      %p332 = scmp.eq.s32.totalorder %s36, 0
      %p333 = por %p331, %p332
      %p334 = scmp.ne.s32.totalorder %s326, %s328
      %p335 = scmp.eq.s32.totalorder %s41, 1
      %p336 = por %p334, %p335
      %p337 = scmp.ne.s32.totalorder %s328, %s329
      %p338 = scmp.eq.s32.totalorder %s41, 0
      %p339 = por %p337, %p338
      %p340 = scmp.ne.s32.totalorder %s328, %s329
      %p341 = scmp.eq.s32.totalorder %s42, 1
      %p342 = por %p340, %p341
      %p344 = scmp.ne.s32.totalorder %s329, %s343
      %p345 = scmp.eq.s32.totalorder %s42, 0
      %p346 = por %p344, %p345
      %s348 = sadd.s32 %s347, 1
      %p351 = scmp.eq.s32.totalorder %s36, 1
      %p352 = scmp.ne.s32.totalorder %s347, %s349
      %p353 = scmp.eq.s32.totalorder %s36, 0
      %p354 = por %p352, %p353
      %p355 = scmp.ne.s32.totalorder %s347, %s349
      %p356 = scmp.eq.s32.totalorder %s41, 1
      %p357 = por %p355, %p356
      %p358 = scmp.ne.s32.totalorder %s349, %s350
      %p359 = scmp.eq.s32.totalorder %s41, 0
      %p360 = por %p358, %p359
      %p361 = scmp.ne.s32.totalorder %s349, %s350
      %p362 = scmp.eq.s32.totalorder %s42, 1
      %p363 = por %p361, %p362
      %p365 = scmp.ne.s32.totalorder %s350, %s364
      %p366 = scmp.eq.s32.totalorder %s42, 0
      %p367 = por %p365, %p366
      %s369 = sadd.s32 %s368, 1
      %p372 = scmp.eq.s32.totalorder %s36, 1
      %p373 = scmp.ne.s32.totalorder %s368, %s370
      %p374 = scmp.eq.s32.totalorder %s36, 0
      %p375 = por %p373, %p374
      %p376 = scmp.ne.s32.totalorder %s368, %s370
      %p377 = scmp.eq.s32.totalorder %s41, 1
      %p378 = por %p376, %p377
      %p379 = scmp.ne.s32.totalorder %s370, %s371
      %p380 = scmp.eq.s32.totalorder %s41, 0
      %p381 = por %p379, %p380
      %p382 = scmp.ne.s32.totalorder %s370, %s371
      %p383 = scmp.eq.s32.totalorder %s42, 1
      %p384 = por %p382, %p383
      %p386 = scmp.ne.s32.totalorder %s371, %s385
      %p387 = scmp.eq.s32.totalorder %s42, 0
      %p388 = por %p386, %p387
      %s390 = sadd.s32 %s389, 1
      %p393 = scmp.eq.s32.totalorder %s36, 1
      %p394 = scmp.ne.s32.totalorder %s389, %s391
      %p395 = scmp.eq.s32.totalorder %s36, 0
      %p396 = por %p394, %p395
      %p397 = scmp.ne.s32.totalorder %s389, %s391
      %p398 = scmp.eq.s32.totalorder %s41, 1
      %p399 = por %p397, %p398
      %p400 = scmp.ne.s32.totalorder %s391, %s392
      %p401 = scmp.eq.s32.totalorder %s41, 0
      %p402 = por %p400, %p401
      %p403 = scmp.ne.s32.totalorder %s391, %s392
      %p404 = scmp.eq.s32.totalorder %s42, 1
      %p405 = por %p403, %p404
      %p407 = scmp.ne.s32.totalorder %s392, %s406
      %p408 = scmp.eq.s32.totalorder %s42, 0
      %p409 = por %p407, %p408
      %s411 = sadd.s32 %s410, 1
      %p414 = scmp.eq.s32.totalorder %s36, 1
      %p415 = scmp.ne.s32.totalorder %s410, %s412
      %p416 = scmp.eq.s32.totalorder %s36, 0
      %p417 = por %p415, %p416
      %p418 = scmp.ne.s32.totalorder %s410, %s412
      %p419 = scmp.eq.s32.totalorder %s41, 1
      %p420 = por %p418, %p419
      %p421 = scmp.ne.s32.totalorder %s412, %s413
      %p422 = scmp.eq.s32.totalorder %s41, 0
      %p423 = por %p421, %p422
      %p424 = scmp.ne.s32.totalorder %s412, %s413
      %p425 = scmp.eq.s32.totalorder %s42, 1
      %p426 = por %p424, %p425
      %p428 = scmp.ne.s32.totalorder %s413, %s427
      %p429 = scmp.eq.s32.totalorder %s42, 0
      %p430 = por %p428, %p429
      %s432 = sadd.s32 %s431, 1
      %p435 = scmp.eq.s32.totalorder %s36, 1
      %p436 = scmp.ne.s32.totalorder %s431, %s433
      %p437 = scmp.eq.s32.totalorder %s36, 0
      %p438 = por %p436, %p437
      %p439 = scmp.ne.s32.totalorder %s431, %s433
      %p440 = scmp.eq.s32.totalorder %s41, 1
      %p441 = por %p439, %p440
      %p442 = scmp.ne.s32.totalorder %s433, %s434
      %p443 = scmp.eq.s32.totalorder %s41, 0
      %p444 = por %p442, %p443
      %p445 = scmp.ne.s32.totalorder %s433, %s434
      %p446 = scmp.eq.s32.totalorder %s42, 1
      %p447 = por %p445, %p446
      %p449 = scmp.ne.s32.totalorder %s434, %s448
      %p450 = scmp.eq.s32.totalorder %s42, 0
      %p451 = por %p449, %p450
      %s453 = sadd.s32 %s452, 1
      %p456 = scmp.eq.s32.totalorder %s36, 1
      %p457 = scmp.ne.s32.totalorder %s452, %s454
      %p458 = scmp.eq.s32.totalorder %s36, 0
      %p459 = por %p457, %p458
      %p460 = scmp.ne.s32.totalorder %s452, %s454
      %p461 = scmp.eq.s32.totalorder %s41, 1
      %p462 = por %p460, %p461
      %p463 = scmp.ne.s32.totalorder %s454, %s455
      %p464 = scmp.eq.s32.totalorder %s41, 0
      %p465 = por %p463, %p464
      %p466 = scmp.ne.s32.totalorder %s454, %s455
      %p467 = scmp.eq.s32.totalorder %s42, 1
      %p468 = por %p466, %p467
      %p470 = scmp.ne.s32.totalorder %s455, %s469
      %p471 = scmp.eq.s32.totalorder %s42, 0
      %p472 = por %p470, %p471
      %s474 = sadd.s32 %s473, 1
      %p477 = scmp.eq.s32.totalorder %s36, 1
      %p478 = scmp.ne.s32.totalorder %s473, %s475
      %p479 = scmp.eq.s32.totalorder %s36, 0
      %p480 = por %p478, %p479
      %p481 = scmp.ne.s32.totalorder %s473, %s475
      %p482 = scmp.eq.s32.totalorder %s41, 1
      %p483 = por %p481, %p482
      %p484 = scmp.ne.s32.totalorder %s475, %s476
      %p485 = scmp.eq.s32.totalorder %s41, 0
      %p486 = por %p484, %p485
      %p487 = scmp.ne.s32.totalorder %s475, %s476
      %p488 = scmp.eq.s32.totalorder %s42, 1
      %p489 = por %p487, %p488
      %p491 = scmp.ne.s32.totalorder %s476, %s490
      %p492 = scmp.eq.s32.totalorder %s42, 0
      %p493 = por %p491, %p492
      %s495 = sadd.s32 %s494, 1
      %p498 = scmp.eq.s32.totalorder %s36, 1
      %p499 = scmp.ne.s32.totalorder %s494, %s496
      %p500 = scmp.eq.s32.totalorder %s36, 0
      %p501 = por %p499, %p500
      %p502 = scmp.ne.s32.totalorder %s494, %s496
      %p503 = scmp.eq.s32.totalorder %s41, 1
      %p504 = por %p502, %p503
      %p505 = scmp.ne.s32.totalorder %s496, %s497
      %p506 = scmp.eq.s32.totalorder %s41, 0
      %p507 = por %p505, %p506
      %p508 = scmp.ne.s32.totalorder %s496, %s497
      %p509 = scmp.eq.s32.totalorder %s42, 1
      %p510 = por %p508, %p509
      %p512 = scmp.ne.s32.totalorder %s497, %s511
      %p513 = scmp.eq.s32.totalorder %s42, 0
      %p514 = por %p512, %p513
      %s516 = sadd.s32 %s515, 1
      %p519 = scmp.eq.s32.totalorder %s36, 1
      %p520 = scmp.ne.s32.totalorder %s515, %s517
      %p521 = scmp.eq.s32.totalorder %s36, 0
      %p522 = por %p520, %p521
      %p523 = scmp.ne.s32.totalorder %s515, %s517
      %p524 = scmp.eq.s32.totalorder %s41, 1
      %p525 = por %p523, %p524
      %p526 = scmp.ne.s32.totalorder %s517, %s518
      %p527 = scmp.eq.s32.totalorder %s41, 0
      %p528 = por %p526, %p527
      %p529 = scmp.ne.s32.totalorder %s517, %s518
      %p530 = scmp.eq.s32.totalorder %s42, 1
      %p531 = por %p529, %p530
      %p533 = scmp.ne.s32.totalorder %s518, %s532
      %p534 = scmp.eq.s32.totalorder %s42, 0
      %p535 = por %p533, %p534
      %s537 = sadd.s32 %s536, 1
      %p540 = scmp.eq.s32.totalorder %s36, 1
      %p541 = scmp.ne.s32.totalorder %s536, %s538
      %p542 = scmp.eq.s32.totalorder %s36, 0
      %p543 = por %p541, %p542
      %p544 = scmp.ne.s32.totalorder %s536, %s538
      %p545 = scmp.eq.s32.totalorder %s41, 1
      %p546 = por %p544, %p545
      %p547 = scmp.ne.s32.totalorder %s538, %s539
      %p548 = scmp.eq.s32.totalorder %s41, 0
      %p549 = por %p547, %p548
      %p550 = scmp.ne.s32.totalorder %s538, %s539
      %p551 = scmp.eq.s32.totalorder %s42, 1
      %p552 = por %p550, %p551
      %p554 = scmp.ne.s32.totalorder %s539, %s553
      %p555 = scmp.eq.s32.totalorder %s42, 0
      %p556 = por %p554, %p555
      %s558 = sadd.s32 %s557, 1
      %p561 = scmp.eq.s32.totalorder %s36, 1
      %p562 = scmp.ne.s32.totalorder %s557, %s559
      %p563 = scmp.eq.s32.totalorder %s36, 0
      %p564 = por %p562, %p563
      %p565 = scmp.ne.s32.totalorder %s557, %s559
      %p566 = scmp.eq.s32.totalorder %s41, 1
      %p567 = por %p565, %p566
      %p568 = scmp.ne.s32.totalorder %s559, %s560
      %p569 = scmp.eq.s32.totalorder %s41, 0
      %p570 = por %p568, %p569
      %p571 = scmp.ne.s32.totalorder %s559, %s560
      %p572 = scmp.eq.s32.totalorder %s42, 1
      %p573 = por %p571, %p572
      %p575 = scmp.ne.s32.totalorder %s560, %s574
      %p576 = scmp.eq.s32.totalorder %s42, 0
      %p577 = por %p575, %p576
      %s579 = sadd.s32 %s578, 1
      %p582 = scmp.eq.s32.totalorder %s36, 1
      %p583 = scmp.ne.s32.totalorder %s578, %s580
      %p584 = scmp.eq.s32.totalorder %s36, 0
      %p585 = por %p583, %p584
      %p586 = scmp.ne.s32.totalorder %s578, %s580
      %p587 = scmp.eq.s32.totalorder %s41, 1
      %p588 = por %p586, %p587
      %p589 = scmp.ne.s32.totalorder %s580, %s581
      %p590 = scmp.eq.s32.totalorder %s41, 0
      %p591 = por %p589, %p590
      %p592 = scmp.ne.s32.totalorder %s580, %s581
      %p593 = scmp.eq.s32.totalorder %s42, 1
      %p594 = por %p592, %p593
      %p596 = scmp.ne.s32.totalorder %s581, %s595
      %p597 = scmp.eq.s32.totalorder %s42, 0
      %p598 = por %p596, %p597
      %s600 = sadd.s32 %s599, 1
      %p603 = scmp.eq.s32.totalorder %s36, 1
      %p604 = scmp.ne.s32.totalorder %s599, %s601
      %p605 = scmp.eq.s32.totalorder %s36, 0
      %p606 = por %p604, %p605
      %p607 = scmp.ne.s32.totalorder %s599, %s601
      %p608 = scmp.eq.s32.totalorder %s41, 1
      %p609 = por %p607, %p608
      %p610 = scmp.ne.s32.totalorder %s601, %s602
      %p611 = scmp.eq.s32.totalorder %s41, 0
      %p612 = por %p610, %p611
      %p613 = scmp.ne.s32.totalorder %s601, %s602
      %p614 = scmp.eq.s32.totalorder %s42, 1
      %p615 = por %p613, %p614
      %p617 = scmp.ne.s32.totalorder %s602, %s616
      %p618 = scmp.eq.s32.totalorder %s42, 0
      %p619 = por %p617, %p618
      %s621 = sadd.s32 %s620, 1
      %p624 = scmp.eq.s32.totalorder %s36, 1
      %p625 = scmp.ne.s32.totalorder %s620, %s622
      %p626 = scmp.eq.s32.totalorder %s36, 0
      %p627 = por %p625, %p626
      %p628 = scmp.ne.s32.totalorder %s620, %s622
      %p629 = scmp.eq.s32.totalorder %s41, 1
      %p630 = por %p628, %p629
      %p631 = scmp.ne.s32.totalorder %s622, %s623
      %p632 = scmp.eq.s32.totalorder %s41, 0
      %p633 = por %p631, %p632
      %p634 = scmp.ne.s32.totalorder %s622, %s623
      %p635 = scmp.eq.s32.totalorder %s42, 1
      %p636 = por %p634, %p635
      %p638 = scmp.ne.s32.totalorder %s623, %s637
      %p639 = scmp.eq.s32.totalorder %s42, 0
      %p640 = por %p638, %p639
      %s641 = ssub.s32 %s36, %s43
      %p642 = scmp.eq.s32.totalorder %s641, 0
      %s644 = sadd.s32 %s643, 1
      %s645 = scalar_select %p642, %s643, %s644
      %p648 = pneg %p642
      %p649 = scmp.eq.s32.totalorder %s36, 1
      %p650 = por %p648, %p649
      %p651 = scmp.ne.s32.totalorder %s643, %s646
      %p652 = scmp.eq.s32.totalorder %s36, 0
      %p653 = por %p651, %p652
      %p654 = scmp.ne.s32.totalorder %s643, %s646
      %p655 = scmp.eq.s32.totalorder %s41, 1
      %p656 = por %p654, %p655
      %p657 = scmp.ne.s32.totalorder %s646, %s647
      %p658 = scmp.eq.s32.totalorder %s41, 0
      %p659 = por %p657, %p658
      %p660 = scmp.ne.s32.totalorder %s646, %s647
      %p661 = scmp.eq.s32.totalorder %s42, 1
      %p662 = por %p660, %p661
      %p664 = scmp.ne.s32.totalorder %s647, %s663
      %p665 = scmp.eq.s32.totalorder %s42, 0
      %p666 = por %p664, %p665
      %s667 = ssub.s32 %s36, %s43
      %p668 = scmp.eq.s32.totalorder %s667, 0
      %s670 = sadd.s32 %s669, 1
      %s671 = scalar_select %p668, %s669, %s670
      %p674 = pneg %p668
      %p675 = scmp.eq.s32.totalorder %s36, 1
      %p676 = por %p674, %p675
      %p677 = scmp.ne.s32.totalorder %s669, %s672
      %p678 = scmp.eq.s32.totalorder %s36, 0
      %p679 = por %p677, %p678
      %p680 = scmp.ne.s32.totalorder %s669, %s672
      %p681 = scmp.eq.s32.totalorder %s41, 1
      %p682 = por %p680, %p681
      %p683 = scmp.ne.s32.totalorder %s672, %s673
      %p684 = scmp.eq.s32.totalorder %s41, 0
      %p685 = por %p683, %p684
      %p686 = scmp.ne.s32.totalorder %s672, %s673
      %p687 = scmp.eq.s32.totalorder %s42, 1
      %p688 = por %p686, %p687
      %p690 = scmp.ne.s32.totalorder %s673, %s689
      %p691 = scmp.eq.s32.totalorder %s42, 0
      %p692 = por %p690, %p691
      %p693 = scmp.le.s32.totalorder 1, %s36
      %p694 = scmp.lt.s32.totalorder %s36, 3
      %p695 = pnand %p693, %p694
      %p696 = pneg %p695
      // Predicated region
      $region9: #{_lambda_.1} parent=5 // pred_check
        _
      $region10: #{_lambda_.1} parent=5 // pred_check_branch
        %698 = sbr.rel (%p695) target = $region12
      $region11: #{_lambda_.1} parent=5 // pred_region
        %s699 = ssub.s32 %s36, 1
        // Predicated region
        $region13: #{_lambda_.1} parent=11 // pred_check
          %p700 = pneg %p109
        $region14: #{_lambda_.1} parent=11 // pred_check_branch
          %702 = sbr.rel (%p700) target = $region16
        $region15: #{_lambda_.1} parent=11 // pred_region
          _
        $region16: #{_lambda_.1} parent=11 // pred_fallthru
          _
        // Predicated region
        $region17: #{_lambda_.1} parent=11 // pred_check
          %p703 = pneg %p130
        $region18: #{_lambda_.1} parent=11 // pred_check_branch
          %705 = sbr.rel (%p703) target = $region20
        $region19: #{_lambda_.1} parent=11 // pred_region
          _
        $region20: #{_lambda_.1} parent=11 // pred_fallthru
          _
        // Predicated region
        $region21: #{_lambda_.1} parent=11 // pred_check
          %p706 = pneg %p255
        $region22: #{_lambda_.1} parent=11 // pred_check_branch
          %708 = sbr.rel (%p706) target = $region24
        $region23: #{_lambda_.1} parent=11 // pred_region
          _
        $region24: #{_lambda_.1} parent=11 // pred_fallthru
          _
        // Predicated region
        $region25: #{_lambda_.1} parent=11 // pred_check
          %p709 = pneg %p276
        $region26: #{_lambda_.1} parent=11 // pred_check_branch
          %711 = sbr.rel (%p709) target = $region28
        $region27: #{_lambda_.1} parent=11 // pred_region
          _
        $region28: #{_lambda_.1} parent=11 // pred_fallthru
          _
        // Predicated region
        $region29: #{_lambda_.1} parent=11 // pred_check
          %p712 = pneg %p297
        $region30: #{_lambda_.1} parent=11 // pred_check_branch
          %714 = sbr.rel (%p712) target = $region32
        $region31: #{_lambda_.1} parent=11 // pred_region
          _
        $region32: #{_lambda_.1} parent=11 // pred_fallthru
          _
        // Predicated region
        $region33: #{_lambda_.1} parent=11 // pred_check
          %p715 = pneg %p318
        $region34: #{_lambda_.1} parent=11 // pred_check_branch
          %717 = sbr.rel (%p715) target = $region36
        $region35: #{_lambda_.1} parent=11 // pred_region
          _
        $region36: #{_lambda_.1} parent=11 // pred_fallthru
          _
        // Predicated region
        $region37: #{_lambda_.1} parent=11 // pred_check
          %p718 = pneg %p339
        $region38: #{_lambda_.1} parent=11 // pred_check_branch
          %720 = sbr.rel (%p718) target = $region40
        $region39: #{_lambda_.1} parent=11 // pred_region
          _
        $region40: #{_lambda_.1} parent=11 // pred_fallthru
          _
        // Predicated region
        $region41: #{_lambda_.1} parent=11 // pred_check
          %p721 = pneg %p360
        $region42: #{_lambda_.1} parent=11 // pred_check_branch
          %723 = sbr.rel (%p721) target = $region44
        $region43: #{_lambda_.1} parent=11 // pred_region
          _
        $region44: #{_lambda_.1} parent=11 // pred_fallthru
          _
        // Predicated region
        $region45: #{_lambda_.1} parent=11 // pred_check
          %p724 = pneg %p381
        $region46: #{_lambda_.1} parent=11 // pred_check_branch
          %726 = sbr.rel (%p724) target = $region48
        $region47: #{_lambda_.1} parent=11 // pred_region
          _
        $region48: #{_lambda_.1} parent=11 // pred_fallthru
          _
        // Predicated region
        $region49: #{_lambda_.1} parent=11 // pred_check
          %p727 = pneg %p402
        $region50: #{_lambda_.1} parent=11 // pred_check_branch
          %729 = sbr.rel (%p727) target = $region52
        $region51: #{_lambda_.1} parent=11 // pred_region
          _
        $region52: #{_lambda_.1} parent=11 // pred_fallthru
          _
        // Predicated region
        $region53: #{_lambda_.1} parent=11 // pred_check
          %p730 = pneg %p423
        $region54: #{_lambda_.1} parent=11 // pred_check_branch
          %732 = sbr.rel (%p730) target = $region56
        $region55: #{_lambda_.1} parent=11 // pred_region
          _
        $region56: #{_lambda_.1} parent=11 // pred_fallthru
          _
        // Predicated region
        $region57: #{_lambda_.1} parent=11 // pred_check
          %p733 = pneg %p444
        $region58: #{_lambda_.1} parent=11 // pred_check_branch
          %735 = sbr.rel (%p733) target = $region60
        $region59: #{_lambda_.1} parent=11 // pred_region
          _
        $region60: #{_lambda_.1} parent=11 // pred_fallthru
          _
        // Predicated region
        $region61: #{_lambda_.1} parent=11 // pred_check
          %p736 = pneg %p465
        $region62: #{_lambda_.1} parent=11 // pred_check_branch
          %738 = sbr.rel (%p736) target = $region64
        $region63: #{_lambda_.1} parent=11 // pred_region
          _
        $region64: #{_lambda_.1} parent=11 // pred_fallthru
          _
        // Predicated region
        $region65: #{_lambda_.1} parent=11 // pred_check
          %p739 = pneg %p486
        $region66: #{_lambda_.1} parent=11 // pred_check_branch
          %741 = sbr.rel (%p739) target = $region68
        $region67: #{_lambda_.1} parent=11 // pred_region
          _
        $region68: #{_lambda_.1} parent=11 // pred_fallthru
          _
        // Predicated region
        $region69: #{_lambda_.1} parent=11 // pred_check
          %p742 = pneg %p507
        $region70: #{_lambda_.1} parent=11 // pred_check_branch
          %744 = sbr.rel (%p742) target = $region72
        $region71: #{_lambda_.1} parent=11 // pred_region
          _
        $region72: #{_lambda_.1} parent=11 // pred_fallthru
          _
        // Predicated region
        $region73: #{_lambda_.1} parent=11 // pred_check
          %p745 = pneg %p528
        $region74: #{_lambda_.1} parent=11 // pred_check_branch
          %747 = sbr.rel (%p745) target = $region76
        $region75: #{_lambda_.1} parent=11 // pred_region
          _
        $region76: #{_lambda_.1} parent=11 // pred_fallthru
          _
        // Predicated region
        $region77: #{_lambda_.1} parent=11 // pred_check
          %p748 = pneg %p549
        $region78: #{_lambda_.1} parent=11 // pred_check_branch
          %750 = sbr.rel (%p748) target = $region80
        $region79: #{_lambda_.1} parent=11 // pred_region
          _
        $region80: #{_lambda_.1} parent=11 // pred_fallthru
          _
        // Predicated region
        $region81: #{_lambda_.1} parent=11 // pred_check
          %p751 = pneg %p570
        $region82: #{_lambda_.1} parent=11 // pred_check_branch
          %753 = sbr.rel (%p751) target = $region84
        $region83: #{_lambda_.1} parent=11 // pred_region
          _
        $region84: #{_lambda_.1} parent=11 // pred_fallthru
          _
        // Predicated region
        $region85: #{_lambda_.1} parent=11 // pred_check
          %p754 = pneg %p591
        $region86: #{_lambda_.1} parent=11 // pred_check_branch
          %756 = sbr.rel (%p754) target = $region88
        $region87: #{_lambda_.1} parent=11 // pred_region
          _
        $region88: #{_lambda_.1} parent=11 // pred_fallthru
          _
        // Predicated region
        $region89: #{_lambda_.1} parent=11 // pred_check
          %p757 = pneg %p612
        $region90: #{_lambda_.1} parent=11 // pred_check_branch
          %759 = sbr.rel (%p757) target = $region92
        $region91: #{_lambda_.1} parent=11 // pred_region
          _
        $region92: #{_lambda_.1} parent=11 // pred_fallthru
          _
        // Predicated region
        $region93: #{_lambda_.1} parent=11 // pred_check
          %p760 = pneg %p633
        $region94: #{_lambda_.1} parent=11 // pred_check_branch
          %762 = sbr.rel (%p760) target = $region96
        $region95: #{_lambda_.1} parent=11 // pred_region
          %s764 = ssub.s32 16, 16
          %765 = vsyncadd [#allocation3], %s764
          %s767 = sshll.u32 %s26, 4
          %s768 = int_to_ptr.vmem [resolvable:$true] %s767
          %770 = dma.vmem_to_smem %s768, 16, [#allocation2], [#allocation3]
        $region96: #{_lambda_.1} parent=11 // pred_fallthru
          _
      $region12: #{_lambda_.1} parent=5 // pred_fallthru
        _
      %p771 = scmp.lt.s32.totalorder %s36, 2
      // Predicated region
      $region97: #{_lambda_.1} parent=5 // pred_check
        %p772 = pneg %p771
      $region98: #{_lambda_.1} parent=5 // pred_check_branch
        %774 = sbr.rel (%p772) target = $region100
      $region99: #{_lambda_.1} parent=5 // pred_region
        // Predicated region
        $region101: #{_lambda_.1} parent=99 // pred_check
          %p775 = pneg %p56
        $region102: #{_lambda_.1} parent=99 // pred_check_branch
          %777 = sbr.rel (%p775) target = $region104
        $region103: #{_lambda_.1} parent=99 // pred_region
          %p778 = scmp.lt.s32.totalorder %s36, 1
          %s779 = scalar_select %p778, %s36, 1
          %s780 = smul.addr %s779, 8
          %s781 = scalar_lea.vmem %s0, %s780
        $region104: #{_lambda_.1} parent=99 // pred_fallthru
          _
        // Predicated region
        $region105: #{_lambda_.1} parent=99 // pred_check
          %p782 = pneg %p82
        $region106: #{_lambda_.1} parent=99 // pred_check_branch
          %784 = sbr.rel (%p782) target = $region108
        $region107: #{_lambda_.1} parent=99 // pred_region
          %p785 = scmp.lt.s32.totalorder %s36, 1
          %s786 = scalar_select %p785, %s36, 1
          %s787 = smul.addr %s786, 2
          %s788 = smul.addr %s787, 8
          %s789 = scalar_lea.vmem %s1, %s788
        $region108: #{_lambda_.1} parent=99 // pred_fallthru
          _
        // Predicated region
        $region109: #{_lambda_.1} parent=99 // pred_check
          %p790 = pneg %p150
        $region110: #{_lambda_.1} parent=99 // pred_check_branch
          %792 = sbr.rel (%p790) target = $region112
        $region111: #{_lambda_.1} parent=99 // pred_region
          %p793 = scmp.lt.s32.totalorder %s36, 1
          %s794 = scalar_select %p793, %s36, 1
          %s795 = smul.addr %s794, 8
          %s796 = scalar_lea.vmem %s4, %s795
        $region112: #{_lambda_.1} parent=99 // pred_fallthru
          _
        // Predicated region
        $region113: #{_lambda_.1} parent=99 // pred_check
          %p797 = pneg %p176
        $region114: #{_lambda_.1} parent=99 // pred_check_branch
          %799 = sbr.rel (%p797) target = $region116
        $region115: #{_lambda_.1} parent=99 // pred_region
          %p800 = scmp.lt.s32.totalorder %s36, 1
          %s801 = scalar_select %p800, %s36, 1
          %s802 = scalar_lea.vmem %s5, %s801
        $region116: #{_lambda_.1} parent=99 // pred_fallthru
          _
        // Predicated region
        $region117: #{_lambda_.1} parent=99 // pred_check
          %p803 = pneg %p202
        $region118: #{_lambda_.1} parent=99 // pred_check_branch
          %805 = sbr.rel (%p803) target = $region120
        $region119: #{_lambda_.1} parent=99 // pred_region
          %p806 = scmp.lt.s32.totalorder %s36, 1
          %s807 = scalar_select %p806, %s36, 1
          %s808 = smul.addr %s807, 2
          %s809 = smul.addr %s808, 8
          %s810 = scalar_lea.vmem %s6, %s809
        $region120: #{_lambda_.1} parent=99 // pred_fallthru
          _
        // Predicated region
        $region121: #{_lambda_.1} parent=99 // pred_check
          %p811 = pneg %p228
        $region122: #{_lambda_.1} parent=99 // pred_check_branch
          %813 = sbr.rel (%p811) target = $region124
        $region123: #{_lambda_.1} parent=99 // pred_region
          %p814 = scmp.lt.s32.totalorder %s36, 1
          %s815 = scalar_select %p814, %s36, 1
          %s816 = scalar_lea.vmem %s7, %s815
        $region124: #{_lambda_.1} parent=99 // pred_fallthru
          _
      $region100: #{_lambda_.1} parent=5 // pred_fallthru
        _
      %p817 = scmp.le.s32.totalorder 1, %s36
      %p818 = scmp.lt.s32.totalorder %s36, 3
      %p819 = pnand %p817, %p818
      %p820 = pneg %p819
      // Predicated region
      $region125: #{_lambda_.1} parent=5 // pred_check
        _
      $region126: #{_lambda_.1} parent=5 // pred_check_branch
        %822 = sbr.rel (%p819) target = $region128
      $region127: #{_lambda_.1} parent=5 // pred_region
        %s823 = ssub.s32 %s36, 1
        // Predicated region
        $region129: #{_lambda_.1} parent=127 // pred_check
          %p824 = pneg %p633
        $region130: #{_lambda_.1} parent=127 // pred_check_branch
          %826 = sbr.rel (%p824) target = $region132
        $region131: #{_lambda_.1} parent=127 // pred_region
          %827 = dma.done [#allocation3], 16
        $region132: #{_lambda_.1} parent=127 // pred_fallthru
          _
        %828 = sfence
        %p829 = scmp.lt.s32.totalorder %s41, 1
        %s830 = scalar_select %p829, %s41, 1
        %s831 = smul.addr %s830, 8
        %s832 = scalar_lea.vmem %s0, %s831
        %p833 = pneg %p62
        %p834 = pneg %p59
        %p835 = scmp.lt.s32.totalorder %s41, 1
        %s836 = scalar_select %p835, %s41, 1
        %s837 = smul.addr %s836, 2
        %s838 = smul.addr %s837, 8
        %s839 = scalar_lea.vmem %s1, %s838
        %p840 = pneg %p88
        %p841 = pneg %p85
        %p842 = pneg %p109
        %p843 = pneg %p106
        %p844 = pneg %p130
        %p845 = pneg %p127
        %p846 = scmp.lt.s32.totalorder %s41, 1
        %s847 = scalar_select %p846, %s41, 1
        %s848 = smul.addr %s847, 8
        %s849 = scalar_lea.vmem %s4, %s848
        %p850 = pneg %p156
        %p851 = pneg %p153
        %p852 = scmp.lt.s32.totalorder %s41, 1
        %s853 = scalar_select %p852, %s41, 1
        %s854 = scalar_lea.vmem %s5, %s853
        %p855 = pneg %p182
        %p856 = pneg %p179
        %p857 = scmp.lt.s32.totalorder %s41, 1
        %s858 = scalar_select %p857, %s41, 1
        %s859 = smul.addr %s858, 2
        %s860 = smul.addr %s859, 8
        %s861 = scalar_lea.vmem %s6, %s860
        %p862 = pneg %p208
        %p863 = pneg %p205
        %p864 = scmp.lt.s32.totalorder %s41, 1
        %s865 = scalar_select %p864, %s41, 1
        %s866 = scalar_lea.vmem %s7, %s865
        %p867 = pneg %p234
        %p868 = pneg %p231
        %p869 = pneg %p255
        %p870 = pneg %p252
        %p871 = pneg %p276
        %p872 = pneg %p273
        %p873 = pneg %p297
        %p874 = pneg %p294
        %p875 = pneg %p318
        %p876 = pneg %p315
        %p877 = pneg %p339
        %p878 = pneg %p336
        %p879 = pneg %p360
        %p880 = pneg %p357
        %p881 = pneg %p381
        %p882 = pneg %p378
        %p883 = pneg %p402
        %p884 = pneg %p399
        %p885 = pneg %p423
        %p886 = pneg %p420
        %p887 = pneg %p444
        %p888 = pneg %p441
        %p889 = pneg %p465
        %p890 = pneg %p462
        %p891 = pneg %p486
        %p892 = pneg %p483
        %p893 = pneg %p507
        %p894 = pneg %p504
        %p895 = pneg %p528
        %p896 = pneg %p525
        %p897 = pneg %p549
        %p898 = pneg %p546
        %p899 = pneg %p570
        %p900 = pneg %p567
        %p901 = pneg %p591
        %p902 = pneg %p588
        %p903 = pneg %p612
        %p904 = pneg %p609
        %p905 = pneg %p633
        %p906 = pneg %p630
        %p907 = pneg %p659
        %p908 = pneg %p656
        %p909 = scmp.lt.s32.totalorder %s41, 1
        %s910 = scalar_select %p909, %s41, 1
        %s911 = smul.addr %s910, 2
        %s912 = smul.addr %s911, 8
        %s913 = scalar_lea.vmem %s27, %s912
        %p914 = pneg %p685
        %p915 = pneg %p682
        %p916 = scmp.lt.s32.totalorder %s41, 1
        %s917 = scalar_select %p916, %s41, 1
        %s918 = smul.addr %s917, 2
        %s919 = smul.addr %s918, 8
        %s920 = scalar_lea.vmem %s28, %s919
        %p921 = scmp.lt.s32.totalorder %s41, 1
        %s922 = scalar_select %p921, %s41, 1
        %s923 = smul.addr %s922, 8
        %s924 = scalar_lea.vmem %s0, %s923
        %p925 = scmp.lt.s32.totalorder %s41, 1
        %s926 = scalar_select %p925, %s41, 1
        %s927 = smul.addr %s926, 2
        %s928 = smul.addr %s927, 8
        %s929 = scalar_lea.vmem %s1, %s928
        %p930 = scmp.lt.s32.totalorder %s41, 1
        %s931 = scalar_select %p930, %s41, 1
        %s932 = smul.addr %s931, 8
        %s933 = scalar_lea.vmem %s4, %s932
        %p934 = scmp.lt.s32.totalorder %s41, 1
        %s935 = scalar_select %p934, %s41, 1
        %s936 = scalar_lea.vmem %s5, %s935
        %p937 = scmp.lt.s32.totalorder %s41, 1
        %s938 = scalar_select %p937, %s41, 1
        %s939 = smul.addr %s938, 2
        %s940 = smul.addr %s939, 8
        %s941 = scalar_lea.vmem %s6, %s940
        %p942 = scmp.lt.s32.totalorder %s41, 1
        %s943 = scalar_select %p942, %s41, 1
        %s944 = scalar_lea.vmem %s7, %s943
        %p945 = scmp.lt.s32.totalorder %s41, 1
        %s946 = scalar_select %p945, %s41, 1
        %s947 = smul.addr %s946, 2
        %s948 = smul.addr %s947, 8
        %s949 = scalar_lea.vmem %s27, %s948
        %p950 = scmp.lt.s32.totalorder %s41, 1
        %s951 = scalar_select %p950, %s41, 1
        %s952 = smul.addr %s951, 2
        %s953 = smul.addr %s952, 8
        %s954 = scalar_lea.vmem %s28, %s953
        %s955 = sld [smem:[#allocation2]]
        %s956 = sld [smem:[#allocation2 + $0x1]]
        %v957 = vld [vmem:[%s924] sm:$0xff]
        %v958 = vld [vmem:[%s929] sm:$0xff]
        %v959 = vld [vmem:[%s929 + $0x8] sm:$0xff]
        %v960 = vld [vmem:[%s933] sm:$0xff]
        %v961 = vld [vmem:[%s936] sm:$0x1]
        %v962 = vld [vmem:[%s941] sm:$0xff]
        %v963 = vld [vmem:[%s941 + $0x8] sm:$0xff]
        %v964 = vld [vmem:[%s944] sm:$0x1]
        %v966 = vlaneseq
        %v967 = vshrl.u32 %v966, 7
        %v968 = vsub.s32 0, %v967
        %v969 = vrot.slane %v961, %v968
        %v972 = vlaneseq
        %v973 = vshrl.u32 %v972, 7
        %v974 = vsub.s32 0, %v973
        %v975 = vrot.slane %v964, %v974
        %v977 = vld [vmem:[%s2] sm:$0xff]
        %v978 = vadd.f32 %v957, %v977
        %v979 = vld [vmem:[%s10] sm:$0xff]
        %v980 = vld [vmem:[%s10 + $0x8] sm:$0xff]
        %v981 = vld [vmem:[%s10 + $0x10] sm:$0xff]
        %v982 = vld [vmem:[%s10 + $0x18] sm:$0xff]
        %v983 = vld [vmem:[%s11] sm:$0x1]
        %v985 = vlaneseq
        %v986 = vshrl.u32 %v985, 7
        %v987 = vsub.s32 0, %v986
        %v988 = vrot.slane %v983, %v987
        %vm990 = vcmask 261120
        %v992 = vsel %vm990, %v978, 0
        %994 = vmatprep.subr.mxu0 0.0
        %995 = vmatpush1.msra.mxu0 0.0
        %996 = vmatprep.subr.mxu0 0.0
        %997 = vmatpush1.msra.mxu0 0.0
        %998 = vmatprep.subr.mxu0 0.0
        %999 = vmatpush1.msra.mxu0 0.0
        %1000 = vmatprep.subr.mxu0 0.0
        %1001 = vmatpush1.msra.mxu0 0.0
        %1002 = vmatprep.subr.mxu0 0.0
        %1003 = vmatpush1.msra.mxu0 0.0
        %1004 = vmatprep.subr.mxu0 0.0
        %1005 = vmatpush1.msra.mxu0 0.0
        %1006 = vmatprep.subr.mxu0 0.0
        %1007 = vmatpush1.msra.mxu0 0.0
        %1008 = vmatprep.subr.mxu0 0.0
        %1009 = vmatpush1.msra.mxu0 0.0
        %1010 = vmatprep.subr.mxu0 0.0
        %1011 = vmatpush1.msra.mxu0 0.0
        %1012 = vmatprep.subr.mxu0 0.0
        %1013 = vmatpush1.msra.mxu0 0.0
        %1014 = vmatprep.subr.mxu0 0.0
        %1015 = vmatpush1.msra.mxu0 0.0
        %1016 = vmatprep.subr.mxu0 0.0
        %1017 = vmatpush1.msra.mxu0 0.0
        %1018 = vmatprep.subr.mxu0 0.0
        %1019 = vmatpush1.msra.mxu0 %v982
        %1020 = vmatprep.subr.mxu0 0.0
        %1021 = vmatpush1.msra.mxu0 %v981
        %1022 = vmatprep.subr.mxu0 0.0
        %1023 = vmatpush1.msra.mxu0 %v980
        %1024 = vmatprep.subr.mxu0 0.0
        %1025 = vmatpush1.msra.mxu0 %v979
        %1026 = vmatprep.subr.mxu0 0.0
        %1027 = vmatpush2.msra.mxu0 0.0
        %1028 = vmatprep.subr.mxu0 0.0
        %1029 = vmatpush2.msra.mxu0 0.0
        %1030 = vmatprep.subr.mxu0 0.0
        %1031 = vmatpush2.msra.mxu0 0.0
        %1032 = vmatprep.subr.mxu0 0.0
        %1033 = vmatpush2.msra.mxu0 0.0
        %1034 = vmatprep.subr.mxu0 0.0
        %1035 = vmatpush2.msra.mxu0 0.0
        %1036 = vmatprep.subr.mxu0 0.0
        %1037 = vmatpush2.msra.mxu0 0.0
        %1038 = vmatprep.subr.mxu0 0.0
        %1039 = vmatpush2.msra.mxu0 0.0
        %1040 = vmatprep.subr.mxu0 0.0
        %1041 = vmatpush2.msra.mxu0 0.0
        %1042 = vmatprep.subr.mxu0 0.0
        %1043 = vmatpush2.msra.mxu0 0.0
        %1044 = vmatprep.subr.mxu0 0.0
        %1045 = vmatpush2.msra.mxu0 0.0
        %1046 = vmatprep.subr.mxu0 0.0
        %1047 = vmatpush2.msra.mxu0 0.0
        %1048 = vmatprep.subr.mxu0 0.0
        %1049 = vmatpush2.msra.mxu0 0.0
        %1050 = vmatprep.subr.mxu0 0.0
        %1051 = vmatpush2.msra.mxu0 0.0
        %1052 = vmatprep.subr.mxu0 0.0
        %1053 = vmatpush2.msra.mxu0 0.0
        %1054 = vmatprep.subr.mxu0 0.0
        %1055 = vmatpush2.msra.mxu0 0.0
        %1056 = vmatprep.subr.mxu0 0.0
        %1057 = vmatpush2.msra.mxu0 0.0
        %1058 = vmatprep.mubr.f32.mxu0 0.0
        %1059 = vmatmul.mubr.f32.gmra.mxu0 %v992
        %v1060 = vpop.f32.mrf.mxu0
        %v1061 = vadd.f32 %v988, %v1060
        %v1062 = vpop.f32.mrf.mxu0
        %1063 = vdwg.mxu0
        %v1064 = vmax.f32 %v1061, 0.0
        %v1065 = vld [vmem:[%s12] sm:$0xff]
        %v1066 = vld [vmem:[%s12 + $0x8] sm:$0xff]
        %v1067 = vld [vmem:[%s12 + $0x10] sm:$0xff]
        %v1068 = vld [vmem:[%s12 + $0x18] sm:$0xff]
        %v1069 = vld [vmem:[%s12 + $0x20] sm:$0xff]
        %v1070 = vld [vmem:[%s12 + $0x28] sm:$0xff]
        %v1071 = vld [vmem:[%s12 + $0x30] sm:$0xff]
        %v1072 = vld [vmem:[%s12 + $0x38] sm:$0xff]
        %v1073 = vld [vmem:[%s13] sm:$0x1]
        %v1075 = vlaneseq
        %v1076 = vshrl.u32 %v1075, 7
        %v1077 = vsub.s32 0, %v1076
        %v1078 = vrot.slane %v1073, %v1077
        %vm1080 = vcmask 523264
        %v1082 = vsel %vm1080, %v1064, 0
        %1084 = vmatprep.subr.mxu0 0.0
        %1085 = vmatpush1.msra.mxu0 0.0
        %1086 = vmatprep.subr.mxu0 0.0
        %1087 = vmatpush1.msra.mxu0 0.0
        %1088 = vmatprep.subr.mxu0 0.0
        %1089 = vmatpush1.msra.mxu0 0.0
        %1090 = vmatprep.subr.mxu0 0.0
        %1091 = vmatpush1.msra.mxu0 0.0
        %1092 = vmatprep.subr.mxu0 0.0
        %1093 = vmatpush1.msra.mxu0 0.0
        %1094 = vmatprep.subr.mxu0 0.0
        %1095 = vmatpush1.msra.mxu0 0.0
        %1096 = vmatprep.subr.mxu0 0.0
        %1097 = vmatpush1.msra.mxu0 0.0
        %1098 = vmatprep.subr.mxu0 0.0
        %1099 = vmatpush1.msra.mxu0 0.0
        %1100 = vmatprep.subr.mxu0 0.0
        %1101 = vmatpush1.msra.mxu0 %v1072
        %1102 = vmatprep.subr.mxu0 0.0
        %1103 = vmatpush1.msra.mxu0 %v1071
        %1104 = vmatprep.subr.mxu0 0.0
        %1105 = vmatpush1.msra.mxu0 %v1070
        %1106 = vmatprep.subr.mxu0 0.0
        %1107 = vmatpush1.msra.mxu0 %v1069
        %1108 = vmatprep.subr.mxu0 0.0
        %1109 = vmatpush1.msra.mxu0 %v1068
        %1110 = vmatprep.subr.mxu0 0.0
        %1111 = vmatpush1.msra.mxu0 %v1067
        %1112 = vmatprep.subr.mxu0 0.0
        %1113 = vmatpush1.msra.mxu0 %v1066
        %1114 = vmatprep.subr.mxu0 0.0
        %1115 = vmatpush1.msra.mxu0 %v1065
        %1116 = vmatprep.subr.mxu0 0.0
        %1117 = vmatpush2.msra.mxu0 0.0
        %1118 = vmatprep.subr.mxu0 0.0
        %1119 = vmatpush2.msra.mxu0 0.0
        %1120 = vmatprep.subr.mxu0 0.0
        %1121 = vmatpush2.msra.mxu0 0.0
        %1122 = vmatprep.subr.mxu0 0.0
        %1123 = vmatpush2.msra.mxu0 0.0
        %1124 = vmatprep.subr.mxu0 0.0
        %1125 = vmatpush2.msra.mxu0 0.0
        %1126 = vmatprep.subr.mxu0 0.0
        %1127 = vmatpush2.msra.mxu0 0.0
        %1128 = vmatprep.subr.mxu0 0.0
        %1129 = vmatpush2.msra.mxu0 0.0
        %1130 = vmatprep.subr.mxu0 0.0
        %1131 = vmatpush2.msra.mxu0 0.0
        %1132 = vmatprep.subr.mxu0 0.0
        %1133 = vmatpush2.msra.mxu0 0.0
        %1134 = vmatprep.subr.mxu0 0.0
        %1135 = vmatpush2.msra.mxu0 0.0
        %1136 = vmatprep.subr.mxu0 0.0
        %1137 = vmatpush2.msra.mxu0 0.0
        %1138 = vmatprep.subr.mxu0 0.0
        %1139 = vmatpush2.msra.mxu0 0.0
        %1140 = vmatprep.subr.mxu0 0.0
        %1141 = vmatpush2.msra.mxu0 0.0
        %1142 = vmatprep.subr.mxu0 0.0
        %1143 = vmatpush2.msra.mxu0 0.0
        %1144 = vmatprep.subr.mxu0 0.0
        %1145 = vmatpush2.msra.mxu0 0.0
        %1146 = vmatprep.subr.mxu0 0.0
        %1147 = vmatpush2.msra.mxu0 0.0
        %1148 = vmatprep.mubr.f32.mxu0 0.0
        %1149 = vmatmul.mubr.f32.gmra.mxu0 %v1082
        %v1150 = vpop.f32.mrf.mxu0
        %v1151 = vadd.f32 %v1078, %v1150
        %v1152 = vpop.f32.mrf.mxu0
        %1153 = vdwg.mxu0
        %v1154 = vadd.f32 %v1151, %v978
        %v1155 = vld [vmem:[%s14] sm:$0x1]
        %v1156 = vld [vmem:[%s15] sm:$0x1]
        %v1157 = vsel %vm990, %v1154, 0.0
        %1158 = vadd.xlane.f32.xlu0 %v1157
        %v1159 = vpop.xlane.xlu0 %1158
        %v1160 = vrcp.pop 32.0
        %v1161 = vmul.f32 %v1159, %v1160
        %v1162 = vsub.f32 %v1154, %v1161
        %v1163 = vmul.f32 %v1162, %v1162
        %v1164 = vsel %vm990, %v1163, 0.0
        %1165 = vadd.xlane.f32.xlu0 %v1164
        %v1166 = vpop.xlane.xlu0 %1165
        %v1167 = vmul.f32 %v1166, 0.032258064
        %v1168 = vrsqrt.pop %v1167
        %v1169 = vmul.f32 %v1167, %v1168
        %vm1170 = vcmp.eq.f32.partialorder %v1167, inf
        %v1171 = vsel %vm1170, %v1167, %v1169
        %vm1172 = vcmp.eq.f32.partialorder %v1167, 0.0
        %v1173 = vand.u32 %v1167, 2147483648
        %v1174 = vsel %vm1172, %v1173, %v1171
        %v1175 = vadd.f32 %v1174, 1e-06
        %v1176 = vrcp.pop %v1175
        %v1178 = vlaneseq
        %v1179 = vshrl.u32 %v1178, 7
        %v1180 = vsub.s32 0, %v1179
        %v1181 = vrot.slane %v1155, %v1180
        %v1183 = vmul.f32 %v1181, %v1162
        %v1184 = vmul.f32 %v1183, %v1176
        %v1186 = vlaneseq
        %v1187 = vshrl.u32 %v1186, 7
        %v1188 = vsub.s32 0, %v1187
        %v1189 = vrot.slane %v1156, %v1188
        %v1191 = vadd.f32 %v1184, %v1189
        %v1192 = vld [vmem:[%s16] sm:$0xff]
        %v1193 = vld [vmem:[%s16 + $0x8] sm:$0xff]
        %v1194 = vld [vmem:[%s16 + $0x10] sm:$0xff]
        %v1195 = vld [vmem:[%s16 + $0x18] sm:$0xff]
        %v1196 = vld [vmem:[%s17] sm:$0x1]
        %v1198 = vlaneseq
        %v1199 = vshrl.u32 %v1198, 7
        %v1200 = vsub.s32 0, %v1199
        %v1201 = vrot.slane %v1196, %v1200
        %v1204 = vsel %vm990, %v1191, 0
        %1206 = vmatprep.subr.mxu0 0.0
        %1207 = vmatpush1.msra.mxu0 0.0
        %1208 = vmatprep.subr.mxu0 0.0
        %1209 = vmatpush1.msra.mxu0 0.0
        %1210 = vmatprep.subr.mxu0 0.0
        %1211 = vmatpush1.msra.mxu0 0.0
        %1212 = vmatprep.subr.mxu0 0.0
        %1213 = vmatpush1.msra.mxu0 0.0
        %1214 = vmatprep.subr.mxu0 0.0
        %1215 = vmatpush1.msra.mxu0 0.0
        %1216 = vmatprep.subr.mxu0 0.0
        %1217 = vmatpush1.msra.mxu0 0.0
        %1218 = vmatprep.subr.mxu0 0.0
        %1219 = vmatpush1.msra.mxu0 0.0
        %1220 = vmatprep.subr.mxu0 0.0
        %1221 = vmatpush1.msra.mxu0 0.0
        %1222 = vmatprep.subr.mxu0 0.0
        %1223 = vmatpush1.msra.mxu0 0.0
        %1224 = vmatprep.subr.mxu0 0.0
        %1225 = vmatpush1.msra.mxu0 0.0
        %1226 = vmatprep.subr.mxu0 0.0
        %1227 = vmatpush1.msra.mxu0 0.0
        %1228 = vmatprep.subr.mxu0 0.0
        %1229 = vmatpush1.msra.mxu0 0.0
        %1230 = vmatprep.subr.mxu0 0.0
        %1231 = vmatpush1.msra.mxu0 %v1195
        %1232 = vmatprep.subr.mxu0 0.0
        %1233 = vmatpush1.msra.mxu0 %v1194
        %1234 = vmatprep.subr.mxu0 0.0
        %1235 = vmatpush1.msra.mxu0 %v1193
        %1236 = vmatprep.subr.mxu0 0.0
        %1237 = vmatpush1.msra.mxu0 %v1192
        %1238 = vmatprep.subr.mxu0 0.0
        %1239 = vmatpush2.msra.mxu0 0.0
        %1240 = vmatprep.subr.mxu0 0.0
        %1241 = vmatpush2.msra.mxu0 0.0
        %1242 = vmatprep.subr.mxu0 0.0
        %1243 = vmatpush2.msra.mxu0 0.0
        %1244 = vmatprep.subr.mxu0 0.0
        %1245 = vmatpush2.msra.mxu0 0.0
        %1246 = vmatprep.subr.mxu0 0.0
        %1247 = vmatpush2.msra.mxu0 0.0
        %1248 = vmatprep.subr.mxu0 0.0
        %1249 = vmatpush2.msra.mxu0 0.0
        %1250 = vmatprep.subr.mxu0 0.0
        %1251 = vmatpush2.msra.mxu0 0.0
        %1252 = vmatprep.subr.mxu0 0.0
        %1253 = vmatpush2.msra.mxu0 0.0
        %1254 = vmatprep.subr.mxu0 0.0
        %1255 = vmatpush2.msra.mxu0 0.0
        %1256 = vmatprep.subr.mxu0 0.0
        %1257 = vmatpush2.msra.mxu0 0.0
        %1258 = vmatprep.subr.mxu0 0.0
        %1259 = vmatpush2.msra.mxu0 0.0
        %1260 = vmatprep.subr.mxu0 0.0
        %1261 = vmatpush2.msra.mxu0 0.0
        %1262 = vmatprep.subr.mxu0 0.0
        %1263 = vmatpush2.msra.mxu0 0.0
        %1264 = vmatprep.subr.mxu0 0.0
        %1265 = vmatpush2.msra.mxu0 0.0
        %1266 = vmatprep.subr.mxu0 0.0
        %1267 = vmatpush2.msra.mxu0 0.0
        %1268 = vmatprep.subr.mxu0 0.0
        %1269 = vmatpush2.msra.mxu0 0.0
        %1270 = vmatprep.mubr.f32.mxu0 0.0
        %1271 = vmatmul.mubr.f32.gmra.mxu0 %v1204
        %v1272 = vpop.f32.mrf.mxu0
        %v1273 = vadd.f32 %v1201, %v1272
        %v1274 = vpop.f32.mrf.mxu0
        %1275 = vdwg.mxu0
        %v1276 = vld [vmem:[%s18] sm:$0xff]
        %v1277 = vld [vmem:[%s18 + $0x8] sm:$0xff]
        %v1278 = vld [vmem:[%s18 + $0x10] sm:$0xff]
        %v1279 = vld [vmem:[%s18 + $0x18] sm:$0xff]
        %v1280 = vld [vmem:[%s19] sm:$0x1]
        %v1282 = vlaneseq
        %v1283 = vshrl.u32 %v1282, 7
        %v1284 = vsub.s32 0, %v1283
        %v1285 = vrot.slane %v1280, %v1284
        %1287 = vmatprep.subr.mxu0 0.0
        %1288 = vmatpush1.msra.mxu0 0.0
        %1289 = vmatprep.subr.mxu0 0.0
        %1290 = vmatpush1.msra.mxu0 0.0
        %1291 = vmatprep.subr.mxu0 0.0
        %1292 = vmatpush1.msra.mxu0 0.0
        %1293 = vmatprep.subr.mxu0 0.0
        %1294 = vmatpush1.msra.mxu0 0.0
        %1295 = vmatprep.subr.mxu0 0.0
        %1296 = vmatpush1.msra.mxu0 0.0
        %1297 = vmatprep.subr.mxu0 0.0
        %1298 = vmatpush1.msra.mxu0 0.0
        %1299 = vmatprep.subr.mxu0 0.0
        %1300 = vmatpush1.msra.mxu0 0.0
        %1301 = vmatprep.subr.mxu0 0.0
        %1302 = vmatpush1.msra.mxu0 0.0
        %1303 = vmatprep.subr.mxu0 0.0
        %1304 = vmatpush1.msra.mxu0 0.0
        %1305 = vmatprep.subr.mxu0 0.0
        %1306 = vmatpush1.msra.mxu0 0.0
        %1307 = vmatprep.subr.mxu0 0.0
        %1308 = vmatpush1.msra.mxu0 0.0
        %1309 = vmatprep.subr.mxu0 0.0
        %1310 = vmatpush1.msra.mxu0 0.0
        %1311 = vmatprep.subr.mxu0 0.0
        %1312 = vmatpush1.msra.mxu0 %v1279
        %1313 = vmatprep.subr.mxu0 0.0
        %1314 = vmatpush1.msra.mxu0 %v1278
        %1315 = vmatprep.subr.mxu0 0.0
        %1316 = vmatpush1.msra.mxu0 %v1277
        %1317 = vmatprep.subr.mxu0 0.0
        %1318 = vmatpush1.msra.mxu0 %v1276
        %1319 = vmatprep.subr.mxu0 0.0
        %1320 = vmatpush2.msra.mxu0 0.0
        %1321 = vmatprep.subr.mxu0 0.0
        %1322 = vmatpush2.msra.mxu0 0.0
        %1323 = vmatprep.subr.mxu0 0.0
        %1324 = vmatpush2.msra.mxu0 0.0
        %1325 = vmatprep.subr.mxu0 0.0
        %1326 = vmatpush2.msra.mxu0 0.0
        %1327 = vmatprep.subr.mxu0 0.0
        %1328 = vmatpush2.msra.mxu0 0.0
        %1329 = vmatprep.subr.mxu0 0.0
        %1330 = vmatpush2.msra.mxu0 0.0
        %1331 = vmatprep.subr.mxu0 0.0
        %1332 = vmatpush2.msra.mxu0 0.0
        %1333 = vmatprep.subr.mxu0 0.0
        %1334 = vmatpush2.msra.mxu0 0.0
        %1335 = vmatprep.subr.mxu0 0.0
        %1336 = vmatpush2.msra.mxu0 0.0
        %1337 = vmatprep.subr.mxu0 0.0
        %1338 = vmatpush2.msra.mxu0 0.0
        %1339 = vmatprep.subr.mxu0 0.0
        %1340 = vmatpush2.msra.mxu0 0.0
        %1341 = vmatprep.subr.mxu0 0.0
        %1342 = vmatpush2.msra.mxu0 0.0
        %1343 = vmatprep.subr.mxu0 0.0
        %1344 = vmatpush2.msra.mxu0 0.0
        %1345 = vmatprep.subr.mxu0 0.0
        %1346 = vmatpush2.msra.mxu0 0.0
        %1347 = vmatprep.subr.mxu0 0.0
        %1348 = vmatpush2.msra.mxu0 0.0
        %1349 = vmatprep.subr.mxu0 0.0
        %1350 = vmatpush2.msra.mxu0 0.0
        %1351 = vmatprep.mubr.f32.mxu0 0.0
        %1352 = vmatmul.mubr.f32.gmra.mxu0 %v1204
        %v1353 = vpop.f32.mrf.mxu0
        %v1354 = vadd.f32 %v1285, %v1353
        %v1355 = vpop.f32.mrf.mxu0
        %1356 = vdwg.mxu0
        %v1357 = vld [vmem:[%s20] sm:$0xff]
        %v1358 = vld [vmem:[%s20 + $0x8] sm:$0xff]
        %v1359 = vld [vmem:[%s20 + $0x10] sm:$0xff]
        %v1360 = vld [vmem:[%s20 + $0x18] sm:$0xff]
        %v1361 = vld [vmem:[%s21] sm:$0x1]
        %v1363 = vlaneseq
        %v1364 = vshrl.u32 %v1363, 7
        %v1365 = vsub.s32 0, %v1364
        %v1366 = vrot.slane %v1361, %v1365
        %1368 = vmatprep.subr.mxu0 0.0
        %1369 = vmatpush1.msra.mxu0 0.0
        %1370 = vmatprep.subr.mxu0 0.0
        %1371 = vmatpush1.msra.mxu0 0.0
        %1372 = vmatprep.subr.mxu0 0.0
        %1373 = vmatpush1.msra.mxu0 0.0
        %1374 = vmatprep.subr.mxu0 0.0
        %1375 = vmatpush1.msra.mxu0 0.0
        %1376 = vmatprep.subr.mxu0 0.0
        %1377 = vmatpush1.msra.mxu0 0.0
        %1378 = vmatprep.subr.mxu0 0.0
        %1379 = vmatpush1.msra.mxu0 0.0
        %1380 = vmatprep.subr.mxu0 0.0
        %1381 = vmatpush1.msra.mxu0 0.0
        %1382 = vmatprep.subr.mxu0 0.0
        %1383 = vmatpush1.msra.mxu0 0.0
        %1384 = vmatprep.subr.mxu0 0.0
        %1385 = vmatpush1.msra.mxu0 0.0
        %1386 = vmatprep.subr.mxu0 0.0
        %1387 = vmatpush1.msra.mxu0 0.0
        %1388 = vmatprep.subr.mxu0 0.0
        %1389 = vmatpush1.msra.mxu0 0.0
        %1390 = vmatprep.subr.mxu0 0.0
        %1391 = vmatpush1.msra.mxu0 0.0
        %1392 = vmatprep.subr.mxu0 0.0
        %1393 = vmatpush1.msra.mxu0 %v1360
        %1394 = vmatprep.subr.mxu0 0.0
        %1395 = vmatpush1.msra.mxu0 %v1359
        %1396 = vmatprep.subr.mxu0 0.0
        %1397 = vmatpush1.msra.mxu0 %v1358
        %1398 = vmatprep.subr.mxu0 0.0
        %1399 = vmatpush1.msra.mxu0 %v1357
        %1400 = vmatprep.subr.mxu0 0.0
        %1401 = vmatpush2.msra.mxu0 0.0
        %1402 = vmatprep.subr.mxu0 0.0
        %1403 = vmatpush2.msra.mxu0 0.0
        %1404 = vmatprep.subr.mxu0 0.0
        %1405 = vmatpush2.msra.mxu0 0.0
        %1406 = vmatprep.subr.mxu0 0.0
        %1407 = vmatpush2.msra.mxu0 0.0
        %1408 = vmatprep.subr.mxu0 0.0
        %1409 = vmatpush2.msra.mxu0 0.0
        %1410 = vmatprep.subr.mxu0 0.0
        %1411 = vmatpush2.msra.mxu0 0.0
        %1412 = vmatprep.subr.mxu0 0.0
        %1413 = vmatpush2.msra.mxu0 0.0
        %1414 = vmatprep.subr.mxu0 0.0
        %1415 = vmatpush2.msra.mxu0 0.0
        %1416 = vmatprep.subr.mxu0 0.0
        %1417 = vmatpush2.msra.mxu0 0.0
        %1418 = vmatprep.subr.mxu0 0.0
        %1419 = vmatpush2.msra.mxu0 0.0
        %1420 = vmatprep.subr.mxu0 0.0
        %1421 = vmatpush2.msra.mxu0 0.0
        %1422 = vmatprep.subr.mxu0 0.0
        %1423 = vmatpush2.msra.mxu0 0.0
        %1424 = vmatprep.subr.mxu0 0.0
        %1425 = vmatpush2.msra.mxu0 0.0
        %1426 = vmatprep.subr.mxu0 0.0
        %1427 = vmatpush2.msra.mxu0 0.0
        %1428 = vmatprep.subr.mxu0 0.0
        %1429 = vmatpush2.msra.mxu0 0.0
        %1430 = vmatprep.subr.mxu0 0.0
        %1431 = vmatpush2.msra.mxu0 0.0
        %1432 = vmatprep.mubr.f32.mxu0 0.0
        %1433 = vmatmul.mubr.f32.gmra.mxu0 %v1204
        %v1434 = vpop.f32.mrf.mxu0
        %v1435 = vadd.f32 %v1366, %v1434
        %v1436 = vpop.f32.mrf.mxu0
        %1437 = vdwg.mxu0
        %vm1438 = vcmask 130048
        %v1440 = vsel %vm1438, %v1273, 0
        %v1443 = vsel %vm1438, %v1354, 0
        %1445 = vmatprep.subr.mxu0 0.0
        %1446 = vmatpush1.xpose.msra.mxu0 0.0
        %1447 = vmatprep.subr.mxu0 0.0
        %1448 = vmatpush1.xpose.msra.mxu0 0.0
        %1449 = vmatprep.subr.mxu0 0.0
        %1450 = vmatpush1.xpose.msra.mxu0 0.0
        %1451 = vmatprep.subr.mxu0 0.0
        %1452 = vmatpush1.xpose.msra.mxu0 0.0
        %1453 = vmatprep.subr.mxu0 0.0
        %1454 = vmatpush1.xpose.msra.mxu0 0.0
        %1455 = vmatprep.subr.mxu0 0.0
        %1456 = vmatpush1.xpose.msra.mxu0 0.0
        %1457 = vmatprep.subr.mxu0 0.0
        %1458 = vmatpush1.xpose.msra.mxu0 0.0
        %1459 = vmatprep.subr.mxu0 0.0
        %1460 = vmatpush1.xpose.msra.mxu0 0.0
        %1461 = vmatprep.subr.mxu0 0.0
        %1462 = vmatpush1.xpose.msra.mxu0 0.0
        %1463 = vmatprep.subr.mxu0 0.0
        %1464 = vmatpush1.xpose.msra.mxu0 0.0
        %1465 = vmatprep.subr.mxu0 0.0
        %1466 = vmatpush1.xpose.msra.mxu0 0.0
        %1467 = vmatprep.subr.mxu0 0.0
        %1468 = vmatpush1.xpose.msra.mxu0 0.0
        %1469 = vmatprep.subr.mxu0 0.0
        %1470 = vmatpush1.xpose.msra.mxu0 0.0
        %1471 = vmatprep.subr.mxu0 0.0
        %1472 = vmatpush1.xpose.msra.mxu0 0.0
        %1473 = vmatprep.subr.mxu0 0.0
        %1474 = vmatpush1.xpose.msra.mxu0 0.0
        %1475 = vmatprep.subr.mxu0 0.0
        %1476 = vmatpush1.xpose.msra.mxu0 %v1443
        %1477 = vmatprep.subr.mxu0 0.0
        %1478 = vmatpush2.xpose.msra.mxu0 0.0
        %1479 = vmatprep.subr.mxu0 0.0
        %1480 = vmatpush2.xpose.msra.mxu0 0.0
        %1481 = vmatprep.subr.mxu0 0.0
        %1482 = vmatpush2.xpose.msra.mxu0 0.0
        %1483 = vmatprep.subr.mxu0 0.0
        %1484 = vmatpush2.xpose.msra.mxu0 0.0
        %1485 = vmatprep.subr.mxu0 0.0
        %1486 = vmatpush2.xpose.msra.mxu0 0.0
        %1487 = vmatprep.subr.mxu0 0.0
        %1488 = vmatpush2.xpose.msra.mxu0 0.0
        %1489 = vmatprep.subr.mxu0 0.0
        %1490 = vmatpush2.xpose.msra.mxu0 0.0
        %1491 = vmatprep.subr.mxu0 0.0
        %1492 = vmatpush2.xpose.msra.mxu0 0.0
        %1493 = vmatprep.subr.mxu0 0.0
        %1494 = vmatpush2.xpose.msra.mxu0 0.0
        %1495 = vmatprep.subr.mxu0 0.0
        %1496 = vmatpush2.xpose.msra.mxu0 0.0
        %1497 = vmatprep.subr.mxu0 0.0
        %1498 = vmatpush2.xpose.msra.mxu0 0.0
        %1499 = vmatprep.subr.mxu0 0.0
        %1500 = vmatpush2.xpose.msra.mxu0 0.0
        %1501 = vmatprep.subr.mxu0 0.0
        %1502 = vmatpush2.xpose.msra.mxu0 0.0
        %1503 = vmatprep.subr.mxu0 0.0
        %1504 = vmatpush2.xpose.msra.mxu0 0.0
        %1505 = vmatprep.subr.mxu0 0.0
        %1506 = vmatpush2.xpose.msra.mxu0 0.0
        %1507 = vmatprep.subr.mxu0 0.0
        %1508 = vmatpush2.xpose.msra.mxu0 0.0
        %1509 = vmatprep.mubr.f32.mxu0 0.0
        %1510 = vmatmul.mubr.f32.gmra.mxu0 %v1440
        %v1511 = vpop.f32.mrf.mxu0
        %v1512 = vadd.f32 0.0, %v1511
        %v1513 = vpop.f32.mrf.mxu0
        %1514 = vdwg.mxu0
        %v1515 = vmul.f32 %v1512, %v969
        %vm1516 = vcmask 64512
        %v1517 = vsel %vm1516, %v1515, -inf
        %1518 = vmax.xlane.f32.xlu0 %v1517
        %v1519 = vpop.xlane.xlu0 %1518
        %v1520 = vsub.f32 %v1515, %v1519
        %v1521 = vmul.f32 %v1520, 1.442695
        %v1522 = vpow.pop %v1521
        %v1523 = vsel %vm1516, %v1522, 0.0
        %1524 = vadd.xlane.f32.xlu0 %v1523
        %v1525 = vpop.xlane.xlu0 %1524
        %v1526 = vmul.f32 %v1522, %v969
        %v1527 = vsel %vm1516, %v1526, 0.0
        %1528 = vadd.xlane.f32.xlu0 %v1527
        %v1529 = vpop.xlane.xlu0 %1528
        %v1530 = vmul.f32 %v1525, 1e-13
        %v1531 = vadd.f32 %v1529, %v1530
        %v1532 = vrcp.pop %v1531
        %v1533 = vmul.f32 %v1526, %v1532
        %v1535 = vsel %vm1516, %v1533, 0
        %1537 = vmatprep.subr.mxu0 0.0
        %1538 = vmatpush1.msra.mxu0 0.0
        %1539 = vmatprep.subr.mxu0 0.0
        %1540 = vmatpush1.msra.mxu0 0.0
        %1541 = vmatprep.subr.mxu0 0.0
        %1542 = vmatpush1.msra.mxu0 0.0
        %1543 = vmatprep.subr.mxu0 0.0
        %1544 = vmatpush1.msra.mxu0 0.0
        %1545 = vmatprep.subr.mxu0 0.0
        %1546 = vmatpush1.msra.mxu0 0.0
        %1547 = vmatprep.subr.mxu0 0.0
        %1548 = vmatpush1.msra.mxu0 0.0
        %1549 = vmatprep.subr.mxu0 0.0
        %1550 = vmatpush1.msra.mxu0 0.0
        %1551 = vmatprep.subr.mxu0 0.0
        %1552 = vmatpush1.msra.mxu0 0.0
        %1553 = vmatprep.subr.mxu0 0.0
        %1554 = vmatpush1.msra.mxu0 0.0
        %1555 = vmatprep.subr.mxu0 0.0
        %1556 = vmatpush1.msra.mxu0 0.0
        %1557 = vmatprep.subr.mxu0 0.0
        %1558 = vmatpush1.msra.mxu0 0.0
        %1559 = vmatprep.subr.mxu0 0.0
        %1560 = vmatpush1.msra.mxu0 0.0
        %1561 = vmatprep.subr.mxu0 0.0
        %1562 = vmatpush1.msra.mxu0 0.0
        %1563 = vmatprep.subr.mxu0 0.0
        %1564 = vmatpush1.msra.mxu0 0.0
        %1565 = vmatprep.subr.mxu0 0.0
        %1566 = vmatpush1.msra.mxu0 0.0
        %1567 = vmatprep.subr.mxu0 0.0
        %1568 = vmatpush1.msra.mxu0 %v1435
        %1569 = vmatprep.subr.mxu0 0.0
        %1570 = vmatpush2.msra.mxu0 0.0
        %1571 = vmatprep.subr.mxu0 0.0
        %1572 = vmatpush2.msra.mxu0 0.0
        %1573 = vmatprep.subr.mxu0 0.0
        %1574 = vmatpush2.msra.mxu0 0.0
        %1575 = vmatprep.subr.mxu0 0.0
        %1576 = vmatpush2.msra.mxu0 0.0
        %1577 = vmatprep.subr.mxu0 0.0
        %1578 = vmatpush2.msra.mxu0 0.0
        %1579 = vmatprep.subr.mxu0 0.0
        %1580 = vmatpush2.msra.mxu0 0.0
        %1581 = vmatprep.subr.mxu0 0.0
        %1582 = vmatpush2.msra.mxu0 0.0
        %1583 = vmatprep.subr.mxu0 0.0
        %1584 = vmatpush2.msra.mxu0 0.0
        %1585 = vmatprep.subr.mxu0 0.0
        %1586 = vmatpush2.msra.mxu0 0.0
        %1587 = vmatprep.subr.mxu0 0.0
        %1588 = vmatpush2.msra.mxu0 0.0
        %1589 = vmatprep.subr.mxu0 0.0
        %1590 = vmatpush2.msra.mxu0 0.0
        %1591 = vmatprep.subr.mxu0 0.0
        %1592 = vmatpush2.msra.mxu0 0.0
        %1593 = vmatprep.subr.mxu0 0.0
        %1594 = vmatpush2.msra.mxu0 0.0
        %1595 = vmatprep.subr.mxu0 0.0
        %1596 = vmatpush2.msra.mxu0 0.0
        %1597 = vmatprep.subr.mxu0 0.0
        %1598 = vmatpush2.msra.mxu0 0.0
        %1599 = vmatprep.subr.mxu0 0.0
        %1600 = vmatpush2.msra.mxu0 0.0
        %1601 = vmatprep.mubr.f32.mxu0 0.0
        %1602 = vmatmul.mubr.f32.gmra.mxu0 %v1535
        %v1603 = vpop.f32.mrf.mxu0
        %v1604 = vadd.f32 0.0, %v1603
        %v1605 = vpop.f32.mrf.mxu0
        %1606 = vdwg.mxu0
        %1607 = vrot.lane.b32.xlu0 %v1273, 112
        %v1608 = vpop.permute.xlu0 %1607
        %1609 = vrot.lane.b32.xlu0 %v1354, 112
        %v1610 = vpop.permute.xlu0 %1609
        %v1611 = vsel %vm1438, %v1608, 0
        %v1613 = vsel %vm1438, %v1610, 0
        %1615 = vmatprep.subr.mxu0 0.0
        %1616 = vmatpush1.xpose.msra.mxu0 0.0
        %1617 = vmatprep.subr.mxu0 0.0
        %1618 = vmatpush1.xpose.msra.mxu0 0.0
        %1619 = vmatprep.subr.mxu0 0.0
        %1620 = vmatpush1.xpose.msra.mxu0 0.0
        %1621 = vmatprep.subr.mxu0 0.0
        %1622 = vmatpush1.xpose.msra.mxu0 0.0
        %1623 = vmatprep.subr.mxu0 0.0
        %1624 = vmatpush1.xpose.msra.mxu0 0.0
        %1625 = vmatprep.subr.mxu0 0.0
        %1626 = vmatpush1.xpose.msra.mxu0 0.0
        %1627 = vmatprep.subr.mxu0 0.0
        %1628 = vmatpush1.xpose.msra.mxu0 0.0
        %1629 = vmatprep.subr.mxu0 0.0
        %1630 = vmatpush1.xpose.msra.mxu0 0.0
        %1631 = vmatprep.subr.mxu0 0.0
        %1632 = vmatpush1.xpose.msra.mxu0 0.0
        %1633 = vmatprep.subr.mxu0 0.0
        %1634 = vmatpush1.xpose.msra.mxu0 0.0
        %1635 = vmatprep.subr.mxu0 0.0
        %1636 = vmatpush1.xpose.msra.mxu0 0.0
        %1637 = vmatprep.subr.mxu0 0.0
        %1638 = vmatpush1.xpose.msra.mxu0 0.0
        %1639 = vmatprep.subr.mxu0 0.0
        %1640 = vmatpush1.xpose.msra.mxu0 0.0
        %1641 = vmatprep.subr.mxu0 0.0
        %1642 = vmatpush1.xpose.msra.mxu0 0.0
        %1643 = vmatprep.subr.mxu0 0.0
        %1644 = vmatpush1.xpose.msra.mxu0 0.0
        %1645 = vmatprep.subr.mxu0 0.0
        %1646 = vmatpush1.xpose.msra.mxu0 %v1613
        %1647 = vmatprep.subr.mxu0 0.0
        %1648 = vmatpush2.xpose.msra.mxu0 0.0
        %1649 = vmatprep.subr.mxu0 0.0
        %1650 = vmatpush2.xpose.msra.mxu0 0.0
        %1651 = vmatprep.subr.mxu0 0.0
        %1652 = vmatpush2.xpose.msra.mxu0 0.0
        %1653 = vmatprep.subr.mxu0 0.0
        %1654 = vmatpush2.xpose.msra.mxu0 0.0
        %1655 = vmatprep.subr.mxu0 0.0
        %1656 = vmatpush2.xpose.msra.mxu0 0.0
        %1657 = vmatprep.subr.mxu0 0.0
        %1658 = vmatpush2.xpose.msra.mxu0 0.0
        %1659 = vmatprep.subr.mxu0 0.0
        %1660 = vmatpush2.xpose.msra.mxu0 0.0
        %1661 = vmatprep.subr.mxu0 0.0
        %1662 = vmatpush2.xpose.msra.mxu0 0.0
        %1663 = vmatprep.subr.mxu0 0.0
        %1664 = vmatpush2.xpose.msra.mxu0 0.0
        %1665 = vmatprep.subr.mxu0 0.0
        %1666 = vmatpush2.xpose.msra.mxu0 0.0
        %1667 = vmatprep.subr.mxu0 0.0
        %1668 = vmatpush2.xpose.msra.mxu0 0.0
        %1669 = vmatprep.subr.mxu0 0.0
        %1670 = vmatpush2.xpose.msra.mxu0 0.0
        %1671 = vmatprep.subr.mxu0 0.0
        %1672 = vmatpush2.xpose.msra.mxu0 0.0
        %1673 = vmatprep.subr.mxu0 0.0
        %1674 = vmatpush2.xpose.msra.mxu0 0.0
        %1675 = vmatprep.subr.mxu0 0.0
        %1676 = vmatpush2.xpose.msra.mxu0 0.0
        %1677 = vmatprep.subr.mxu0 0.0
        %1678 = vmatpush2.xpose.msra.mxu0 0.0
        %1679 = vmatprep.mubr.f32.mxu0 0.0
        %1680 = vmatmul.mubr.f32.gmra.mxu0 %v1611
        %v1681 = vpop.f32.mrf.mxu0
        %v1682 = vadd.f32 0.0, %v1681
        %v1683 = vpop.f32.mrf.mxu0
        %1684 = vdwg.mxu0
        %v1685 = vmul.f32 %v1682, %v969
        %v1686 = vsel %vm1516, %v1685, -inf
        %1687 = vmax.xlane.f32.xlu0 %v1686
        %v1688 = vpop.xlane.xlu0 %1687
        %v1689 = vsub.f32 %v1685, %v1688
        %v1690 = vmul.f32 %v1689, 1.442695
        %v1691 = vpow.pop %v1690
        %v1692 = vsel %vm1516, %v1691, 0.0
        %1693 = vadd.xlane.f32.xlu0 %v1692
        %v1694 = vpop.xlane.xlu0 %1693
        %v1695 = vmul.f32 %v1691, %v969
        %v1696 = vsel %vm1516, %v1695, 0.0
        %1697 = vadd.xlane.f32.xlu0 %v1696
        %v1698 = vpop.xlane.xlu0 %1697
        %v1699 = vmul.f32 %v1694, 1e-13
        %v1700 = vadd.f32 %v1698, %v1699
        %v1701 = vrcp.pop %v1700
        %v1702 = vmul.f32 %v1695, %v1701
        %1704 = vrot.lane.b32.xlu0 %v1435, 112
        %v1705 = vpop.permute.xlu0 %1704
        %v1708 = vsel %vm1516, %v1702, 0
        %1710 = vmatprep.subr.mxu0 0.0
        %1711 = vmatpush1.msra.mxu0 0.0
        %1712 = vmatprep.subr.mxu0 0.0
        %1713 = vmatpush1.msra.mxu0 0.0
        %1714 = vmatprep.subr.mxu0 0.0
        %1715 = vmatpush1.msra.mxu0 0.0
        %1716 = vmatprep.subr.mxu0 0.0
        %1717 = vmatpush1.msra.mxu0 0.0
        %1718 = vmatprep.subr.mxu0 0.0
        %1719 = vmatpush1.msra.mxu0 0.0
        %1720 = vmatprep.subr.mxu0 0.0
        %1721 = vmatpush1.msra.mxu0 0.0
        %1722 = vmatprep.subr.mxu0 0.0
        %1723 = vmatpush1.msra.mxu0 0.0
        %1724 = vmatprep.subr.mxu0 0.0
        %1725 = vmatpush1.msra.mxu0 0.0
        %1726 = vmatprep.subr.mxu0 0.0
        %1727 = vmatpush1.msra.mxu0 0.0
        %1728 = vmatprep.subr.mxu0 0.0
        %1729 = vmatpush1.msra.mxu0 0.0
        %1730 = vmatprep.subr.mxu0 0.0
        %1731 = vmatpush1.msra.mxu0 0.0
        %1732 = vmatprep.subr.mxu0 0.0
        %1733 = vmatpush1.msra.mxu0 0.0
        %1734 = vmatprep.subr.mxu0 0.0
        %1735 = vmatpush1.msra.mxu0 0.0
        %1736 = vmatprep.subr.mxu0 0.0
        %1737 = vmatpush1.msra.mxu0 0.0
        %1738 = vmatprep.subr.mxu0 0.0
        %1739 = vmatpush1.msra.mxu0 0.0
        %1740 = vmatprep.subr.mxu0 0.0
        %1741 = vmatpush1.msra.mxu0 %v1705
        %1742 = vmatprep.subr.mxu0 0.0
        %1743 = vmatpush2.msra.mxu0 0.0
        %1744 = vmatprep.subr.mxu0 0.0
        %1745 = vmatpush2.msra.mxu0 0.0
        %1746 = vmatprep.subr.mxu0 0.0
        %1747 = vmatpush2.msra.mxu0 0.0
        %1748 = vmatprep.subr.mxu0 0.0
        %1749 = vmatpush2.msra.mxu0 0.0
        %1750 = vmatprep.subr.mxu0 0.0
        %1751 = vmatpush2.msra.mxu0 0.0
        %1752 = vmatprep.subr.mxu0 0.0
        %1753 = vmatpush2.msra.mxu0 0.0
        %1754 = vmatprep.subr.mxu0 0.0
        %1755 = vmatpush2.msra.mxu0 0.0
        %1756 = vmatprep.subr.mxu0 0.0
        %1757 = vmatpush2.msra.mxu0 0.0
        %1758 = vmatprep.subr.mxu0 0.0
        %1759 = vmatpush2.msra.mxu0 0.0
        %1760 = vmatprep.subr.mxu0 0.0
        %1761 = vmatpush2.msra.mxu0 0.0
        %1762 = vmatprep.subr.mxu0 0.0
        %1763 = vmatpush2.msra.mxu0 0.0
        %1764 = vmatprep.subr.mxu0 0.0
        %1765 = vmatpush2.msra.mxu0 0.0
        %1766 = vmatprep.subr.mxu0 0.0
        %1767 = vmatpush2.msra.mxu0 0.0
        %1768 = vmatprep.subr.mxu0 0.0
        %1769 = vmatpush2.msra.mxu0 0.0
        %1770 = vmatprep.subr.mxu0 0.0
        %1771 = vmatpush2.msra.mxu0 0.0
        %1772 = vmatprep.subr.mxu0 0.0
        %1773 = vmatpush2.msra.mxu0 0.0
        %1774 = vmatprep.mubr.f32.mxu0 0.0
        %1775 = vmatmul.mubr.f32.gmra.mxu0 %v1708
        %v1776 = vpop.f32.mrf.mxu0
        %v1777 = vadd.f32 0.0, %v1776
        %v1778 = vpop.f32.mrf.mxu0
        %1779 = vdwg.mxu0
        %1781 = vrot.lane.b32.xlu0 %v1777, 16
        %v1782 = vpop.permute.xlu0 %1781
        %v1784 = vsel %vm1438, %v1604, %v1782
        %v1785 = vld [vmem:[%s22] sm:$0xff]
        %v1786 = vld [vmem:[%s22 + $0x8] sm:$0xff]
        %v1787 = vld [vmem:[%s22 + $0x10] sm:$0xff]
        %v1788 = vld [vmem:[%s22 + $0x18] sm:$0xff]
        %v1789 = vld [vmem:[%s23] sm:$0x1]
        %v1791 = vlaneseq
        %v1792 = vshrl.u32 %v1791, 7
        %v1793 = vsub.s32 0, %v1792
        %v1794 = vrot.slane %v1789, %v1793
        %v1797 = vsel %vm990, %v1784, 0
        %1799 = vmatprep.subr.mxu0 0.0
        %1800 = vmatpush1.msra.mxu0 0.0
        %1801 = vmatprep.subr.mxu0 0.0
        %1802 = vmatpush1.msra.mxu0 0.0
        %1803 = vmatprep.subr.mxu0 0.0
        %1804 = vmatpush1.msra.mxu0 0.0
        %1805 = vmatprep.subr.mxu0 0.0
        %1806 = vmatpush1.msra.mxu0 0.0
        %1807 = vmatprep.subr.mxu0 0.0
        %1808 = vmatpush1.msra.mxu0 0.0
        %1809 = vmatprep.subr.mxu0 0.0
        %1810 = vmatpush1.msra.mxu0 0.0
        %1811 = vmatprep.subr.mxu0 0.0
        %1812 = vmatpush1.msra.mxu0 0.0
        %1813 = vmatprep.subr.mxu0 0.0
        %1814 = vmatpush1.msra.mxu0 0.0
        %1815 = vmatprep.subr.mxu0 0.0
        %1816 = vmatpush1.msra.mxu0 0.0
        %1817 = vmatprep.subr.mxu0 0.0
        %1818 = vmatpush1.msra.mxu0 0.0
        %1819 = vmatprep.subr.mxu0 0.0
        %1820 = vmatpush1.msra.mxu0 0.0
        %1821 = vmatprep.subr.mxu0 0.0
        %1822 = vmatpush1.msra.mxu0 0.0
        %1823 = vmatprep.subr.mxu0 0.0
        %1824 = vmatpush1.msra.mxu0 %v1788
        %1825 = vmatprep.subr.mxu0 0.0
        %1826 = vmatpush1.msra.mxu0 %v1787
        %1827 = vmatprep.subr.mxu0 0.0
        %1828 = vmatpush1.msra.mxu0 %v1786
        %1829 = vmatprep.subr.mxu0 0.0
        %1830 = vmatpush1.msra.mxu0 %v1785
        %1831 = vmatprep.subr.mxu0 0.0
        %1832 = vmatpush2.msra.mxu0 0.0
        %1833 = vmatprep.subr.mxu0 0.0
        %1834 = vmatpush2.msra.mxu0 0.0
        %1835 = vmatprep.subr.mxu0 0.0
        %1836 = vmatpush2.msra.mxu0 0.0
        %1837 = vmatprep.subr.mxu0 0.0
        %1838 = vmatpush2.msra.mxu0 0.0
        %1839 = vmatprep.subr.mxu0 0.0
        %1840 = vmatpush2.msra.mxu0 0.0
        %1841 = vmatprep.subr.mxu0 0.0
        %1842 = vmatpush2.msra.mxu0 0.0
        %1843 = vmatprep.subr.mxu0 0.0
        %1844 = vmatpush2.msra.mxu0 0.0
        %1845 = vmatprep.subr.mxu0 0.0
        %1846 = vmatpush2.msra.mxu0 0.0
        %1847 = vmatprep.subr.mxu0 0.0
        %1848 = vmatpush2.msra.mxu0 0.0
        %1849 = vmatprep.subr.mxu0 0.0
        %1850 = vmatpush2.msra.mxu0 0.0
        %1851 = vmatprep.subr.mxu0 0.0
        %1852 = vmatpush2.msra.mxu0 0.0
        %1853 = vmatprep.subr.mxu0 0.0
        %1854 = vmatpush2.msra.mxu0 0.0
        %1855 = vmatprep.subr.mxu0 0.0
        %1856 = vmatpush2.msra.mxu0 0.0
        %1857 = vmatprep.subr.mxu0 0.0
        %1858 = vmatpush2.msra.mxu0 0.0
        %1859 = vmatprep.subr.mxu0 0.0
        %1860 = vmatpush2.msra.mxu0 0.0
        %1861 = vmatprep.subr.mxu0 0.0
        %1862 = vmatpush2.msra.mxu0 0.0
        %1863 = vmatprep.mubr.f32.mxu0 0.0
        %1864 = vmatmul.mubr.f32.gmra.mxu0 %v1797
        %v1865 = vpop.f32.mrf.mxu0
        %v1866 = vadd.f32 %v1794, %v1865
        %v1867 = vpop.f32.mrf.mxu0
        %1868 = vdwg.mxu0
        %v1869 = vadd.f32 %v1866, %v1191
        %v1870 = vld [vmem:[%s24] sm:$0x1]
        %v1871 = vld [vmem:[%s25] sm:$0x1]
        %v1872 = vsel %vm990, %v1869, 0.0
        %1873 = vadd.xlane.f32.xlu0 %v1872
        %v1874 = vpop.xlane.xlu0 %1873
        %v1875 = vmul.f32 %v1874, %v1160
        %v1876 = vsub.f32 %v1869, %v1875
        %v1877 = vmul.f32 %v1876, %v1876
        %v1878 = vsel %vm990, %v1877, 0.0
        %1879 = vadd.xlane.f32.xlu0 %v1878
        %v1880 = vpop.xlane.xlu0 %1879
        %v1881 = vmul.f32 %v1880, 0.032258064
        %v1882 = vrsqrt.pop %v1881
        %v1883 = vmul.f32 %v1881, %v1882
        %vm1884 = vcmp.eq.f32.partialorder %v1881, inf
        %v1885 = vsel %vm1884, %v1881, %v1883
        %vm1886 = vcmp.eq.f32.partialorder %v1881, 0.0
        %v1887 = vand.u32 %v1881, 2147483648
        %v1888 = vsel %vm1886, %v1887, %v1885
        %v1889 = vadd.f32 %v1888, 1e-06
        %v1890 = vrcp.pop %v1889
        %v1892 = vlaneseq
        %v1893 = vshrl.u32 %v1892, 7
        %v1894 = vsub.s32 0, %v1893
        %v1895 = vrot.slane %v1870, %v1894
        %v1897 = vmul.f32 %v1895, %v1876
        %v1898 = vmul.f32 %v1897, %v1890
        %v1900 = vlaneseq
        %v1901 = vshrl.u32 %v1900, 7
        %v1902 = vsub.s32 0, %v1901
        %v1903 = vrot.slane %v1871, %v1902
        %v1905 = vadd.f32 %v1898, %v1903
        %s1906 = scalar_lea.vmem %s10, 32
        %v1907 = vld [vmem:[%s1906] sm:$0xff]
        %v1908 = vld [vmem:[%s1906 + $0x8] sm:$0xff]
        %v1909 = vld [vmem:[%s1906 + $0x10] sm:$0xff]
        %v1910 = vld [vmem:[%s1906 + $0x18] sm:$0xff]
        %s1911 = scalar_lea.vmem %s11, 1
        %v1912 = vld [vmem:[%s1911] sm:$0x1]
        %v1914 = vlaneseq
        %v1915 = vshrl.u32 %v1914, 7
        %v1916 = vsub.s32 0, %v1915
        %v1917 = vrot.slane %v1912, %v1916
        %v1920 = vsel %vm990, %v1905, 0
        %1922 = vmatprep.subr.mxu0 0.0
        %1923 = vmatpush1.msra.mxu0 0.0
        %1924 = vmatprep.subr.mxu0 0.0
        %1925 = vmatpush1.msra.mxu0 0.0
        %1926 = vmatprep.subr.mxu0 0.0
        %1927 = vmatpush1.msra.mxu0 0.0
        %1928 = vmatprep.subr.mxu0 0.0
        %1929 = vmatpush1.msra.mxu0 0.0
        %1930 = vmatprep.subr.mxu0 0.0
        %1931 = vmatpush1.msra.mxu0 0.0
        %1932 = vmatprep.subr.mxu0 0.0
        %1933 = vmatpush1.msra.mxu0 0.0
        %1934 = vmatprep.subr.mxu0 0.0
        %1935 = vmatpush1.msra.mxu0 0.0
        %1936 = vmatprep.subr.mxu0 0.0
        %1937 = vmatpush1.msra.mxu0 0.0
        %1938 = vmatprep.subr.mxu0 0.0
        %1939 = vmatpush1.msra.mxu0 0.0
        %1940 = vmatprep.subr.mxu0 0.0
        %1941 = vmatpush1.msra.mxu0 0.0
        %1942 = vmatprep.subr.mxu0 0.0
        %1943 = vmatpush1.msra.mxu0 0.0
        %1944 = vmatprep.subr.mxu0 0.0
        %1945 = vmatpush1.msra.mxu0 0.0
        %1946 = vmatprep.subr.mxu0 0.0
        %1947 = vmatpush1.msra.mxu0 %v1910
        %1948 = vmatprep.subr.mxu0 0.0
        %1949 = vmatpush1.msra.mxu0 %v1909
        %1950 = vmatprep.subr.mxu0 0.0
        %1951 = vmatpush1.msra.mxu0 %v1908
        %1952 = vmatprep.subr.mxu0 0.0
        %1953 = vmatpush1.msra.mxu0 %v1907
        %1954 = vmatprep.subr.mxu0 0.0
        %1955 = vmatpush2.msra.mxu0 0.0
        %1956 = vmatprep.subr.mxu0 0.0
        %1957 = vmatpush2.msra.mxu0 0.0
        %1958 = vmatprep.subr.mxu0 0.0
        %1959 = vmatpush2.msra.mxu0 0.0
        %1960 = vmatprep.subr.mxu0 0.0
        %1961 = vmatpush2.msra.mxu0 0.0
        %1962 = vmatprep.subr.mxu0 0.0
        %1963 = vmatpush2.msra.mxu0 0.0
        %1964 = vmatprep.subr.mxu0 0.0
        %1965 = vmatpush2.msra.mxu0 0.0
        %1966 = vmatprep.subr.mxu0 0.0
        %1967 = vmatpush2.msra.mxu0 0.0
        %1968 = vmatprep.subr.mxu0 0.0
        %1969 = vmatpush2.msra.mxu0 0.0
        %1970 = vmatprep.subr.mxu0 0.0
        %1971 = vmatpush2.msra.mxu0 0.0
        %1972 = vmatprep.subr.mxu0 0.0
        %1973 = vmatpush2.msra.mxu0 0.0
        %1974 = vmatprep.subr.mxu0 0.0
        %1975 = vmatpush2.msra.mxu0 0.0
        %1976 = vmatprep.subr.mxu0 0.0
        %1977 = vmatpush2.msra.mxu0 0.0
        %1978 = vmatprep.subr.mxu0 0.0
        %1979 = vmatpush2.msra.mxu0 0.0
        %1980 = vmatprep.subr.mxu0 0.0
        %1981 = vmatpush2.msra.mxu0 0.0
        %1982 = vmatprep.subr.mxu0 0.0
        %1983 = vmatpush2.msra.mxu0 0.0
        %1984 = vmatprep.subr.mxu0 0.0
        %1985 = vmatpush2.msra.mxu0 0.0
        %1986 = vmatprep.mubr.f32.mxu0 0.0
        %1987 = vmatmul.mubr.f32.gmra.mxu0 %v1920
        %v1988 = vpop.f32.mrf.mxu0
        %v1989 = vadd.f32 %v1917, %v1988
        %v1990 = vpop.f32.mrf.mxu0
        %1991 = vdwg.mxu0
        %v1992 = vmax.f32 %v1989, 0.0
        %s1993 = scalar_lea.vmem %s12, 64
        %v1994 = vld [vmem:[%s1993] sm:$0xff]
        %v1995 = vld [vmem:[%s1993 + $0x8] sm:$0xff]
        %v1996 = vld [vmem:[%s1993 + $0x10] sm:$0xff]
        %v1997 = vld [vmem:[%s1993 + $0x18] sm:$0xff]
        %v1998 = vld [vmem:[%s1993 + $0x20] sm:$0xff]
        %v1999 = vld [vmem:[%s1993 + $0x28] sm:$0xff]
        %v2000 = vld [vmem:[%s1993 + $0x30] sm:$0xff]
        %v2001 = vld [vmem:[%s1993 + $0x38] sm:$0xff]
        %s2002 = scalar_lea.vmem %s13, 1
        %v2003 = vld [vmem:[%s2002] sm:$0x1]
        %v2005 = vlaneseq
        %v2006 = vshrl.u32 %v2005, 7
        %v2007 = vsub.s32 0, %v2006
        %v2008 = vrot.slane %v2003, %v2007
        %v2011 = vsel %vm1080, %v1992, 0
        %2013 = vmatprep.subr.mxu0 0.0
        %2014 = vmatpush1.msra.mxu0 0.0
        %2015 = vmatprep.subr.mxu0 0.0
        %2016 = vmatpush1.msra.mxu0 0.0
        %2017 = vmatprep.subr.mxu0 0.0
        %2018 = vmatpush1.msra.mxu0 0.0
        %2019 = vmatprep.subr.mxu0 0.0
        %2020 = vmatpush1.msra.mxu0 0.0
        %2021 = vmatprep.subr.mxu0 0.0
        %2022 = vmatpush1.msra.mxu0 0.0
        %2023 = vmatprep.subr.mxu0 0.0
        %2024 = vmatpush1.msra.mxu0 0.0
        %2025 = vmatprep.subr.mxu0 0.0
        %2026 = vmatpush1.msra.mxu0 0.0
        %2027 = vmatprep.subr.mxu0 0.0
        %2028 = vmatpush1.msra.mxu0 0.0
        %2029 = vmatprep.subr.mxu0 0.0
        %2030 = vmatpush1.msra.mxu0 %v2001
        %2031 = vmatprep.subr.mxu0 0.0
        %2032 = vmatpush1.msra.mxu0 %v2000
        %2033 = vmatprep.subr.mxu0 0.0
        %2034 = vmatpush1.msra.mxu0 %v1999
        %2035 = vmatprep.subr.mxu0 0.0
        %2036 = vmatpush1.msra.mxu0 %v1998
        %2037 = vmatprep.subr.mxu0 0.0
        %2038 = vmatpush1.msra.mxu0 %v1997
        %2039 = vmatprep.subr.mxu0 0.0
        %2040 = vmatpush1.msra.mxu0 %v1996
        %2041 = vmatprep.subr.mxu0 0.0
        %2042 = vmatpush1.msra.mxu0 %v1995
        %2043 = vmatprep.subr.mxu0 0.0
        %2044 = vmatpush1.msra.mxu0 %v1994
        %2045 = vmatprep.subr.mxu0 0.0
        %2046 = vmatpush2.msra.mxu0 0.0
        %2047 = vmatprep.subr.mxu0 0.0
        %2048 = vmatpush2.msra.mxu0 0.0
        %2049 = vmatprep.subr.mxu0 0.0
        %2050 = vmatpush2.msra.mxu0 0.0
        %2051 = vmatprep.subr.mxu0 0.0
        %2052 = vmatpush2.msra.mxu0 0.0
        %2053 = vmatprep.subr.mxu0 0.0
        %2054 = vmatpush2.msra.mxu0 0.0
        %2055 = vmatprep.subr.mxu0 0.0
        %2056 = vmatpush2.msra.mxu0 0.0
        %2057 = vmatprep.subr.mxu0 0.0
        %2058 = vmatpush2.msra.mxu0 0.0
        %2059 = vmatprep.subr.mxu0 0.0
        %2060 = vmatpush2.msra.mxu0 0.0
        %2061 = vmatprep.subr.mxu0 0.0
        %2062 = vmatpush2.msra.mxu0 0.0
        %2063 = vmatprep.subr.mxu0 0.0
        %2064 = vmatpush2.msra.mxu0 0.0
        %2065 = vmatprep.subr.mxu0 0.0
        %2066 = vmatpush2.msra.mxu0 0.0
        %2067 = vmatprep.subr.mxu0 0.0
        %2068 = vmatpush2.msra.mxu0 0.0
        %2069 = vmatprep.subr.mxu0 0.0
        %2070 = vmatpush2.msra.mxu0 0.0
        %2071 = vmatprep.subr.mxu0 0.0
        %2072 = vmatpush2.msra.mxu0 0.0
        %2073 = vmatprep.subr.mxu0 0.0
        %2074 = vmatpush2.msra.mxu0 0.0
        %2075 = vmatprep.subr.mxu0 0.0
        %2076 = vmatpush2.msra.mxu0 0.0
        %2077 = vmatprep.mubr.f32.mxu0 0.0
        %2078 = vmatmul.mubr.f32.gmra.mxu0 %v2011
        %v2079 = vpop.f32.mrf.mxu0
        %v2080 = vadd.f32 %v2008, %v2079
        %v2081 = vpop.f32.mrf.mxu0
        %2082 = vdwg.mxu0
        %v2083 = vadd.f32 %v2080, %v1905
        %s2084 = scalar_lea.vmem %s14, 1
        %v2085 = vld [vmem:[%s2084] sm:$0x1]
        %s2086 = scalar_lea.vmem %s15, 1
        %v2087 = vld [vmem:[%s2086] sm:$0x1]
        %v2088 = vsel %vm990, %v2083, 0.0
        %2089 = vadd.xlane.f32.xlu0 %v2088
        %v2090 = vpop.xlane.xlu0 %2089
        %v2091 = vmul.f32 %v2090, %v1160
        %v2092 = vsub.f32 %v2083, %v2091
        %v2093 = vmul.f32 %v2092, %v2092
        %v2094 = vsel %vm990, %v2093, 0.0
        %2095 = vadd.xlane.f32.xlu0 %v2094
        %v2096 = vpop.xlane.xlu0 %2095
        %v2097 = vmul.f32 %v2096, 0.032258064
        %v2098 = vrsqrt.pop %v2097
        %v2099 = vmul.f32 %v2097, %v2098
        %vm2100 = vcmp.eq.f32.partialorder %v2097, inf
        %v2101 = vsel %vm2100, %v2097, %v2099
        %vm2102 = vcmp.eq.f32.partialorder %v2097, 0.0
        %v2103 = vand.u32 %v2097, 2147483648
        %v2104 = vsel %vm2102, %v2103, %v2101
        %v2105 = vadd.f32 %v2104, 1e-06
        %v2106 = vrcp.pop %v2105
        %v2108 = vlaneseq
        %v2109 = vshrl.u32 %v2108, 7
        %v2110 = vsub.s32 0, %v2109
        %v2111 = vrot.slane %v2085, %v2110
        %v2113 = vmul.f32 %v2111, %v2092
        %v2114 = vmul.f32 %v2113, %v2106
        %v2116 = vlaneseq
        %v2117 = vshrl.u32 %v2116, 7
        %v2118 = vsub.s32 0, %v2117
        %v2119 = vrot.slane %v2087, %v2118
        %v2121 = vadd.f32 %v2114, %v2119
        %s2122 = scalar_lea.vmem %s16, 32
        %v2123 = vld [vmem:[%s2122] sm:$0xff]
        %v2124 = vld [vmem:[%s2122 + $0x8] sm:$0xff]
        %v2125 = vld [vmem:[%s2122 + $0x10] sm:$0xff]
        %v2126 = vld [vmem:[%s2122 + $0x18] sm:$0xff]
        %s2127 = scalar_lea.vmem %s17, 1
        %v2128 = vld [vmem:[%s2127] sm:$0x1]
        %v2130 = vlaneseq
        %v2131 = vshrl.u32 %v2130, 7
        %v2132 = vsub.s32 0, %v2131
        %v2133 = vrot.slane %v2128, %v2132
        %v2136 = vsel %vm990, %v2121, 0
        %2138 = vmatprep.subr.mxu0 0.0
        %2139 = vmatpush1.msra.mxu0 0.0
        %2140 = vmatprep.subr.mxu0 0.0
        %2141 = vmatpush1.msra.mxu0 0.0
        %2142 = vmatprep.subr.mxu0 0.0
        %2143 = vmatpush1.msra.mxu0 0.0
        %2144 = vmatprep.subr.mxu0 0.0
        %2145 = vmatpush1.msra.mxu0 0.0
        %2146 = vmatprep.subr.mxu0 0.0
        %2147 = vmatpush1.msra.mxu0 0.0
        %2148 = vmatprep.subr.mxu0 0.0
        %2149 = vmatpush1.msra.mxu0 0.0
        %2150 = vmatprep.subr.mxu0 0.0
        %2151 = vmatpush1.msra.mxu0 0.0
        %2152 = vmatprep.subr.mxu0 0.0
        %2153 = vmatpush1.msra.mxu0 0.0
        %2154 = vmatprep.subr.mxu0 0.0
        %2155 = vmatpush1.msra.mxu0 0.0
        %2156 = vmatprep.subr.mxu0 0.0
        %2157 = vmatpush1.msra.mxu0 0.0
        %2158 = vmatprep.subr.mxu0 0.0
        %2159 = vmatpush1.msra.mxu0 0.0
        %2160 = vmatprep.subr.mxu0 0.0
        %2161 = vmatpush1.msra.mxu0 0.0
        %2162 = vmatprep.subr.mxu0 0.0
        %2163 = vmatpush1.msra.mxu0 %v2126
        %2164 = vmatprep.subr.mxu0 0.0
        %2165 = vmatpush1.msra.mxu0 %v2125
        %2166 = vmatprep.subr.mxu0 0.0
        %2167 = vmatpush1.msra.mxu0 %v2124
        %2168 = vmatprep.subr.mxu0 0.0
        %2169 = vmatpush1.msra.mxu0 %v2123
        %2170 = vmatprep.subr.mxu0 0.0
        %2171 = vmatpush2.msra.mxu0 0.0
        %2172 = vmatprep.subr.mxu0 0.0
        %2173 = vmatpush2.msra.mxu0 0.0
        %2174 = vmatprep.subr.mxu0 0.0
        %2175 = vmatpush2.msra.mxu0 0.0
        %2176 = vmatprep.subr.mxu0 0.0
        %2177 = vmatpush2.msra.mxu0 0.0
        %2178 = vmatprep.subr.mxu0 0.0
        %2179 = vmatpush2.msra.mxu0 0.0
        %2180 = vmatprep.subr.mxu0 0.0
        %2181 = vmatpush2.msra.mxu0 0.0
        %2182 = vmatprep.subr.mxu0 0.0
        %2183 = vmatpush2.msra.mxu0 0.0
        %2184 = vmatprep.subr.mxu0 0.0
        %2185 = vmatpush2.msra.mxu0 0.0
        %2186 = vmatprep.subr.mxu0 0.0
        %2187 = vmatpush2.msra.mxu0 0.0
        %2188 = vmatprep.subr.mxu0 0.0
        %2189 = vmatpush2.msra.mxu0 0.0
        %2190 = vmatprep.subr.mxu0 0.0
        %2191 = vmatpush2.msra.mxu0 0.0
        %2192 = vmatprep.subr.mxu0 0.0
        %2193 = vmatpush2.msra.mxu0 0.0
        %2194 = vmatprep.subr.mxu0 0.0
        %2195 = vmatpush2.msra.mxu0 0.0
        %2196 = vmatprep.subr.mxu0 0.0
        %2197 = vmatpush2.msra.mxu0 0.0
        %2198 = vmatprep.subr.mxu0 0.0
        %2199 = vmatpush2.msra.mxu0 0.0
        %2200 = vmatprep.subr.mxu0 0.0
        %2201 = vmatpush2.msra.mxu0 0.0
        %2202 = vmatprep.mubr.f32.mxu0 0.0
        %2203 = vmatmul.mubr.f32.gmra.mxu0 %v2136
        %v2204 = vpop.f32.mrf.mxu0
        %v2205 = vadd.f32 %v2133, %v2204
        %v2206 = vpop.f32.mrf.mxu0
        %2207 = vdwg.mxu0
        %s2208 = scalar_lea.vmem %s18, 32
        %v2209 = vld [vmem:[%s2208] sm:$0xff]
        %v2210 = vld [vmem:[%s2208 + $0x8] sm:$0xff]
        %v2211 = vld [vmem:[%s2208 + $0x10] sm:$0xff]
        %v2212 = vld [vmem:[%s2208 + $0x18] sm:$0xff]
        %s2213 = scalar_lea.vmem %s19, 1
        %v2214 = vld [vmem:[%s2213] sm:$0x1]
        %v2216 = vlaneseq
        %v2217 = vshrl.u32 %v2216, 7
        %v2218 = vsub.s32 0, %v2217
        %v2219 = vrot.slane %v2214, %v2218
        %2221 = vmatprep.subr.mxu0 0.0
        %2222 = vmatpush1.msra.mxu0 0.0
        %2223 = vmatprep.subr.mxu0 0.0
        %2224 = vmatpush1.msra.mxu0 0.0
        %2225 = vmatprep.subr.mxu0 0.0
        %2226 = vmatpush1.msra.mxu0 0.0
        %2227 = vmatprep.subr.mxu0 0.0
        %2228 = vmatpush1.msra.mxu0 0.0
        %2229 = vmatprep.subr.mxu0 0.0
        %2230 = vmatpush1.msra.mxu0 0.0
        %2231 = vmatprep.subr.mxu0 0.0
        %2232 = vmatpush1.msra.mxu0 0.0
        %2233 = vmatprep.subr.mxu0 0.0
        %2234 = vmatpush1.msra.mxu0 0.0
        %2235 = vmatprep.subr.mxu0 0.0
        %2236 = vmatpush1.msra.mxu0 0.0
        %2237 = vmatprep.subr.mxu0 0.0
        %2238 = vmatpush1.msra.mxu0 0.0
        %2239 = vmatprep.subr.mxu0 0.0
        %2240 = vmatpush1.msra.mxu0 0.0
        %2241 = vmatprep.subr.mxu0 0.0
        %2242 = vmatpush1.msra.mxu0 0.0
        %2243 = vmatprep.subr.mxu0 0.0
        %2244 = vmatpush1.msra.mxu0 0.0
        %2245 = vmatprep.subr.mxu0 0.0
        %2246 = vmatpush1.msra.mxu0 %v2212
        %2247 = vmatprep.subr.mxu0 0.0
        %2248 = vmatpush1.msra.mxu0 %v2211
        %2249 = vmatprep.subr.mxu0 0.0
        %2250 = vmatpush1.msra.mxu0 %v2210
        %2251 = vmatprep.subr.mxu0 0.0
        %2252 = vmatpush1.msra.mxu0 %v2209
        %2253 = vmatprep.subr.mxu0 0.0
        %2254 = vmatpush2.msra.mxu0 0.0
        %2255 = vmatprep.subr.mxu0 0.0
        %2256 = vmatpush2.msra.mxu0 0.0
        %2257 = vmatprep.subr.mxu0 0.0
        %2258 = vmatpush2.msra.mxu0 0.0
        %2259 = vmatprep.subr.mxu0 0.0
        %2260 = vmatpush2.msra.mxu0 0.0
        %2261 = vmatprep.subr.mxu0 0.0
        %2262 = vmatpush2.msra.mxu0 0.0
        %2263 = vmatprep.subr.mxu0 0.0
        %2264 = vmatpush2.msra.mxu0 0.0
        %2265 = vmatprep.subr.mxu0 0.0
        %2266 = vmatpush2.msra.mxu0 0.0
        %2267 = vmatprep.subr.mxu0 0.0
        %2268 = vmatpush2.msra.mxu0 0.0
        %2269 = vmatprep.subr.mxu0 0.0
        %2270 = vmatpush2.msra.mxu0 0.0
        %2271 = vmatprep.subr.mxu0 0.0
        %2272 = vmatpush2.msra.mxu0 0.0
        %2273 = vmatprep.subr.mxu0 0.0
        %2274 = vmatpush2.msra.mxu0 0.0
        %2275 = vmatprep.subr.mxu0 0.0
        %2276 = vmatpush2.msra.mxu0 0.0
        %2277 = vmatprep.subr.mxu0 0.0
        %2278 = vmatpush2.msra.mxu0 0.0
        %2279 = vmatprep.subr.mxu0 0.0
        %2280 = vmatpush2.msra.mxu0 0.0
        %2281 = vmatprep.subr.mxu0 0.0
        %2282 = vmatpush2.msra.mxu0 0.0
        %2283 = vmatprep.subr.mxu0 0.0
        %2284 = vmatpush2.msra.mxu0 0.0
        %2285 = vmatprep.mubr.f32.mxu0 0.0
        %2286 = vmatmul.mubr.f32.gmra.mxu0 %v2136
        %v2287 = vpop.f32.mrf.mxu0
        %v2288 = vadd.f32 %v2219, %v2287
        %v2289 = vpop.f32.mrf.mxu0
        %2290 = vdwg.mxu0
        %s2291 = scalar_lea.vmem %s20, 32
        %v2292 = vld [vmem:[%s2291] sm:$0xff]
        %v2293 = vld [vmem:[%s2291 + $0x8] sm:$0xff]
        %v2294 = vld [vmem:[%s2291 + $0x10] sm:$0xff]
        %v2295 = vld [vmem:[%s2291 + $0x18] sm:$0xff]
        %s2296 = scalar_lea.vmem %s21, 1
        %v2297 = vld [vmem:[%s2296] sm:$0x1]
        %v2299 = vlaneseq
        %v2300 = vshrl.u32 %v2299, 7
        %v2301 = vsub.s32 0, %v2300
        %v2302 = vrot.slane %v2297, %v2301
        %2304 = vmatprep.subr.mxu0 0.0
        %2305 = vmatpush1.msra.mxu0 0.0
        %2306 = vmatprep.subr.mxu0 0.0
        %2307 = vmatpush1.msra.mxu0 0.0
        %2308 = vmatprep.subr.mxu0 0.0
        %2309 = vmatpush1.msra.mxu0 0.0
        %2310 = vmatprep.subr.mxu0 0.0
        %2311 = vmatpush1.msra.mxu0 0.0
        %2312 = vmatprep.subr.mxu0 0.0
        %2313 = vmatpush1.msra.mxu0 0.0
        %2314 = vmatprep.subr.mxu0 0.0
        %2315 = vmatpush1.msra.mxu0 0.0
        %2316 = vmatprep.subr.mxu0 0.0
        %2317 = vmatpush1.msra.mxu0 0.0
        %2318 = vmatprep.subr.mxu0 0.0
        %2319 = vmatpush1.msra.mxu0 0.0
        %2320 = vmatprep.subr.mxu0 0.0
        %2321 = vmatpush1.msra.mxu0 0.0
        %2322 = vmatprep.subr.mxu0 0.0
        %2323 = vmatpush1.msra.mxu0 0.0
        %2324 = vmatprep.subr.mxu0 0.0
        %2325 = vmatpush1.msra.mxu0 0.0
        %2326 = vmatprep.subr.mxu0 0.0
        %2327 = vmatpush1.msra.mxu0 0.0
        %2328 = vmatprep.subr.mxu0 0.0
        %2329 = vmatpush1.msra.mxu0 %v2295
        %2330 = vmatprep.subr.mxu0 0.0
        %2331 = vmatpush1.msra.mxu0 %v2294
        %2332 = vmatprep.subr.mxu0 0.0
        %2333 = vmatpush1.msra.mxu0 %v2293
        %2334 = vmatprep.subr.mxu0 0.0
        %2335 = vmatpush1.msra.mxu0 %v2292
        %2336 = vmatprep.subr.mxu0 0.0
        %2337 = vmatpush2.msra.mxu0 0.0
        %2338 = vmatprep.subr.mxu0 0.0
        %2339 = vmatpush2.msra.mxu0 0.0
        %2340 = vmatprep.subr.mxu0 0.0
        %2341 = vmatpush2.msra.mxu0 0.0
        %2342 = vmatprep.subr.mxu0 0.0
        %2343 = vmatpush2.msra.mxu0 0.0
        %2344 = vmatprep.subr.mxu0 0.0
        %2345 = vmatpush2.msra.mxu0 0.0
        %2346 = vmatprep.subr.mxu0 0.0
        %2347 = vmatpush2.msra.mxu0 0.0
        %2348 = vmatprep.subr.mxu0 0.0
        %2349 = vmatpush2.msra.mxu0 0.0
        %2350 = vmatprep.subr.mxu0 0.0
        %2351 = vmatpush2.msra.mxu0 0.0
        %2352 = vmatprep.subr.mxu0 0.0
        %2353 = vmatpush2.msra.mxu0 0.0
        %2354 = vmatprep.subr.mxu0 0.0
        %2355 = vmatpush2.msra.mxu0 0.0
        %2356 = vmatprep.subr.mxu0 0.0
        %2357 = vmatpush2.msra.mxu0 0.0
        %2358 = vmatprep.subr.mxu0 0.0
        %2359 = vmatpush2.msra.mxu0 0.0
        %2360 = vmatprep.subr.mxu0 0.0
        %2361 = vmatpush2.msra.mxu0 0.0
        %2362 = vmatprep.subr.mxu0 0.0
        %2363 = vmatpush2.msra.mxu0 0.0
        %2364 = vmatprep.subr.mxu0 0.0
        %2365 = vmatpush2.msra.mxu0 0.0
        %2366 = vmatprep.subr.mxu0 0.0
        %2367 = vmatpush2.msra.mxu0 0.0
        %2368 = vmatprep.mubr.f32.mxu0 0.0
        %2369 = vmatmul.mubr.f32.gmra.mxu0 %v2136
        %v2370 = vpop.f32.mrf.mxu0
        %v2371 = vadd.f32 %v2302, %v2370
        %v2372 = vpop.f32.mrf.mxu0
        %2373 = vdwg.mxu0
        %v2375 = vsel %vm1438, %v2205, 0
        %v2378 = vsel %vm1438, %v2288, 0
        %2380 = vmatprep.subr.mxu0 0.0
        %2381 = vmatpush1.xpose.msra.mxu0 0.0
        %2382 = vmatprep.subr.mxu0 0.0
        %2383 = vmatpush1.xpose.msra.mxu0 0.0
        %2384 = vmatprep.subr.mxu0 0.0
        %2385 = vmatpush1.xpose.msra.mxu0 0.0
        %2386 = vmatprep.subr.mxu0 0.0
        %2387 = vmatpush1.xpose.msra.mxu0 0.0
        %2388 = vmatprep.subr.mxu0 0.0
        %2389 = vmatpush1.xpose.msra.mxu0 0.0
        %2390 = vmatprep.subr.mxu0 0.0
        %2391 = vmatpush1.xpose.msra.mxu0 0.0
        %2392 = vmatprep.subr.mxu0 0.0
        %2393 = vmatpush1.xpose.msra.mxu0 0.0
        %2394 = vmatprep.subr.mxu0 0.0
        %2395 = vmatpush1.xpose.msra.mxu0 0.0
        %2396 = vmatprep.subr.mxu0 0.0
        %2397 = vmatpush1.xpose.msra.mxu0 0.0
        %2398 = vmatprep.subr.mxu0 0.0
        %2399 = vmatpush1.xpose.msra.mxu0 0.0
        %2400 = vmatprep.subr.mxu0 0.0
        %2401 = vmatpush1.xpose.msra.mxu0 0.0
        %2402 = vmatprep.subr.mxu0 0.0
        %2403 = vmatpush1.xpose.msra.mxu0 0.0
        %2404 = vmatprep.subr.mxu0 0.0
        %2405 = vmatpush1.xpose.msra.mxu0 0.0
        %2406 = vmatprep.subr.mxu0 0.0
        %2407 = vmatpush1.xpose.msra.mxu0 0.0
        %2408 = vmatprep.subr.mxu0 0.0
        %2409 = vmatpush1.xpose.msra.mxu0 0.0
        %2410 = vmatprep.subr.mxu0 0.0
        %2411 = vmatpush1.xpose.msra.mxu0 %v2378
        %2412 = vmatprep.subr.mxu0 0.0
        %2413 = vmatpush2.xpose.msra.mxu0 0.0
        %2414 = vmatprep.subr.mxu0 0.0
        %2415 = vmatpush2.xpose.msra.mxu0 0.0
        %2416 = vmatprep.subr.mxu0 0.0
        %2417 = vmatpush2.xpose.msra.mxu0 0.0
        %2418 = vmatprep.subr.mxu0 0.0
        %2419 = vmatpush2.xpose.msra.mxu0 0.0
        %2420 = vmatprep.subr.mxu0 0.0
        %2421 = vmatpush2.xpose.msra.mxu0 0.0
        %2422 = vmatprep.subr.mxu0 0.0
        %2423 = vmatpush2.xpose.msra.mxu0 0.0
        %2424 = vmatprep.subr.mxu0 0.0
        %2425 = vmatpush2.xpose.msra.mxu0 0.0
        %2426 = vmatprep.subr.mxu0 0.0
        %2427 = vmatpush2.xpose.msra.mxu0 0.0
        %2428 = vmatprep.subr.mxu0 0.0
        %2429 = vmatpush2.xpose.msra.mxu0 0.0
        %2430 = vmatprep.subr.mxu0 0.0
        %2431 = vmatpush2.xpose.msra.mxu0 0.0
        %2432 = vmatprep.subr.mxu0 0.0
        %2433 = vmatpush2.xpose.msra.mxu0 0.0
        %2434 = vmatprep.subr.mxu0 0.0
        %2435 = vmatpush2.xpose.msra.mxu0 0.0
        %2436 = vmatprep.subr.mxu0 0.0
        %2437 = vmatpush2.xpose.msra.mxu0 0.0
        %2438 = vmatprep.subr.mxu0 0.0
        %2439 = vmatpush2.xpose.msra.mxu0 0.0
        %2440 = vmatprep.subr.mxu0 0.0
        %2441 = vmatpush2.xpose.msra.mxu0 0.0
        %2442 = vmatprep.subr.mxu0 0.0
        %2443 = vmatpush2.xpose.msra.mxu0 0.0
        %2444 = vmatprep.mubr.f32.mxu0 0.0
        %2445 = vmatmul.mubr.f32.gmra.mxu0 %v2375
        %v2446 = vpop.f32.mrf.mxu0
        %v2447 = vadd.f32 0.0, %v2446
        %v2448 = vpop.f32.mrf.mxu0
        %2449 = vdwg.mxu0
        %v2450 = vmul.f32 %v2447, %v969
        %v2451 = vsel %vm1516, %v2450, -inf
        %2452 = vmax.xlane.f32.xlu0 %v2451
        %v2453 = vpop.xlane.xlu0 %2452
        %v2454 = vsub.f32 %v2450, %v2453
        %v2455 = vmul.f32 %v2454, 1.442695
        %v2456 = vpow.pop %v2455
        %v2457 = vsel %vm1516, %v2456, 0.0
        %2458 = vadd.xlane.f32.xlu0 %v2457
        %v2459 = vpop.xlane.xlu0 %2458
        %v2460 = vmul.f32 %v2456, %v969
        %v2461 = vsel %vm1516, %v2460, 0.0
        %2462 = vadd.xlane.f32.xlu0 %v2461
        %v2463 = vpop.xlane.xlu0 %2462
        %v2464 = vmul.f32 %v2459, 1e-13
        %v2465 = vadd.f32 %v2463, %v2464
        %v2466 = vrcp.pop %v2465
        %v2467 = vmul.f32 %v2460, %v2466
        %v2469 = vsel %vm1516, %v2467, 0
        %2471 = vmatprep.subr.mxu0 0.0
        %2472 = vmatpush1.msra.mxu0 0.0
        %2473 = vmatprep.subr.mxu0 0.0
        %2474 = vmatpush1.msra.mxu0 0.0
        %2475 = vmatprep.subr.mxu0 0.0
        %2476 = vmatpush1.msra.mxu0 0.0
        %2477 = vmatprep.subr.mxu0 0.0
        %2478 = vmatpush1.msra.mxu0 0.0
        %2479 = vmatprep.subr.mxu0 0.0
        %2480 = vmatpush1.msra.mxu0 0.0
        %2481 = vmatprep.subr.mxu0 0.0
        %2482 = vmatpush1.msra.mxu0 0.0
        %2483 = vmatprep.subr.mxu0 0.0
        %2484 = vmatpush1.msra.mxu0 0.0
        %2485 = vmatprep.subr.mxu0 0.0
        %2486 = vmatpush1.msra.mxu0 0.0
        %2487 = vmatprep.subr.mxu0 0.0
        %2488 = vmatpush1.msra.mxu0 0.0
        %2489 = vmatprep.subr.mxu0 0.0
        %2490 = vmatpush1.msra.mxu0 0.0
        %2491 = vmatprep.subr.mxu0 0.0
        %2492 = vmatpush1.msra.mxu0 0.0
        %2493 = vmatprep.subr.mxu0 0.0
        %2494 = vmatpush1.msra.mxu0 0.0
        %2495 = vmatprep.subr.mxu0 0.0
        %2496 = vmatpush1.msra.mxu0 0.0
        %2497 = vmatprep.subr.mxu0 0.0
        %2498 = vmatpush1.msra.mxu0 0.0
        %2499 = vmatprep.subr.mxu0 0.0
        %2500 = vmatpush1.msra.mxu0 0.0
        %2501 = vmatprep.subr.mxu0 0.0
        %2502 = vmatpush1.msra.mxu0 %v2371
        %2503 = vmatprep.subr.mxu0 0.0
        %2504 = vmatpush2.msra.mxu0 0.0
        %2505 = vmatprep.subr.mxu0 0.0
        %2506 = vmatpush2.msra.mxu0 0.0
        %2507 = vmatprep.subr.mxu0 0.0
        %2508 = vmatpush2.msra.mxu0 0.0
        %2509 = vmatprep.subr.mxu0 0.0
        %2510 = vmatpush2.msra.mxu0 0.0
        %2511 = vmatprep.subr.mxu0 0.0
        %2512 = vmatpush2.msra.mxu0 0.0
        %2513 = vmatprep.subr.mxu0 0.0
        %2514 = vmatpush2.msra.mxu0 0.0
        %2515 = vmatprep.subr.mxu0 0.0
        %2516 = vmatpush2.msra.mxu0 0.0
        %2517 = vmatprep.subr.mxu0 0.0
        %2518 = vmatpush2.msra.mxu0 0.0
        %2519 = vmatprep.subr.mxu0 0.0
        %2520 = vmatpush2.msra.mxu0 0.0
        %2521 = vmatprep.subr.mxu0 0.0
        %2522 = vmatpush2.msra.mxu0 0.0
        %2523 = vmatprep.subr.mxu0 0.0
        %2524 = vmatpush2.msra.mxu0 0.0
        %2525 = vmatprep.subr.mxu0 0.0
        %2526 = vmatpush2.msra.mxu0 0.0
        %2527 = vmatprep.subr.mxu0 0.0
        %2528 = vmatpush2.msra.mxu0 0.0
        %2529 = vmatprep.subr.mxu0 0.0
        %2530 = vmatpush2.msra.mxu0 0.0
        %2531 = vmatprep.subr.mxu0 0.0
        %2532 = vmatpush2.msra.mxu0 0.0
        %2533 = vmatprep.subr.mxu0 0.0
        %2534 = vmatpush2.msra.mxu0 0.0
        %2535 = vmatprep.mubr.f32.mxu0 0.0
        %2536 = vmatmul.mubr.f32.gmra.mxu0 %v2469
        %v2537 = vpop.f32.mrf.mxu0
        %v2538 = vadd.f32 0.0, %v2537
        %v2539 = vpop.f32.mrf.mxu0
        %2540 = vdwg.mxu0
        %2541 = vrot.lane.b32.xlu0 %v2205, 112
        %v2542 = vpop.permute.xlu0 %2541
        %2543 = vrot.lane.b32.xlu0 %v2288, 112
        %v2544 = vpop.permute.xlu0 %2543
        %v2545 = vsel %vm1438, %v2542, 0
        %v2547 = vsel %vm1438, %v2544, 0
        %2549 = vmatprep.subr.mxu0 0.0
        %2550 = vmatpush1.xpose.msra.mxu0 0.0
        %2551 = vmatprep.subr.mxu0 0.0
        %2552 = vmatpush1.xpose.msra.mxu0 0.0
        %2553 = vmatprep.subr.mxu0 0.0
        %2554 = vmatpush1.xpose.msra.mxu0 0.0
        %2555 = vmatprep.subr.mxu0 0.0
        %2556 = vmatpush1.xpose.msra.mxu0 0.0
        %2557 = vmatprep.subr.mxu0 0.0
        %2558 = vmatpush1.xpose.msra.mxu0 0.0
        %2559 = vmatprep.subr.mxu0 0.0
        %2560 = vmatpush1.xpose.msra.mxu0 0.0
        %2561 = vmatprep.subr.mxu0 0.0
        %2562 = vmatpush1.xpose.msra.mxu0 0.0
        %2563 = vmatprep.subr.mxu0 0.0
        %2564 = vmatpush1.xpose.msra.mxu0 0.0
        %2565 = vmatprep.subr.mxu0 0.0
        %2566 = vmatpush1.xpose.msra.mxu0 0.0
        %2567 = vmatprep.subr.mxu0 0.0
        %2568 = vmatpush1.xpose.msra.mxu0 0.0
        %2569 = vmatprep.subr.mxu0 0.0
        %2570 = vmatpush1.xpose.msra.mxu0 0.0
        %2571 = vmatprep.subr.mxu0 0.0
        %2572 = vmatpush1.xpose.msra.mxu0 0.0
        %2573 = vmatprep.subr.mxu0 0.0
        %2574 = vmatpush1.xpose.msra.mxu0 0.0
        %2575 = vmatprep.subr.mxu0 0.0
        %2576 = vmatpush1.xpose.msra.mxu0 0.0
        %2577 = vmatprep.subr.mxu0 0.0
        %2578 = vmatpush1.xpose.msra.mxu0 0.0
        %2579 = vmatprep.subr.mxu0 0.0
        %2580 = vmatpush1.xpose.msra.mxu0 %v2547
        %2581 = vmatprep.subr.mxu0 0.0
        %2582 = vmatpush2.xpose.msra.mxu0 0.0
        %2583 = vmatprep.subr.mxu0 0.0
        %2584 = vmatpush2.xpose.msra.mxu0 0.0
        %2585 = vmatprep.subr.mxu0 0.0
        %2586 = vmatpush2.xpose.msra.mxu0 0.0
        %2587 = vmatprep.subr.mxu0 0.0
        %2588 = vmatpush2.xpose.msra.mxu0 0.0
        %2589 = vmatprep.subr.mxu0 0.0
        %2590 = vmatpush2.xpose.msra.mxu0 0.0
        %2591 = vmatprep.subr.mxu0 0.0
        %2592 = vmatpush2.xpose.msra.mxu0 0.0
        %2593 = vmatprep.subr.mxu0 0.0
        %2594 = vmatpush2.xpose.msra.mxu0 0.0
        %2595 = vmatprep.subr.mxu0 0.0
        %2596 = vmatpush2.xpose.msra.mxu0 0.0
        %2597 = vmatprep.subr.mxu0 0.0
        %2598 = vmatpush2.xpose.msra.mxu0 0.0
        %2599 = vmatprep.subr.mxu0 0.0
        %2600 = vmatpush2.xpose.msra.mxu0 0.0
        %2601 = vmatprep.subr.mxu0 0.0
        %2602 = vmatpush2.xpose.msra.mxu0 0.0
        %2603 = vmatprep.subr.mxu0 0.0
        %2604 = vmatpush2.xpose.msra.mxu0 0.0
        %2605 = vmatprep.subr.mxu0 0.0
        %2606 = vmatpush2.xpose.msra.mxu0 0.0
        %2607 = vmatprep.subr.mxu0 0.0
        %2608 = vmatpush2.xpose.msra.mxu0 0.0
        %2609 = vmatprep.subr.mxu0 0.0
        %2610 = vmatpush2.xpose.msra.mxu0 0.0
        %2611 = vmatprep.subr.mxu0 0.0
        %2612 = vmatpush2.xpose.msra.mxu0 0.0
        %2613 = vmatprep.mubr.f32.mxu0 0.0
        %2614 = vmatmul.mubr.f32.gmra.mxu0 %v2545
        %v2615 = vpop.f32.mrf.mxu0
        %v2616 = vadd.f32 0.0, %v2615
        %v2617 = vpop.f32.mrf.mxu0
        %2618 = vdwg.mxu0
        %v2619 = vmul.f32 %v2616, %v969
        %v2620 = vsel %vm1516, %v2619, -inf
        %2621 = vmax.xlane.f32.xlu0 %v2620
        %v2622 = vpop.xlane.xlu0 %2621
        %v2623 = vsub.f32 %v2619, %v2622
        %v2624 = vmul.f32 %v2623, 1.442695
        %v2625 = vpow.pop %v2624
        %v2626 = vsel %vm1516, %v2625, 0.0
        %2627 = vadd.xlane.f32.xlu0 %v2626
        %v2628 = vpop.xlane.xlu0 %2627
        %v2629 = vmul.f32 %v2625, %v969
        %v2630 = vsel %vm1516, %v2629, 0.0
        %2631 = vadd.xlane.f32.xlu0 %v2630
        %v2632 = vpop.xlane.xlu0 %2631
        %v2633 = vmul.f32 %v2628, 1e-13
        %v2634 = vadd.f32 %v2632, %v2633
        %v2635 = vrcp.pop %v2634
        %v2636 = vmul.f32 %v2629, %v2635
        %2638 = vrot.lane.b32.xlu0 %v2371, 112
        %v2639 = vpop.permute.xlu0 %2638
        %v2642 = vsel %vm1516, %v2636, 0
        %2644 = vmatprep.subr.mxu0 0.0
        %2645 = vmatpush1.msra.mxu0 0.0
        %2646 = vmatprep.subr.mxu0 0.0
        %2647 = vmatpush1.msra.mxu0 0.0
        %2648 = vmatprep.subr.mxu0 0.0
        %2649 = vmatpush1.msra.mxu0 0.0
        %2650 = vmatprep.subr.mxu0 0.0
        %2651 = vmatpush1.msra.mxu0 0.0
        %2652 = vmatprep.subr.mxu0 0.0
        %2653 = vmatpush1.msra.mxu0 0.0
        %2654 = vmatprep.subr.mxu0 0.0
        %2655 = vmatpush1.msra.mxu0 0.0
        %2656 = vmatprep.subr.mxu0 0.0
        %2657 = vmatpush1.msra.mxu0 0.0
        %2658 = vmatprep.subr.mxu0 0.0
        %2659 = vmatpush1.msra.mxu0 0.0
        %2660 = vmatprep.subr.mxu0 0.0
        %2661 = vmatpush1.msra.mxu0 0.0
        %2662 = vmatprep.subr.mxu0 0.0
        %2663 = vmatpush1.msra.mxu0 0.0
        %2664 = vmatprep.subr.mxu0 0.0
        %2665 = vmatpush1.msra.mxu0 0.0
        %2666 = vmatprep.subr.mxu0 0.0
        %2667 = vmatpush1.msra.mxu0 0.0
        %2668 = vmatprep.subr.mxu0 0.0
        %2669 = vmatpush1.msra.mxu0 0.0
        %2670 = vmatprep.subr.mxu0 0.0
        %2671 = vmatpush1.msra.mxu0 0.0
        %2672 = vmatprep.subr.mxu0 0.0
        %2673 = vmatpush1.msra.mxu0 0.0
        %2674 = vmatprep.subr.mxu0 0.0
        %2675 = vmatpush1.msra.mxu0 %v2639
        %2676 = vmatprep.subr.mxu0 0.0
        %2677 = vmatpush2.msra.mxu0 0.0
        %2678 = vmatprep.subr.mxu0 0.0
        %2679 = vmatpush2.msra.mxu0 0.0
        %2680 = vmatprep.subr.mxu0 0.0
        %2681 = vmatpush2.msra.mxu0 0.0
        %2682 = vmatprep.subr.mxu0 0.0
        %2683 = vmatpush2.msra.mxu0 0.0
        %2684 = vmatprep.subr.mxu0 0.0
        %2685 = vmatpush2.msra.mxu0 0.0
        %2686 = vmatprep.subr.mxu0 0.0
        %2687 = vmatpush2.msra.mxu0 0.0
        %2688 = vmatprep.subr.mxu0 0.0
        %2689 = vmatpush2.msra.mxu0 0.0
        %2690 = vmatprep.subr.mxu0 0.0
        %2691 = vmatpush2.msra.mxu0 0.0
        %2692 = vmatprep.subr.mxu0 0.0
        %2693 = vmatpush2.msra.mxu0 0.0
        %2694 = vmatprep.subr.mxu0 0.0
        %2695 = vmatpush2.msra.mxu0 0.0
        %2696 = vmatprep.subr.mxu0 0.0
        %2697 = vmatpush2.msra.mxu0 0.0
        %2698 = vmatprep.subr.mxu0 0.0
        %2699 = vmatpush2.msra.mxu0 0.0
        %2700 = vmatprep.subr.mxu0 0.0
        %2701 = vmatpush2.msra.mxu0 0.0
        %2702 = vmatprep.subr.mxu0 0.0
        %2703 = vmatpush2.msra.mxu0 0.0
        %2704 = vmatprep.subr.mxu0 0.0
        %2705 = vmatpush2.msra.mxu0 0.0
        %2706 = vmatprep.subr.mxu0 0.0
        %2707 = vmatpush2.msra.mxu0 0.0
        %2708 = vmatprep.mubr.f32.mxu0 0.0
        %2709 = vmatmul.mubr.f32.gmra.mxu0 %v2642
        %v2710 = vpop.f32.mrf.mxu0
        %v2711 = vadd.f32 0.0, %v2710
        %v2712 = vpop.f32.mrf.mxu0
        %2713 = vdwg.mxu0
        %2715 = vrot.lane.b32.xlu0 %v2711, 16
        %v2716 = vpop.permute.xlu0 %2715
        %v2718 = vsel %vm1438, %v2538, %v2716
        %s2719 = scalar_lea.vmem %s22, 32
        %v2720 = vld [vmem:[%s2719] sm:$0xff]
        %v2721 = vld [vmem:[%s2719 + $0x8] sm:$0xff]
        %v2722 = vld [vmem:[%s2719 + $0x10] sm:$0xff]
        %v2723 = vld [vmem:[%s2719 + $0x18] sm:$0xff]
        %s2724 = scalar_lea.vmem %s23, 1
        %v2725 = vld [vmem:[%s2724] sm:$0x1]
        %v2727 = vlaneseq
        %v2728 = vshrl.u32 %v2727, 7
        %v2729 = vsub.s32 0, %v2728
        %v2730 = vrot.slane %v2725, %v2729
        %v2733 = vsel %vm990, %v2718, 0
        %2735 = vmatprep.subr.mxu0 0.0
        %2736 = vmatpush1.msra.mxu0 0.0
        %2737 = vmatprep.subr.mxu0 0.0
        %2738 = vmatpush1.msra.mxu0 0.0
        %2739 = vmatprep.subr.mxu0 0.0
        %2740 = vmatpush1.msra.mxu0 0.0
        %2741 = vmatprep.subr.mxu0 0.0
        %2742 = vmatpush1.msra.mxu0 0.0
        %2743 = vmatprep.subr.mxu0 0.0
        %2744 = vmatpush1.msra.mxu0 0.0
        %2745 = vmatprep.subr.mxu0 0.0
        %2746 = vmatpush1.msra.mxu0 0.0
        %2747 = vmatprep.subr.mxu0 0.0
        %2748 = vmatpush1.msra.mxu0 0.0
        %2749 = vmatprep.subr.mxu0 0.0
        %2750 = vmatpush1.msra.mxu0 0.0
        %2751 = vmatprep.subr.mxu0 0.0
        %2752 = vmatpush1.msra.mxu0 0.0
        %2753 = vmatprep.subr.mxu0 0.0
        %2754 = vmatpush1.msra.mxu0 0.0
        %2755 = vmatprep.subr.mxu0 0.0
        %2756 = vmatpush1.msra.mxu0 0.0
        %2757 = vmatprep.subr.mxu0 0.0
        %2758 = vmatpush1.msra.mxu0 0.0
        %2759 = vmatprep.subr.mxu0 0.0
        %2760 = vmatpush1.msra.mxu0 %v2723
        %2761 = vmatprep.subr.mxu0 0.0
        %2762 = vmatpush1.msra.mxu0 %v2722
        %2763 = vmatprep.subr.mxu0 0.0
        %2764 = vmatpush1.msra.mxu0 %v2721
        %2765 = vmatprep.subr.mxu0 0.0
        %2766 = vmatpush1.msra.mxu0 %v2720
        %2767 = vmatprep.subr.mxu0 0.0
        %2768 = vmatpush2.msra.mxu0 0.0
        %2769 = vmatprep.subr.mxu0 0.0
        %2770 = vmatpush2.msra.mxu0 0.0
        %2771 = vmatprep.subr.mxu0 0.0
        %2772 = vmatpush2.msra.mxu0 0.0
        %2773 = vmatprep.subr.mxu0 0.0
        %2774 = vmatpush2.msra.mxu0 0.0
        %2775 = vmatprep.subr.mxu0 0.0
        %2776 = vmatpush2.msra.mxu0 0.0
        %2777 = vmatprep.subr.mxu0 0.0
        %2778 = vmatpush2.msra.mxu0 0.0
        %2779 = vmatprep.subr.mxu0 0.0
        %2780 = vmatpush2.msra.mxu0 0.0
        %2781 = vmatprep.subr.mxu0 0.0
        %2782 = vmatpush2.msra.mxu0 0.0
        %2783 = vmatprep.subr.mxu0 0.0
        %2784 = vmatpush2.msra.mxu0 0.0
        %2785 = vmatprep.subr.mxu0 0.0
        %2786 = vmatpush2.msra.mxu0 0.0
        %2787 = vmatprep.subr.mxu0 0.0
        %2788 = vmatpush2.msra.mxu0 0.0
        %2789 = vmatprep.subr.mxu0 0.0
        %2790 = vmatpush2.msra.mxu0 0.0
        %2791 = vmatprep.subr.mxu0 0.0
        %2792 = vmatpush2.msra.mxu0 0.0
        %2793 = vmatprep.subr.mxu0 0.0
        %2794 = vmatpush2.msra.mxu0 0.0
        %2795 = vmatprep.subr.mxu0 0.0
        %2796 = vmatpush2.msra.mxu0 0.0
        %2797 = vmatprep.subr.mxu0 0.0
        %2798 = vmatpush2.msra.mxu0 0.0
        %2799 = vmatprep.mubr.f32.mxu0 0.0
        %2800 = vmatmul.mubr.f32.gmra.mxu0 %v2733
        %v2801 = vpop.f32.mrf.mxu0
        %v2802 = vadd.f32 %v2730, %v2801
        %v2803 = vpop.f32.mrf.mxu0
        %2804 = vdwg.mxu0
        %v2805 = vadd.f32 %v2802, %v2121
        %s2806 = scalar_lea.vmem %s24, 1
        %v2807 = vld [vmem:[%s2806] sm:$0x1]
        %s2808 = scalar_lea.vmem %s25, 1
        %v2809 = vld [vmem:[%s2808] sm:$0x1]
        %v2810 = vsel %vm990, %v2805, 0.0
        %2811 = vadd.xlane.f32.xlu0 %v2810
        %v2812 = vpop.xlane.xlu0 %2811
        %v2813 = vmul.f32 %v2812, %v1160
        %v2814 = vsub.f32 %v2805, %v2813
        %v2815 = vmul.f32 %v2814, %v2814
        %v2816 = vsel %vm990, %v2815, 0.0
        %2817 = vadd.xlane.f32.xlu0 %v2816
        %v2818 = vpop.xlane.xlu0 %2817
        %v2819 = vmul.f32 %v2818, 0.032258064
        %v2820 = vrsqrt.pop %v2819
        %v2821 = vmul.f32 %v2819, %v2820
        %vm2822 = vcmp.eq.f32.partialorder %v2819, inf
        %v2823 = vsel %vm2822, %v2819, %v2821
        %vm2824 = vcmp.eq.f32.partialorder %v2819, 0.0
        %v2825 = vand.u32 %v2819, 2147483648
        %v2826 = vsel %vm2824, %v2825, %v2823
        %v2827 = vadd.f32 %v2826, 1e-06
        %v2828 = vrcp.pop %v2827
        %v2830 = vlaneseq
        %v2831 = vshrl.u32 %v2830, 7
        %v2832 = vsub.s32 0, %v2831
        %v2833 = vrot.slane %v2807, %v2832
        %v2835 = vmul.f32 %v2833, %v2814
        %v2836 = vmul.f32 %v2835, %v2828
        %v2838 = vlaneseq
        %v2839 = vshrl.u32 %v2838, 7
        %v2840 = vsub.s32 0, %v2839
        %v2841 = vrot.slane %v2809, %v2840
        %v2843 = vadd.f32 %v2836, %v2841
        %v2844 = vld [vmem:[%s3] sm:$0xff]
        %v2845 = vld [vmem:[%s3 + $0x8] sm:$0xff]
        %v2846 = vadd.f32 %v958, %v2844
        %v2847 = vadd.f32 %v959, %v2845
        %v2848 = vld [vmem:[%s10] sm:$0xff]
        %v2849 = vld [vmem:[%s10 + $0x8] sm:$0xff]
        %v2850 = vld [vmem:[%s10 + $0x10] sm:$0xff]
        %v2851 = vld [vmem:[%s10 + $0x18] sm:$0xff]
        %v2852 = vld [vmem:[%s11] sm:$0x1]
        %v2854 = vlaneseq
        %v2855 = vshrl.u32 %v2854, 7
        %v2856 = vsub.s32 0, %v2855
        %v2857 = vrot.slane %v2852, %v2856
        %v2860 = vsel %vm990, %v2846, 0
        %v2863 = vsel %vm990, %v2847, 0
        %2865 = vmatprep.subr.mxu0 0.0
        %2866 = vmatpush1.msra.mxu0 0.0
        %2867 = vmatprep.subr.mxu0 0.0
        %2868 = vmatpush1.msra.mxu0 0.0
        %2869 = vmatprep.subr.mxu0 0.0
        %2870 = vmatpush1.msra.mxu0 0.0
        %2871 = vmatprep.subr.mxu0 0.0
        %2872 = vmatpush1.msra.mxu0 0.0
        %2873 = vmatprep.subr.mxu0 0.0
        %2874 = vmatpush1.msra.mxu0 0.0
        %2875 = vmatprep.subr.mxu0 0.0
        %2876 = vmatpush1.msra.mxu0 0.0
        %2877 = vmatprep.subr.mxu0 0.0
        %2878 = vmatpush1.msra.mxu0 0.0
        %2879 = vmatprep.subr.mxu0 0.0
        %2880 = vmatpush1.msra.mxu0 0.0
        %2881 = vmatprep.subr.mxu0 0.0
        %2882 = vmatpush1.msra.mxu0 0.0
        %2883 = vmatprep.subr.mxu0 0.0
        %2884 = vmatpush1.msra.mxu0 0.0
        %2885 = vmatprep.subr.mxu0 0.0
        %2886 = vmatpush1.msra.mxu0 0.0
        %2887 = vmatprep.subr.mxu0 0.0
        %2888 = vmatpush1.msra.mxu0 0.0
        %2889 = vmatprep.subr.mxu0 0.0
        %2890 = vmatpush1.msra.mxu0 %v2851
        %2891 = vmatprep.subr.mxu0 0.0
        %2892 = vmatpush1.msra.mxu0 %v2850
        %2893 = vmatprep.subr.mxu0 0.0
        %2894 = vmatpush1.msra.mxu0 %v2849
        %2895 = vmatprep.subr.mxu0 0.0
        %2896 = vmatpush1.msra.mxu0 %v2848
        %2897 = vmatprep.subr.mxu0 0.0
        %2898 = vmatpush2.msra.mxu0 0.0
        %2899 = vmatprep.subr.mxu0 0.0
        %2900 = vmatpush2.msra.mxu0 0.0
        %2901 = vmatprep.subr.mxu0 0.0
        %2902 = vmatpush2.msra.mxu0 0.0
        %2903 = vmatprep.subr.mxu0 0.0
        %2904 = vmatpush2.msra.mxu0 0.0
        %2905 = vmatprep.subr.mxu0 0.0
        %2906 = vmatpush2.msra.mxu0 0.0
        %2907 = vmatprep.subr.mxu0 0.0
        %2908 = vmatpush2.msra.mxu0 0.0
        %2909 = vmatprep.subr.mxu0 0.0
        %2910 = vmatpush2.msra.mxu0 0.0
        %2911 = vmatprep.subr.mxu0 0.0
        %2912 = vmatpush2.msra.mxu0 0.0
        %2913 = vmatprep.subr.mxu0 0.0
        %2914 = vmatpush2.msra.mxu0 0.0
        %2915 = vmatprep.subr.mxu0 0.0
        %2916 = vmatpush2.msra.mxu0 0.0
        %2917 = vmatprep.subr.mxu0 0.0
        %2918 = vmatpush2.msra.mxu0 0.0
        %2919 = vmatprep.subr.mxu0 0.0
        %2920 = vmatpush2.msra.mxu0 0.0
        %2921 = vmatprep.subr.mxu0 0.0
        %2922 = vmatpush2.msra.mxu0 0.0
        %2923 = vmatprep.subr.mxu0 0.0
        %2924 = vmatpush2.msra.mxu0 0.0
        %2925 = vmatprep.subr.mxu0 0.0
        %2926 = vmatpush2.msra.mxu0 0.0
        %2927 = vmatprep.subr.mxu0 0.0
        %2928 = vmatpush2.msra.mxu0 0.0
        %2929 = vmatprep.mubr.f32.mxu0 0.0
        %2930 = vmatmul.mubr.f32.gmra.mxu0 %v2860
        %v2931 = vpop.f32.mrf.mxu0
        %v2932 = vadd.f32 %v2857, %v2931
        %v2933 = vpop.f32.mrf.mxu0
        %2934 = vmatprep.mubr.f32.mxu0 0.0
        %2935 = vmatmul.mubr.f32.gmra.mxu0 %v2863
        %v2936 = vpop.f32.mrf.mxu0
        %v2937 = vadd.f32 %v2857, %v2936
        %v2938 = vpop.f32.mrf.mxu0
        %2939 = vdwg.mxu0
        %v2940 = vmax.f32 %v2932, 0.0
        %v2941 = vmax.f32 %v2937, 0.0
        %v2942 = vld [vmem:[%s12] sm:$0xff]
        %v2943 = vld [vmem:[%s12 + $0x8] sm:$0xff]
        %v2944 = vld [vmem:[%s12 + $0x10] sm:$0xff]
        %v2945 = vld [vmem:[%s12 + $0x18] sm:$0xff]
        %v2946 = vld [vmem:[%s12 + $0x20] sm:$0xff]
        %v2947 = vld [vmem:[%s12 + $0x28] sm:$0xff]
        %v2948 = vld [vmem:[%s12 + $0x30] sm:$0xff]
        %v2949 = vld [vmem:[%s12 + $0x38] sm:$0xff]
        %v2950 = vld [vmem:[%s13] sm:$0x1]
        %v2952 = vlaneseq
        %v2953 = vshrl.u32 %v2952, 7
        %v2954 = vsub.s32 0, %v2953
        %v2955 = vrot.slane %v2950, %v2954
        %v2958 = vsel %vm1080, %v2940, 0
        %v2961 = vsel %vm1080, %v2941, 0
        %2963 = vmatprep.subr.mxu0 0.0
        %2964 = vmatpush1.msra.mxu0 0.0
        %2965 = vmatprep.subr.mxu0 0.0
        %2966 = vmatpush1.msra.mxu0 0.0
        %2967 = vmatprep.subr.mxu0 0.0
        %2968 = vmatpush1.msra.mxu0 0.0
        %2969 = vmatprep.subr.mxu0 0.0
        %2970 = vmatpush1.msra.mxu0 0.0
        %2971 = vmatprep.subr.mxu0 0.0
        %2972 = vmatpush1.msra.mxu0 0.0
        %2973 = vmatprep.subr.mxu0 0.0
        %2974 = vmatpush1.msra.mxu0 0.0
        %2975 = vmatprep.subr.mxu0 0.0
        %2976 = vmatpush1.msra.mxu0 0.0
        %2977 = vmatprep.subr.mxu0 0.0
        %2978 = vmatpush1.msra.mxu0 0.0
        %2979 = vmatprep.subr.mxu0 0.0
        %2980 = vmatpush1.msra.mxu0 %v2949
        %2981 = vmatprep.subr.mxu0 0.0
        %2982 = vmatpush1.msra.mxu0 %v2948
        %2983 = vmatprep.subr.mxu0 0.0
        %2984 = vmatpush1.msra.mxu0 %v2947
        %2985 = vmatprep.subr.mxu0 0.0
        %2986 = vmatpush1.msra.mxu0 %v2946
        %2987 = vmatprep.subr.mxu0 0.0
        %2988 = vmatpush1.msra.mxu0 %v2945
        %2989 = vmatprep.subr.mxu0 0.0
        %2990 = vmatpush1.msra.mxu0 %v2944
        %2991 = vmatprep.subr.mxu0 0.0
        %2992 = vmatpush1.msra.mxu0 %v2943
        %2993 = vmatprep.subr.mxu0 0.0
        %2994 = vmatpush1.msra.mxu0 %v2942
        %2995 = vmatprep.subr.mxu0 0.0
        %2996 = vmatpush2.msra.mxu0 0.0
        %2997 = vmatprep.subr.mxu0 0.0
        %2998 = vmatpush2.msra.mxu0 0.0
        %2999 = vmatprep.subr.mxu0 0.0
        %3000 = vmatpush2.msra.mxu0 0.0
        %3001 = vmatprep.subr.mxu0 0.0
        %3002 = vmatpush2.msra.mxu0 0.0
        %3003 = vmatprep.subr.mxu0 0.0
        %3004 = vmatpush2.msra.mxu0 0.0
        %3005 = vmatprep.subr.mxu0 0.0
        %3006 = vmatpush2.msra.mxu0 0.0
        %3007 = vmatprep.subr.mxu0 0.0
        %3008 = vmatpush2.msra.mxu0 0.0
        %3009 = vmatprep.subr.mxu0 0.0
        %3010 = vmatpush2.msra.mxu0 0.0
        %3011 = vmatprep.subr.mxu0 0.0
        %3012 = vmatpush2.msra.mxu0 0.0
        %3013 = vmatprep.subr.mxu0 0.0
        %3014 = vmatpush2.msra.mxu0 0.0
        %3015 = vmatprep.subr.mxu0 0.0
        %3016 = vmatpush2.msra.mxu0 0.0
        %3017 = vmatprep.subr.mxu0 0.0
        %3018 = vmatpush2.msra.mxu0 0.0
        %3019 = vmatprep.subr.mxu0 0.0
        %3020 = vmatpush2.msra.mxu0 0.0
        %3021 = vmatprep.subr.mxu0 0.0
        %3022 = vmatpush2.msra.mxu0 0.0
        %3023 = vmatprep.subr.mxu0 0.0
        %3024 = vmatpush2.msra.mxu0 0.0
        %3025 = vmatprep.subr.mxu0 0.0
        %3026 = vmatpush2.msra.mxu0 0.0
        %3027 = vmatprep.mubr.f32.mxu0 0.0
        %3028 = vmatmul.mubr.f32.gmra.mxu0 %v2958
        %v3029 = vpop.f32.mrf.mxu0
        %v3030 = vadd.f32 %v2955, %v3029
        %v3031 = vpop.f32.mrf.mxu0
        %3032 = vmatprep.mubr.f32.mxu0 0.0
        %3033 = vmatmul.mubr.f32.gmra.mxu0 %v2961
        %v3034 = vpop.f32.mrf.mxu0
        %v3035 = vadd.f32 %v2955, %v3034
        %v3036 = vpop.f32.mrf.mxu0
        %3037 = vdwg.mxu0
        %v3038 = vadd.f32 %v3030, %v2846
        %v3039 = vadd.f32 %v3035, %v2847
        %v3040 = vld [vmem:[%s14] sm:$0x1]
        %v3041 = vld [vmem:[%s15] sm:$0x1]
        %v3042 = vsel %vm990, %v3038, 0.0
        %3043 = vadd.xlane.f32.xlu0 %v3042
        %v3044 = vpop.xlane.xlu0 %3043
        %v3045 = vsel %vm990, %v3039, 0.0
        %3046 = vadd.xlane.f32.xlu0 %v3045
        %v3047 = vpop.xlane.xlu0 %3046
        %v3048 = vmul.f32 %v3044, %v1160
        %v3049 = vmul.f32 %v3047, %v1160
        %v3050 = vsub.f32 %v3038, %v3048
        %v3051 = vsub.f32 %v3039, %v3049
        %v3052 = vmul.f32 %v3050, %v3050
        %v3053 = vmul.f32 %v3051, %v3051
        %v3054 = vsel %vm990, %v3052, 0.0
        %3055 = vadd.xlane.f32.xlu0 %v3054
        %v3056 = vpop.xlane.xlu0 %3055
        %v3057 = vsel %vm990, %v3053, 0.0
        %3058 = vadd.xlane.f32.xlu0 %v3057
        %v3059 = vpop.xlane.xlu0 %3058
        %v3060 = vmul.f32 %v3056, 0.032258064
        %v3061 = vmul.f32 %v3059, 0.032258064
        %v3062 = vrsqrt.pop %v3060
        %v3063 = vmul.f32 %v3060, %v3062
        %vm3064 = vcmp.eq.f32.partialorder %v3060, inf
        %v3065 = vsel %vm3064, %v3060, %v3063
        %vm3066 = vcmp.eq.f32.partialorder %v3060, 0.0
        %v3067 = vand.u32 %v3060, 2147483648
        %v3068 = vsel %vm3066, %v3067, %v3065
        %v3069 = vrsqrt.pop %v3061
        %v3070 = vmul.f32 %v3061, %v3069
        %vm3071 = vcmp.eq.f32.partialorder %v3061, inf
        %v3072 = vsel %vm3071, %v3061, %v3070
        %vm3073 = vcmp.eq.f32.partialorder %v3061, 0.0
        %v3074 = vand.u32 %v3061, 2147483648
        %v3075 = vsel %vm3073, %v3074, %v3072
        %v3076 = vadd.f32 %v3068, 1e-06
        %v3077 = vadd.f32 %v3075, 1e-06
        %v3078 = vrcp.pop %v3076
        %v3079 = vrcp.pop %v3077
        %v3081 = vlaneseq
        %v3082 = vshrl.u32 %v3081, 7
        %v3083 = vsub.s32 0, %v3082
        %v3084 = vrot.slane %v3040, %v3083
        %v3086 = vmul.f32 %v3084, %v3050
        %v3087 = vmul.f32 %v3084, %v3051
        %v3088 = vmul.f32 %v3086, %v3078
        %v3089 = vmul.f32 %v3087, %v3079
        %v3091 = vlaneseq
        %v3092 = vshrl.u32 %v3091, 7
        %v3093 = vsub.s32 0, %v3092
        %v3094 = vrot.slane %v3041, %v3093
        %v3096 = vadd.f32 %v3088, %v3094
        %v3097 = vadd.f32 %v3089, %v3094
        %v3098 = vld [vmem:[%s16] sm:$0xff]
        %v3099 = vld [vmem:[%s16 + $0x8] sm:$0xff]
        %v3100 = vld [vmem:[%s16 + $0x10] sm:$0xff]
        %v3101 = vld [vmem:[%s16 + $0x18] sm:$0xff]
        %v3102 = vld [vmem:[%s17] sm:$0x1]
        %v3104 = vlaneseq
        %v3105 = vshrl.u32 %v3104, 7
        %v3106 = vsub.s32 0, %v3105
        %v3107 = vrot.slane %v3102, %v3106
        %v3110 = vsel %vm990, %v3096, 0
        %v3113 = vsel %vm990, %v3097, 0
        %3115 = vmatprep.subr.mxu0 0.0
        %3116 = vmatpush1.msra.mxu0 0.0
        %3117 = vmatprep.subr.mxu0 0.0
        %3118 = vmatpush1.msra.mxu0 0.0
        %3119 = vmatprep.subr.mxu0 0.0
        %3120 = vmatpush1.msra.mxu0 0.0
        %3121 = vmatprep.subr.mxu0 0.0
        %3122 = vmatpush1.msra.mxu0 0.0
        %3123 = vmatprep.subr.mxu0 0.0
        %3124 = vmatpush1.msra.mxu0 0.0
        %3125 = vmatprep.subr.mxu0 0.0
        %3126 = vmatpush1.msra.mxu0 0.0
        %3127 = vmatprep.subr.mxu0 0.0
        %3128 = vmatpush1.msra.mxu0 0.0
        %3129 = vmatprep.subr.mxu0 0.0
        %3130 = vmatpush1.msra.mxu0 0.0
        %3131 = vmatprep.subr.mxu0 0.0
        %3132 = vmatpush1.msra.mxu0 0.0
        %3133 = vmatprep.subr.mxu0 0.0
        %3134 = vmatpush1.msra.mxu0 0.0
        %3135 = vmatprep.subr.mxu0 0.0
        %3136 = vmatpush1.msra.mxu0 0.0
        %3137 = vmatprep.subr.mxu0 0.0
        %3138 = vmatpush1.msra.mxu0 0.0
        %3139 = vmatprep.subr.mxu0 0.0
        %3140 = vmatpush1.msra.mxu0 %v3101
        %3141 = vmatprep.subr.mxu0 0.0
        %3142 = vmatpush1.msra.mxu0 %v3100
        %3143 = vmatprep.subr.mxu0 0.0
        %3144 = vmatpush1.msra.mxu0 %v3099
        %3145 = vmatprep.subr.mxu0 0.0
        %3146 = vmatpush1.msra.mxu0 %v3098
        %3147 = vmatprep.subr.mxu0 0.0
        %3148 = vmatpush2.msra.mxu0 0.0
        %3149 = vmatprep.subr.mxu0 0.0
        %3150 = vmatpush2.msra.mxu0 0.0
        %3151 = vmatprep.subr.mxu0 0.0
        %3152 = vmatpush2.msra.mxu0 0.0
        %3153 = vmatprep.subr.mxu0 0.0
        %3154 = vmatpush2.msra.mxu0 0.0
        %3155 = vmatprep.subr.mxu0 0.0
        %3156 = vmatpush2.msra.mxu0 0.0
        %3157 = vmatprep.subr.mxu0 0.0
        %3158 = vmatpush2.msra.mxu0 0.0
        %3159 = vmatprep.subr.mxu0 0.0
        %3160 = vmatpush2.msra.mxu0 0.0
        %3161 = vmatprep.subr.mxu0 0.0
        %3162 = vmatpush2.msra.mxu0 0.0
        %3163 = vmatprep.subr.mxu0 0.0
        %3164 = vmatpush2.msra.mxu0 0.0
        %3165 = vmatprep.subr.mxu0 0.0
        %3166 = vmatpush2.msra.mxu0 0.0
        %3167 = vmatprep.subr.mxu0 0.0
        %3168 = vmatpush2.msra.mxu0 0.0
        %3169 = vmatprep.subr.mxu0 0.0
        %3170 = vmatpush2.msra.mxu0 0.0
        %3171 = vmatprep.subr.mxu0 0.0
        %3172 = vmatpush2.msra.mxu0 0.0
        %3173 = vmatprep.subr.mxu0 0.0
        %3174 = vmatpush2.msra.mxu0 0.0
        %3175 = vmatprep.subr.mxu0 0.0
        %3176 = vmatpush2.msra.mxu0 0.0
        %3177 = vmatprep.subr.mxu0 0.0
        %3178 = vmatpush2.msra.mxu0 0.0
        %3179 = vmatprep.mubr.f32.mxu0 0.0
        %3180 = vmatmul.mubr.f32.gmra.mxu0 %v3110
        %v3181 = vpop.f32.mrf.mxu0
        %v3182 = vadd.f32 %v3107, %v3181
        %v3183 = vpop.f32.mrf.mxu0
        %3184 = vmatprep.mubr.f32.mxu0 0.0
        %3185 = vmatmul.mubr.f32.gmra.mxu0 %v3113
        %v3186 = vpop.f32.mrf.mxu0
        %v3187 = vadd.f32 %v3107, %v3186
        %v3188 = vpop.f32.mrf.mxu0
        %3189 = vdwg.mxu0
        %v3190 = vld [vmem:[%s18] sm:$0xff]
        %v3191 = vld [vmem:[%s18 + $0x8] sm:$0xff]
        %v3192 = vld [vmem:[%s18 + $0x10] sm:$0xff]
        %v3193 = vld [vmem:[%s18 + $0x18] sm:$0xff]
        %v3194 = vld [vmem:[%s19] sm:$0x1]
        %v3196 = vlaneseq
        %v3197 = vshrl.u32 %v3196, 7
        %v3198 = vsub.s32 0, %v3197
        %v3199 = vrot.slane %v3194, %v3198
        %3201 = vmatprep.subr.mxu0 0.0
        %3202 = vmatpush1.msra.mxu0 0.0
        %3203 = vmatprep.subr.mxu0 0.0
        %3204 = vmatpush1.msra.mxu0 0.0
        %3205 = vmatprep.subr.mxu0 0.0
        %3206 = vmatpush1.msra.mxu0 0.0
        %3207 = vmatprep.subr.mxu0 0.0
        %3208 = vmatpush1.msra.mxu0 0.0
        %3209 = vmatprep.subr.mxu0 0.0
        %3210 = vmatpush1.msra.mxu0 0.0
        %3211 = vmatprep.subr.mxu0 0.0
        %3212 = vmatpush1.msra.mxu0 0.0
        %3213 = vmatprep.subr.mxu0 0.0
        %3214 = vmatpush1.msra.mxu0 0.0
        %3215 = vmatprep.subr.mxu0 0.0
        %3216 = vmatpush1.msra.mxu0 0.0
        %3217 = vmatprep.subr.mxu0 0.0
        %3218 = vmatpush1.msra.mxu0 0.0
        %3219 = vmatprep.subr.mxu0 0.0
        %3220 = vmatpush1.msra.mxu0 0.0
        %3221 = vmatprep.subr.mxu0 0.0
        %3222 = vmatpush1.msra.mxu0 0.0
        %3223 = vmatprep.subr.mxu0 0.0
        %3224 = vmatpush1.msra.mxu0 0.0
        %3225 = vmatprep.subr.mxu0 0.0
        %3226 = vmatpush1.msra.mxu0 %v3193
        %3227 = vmatprep.subr.mxu0 0.0
        %3228 = vmatpush1.msra.mxu0 %v3192
        %3229 = vmatprep.subr.mxu0 0.0
        %3230 = vmatpush1.msra.mxu0 %v3191
        %3231 = vmatprep.subr.mxu0 0.0
        %3232 = vmatpush1.msra.mxu0 %v3190
        %3233 = vmatprep.subr.mxu0 0.0
        %3234 = vmatpush2.msra.mxu0 0.0
        %3235 = vmatprep.subr.mxu0 0.0
        %3236 = vmatpush2.msra.mxu0 0.0
        %3237 = vmatprep.subr.mxu0 0.0
        %3238 = vmatpush2.msra.mxu0 0.0
        %3239 = vmatprep.subr.mxu0 0.0
        %3240 = vmatpush2.msra.mxu0 0.0
        %3241 = vmatprep.subr.mxu0 0.0
        %3242 = vmatpush2.msra.mxu0 0.0
        %3243 = vmatprep.subr.mxu0 0.0
        %3244 = vmatpush2.msra.mxu0 0.0
        %3245 = vmatprep.subr.mxu0 0.0
        %3246 = vmatpush2.msra.mxu0 0.0
        %3247 = vmatprep.subr.mxu0 0.0
        %3248 = vmatpush2.msra.mxu0 0.0
        %3249 = vmatprep.subr.mxu0 0.0
        %3250 = vmatpush2.msra.mxu0 0.0
        %3251 = vmatprep.subr.mxu0 0.0
        %3252 = vmatpush2.msra.mxu0 0.0
        %3253 = vmatprep.subr.mxu0 0.0
        %3254 = vmatpush2.msra.mxu0 0.0
        %3255 = vmatprep.subr.mxu0 0.0
        %3256 = vmatpush2.msra.mxu0 0.0
        %3257 = vmatprep.subr.mxu0 0.0
        %3258 = vmatpush2.msra.mxu0 0.0
        %3259 = vmatprep.subr.mxu0 0.0
        %3260 = vmatpush2.msra.mxu0 0.0
        %3261 = vmatprep.subr.mxu0 0.0
        %3262 = vmatpush2.msra.mxu0 0.0
        %3263 = vmatprep.subr.mxu0 0.0
        %3264 = vmatpush2.msra.mxu0 0.0
        %3265 = vmatprep.mubr.f32.mxu0 0.0
        %3266 = vmatmul.mubr.f32.gmra.mxu0 %v3110
        %v3267 = vpop.f32.mrf.mxu0
        %v3268 = vadd.f32 %v3199, %v3267
        %v3269 = vpop.f32.mrf.mxu0
        %3270 = vmatprep.mubr.f32.mxu0 0.0
        %3271 = vmatmul.mubr.f32.gmra.mxu0 %v3113
        %v3272 = vpop.f32.mrf.mxu0
        %v3273 = vadd.f32 %v3199, %v3272
        %v3274 = vpop.f32.mrf.mxu0
        %3275 = vdwg.mxu0
        %v3276 = vld [vmem:[%s20] sm:$0xff]
        %v3277 = vld [vmem:[%s20 + $0x8] sm:$0xff]
        %v3278 = vld [vmem:[%s20 + $0x10] sm:$0xff]
        %v3279 = vld [vmem:[%s20 + $0x18] sm:$0xff]
        %v3280 = vld [vmem:[%s21] sm:$0x1]
        %v3282 = vlaneseq
        %v3283 = vshrl.u32 %v3282, 7
        %v3284 = vsub.s32 0, %v3283
        %v3285 = vrot.slane %v3280, %v3284
        %3287 = vmatprep.subr.mxu0 0.0
        %3288 = vmatpush1.msra.mxu0 0.0
        %3289 = vmatprep.subr.mxu0 0.0
        %3290 = vmatpush1.msra.mxu0 0.0
        %3291 = vmatprep.subr.mxu0 0.0
        %3292 = vmatpush1.msra.mxu0 0.0
        %3293 = vmatprep.subr.mxu0 0.0
        %3294 = vmatpush1.msra.mxu0 0.0
        %3295 = vmatprep.subr.mxu0 0.0
        %3296 = vmatpush1.msra.mxu0 0.0
        %3297 = vmatprep.subr.mxu0 0.0
        %3298 = vmatpush1.msra.mxu0 0.0
        %3299 = vmatprep.subr.mxu0 0.0
        %3300 = vmatpush1.msra.mxu0 0.0
        %3301 = vmatprep.subr.mxu0 0.0
        %3302 = vmatpush1.msra.mxu0 0.0
        %3303 = vmatprep.subr.mxu0 0.0
        %3304 = vmatpush1.msra.mxu0 0.0
        %3305 = vmatprep.subr.mxu0 0.0
        %3306 = vmatpush1.msra.mxu0 0.0
        %3307 = vmatprep.subr.mxu0 0.0
        %3308 = vmatpush1.msra.mxu0 0.0
        %3309 = vmatprep.subr.mxu0 0.0
        %3310 = vmatpush1.msra.mxu0 0.0
        %3311 = vmatprep.subr.mxu0 0.0
        %3312 = vmatpush1.msra.mxu0 %v3279
        %3313 = vmatprep.subr.mxu0 0.0
        %3314 = vmatpush1.msra.mxu0 %v3278
        %3315 = vmatprep.subr.mxu0 0.0
        %3316 = vmatpush1.msra.mxu0 %v3277
        %3317 = vmatprep.subr.mxu0 0.0
        %3318 = vmatpush1.msra.mxu0 %v3276
        %3319 = vmatprep.subr.mxu0 0.0
        %3320 = vmatpush2.msra.mxu0 0.0
        %3321 = vmatprep.subr.mxu0 0.0
        %3322 = vmatpush2.msra.mxu0 0.0
        %3323 = vmatprep.subr.mxu0 0.0
        %3324 = vmatpush2.msra.mxu0 0.0
        %3325 = vmatprep.subr.mxu0 0.0
        %3326 = vmatpush2.msra.mxu0 0.0
        %3327 = vmatprep.subr.mxu0 0.0
        %3328 = vmatpush2.msra.mxu0 0.0
        %3329 = vmatprep.subr.mxu0 0.0
        %3330 = vmatpush2.msra.mxu0 0.0
        %3331 = vmatprep.subr.mxu0 0.0
        %3332 = vmatpush2.msra.mxu0 0.0
        %3333 = vmatprep.subr.mxu0 0.0
        %3334 = vmatpush2.msra.mxu0 0.0
        %3335 = vmatprep.subr.mxu0 0.0
        %3336 = vmatpush2.msra.mxu0 0.0
        %3337 = vmatprep.subr.mxu0 0.0
        %3338 = vmatpush2.msra.mxu0 0.0
        %3339 = vmatprep.subr.mxu0 0.0
        %3340 = vmatpush2.msra.mxu0 0.0
        %3341 = vmatprep.subr.mxu0 0.0
        %3342 = vmatpush2.msra.mxu0 0.0
        %3343 = vmatprep.subr.mxu0 0.0
        %3344 = vmatpush2.msra.mxu0 0.0
        %3345 = vmatprep.subr.mxu0 0.0
        %3346 = vmatpush2.msra.mxu0 0.0
        %3347 = vmatprep.subr.mxu0 0.0
        %3348 = vmatpush2.msra.mxu0 0.0
        %3349 = vmatprep.subr.mxu0 0.0
        %3350 = vmatpush2.msra.mxu0 0.0
        %3351 = vmatprep.mubr.f32.mxu0 0.0
        %3352 = vmatmul.mubr.f32.gmra.mxu0 %v3110
        %v3353 = vpop.f32.mrf.mxu0
        %v3354 = vadd.f32 %v3285, %v3353
        %v3355 = vpop.f32.mrf.mxu0
        %3356 = vmatprep.mubr.f32.mxu0 0.0
        %3357 = vmatmul.mubr.f32.gmra.mxu0 %v3113
        %v3358 = vpop.f32.mrf.mxu0
        %v3359 = vadd.f32 %v3285, %v3358
        %v3360 = vpop.f32.mrf.mxu0
        %3361 = vdwg.mxu0
        %v3363 = vsel %vm1438, %v3182, 0
        %v3366 = vsel %vm1438, %v3187, 0
        %v3369 = vsel %vm1438, %v3268, 0
        %v3372 = vsel %vm1438, %v3273, 0
        %3374 = vmatprep.subr.mxu0 0.0
        %3375 = vmatpush1.xpose.msra.mxu0 0.0
        %3376 = vmatprep.subr.mxu0 0.0
        %3377 = vmatpush1.xpose.msra.mxu0 0.0
        %3378 = vmatprep.subr.mxu0 0.0
        %3379 = vmatpush1.xpose.msra.mxu0 0.0
        %3380 = vmatprep.subr.mxu0 0.0
        %3381 = vmatpush1.xpose.msra.mxu0 0.0
        %3382 = vmatprep.subr.mxu0 0.0
        %3383 = vmatpush1.xpose.msra.mxu0 0.0
        %3384 = vmatprep.subr.mxu0 0.0
        %3385 = vmatpush1.xpose.msra.mxu0 0.0
        %3386 = vmatprep.subr.mxu0 0.0
        %3387 = vmatpush1.xpose.msra.mxu0 0.0
        %3388 = vmatprep.subr.mxu0 0.0
        %3389 = vmatpush1.xpose.msra.mxu0 0.0
        %3390 = vmatprep.subr.mxu0 0.0
        %3391 = vmatpush1.xpose.msra.mxu0 0.0
        %3392 = vmatprep.subr.mxu0 0.0
        %3393 = vmatpush1.xpose.msra.mxu0 0.0
        %3394 = vmatprep.subr.mxu0 0.0
        %3395 = vmatpush1.xpose.msra.mxu0 0.0
        %3396 = vmatprep.subr.mxu0 0.0
        %3397 = vmatpush1.xpose.msra.mxu0 0.0
        %3398 = vmatprep.subr.mxu0 0.0
        %3399 = vmatpush1.xpose.msra.mxu0 0.0
        %3400 = vmatprep.subr.mxu0 0.0
        %3401 = vmatpush1.xpose.msra.mxu0 0.0
        %3402 = vmatprep.subr.mxu0 0.0
        %3403 = vmatpush1.xpose.msra.mxu0 %v3372
        %3404 = vmatprep.subr.mxu0 0.0
        %3405 = vmatpush1.xpose.msra.mxu0 %v3369
        %3406 = vmatprep.subr.mxu0 0.0
        %3407 = vmatpush2.xpose.msra.mxu0 0.0
        %3408 = vmatprep.subr.mxu0 0.0
        %3409 = vmatpush2.xpose.msra.mxu0 0.0
        %3410 = vmatprep.subr.mxu0 0.0
        %3411 = vmatpush2.xpose.msra.mxu0 0.0
        %3412 = vmatprep.subr.mxu0 0.0
        %3413 = vmatpush2.xpose.msra.mxu0 0.0
        %3414 = vmatprep.subr.mxu0 0.0
        %3415 = vmatpush2.xpose.msra.mxu0 0.0
        %3416 = vmatprep.subr.mxu0 0.0
        %3417 = vmatpush2.xpose.msra.mxu0 0.0
        %3418 = vmatprep.subr.mxu0 0.0
        %3419 = vmatpush2.xpose.msra.mxu0 0.0
        %3420 = vmatprep.subr.mxu0 0.0
        %3421 = vmatpush2.xpose.msra.mxu0 0.0
        %3422 = vmatprep.subr.mxu0 0.0
        %3423 = vmatpush2.xpose.msra.mxu0 0.0
        %3424 = vmatprep.subr.mxu0 0.0
        %3425 = vmatpush2.xpose.msra.mxu0 0.0
        %3426 = vmatprep.subr.mxu0 0.0
        %3427 = vmatpush2.xpose.msra.mxu0 0.0
        %3428 = vmatprep.subr.mxu0 0.0
        %3429 = vmatpush2.xpose.msra.mxu0 0.0
        %3430 = vmatprep.subr.mxu0 0.0
        %3431 = vmatpush2.xpose.msra.mxu0 0.0
        %3432 = vmatprep.subr.mxu0 0.0
        %3433 = vmatpush2.xpose.msra.mxu0 0.0
        %3434 = vmatprep.subr.mxu0 0.0
        %3435 = vmatpush2.xpose.msra.mxu0 0.0
        %3436 = vmatprep.subr.mxu0 0.0
        %3437 = vmatpush2.xpose.msra.mxu0 0.0
        %3438 = vmatprep.mubr.f32.mxu0 0.0
        %3439 = vmatmul.mubr.f32.gmra.mxu0 %v3363
        %v3440 = vpop.f32.mrf.mxu0
        %v3441 = vadd.f32 0.0, %v3440
        %v3442 = vpop.f32.mrf.mxu0
        %3443 = vmatprep.mubr.f32.mxu0 0.0
        %3444 = vmatmul.mubr.f32.gmra.mxu0 %v3366
        %v3445 = vpop.f32.mrf.mxu0
        %v3446 = vadd.f32 0.0, %v3445
        %v3447 = vpop.f32.mrf.mxu0
        %3448 = vdwg.mxu0
        %v3449 = vmul.f32 %v3441, %v975
        %v3450 = vmul.f32 %v3446, %v975
        %v3451 = vsel %vm1438, %v3449, -inf
        %3452 = vmax.xlane.f32.xlu0 %v3451
        %v3453 = vpop.xlane.xlu0 %3452
        %v3454 = vsel %vm1438, %v3450, -inf
        %3455 = vmax.xlane.f32.xlu0 %v3454
        %v3456 = vpop.xlane.xlu0 %3455
        %v3457 = vsub.f32 %v3449, %v3453
        %v3458 = vsub.f32 %v3450, %v3456
        %v3459 = vmul.f32 %v3457, 1.442695
        %v3460 = vpow.pop %v3459
        %v3461 = vmul.f32 %v3458, 1.442695
        %v3462 = vpow.pop %v3461
        %v3463 = vsel %vm1438, %v3460, 0.0
        %3464 = vadd.xlane.f32.xlu0 %v3463
        %v3465 = vpop.xlane.xlu0 %3464
        %v3466 = vsel %vm1438, %v3462, 0.0
        %3467 = vadd.xlane.f32.xlu0 %v3466
        %v3468 = vpop.xlane.xlu0 %3467
        %v3469 = vmul.f32 %v3460, %v975
        %v3470 = vmul.f32 %v3462, %v975
        %v3471 = vsel %vm1438, %v3469, 0.0
        %3472 = vadd.xlane.f32.xlu0 %v3471
        %v3473 = vpop.xlane.xlu0 %3472
        %v3474 = vsel %vm1438, %v3470, 0.0
        %3475 = vadd.xlane.f32.xlu0 %v3474
        %v3476 = vpop.xlane.xlu0 %3475
        %v3477 = vmul.f32 %v3465, 1e-13
        %v3478 = vmul.f32 %v3468, 1e-13
        %v3479 = vadd.f32 %v3473, %v3477
        %v3480 = vadd.f32 %v3476, %v3478
        %v3481 = vrcp.pop %v3479
        %v3482 = vrcp.pop %v3480
        %v3483 = vmul.f32 %v3469, %v3481
        %v3484 = vmul.f32 %v3470, %v3482
        %v3486 = vsel %vm1438, %v3483, 0
        %v3489 = vsel %vm1438, %v3484, 0
        %3491 = vmatprep.subr.mxu0 0.0
        %3492 = vmatpush1.msra.mxu0 0.0
        %3493 = vmatprep.subr.mxu0 0.0
        %3494 = vmatpush1.msra.mxu0 0.0
        %3495 = vmatprep.subr.mxu0 0.0
        %3496 = vmatpush1.msra.mxu0 0.0
        %3497 = vmatprep.subr.mxu0 0.0
        %3498 = vmatpush1.msra.mxu0 0.0
        %3499 = vmatprep.subr.mxu0 0.0
        %3500 = vmatpush1.msra.mxu0 0.0
        %3501 = vmatprep.subr.mxu0 0.0
        %3502 = vmatpush1.msra.mxu0 0.0
        %3503 = vmatprep.subr.mxu0 0.0
        %3504 = vmatpush1.msra.mxu0 0.0
        %3505 = vmatprep.subr.mxu0 0.0
        %3506 = vmatpush1.msra.mxu0 0.0
        %3507 = vmatprep.subr.mxu0 0.0
        %3508 = vmatpush1.msra.mxu0 0.0
        %3509 = vmatprep.subr.mxu0 0.0
        %3510 = vmatpush1.msra.mxu0 0.0
        %3511 = vmatprep.subr.mxu0 0.0
        %3512 = vmatpush1.msra.mxu0 0.0
        %3513 = vmatprep.subr.mxu0 0.0
        %3514 = vmatpush1.msra.mxu0 0.0
        %3515 = vmatprep.subr.mxu0 0.0
        %3516 = vmatpush1.msra.mxu0 0.0
        %3517 = vmatprep.subr.mxu0 0.0
        %3518 = vmatpush1.msra.mxu0 0.0
        %3519 = vmatprep.subr.mxu0 0.0
        %3520 = vmatpush1.msra.mxu0 %v3359
        %3521 = vmatprep.subr.mxu0 0.0
        %3522 = vmatpush1.msra.mxu0 %v3354
        %3523 = vmatprep.subr.mxu0 0.0
        %3524 = vmatpush2.msra.mxu0 0.0
        %3525 = vmatprep.subr.mxu0 0.0
        %3526 = vmatpush2.msra.mxu0 0.0
        %3527 = vmatprep.subr.mxu0 0.0
        %3528 = vmatpush2.msra.mxu0 0.0
        %3529 = vmatprep.subr.mxu0 0.0
        %3530 = vmatpush2.msra.mxu0 0.0
        %3531 = vmatprep.subr.mxu0 0.0
        %3532 = vmatpush2.msra.mxu0 0.0
        %3533 = vmatprep.subr.mxu0 0.0
        %3534 = vmatpush2.msra.mxu0 0.0
        %3535 = vmatprep.subr.mxu0 0.0
        %3536 = vmatpush2.msra.mxu0 0.0
        %3537 = vmatprep.subr.mxu0 0.0
        %3538 = vmatpush2.msra.mxu0 0.0
        %3539 = vmatprep.subr.mxu0 0.0
        %3540 = vmatpush2.msra.mxu0 0.0
        %3541 = vmatprep.subr.mxu0 0.0
        %3542 = vmatpush2.msra.mxu0 0.0
        %3543 = vmatprep.subr.mxu0 0.0
        %3544 = vmatpush2.msra.mxu0 0.0
        %3545 = vmatprep.subr.mxu0 0.0
        %3546 = vmatpush2.msra.mxu0 0.0
        %3547 = vmatprep.subr.mxu0 0.0
        %3548 = vmatpush2.msra.mxu0 0.0
        %3549 = vmatprep.subr.mxu0 0.0
        %3550 = vmatpush2.msra.mxu0 0.0
        %3551 = vmatprep.subr.mxu0 0.0
        %3552 = vmatpush2.msra.mxu0 0.0
        %3553 = vmatprep.subr.mxu0 0.0
        %3554 = vmatpush2.msra.mxu0 0.0
        %3555 = vmatprep.mubr.f32.mxu0 0.0
        %3556 = vmatmul.mubr.f32.gmra.mxu0 %v3486
        %v3557 = vpop.f32.mrf.mxu0
        %v3558 = vadd.f32 0.0, %v3557
        %v3559 = vpop.f32.mrf.mxu0
        %3560 = vmatprep.mubr.f32.mxu0 0.0
        %3561 = vmatmul.mubr.f32.gmra.mxu0 %v3489
        %v3562 = vpop.f32.mrf.mxu0
        %v3563 = vadd.f32 0.0, %v3562
        %v3564 = vpop.f32.mrf.mxu0
        %3565 = vdwg.mxu0
        %3566 = vrot.lane.b32.xlu0 %v3182, 112
        %v3567 = vpop.permute.xlu0 %3566
        %3568 = vrot.lane.b32.xlu0 %v3187, 112
        %v3569 = vpop.permute.xlu0 %3568
        %3570 = vrot.lane.b32.xlu0 %v3268, 112
        %v3571 = vpop.permute.xlu0 %3570
        %3572 = vrot.lane.b32.xlu0 %v3273, 112
        %v3573 = vpop.permute.xlu0 %3572
        %v3574 = vsel %vm1438, %v3567, 0
        %v3576 = vsel %vm1438, %v3569, 0
        %v3578 = vsel %vm1438, %v3571, 0
        %v3580 = vsel %vm1438, %v3573, 0
        %3582 = vmatprep.subr.mxu0 0.0
        %3583 = vmatpush1.xpose.msra.mxu0 0.0
        %3584 = vmatprep.subr.mxu0 0.0
        %3585 = vmatpush1.xpose.msra.mxu0 0.0
        %3586 = vmatprep.subr.mxu0 0.0
        %3587 = vmatpush1.xpose.msra.mxu0 0.0
        %3588 = vmatprep.subr.mxu0 0.0
        %3589 = vmatpush1.xpose.msra.mxu0 0.0
        %3590 = vmatprep.subr.mxu0 0.0
        %3591 = vmatpush1.xpose.msra.mxu0 0.0
        %3592 = vmatprep.subr.mxu0 0.0
        %3593 = vmatpush1.xpose.msra.mxu0 0.0
        %3594 = vmatprep.subr.mxu0 0.0
        %3595 = vmatpush1.xpose.msra.mxu0 0.0
        %3596 = vmatprep.subr.mxu0 0.0
        %3597 = vmatpush1.xpose.msra.mxu0 0.0
        %3598 = vmatprep.subr.mxu0 0.0
        %3599 = vmatpush1.xpose.msra.mxu0 0.0
        %3600 = vmatprep.subr.mxu0 0.0
        %3601 = vmatpush1.xpose.msra.mxu0 0.0
        %3602 = vmatprep.subr.mxu0 0.0
        %3603 = vmatpush1.xpose.msra.mxu0 0.0
        %3604 = vmatprep.subr.mxu0 0.0
        %3605 = vmatpush1.xpose.msra.mxu0 0.0
        %3606 = vmatprep.subr.mxu0 0.0
        %3607 = vmatpush1.xpose.msra.mxu0 0.0
        %3608 = vmatprep.subr.mxu0 0.0
        %3609 = vmatpush1.xpose.msra.mxu0 0.0
        %3610 = vmatprep.subr.mxu0 0.0
        %3611 = vmatpush1.xpose.msra.mxu0 %v3580
        %3612 = vmatprep.subr.mxu0 0.0
        %3613 = vmatpush1.xpose.msra.mxu0 %v3578
        %3614 = vmatprep.subr.mxu0 0.0
        %3615 = vmatpush2.xpose.msra.mxu0 0.0
        %3616 = vmatprep.subr.mxu0 0.0
        %3617 = vmatpush2.xpose.msra.mxu0 0.0
        %3618 = vmatprep.subr.mxu0 0.0
        %3619 = vmatpush2.xpose.msra.mxu0 0.0
        %3620 = vmatprep.subr.mxu0 0.0
        %3621 = vmatpush2.xpose.msra.mxu0 0.0
        %3622 = vmatprep.subr.mxu0 0.0
        %3623 = vmatpush2.xpose.msra.mxu0 0.0
        %3624 = vmatprep.subr.mxu0 0.0
        %3625 = vmatpush2.xpose.msra.mxu0 0.0
        %3626 = vmatprep.subr.mxu0 0.0
        %3627 = vmatpush2.xpose.msra.mxu0 0.0
        %3628 = vmatprep.subr.mxu0 0.0
        %3629 = vmatpush2.xpose.msra.mxu0 0.0
        %3630 = vmatprep.subr.mxu0 0.0
        %3631 = vmatpush2.xpose.msra.mxu0 0.0
        %3632 = vmatprep.subr.mxu0 0.0
        %3633 = vmatpush2.xpose.msra.mxu0 0.0
        %3634 = vmatprep.subr.mxu0 0.0
        %3635 = vmatpush2.xpose.msra.mxu0 0.0
        %3636 = vmatprep.subr.mxu0 0.0
        %3637 = vmatpush2.xpose.msra.mxu0 0.0
        %3638 = vmatprep.subr.mxu0 0.0
        %3639 = vmatpush2.xpose.msra.mxu0 0.0
        %3640 = vmatprep.subr.mxu0 0.0
        %3641 = vmatpush2.xpose.msra.mxu0 0.0
        %3642 = vmatprep.subr.mxu0 0.0
        %3643 = vmatpush2.xpose.msra.mxu0 0.0
        %3644 = vmatprep.subr.mxu0 0.0
        %3645 = vmatpush2.xpose.msra.mxu0 0.0
        %3646 = vmatprep.mubr.f32.mxu0 0.0
        %3647 = vmatmul.mubr.f32.gmra.mxu0 %v3574
        %v3648 = vpop.f32.mrf.mxu0
        %v3649 = vadd.f32 0.0, %v3648
        %v3650 = vpop.f32.mrf.mxu0
        %3651 = vmatprep.mubr.f32.mxu0 0.0
        %3652 = vmatmul.mubr.f32.gmra.mxu0 %v3576
        %v3653 = vpop.f32.mrf.mxu0
        %v3654 = vadd.f32 0.0, %v3653
        %v3655 = vpop.f32.mrf.mxu0
        %3656 = vdwg.mxu0
        %v3657 = vmul.f32 %v3649, %v975
        %v3658 = vmul.f32 %v3654, %v975
        %v3659 = vsel %vm1438, %v3657, -inf
        %3660 = vmax.xlane.f32.xlu0 %v3659
        %v3661 = vpop.xlane.xlu0 %3660
        %v3662 = vsel %vm1438, %v3658, -inf
        %3663 = vmax.xlane.f32.xlu0 %v3662
        %v3664 = vpop.xlane.xlu0 %3663
        %v3665 = vsub.f32 %v3657, %v3661
        %v3666 = vsub.f32 %v3658, %v3664
        %v3667 = vmul.f32 %v3665, 1.442695
        %v3668 = vpow.pop %v3667
        %v3669 = vmul.f32 %v3666, 1.442695
        %v3670 = vpow.pop %v3669
        %v3671 = vsel %vm1438, %v3668, 0.0
        %3672 = vadd.xlane.f32.xlu0 %v3671
        %v3673 = vpop.xlane.xlu0 %3672
        %v3674 = vsel %vm1438, %v3670, 0.0
        %3675 = vadd.xlane.f32.xlu0 %v3674
        %v3676 = vpop.xlane.xlu0 %3675
        %v3677 = vmul.f32 %v3668, %v975
        %v3678 = vmul.f32 %v3670, %v975
        %v3679 = vsel %vm1438, %v3677, 0.0
        %3680 = vadd.xlane.f32.xlu0 %v3679
        %v3681 = vpop.xlane.xlu0 %3680
        %v3682 = vsel %vm1438, %v3678, 0.0
        %3683 = vadd.xlane.f32.xlu0 %v3682
        %v3684 = vpop.xlane.xlu0 %3683
        %v3685 = vmul.f32 %v3673, 1e-13
        %v3686 = vmul.f32 %v3676, 1e-13
        %v3687 = vadd.f32 %v3681, %v3685
        %v3688 = vadd.f32 %v3684, %v3686
        %v3689 = vrcp.pop %v3687
        %v3690 = vrcp.pop %v3688
        %v3691 = vmul.f32 %v3677, %v3689
        %v3692 = vmul.f32 %v3678, %v3690
        %3695 = vrot.lane.b32.xlu0 %v3354, 112
        %v3696 = vpop.permute.xlu0 %3695
        %3697 = vrot.lane.b32.xlu0 %v3359, 112
        %v3698 = vpop.permute.xlu0 %3697
        %v3702 = vsel %vm1438, %v3691, 0
        %v3705 = vsel %vm1438, %v3692, 0
        %3707 = vmatprep.subr.mxu0 0.0
        %3708 = vmatpush1.msra.mxu0 0.0
        %3709 = vmatprep.subr.mxu0 0.0
        %3710 = vmatpush1.msra.mxu0 0.0
        %3711 = vmatprep.subr.mxu0 0.0
        %3712 = vmatpush1.msra.mxu0 0.0
        %3713 = vmatprep.subr.mxu0 0.0
        %3714 = vmatpush1.msra.mxu0 0.0
        %3715 = vmatprep.subr.mxu0 0.0
        %3716 = vmatpush1.msra.mxu0 0.0
        %3717 = vmatprep.subr.mxu0 0.0
        %3718 = vmatpush1.msra.mxu0 0.0
        %3719 = vmatprep.subr.mxu0 0.0
        %3720 = vmatpush1.msra.mxu0 0.0
        %3721 = vmatprep.subr.mxu0 0.0
        %3722 = vmatpush1.msra.mxu0 0.0
        %3723 = vmatprep.subr.mxu0 0.0
        %3724 = vmatpush1.msra.mxu0 0.0
        %3725 = vmatprep.subr.mxu0 0.0
        %3726 = vmatpush1.msra.mxu0 0.0
        %3727 = vmatprep.subr.mxu0 0.0
        %3728 = vmatpush1.msra.mxu0 0.0
        %3729 = vmatprep.subr.mxu0 0.0
        %3730 = vmatpush1.msra.mxu0 0.0
        %3731 = vmatprep.subr.mxu0 0.0
        %3732 = vmatpush1.msra.mxu0 0.0
        %3733 = vmatprep.subr.mxu0 0.0
        %3734 = vmatpush1.msra.mxu0 0.0
        %3735 = vmatprep.subr.mxu0 0.0
        %3736 = vmatpush1.msra.mxu0 %v3698
        %3737 = vmatprep.subr.mxu0 0.0
        %3738 = vmatpush1.msra.mxu0 %v3696
        %3739 = vmatprep.subr.mxu0 0.0
        %3740 = vmatpush2.msra.mxu0 0.0
        %3741 = vmatprep.subr.mxu0 0.0
        %3742 = vmatpush2.msra.mxu0 0.0
        %3743 = vmatprep.subr.mxu0 0.0
        %3744 = vmatpush2.msra.mxu0 0.0
        %3745 = vmatprep.subr.mxu0 0.0
        %3746 = vmatpush2.msra.mxu0 0.0
        %3747 = vmatprep.subr.mxu0 0.0
        %3748 = vmatpush2.msra.mxu0 0.0
        %3749 = vmatprep.subr.mxu0 0.0
        %3750 = vmatpush2.msra.mxu0 0.0
        %3751 = vmatprep.subr.mxu0 0.0
        %3752 = vmatpush2.msra.mxu0 0.0
        %3753 = vmatprep.subr.mxu0 0.0
        %3754 = vmatpush2.msra.mxu0 0.0
        %3755 = vmatprep.subr.mxu0 0.0
        %3756 = vmatpush2.msra.mxu0 0.0
        %3757 = vmatprep.subr.mxu0 0.0
        %3758 = vmatpush2.msra.mxu0 0.0
        %3759 = vmatprep.subr.mxu0 0.0
        %3760 = vmatpush2.msra.mxu0 0.0
        %3761 = vmatprep.subr.mxu0 0.0
        %3762 = vmatpush2.msra.mxu0 0.0
        %3763 = vmatprep.subr.mxu0 0.0
        %3764 = vmatpush2.msra.mxu0 0.0
        %3765 = vmatprep.subr.mxu0 0.0
        %3766 = vmatpush2.msra.mxu0 0.0
        %3767 = vmatprep.subr.mxu0 0.0
        %3768 = vmatpush2.msra.mxu0 0.0
        %3769 = vmatprep.subr.mxu0 0.0
        %3770 = vmatpush2.msra.mxu0 0.0
        %3771 = vmatprep.mubr.f32.mxu0 0.0
        %3772 = vmatmul.mubr.f32.gmra.mxu0 %v3702
        %v3773 = vpop.f32.mrf.mxu0
        %v3774 = vadd.f32 0.0, %v3773
        %v3775 = vpop.f32.mrf.mxu0
        %3776 = vmatprep.mubr.f32.mxu0 0.0
        %3777 = vmatmul.mubr.f32.gmra.mxu0 %v3705
        %v3778 = vpop.f32.mrf.mxu0
        %v3779 = vadd.f32 0.0, %v3778
        %v3780 = vpop.f32.mrf.mxu0
        %3781 = vdwg.mxu0
        %3784 = vrot.lane.b32.xlu0 %v3774, 16
        %v3785 = vpop.permute.xlu0 %3784
        %3786 = vrot.lane.b32.xlu0 %v3779, 16
        %v3787 = vpop.permute.xlu0 %3786
        %v3790 = vsel %vm1438, %v3558, %v3785
        %v3791 = vsel %vm1438, %v3563, %v3787
        %v3792 = vld [vmem:[%s22] sm:$0xff]
        %v3793 = vld [vmem:[%s22 + $0x8] sm:$0xff]
        %v3794 = vld [vmem:[%s22 + $0x10] sm:$0xff]
        %v3795 = vld [vmem:[%s22 + $0x18] sm:$0xff]
        %v3796 = vld [vmem:[%s23] sm:$0x1]
        %v3798 = vlaneseq
        %v3799 = vshrl.u32 %v3798, 7
        %v3800 = vsub.s32 0, %v3799
        %v3801 = vrot.slane %v3796, %v3800
        %v3804 = vsel %vm990, %v3790, 0
        %v3807 = vsel %vm990, %v3791, 0
        %3809 = vmatprep.subr.mxu0 0.0
        %3810 = vmatpush1.msra.mxu0 0.0
        %3811 = vmatprep.subr.mxu0 0.0
        %3812 = vmatpush1.msra.mxu0 0.0
        %3813 = vmatprep.subr.mxu0 0.0
        %3814 = vmatpush1.msra.mxu0 0.0
        %3815 = vmatprep.subr.mxu0 0.0
        %3816 = vmatpush1.msra.mxu0 0.0
        %3817 = vmatprep.subr.mxu0 0.0
        %3818 = vmatpush1.msra.mxu0 0.0
        %3819 = vmatprep.subr.mxu0 0.0
        %3820 = vmatpush1.msra.mxu0 0.0
        %3821 = vmatprep.subr.mxu0 0.0
        %3822 = vmatpush1.msra.mxu0 0.0
        %3823 = vmatprep.subr.mxu0 0.0
        %3824 = vmatpush1.msra.mxu0 0.0
        %3825 = vmatprep.subr.mxu0 0.0
        %3826 = vmatpush1.msra.mxu0 0.0
        %3827 = vmatprep.subr.mxu0 0.0
        %3828 = vmatpush1.msra.mxu0 0.0
        %3829 = vmatprep.subr.mxu0 0.0
        %3830 = vmatpush1.msra.mxu0 0.0
        %3831 = vmatprep.subr.mxu0 0.0
        %3832 = vmatpush1.msra.mxu0 0.0
        %3833 = vmatprep.subr.mxu0 0.0
        %3834 = vmatpush1.msra.mxu0 %v3795
        %3835 = vmatprep.subr.mxu0 0.0
        %3836 = vmatpush1.msra.mxu0 %v3794
        %3837 = vmatprep.subr.mxu0 0.0
        %3838 = vmatpush1.msra.mxu0 %v3793
        %3839 = vmatprep.subr.mxu0 0.0
        %3840 = vmatpush1.msra.mxu0 %v3792
        %3841 = vmatprep.subr.mxu0 0.0
        %3842 = vmatpush2.msra.mxu0 0.0
        %3843 = vmatprep.subr.mxu0 0.0
        %3844 = vmatpush2.msra.mxu0 0.0
        %3845 = vmatprep.subr.mxu0 0.0
        %3846 = vmatpush2.msra.mxu0 0.0
        %3847 = vmatprep.subr.mxu0 0.0
        %3848 = vmatpush2.msra.mxu0 0.0
        %3849 = vmatprep.subr.mxu0 0.0
        %3850 = vmatpush2.msra.mxu0 0.0
        %3851 = vmatprep.subr.mxu0 0.0
        %3852 = vmatpush2.msra.mxu0 0.0
        %3853 = vmatprep.subr.mxu0 0.0
        %3854 = vmatpush2.msra.mxu0 0.0
        %3855 = vmatprep.subr.mxu0 0.0
        %3856 = vmatpush2.msra.mxu0 0.0
        %3857 = vmatprep.subr.mxu0 0.0
        %3858 = vmatpush2.msra.mxu0 0.0
        %3859 = vmatprep.subr.mxu0 0.0
        %3860 = vmatpush2.msra.mxu0 0.0
        %3861 = vmatprep.subr.mxu0 0.0
        %3862 = vmatpush2.msra.mxu0 0.0
        %3863 = vmatprep.subr.mxu0 0.0
        %3864 = vmatpush2.msra.mxu0 0.0
        %3865 = vmatprep.subr.mxu0 0.0
        %3866 = vmatpush2.msra.mxu0 0.0
        %3867 = vmatprep.subr.mxu0 0.0
        %3868 = vmatpush2.msra.mxu0 0.0
        %3869 = vmatprep.subr.mxu0 0.0
        %3870 = vmatpush2.msra.mxu0 0.0
        %3871 = vmatprep.subr.mxu0 0.0
        %3872 = vmatpush2.msra.mxu0 0.0
        %3873 = vmatprep.mubr.f32.mxu0 0.0
        %3874 = vmatmul.mubr.f32.gmra.mxu0 %v3804
        %v3875 = vpop.f32.mrf.mxu0
        %v3876 = vadd.f32 %v3801, %v3875
        %v3877 = vpop.f32.mrf.mxu0
        %3878 = vmatprep.mubr.f32.mxu0 0.0
        %3879 = vmatmul.mubr.f32.gmra.mxu0 %v3807
        %v3880 = vpop.f32.mrf.mxu0
        %v3881 = vadd.f32 %v3801, %v3880
        %v3882 = vpop.f32.mrf.mxu0
        %3883 = vdwg.mxu0
        %v3884 = vadd.f32 %v3876, %v3096
        %v3885 = vadd.f32 %v3881, %v3097
        %v3886 = vld [vmem:[%s24] sm:$0x1]
        %v3887 = vld [vmem:[%s25] sm:$0x1]
        %v3888 = vsel %vm990, %v3884, 0.0
        %3889 = vadd.xlane.f32.xlu0 %v3888
        %v3890 = vpop.xlane.xlu0 %3889
        %v3891 = vsel %vm990, %v3885, 0.0
        %3892 = vadd.xlane.f32.xlu0 %v3891
        %v3893 = vpop.xlane.xlu0 %3892
        %v3894 = vmul.f32 %v3890, %v1160
        %v3895 = vmul.f32 %v3893, %v1160
        %v3896 = vsub.f32 %v3884, %v3894
        %v3897 = vsub.f32 %v3885, %v3895
        %v3898 = vmul.f32 %v3896, %v3896
        %v3899 = vmul.f32 %v3897, %v3897
        %v3900 = vsel %vm990, %v3898, 0.0
        %3901 = vadd.xlane.f32.xlu0 %v3900
        %v3902 = vpop.xlane.xlu0 %3901
        %v3903 = vsel %vm990, %v3899, 0.0
        %3904 = vadd.xlane.f32.xlu0 %v3903
        %v3905 = vpop.xlane.xlu0 %3904
        %v3906 = vmul.f32 %v3902, 0.032258064
        %v3907 = vmul.f32 %v3905, 0.032258064
        %v3908 = vrsqrt.pop %v3906
        %v3909 = vmul.f32 %v3906, %v3908
        %vm3910 = vcmp.eq.f32.partialorder %v3906, inf
        %v3911 = vsel %vm3910, %v3906, %v3909
        %vm3912 = vcmp.eq.f32.partialorder %v3906, 0.0
        %v3913 = vand.u32 %v3906, 2147483648
        %v3914 = vsel %vm3912, %v3913, %v3911
        %v3915 = vrsqrt.pop %v3907
        %v3916 = vmul.f32 %v3907, %v3915
        %vm3917 = vcmp.eq.f32.partialorder %v3907, inf
        %v3918 = vsel %vm3917, %v3907, %v3916
        %vm3919 = vcmp.eq.f32.partialorder %v3907, 0.0
        %v3920 = vand.u32 %v3907, 2147483648
        %v3921 = vsel %vm3919, %v3920, %v3918
        %v3922 = vadd.f32 %v3914, 1e-06
        %v3923 = vadd.f32 %v3921, 1e-06
        %v3924 = vrcp.pop %v3922
        %v3925 = vrcp.pop %v3923
        %v3927 = vlaneseq
        %v3928 = vshrl.u32 %v3927, 7
        %v3929 = vsub.s32 0, %v3928
        %v3930 = vrot.slane %v3886, %v3929
        %v3932 = vmul.f32 %v3930, %v3896
        %v3933 = vmul.f32 %v3930, %v3897
        %v3934 = vmul.f32 %v3932, %v3924
        %v3935 = vmul.f32 %v3933, %v3925
        %v3937 = vlaneseq
        %v3938 = vshrl.u32 %v3937, 7
        %v3939 = vsub.s32 0, %v3938
        %v3940 = vrot.slane %v3887, %v3939
        %v3942 = vadd.f32 %v3934, %v3940
        %v3943 = vadd.f32 %v3935, %v3940
        %v3944 = vld [vmem:[%s1906] sm:$0xff]
        %v3945 = vld [vmem:[%s1906 + $0x8] sm:$0xff]
        %v3946 = vld [vmem:[%s1906 + $0x10] sm:$0xff]
        %v3947 = vld [vmem:[%s1906 + $0x18] sm:$0xff]
        %v3948 = vld [vmem:[%s1911] sm:$0x1]
        %v3950 = vlaneseq
        %v3951 = vshrl.u32 %v3950, 7
        %v3952 = vsub.s32 0, %v3951
        %v3953 = vrot.slane %v3948, %v3952
        %v3956 = vsel %vm990, %v3942, 0
        %v3959 = vsel %vm990, %v3943, 0
        %3961 = vmatprep.subr.mxu0 0.0
        %3962 = vmatpush1.msra.mxu0 0.0
        %3963 = vmatprep.subr.mxu0 0.0
        %3964 = vmatpush1.msra.mxu0 0.0
        %3965 = vmatprep.subr.mxu0 0.0
        %3966 = vmatpush1.msra.mxu0 0.0
        %3967 = vmatprep.subr.mxu0 0.0
        %3968 = vmatpush1.msra.mxu0 0.0
        %3969 = vmatprep.subr.mxu0 0.0
        %3970 = vmatpush1.msra.mxu0 0.0
        %3971 = vmatprep.subr.mxu0 0.0
        %3972 = vmatpush1.msra.mxu0 0.0
        %3973 = vmatprep.subr.mxu0 0.0
        %3974 = vmatpush1.msra.mxu0 0.0
        %3975 = vmatprep.subr.mxu0 0.0
        %3976 = vmatpush1.msra.mxu0 0.0
        %3977 = vmatprep.subr.mxu0 0.0
        %3978 = vmatpush1.msra.mxu0 0.0
        %3979 = vmatprep.subr.mxu0 0.0
        %3980 = vmatpush1.msra.mxu0 0.0
        %3981 = vmatprep.subr.mxu0 0.0
        %3982 = vmatpush1.msra.mxu0 0.0
        %3983 = vmatprep.subr.mxu0 0.0
        %3984 = vmatpush1.msra.mxu0 0.0
        %3985 = vmatprep.subr.mxu0 0.0
        %3986 = vmatpush1.msra.mxu0 %v3947
        %3987 = vmatprep.subr.mxu0 0.0
        %3988 = vmatpush1.msra.mxu0 %v3946
        %3989 = vmatprep.subr.mxu0 0.0
        %3990 = vmatpush1.msra.mxu0 %v3945
        %3991 = vmatprep.subr.mxu0 0.0
        %3992 = vmatpush1.msra.mxu0 %v3944
        %3993 = vmatprep.subr.mxu0 0.0
        %3994 = vmatpush2.msra.mxu0 0.0
        %3995 = vmatprep.subr.mxu0 0.0
        %3996 = vmatpush2.msra.mxu0 0.0
        %3997 = vmatprep.subr.mxu0 0.0
        %3998 = vmatpush2.msra.mxu0 0.0
        %3999 = vmatprep.subr.mxu0 0.0
        %4000 = vmatpush2.msra.mxu0 0.0
        %4001 = vmatprep.subr.mxu0 0.0
        %4002 = vmatpush2.msra.mxu0 0.0
        %4003 = vmatprep.subr.mxu0 0.0
        %4004 = vmatpush2.msra.mxu0 0.0
        %4005 = vmatprep.subr.mxu0 0.0
        %4006 = vmatpush2.msra.mxu0 0.0
        %4007 = vmatprep.subr.mxu0 0.0
        %4008 = vmatpush2.msra.mxu0 0.0
        %4009 = vmatprep.subr.mxu0 0.0
        %4010 = vmatpush2.msra.mxu0 0.0
        %4011 = vmatprep.subr.mxu0 0.0
        %4012 = vmatpush2.msra.mxu0 0.0
        %4013 = vmatprep.subr.mxu0 0.0
        %4014 = vmatpush2.msra.mxu0 0.0
        %4015 = vmatprep.subr.mxu0 0.0
        %4016 = vmatpush2.msra.mxu0 0.0
        %4017 = vmatprep.subr.mxu0 0.0
        %4018 = vmatpush2.msra.mxu0 0.0
        %4019 = vmatprep.subr.mxu0 0.0
        %4020 = vmatpush2.msra.mxu0 0.0
        %4021 = vmatprep.subr.mxu0 0.0
        %4022 = vmatpush2.msra.mxu0 0.0
        %4023 = vmatprep.subr.mxu0 0.0
        %4024 = vmatpush2.msra.mxu0 0.0
        %4025 = vmatprep.mubr.f32.mxu0 0.0
        %4026 = vmatmul.mubr.f32.gmra.mxu0 %v3956
        %v4027 = vpop.f32.mrf.mxu0
        %v4028 = vadd.f32 %v3953, %v4027
        %v4029 = vpop.f32.mrf.mxu0
        %4030 = vmatprep.mubr.f32.mxu0 0.0
        %4031 = vmatmul.mubr.f32.gmra.mxu0 %v3959
        %v4032 = vpop.f32.mrf.mxu0
        %v4033 = vadd.f32 %v3953, %v4032
        %v4034 = vpop.f32.mrf.mxu0
        %4035 = vdwg.mxu0
        %v4036 = vmax.f32 %v4028, 0.0
        %v4037 = vmax.f32 %v4033, 0.0
        %v4038 = vld [vmem:[%s1993] sm:$0xff]
        %v4039 = vld [vmem:[%s1993 + $0x8] sm:$0xff]
        %v4040 = vld [vmem:[%s1993 + $0x10] sm:$0xff]
        %v4041 = vld [vmem:[%s1993 + $0x18] sm:$0xff]
        %v4042 = vld [vmem:[%s1993 + $0x20] sm:$0xff]
        %v4043 = vld [vmem:[%s1993 + $0x28] sm:$0xff]
        %v4044 = vld [vmem:[%s1993 + $0x30] sm:$0xff]
        %v4045 = vld [vmem:[%s1993 + $0x38] sm:$0xff]
        %v4046 = vld [vmem:[%s2002] sm:$0x1]
        %v4048 = vlaneseq
        %v4049 = vshrl.u32 %v4048, 7
        %v4050 = vsub.s32 0, %v4049
        %v4051 = vrot.slane %v4046, %v4050
        %v4054 = vsel %vm1080, %v4036, 0
        %v4057 = vsel %vm1080, %v4037, 0
        %4059 = vmatprep.subr.mxu0 0.0
        %4060 = vmatpush1.msra.mxu0 0.0
        %4061 = vmatprep.subr.mxu0 0.0
        %4062 = vmatpush1.msra.mxu0 0.0
        %4063 = vmatprep.subr.mxu0 0.0
        %4064 = vmatpush1.msra.mxu0 0.0
        %4065 = vmatprep.subr.mxu0 0.0
        %4066 = vmatpush1.msra.mxu0 0.0
        %4067 = vmatprep.subr.mxu0 0.0
        %4068 = vmatpush1.msra.mxu0 0.0
        %4069 = vmatprep.subr.mxu0 0.0
        %4070 = vmatpush1.msra.mxu0 0.0
        %4071 = vmatprep.subr.mxu0 0.0
        %4072 = vmatpush1.msra.mxu0 0.0
        %4073 = vmatprep.subr.mxu0 0.0
        %4074 = vmatpush1.msra.mxu0 0.0
        %4075 = vmatprep.subr.mxu0 0.0
        %4076 = vmatpush1.msra.mxu0 %v4045
        %4077 = vmatprep.subr.mxu0 0.0
        %4078 = vmatpush1.msra.mxu0 %v4044
        %4079 = vmatprep.subr.mxu0 0.0
        %4080 = vmatpush1.msra.mxu0 %v4043
        %4081 = vmatprep.subr.mxu0 0.0
        %4082 = vmatpush1.msra.mxu0 %v4042
        %4083 = vmatprep.subr.mxu0 0.0
        %4084 = vmatpush1.msra.mxu0 %v4041
        %4085 = vmatprep.subr.mxu0 0.0
        %4086 = vmatpush1.msra.mxu0 %v4040
        %4087 = vmatprep.subr.mxu0 0.0
        %4088 = vmatpush1.msra.mxu0 %v4039
        %4089 = vmatprep.subr.mxu0 0.0
        %4090 = vmatpush1.msra.mxu0 %v4038
        %4091 = vmatprep.subr.mxu0 0.0
        %4092 = vmatpush2.msra.mxu0 0.0
        %4093 = vmatprep.subr.mxu0 0.0
        %4094 = vmatpush2.msra.mxu0 0.0
        %4095 = vmatprep.subr.mxu0 0.0
        %4096 = vmatpush2.msra.mxu0 0.0
        %4097 = vmatprep.subr.mxu0 0.0
        %4098 = vmatpush2.msra.mxu0 0.0
        %4099 = vmatprep.subr.mxu0 0.0
        %4100 = vmatpush2.msra.mxu0 0.0
        %4101 = vmatprep.subr.mxu0 0.0
        %4102 = vmatpush2.msra.mxu0 0.0
        %4103 = vmatprep.subr.mxu0 0.0
        %4104 = vmatpush2.msra.mxu0 0.0
        %4105 = vmatprep.subr.mxu0 0.0
        %4106 = vmatpush2.msra.mxu0 0.0
        %4107 = vmatprep.subr.mxu0 0.0
        %4108 = vmatpush2.msra.mxu0 0.0
        %4109 = vmatprep.subr.mxu0 0.0
        %4110 = vmatpush2.msra.mxu0 0.0
        %4111 = vmatprep.subr.mxu0 0.0
        %4112 = vmatpush2.msra.mxu0 0.0
        %4113 = vmatprep.subr.mxu0 0.0
        %4114 = vmatpush2.msra.mxu0 0.0
        %4115 = vmatprep.subr.mxu0 0.0
        %4116 = vmatpush2.msra.mxu0 0.0
        %4117 = vmatprep.subr.mxu0 0.0
        %4118 = vmatpush2.msra.mxu0 0.0
        %4119 = vmatprep.subr.mxu0 0.0
        %4120 = vmatpush2.msra.mxu0 0.0
        %4121 = vmatprep.subr.mxu0 0.0
        %4122 = vmatpush2.msra.mxu0 0.0
        %4123 = vmatprep.mubr.f32.mxu0 0.0
        %4124 = vmatmul.mubr.f32.gmra.mxu0 %v4054
        %v4125 = vpop.f32.mrf.mxu0
        %v4126 = vadd.f32 %v4051, %v4125
        %v4127 = vpop.f32.mrf.mxu0
        %4128 = vmatprep.mubr.f32.mxu0 0.0
        %4129 = vmatmul.mubr.f32.gmra.mxu0 %v4057
        %v4130 = vpop.f32.mrf.mxu0
        %v4131 = vadd.f32 %v4051, %v4130
        %v4132 = vpop.f32.mrf.mxu0
        %4133 = vdwg.mxu0
        %v4134 = vadd.f32 %v4126, %v3942
        %v4135 = vadd.f32 %v4131, %v3943
        %v4136 = vld [vmem:[%s2084] sm:$0x1]
        %v4137 = vld [vmem:[%s2086] sm:$0x1]
        %v4138 = vsel %vm990, %v4134, 0.0
        %4139 = vadd.xlane.f32.xlu0 %v4138
        %v4140 = vpop.xlane.xlu0 %4139
        %v4141 = vsel %vm990, %v4135, 0.0
        %4142 = vadd.xlane.f32.xlu0 %v4141
        %v4143 = vpop.xlane.xlu0 %4142
        %v4144 = vmul.f32 %v4140, %v1160
        %v4145 = vmul.f32 %v4143, %v1160
        %v4146 = vsub.f32 %v4134, %v4144
        %v4147 = vsub.f32 %v4135, %v4145
        %v4148 = vmul.f32 %v4146, %v4146
        %v4149 = vmul.f32 %v4147, %v4147
        %v4150 = vsel %vm990, %v4148, 0.0
        %4151 = vadd.xlane.f32.xlu0 %v4150
        %v4152 = vpop.xlane.xlu0 %4151
        %v4153 = vsel %vm990, %v4149, 0.0
        %4154 = vadd.xlane.f32.xlu0 %v4153
        %v4155 = vpop.xlane.xlu0 %4154
        %v4156 = vmul.f32 %v4152, 0.032258064
        %v4157 = vmul.f32 %v4155, 0.032258064
        %v4158 = vrsqrt.pop %v4156
        %v4159 = vmul.f32 %v4156, %v4158
        %vm4160 = vcmp.eq.f32.partialorder %v4156, inf
        %v4161 = vsel %vm4160, %v4156, %v4159
        %vm4162 = vcmp.eq.f32.partialorder %v4156, 0.0
        %v4163 = vand.u32 %v4156, 2147483648
        %v4164 = vsel %vm4162, %v4163, %v4161
        %v4165 = vrsqrt.pop %v4157
        %v4166 = vmul.f32 %v4157, %v4165
        %vm4167 = vcmp.eq.f32.partialorder %v4157, inf
        %v4168 = vsel %vm4167, %v4157, %v4166
        %vm4169 = vcmp.eq.f32.partialorder %v4157, 0.0
        %v4170 = vand.u32 %v4157, 2147483648
        %v4171 = vsel %vm4169, %v4170, %v4168
        %v4172 = vadd.f32 %v4164, 1e-06
        %v4173 = vadd.f32 %v4171, 1e-06
        %v4174 = vrcp.pop %v4172
        %v4175 = vrcp.pop %v4173
        %v4177 = vlaneseq
        %v4178 = vshrl.u32 %v4177, 7
        %v4179 = vsub.s32 0, %v4178
        %v4180 = vrot.slane %v4136, %v4179
        %v4182 = vmul.f32 %v4180, %v4146
        %v4183 = vmul.f32 %v4180, %v4147
        %v4184 = vmul.f32 %v4182, %v4174
        %v4185 = vmul.f32 %v4183, %v4175
        %v4187 = vlaneseq
        %v4188 = vshrl.u32 %v4187, 7
        %v4189 = vsub.s32 0, %v4188
        %v4190 = vrot.slane %v4137, %v4189
        %v4192 = vadd.f32 %v4184, %v4190
        %v4193 = vadd.f32 %v4185, %v4190
        %v4194 = vld [vmem:[%s2122] sm:$0xff]
        %v4195 = vld [vmem:[%s2122 + $0x8] sm:$0xff]
        %v4196 = vld [vmem:[%s2122 + $0x10] sm:$0xff]
        %v4197 = vld [vmem:[%s2122 + $0x18] sm:$0xff]
        %v4198 = vld [vmem:[%s2127] sm:$0x1]
        %v4200 = vlaneseq
        %v4201 = vshrl.u32 %v4200, 7
        %v4202 = vsub.s32 0, %v4201
        %v4203 = vrot.slane %v4198, %v4202
        %v4206 = vsel %vm990, %v4192, 0
        %v4209 = vsel %vm990, %v4193, 0
        %4211 = vmatprep.subr.mxu0 0.0
        %4212 = vmatpush1.msra.mxu0 0.0
        %4213 = vmatprep.subr.mxu0 0.0
        %4214 = vmatpush1.msra.mxu0 0.0
        %4215 = vmatprep.subr.mxu0 0.0
        %4216 = vmatpush1.msra.mxu0 0.0
        %4217 = vmatprep.subr.mxu0 0.0
        %4218 = vmatpush1.msra.mxu0 0.0
        %4219 = vmatprep.subr.mxu0 0.0
        %4220 = vmatpush1.msra.mxu0 0.0
        %4221 = vmatprep.subr.mxu0 0.0
        %4222 = vmatpush1.msra.mxu0 0.0
        %4223 = vmatprep.subr.mxu0 0.0
        %4224 = vmatpush1.msra.mxu0 0.0
        %4225 = vmatprep.subr.mxu0 0.0
        %4226 = vmatpush1.msra.mxu0 0.0
        %4227 = vmatprep.subr.mxu0 0.0
        %4228 = vmatpush1.msra.mxu0 0.0
        %4229 = vmatprep.subr.mxu0 0.0
        %4230 = vmatpush1.msra.mxu0 0.0
        %4231 = vmatprep.subr.mxu0 0.0
        %4232 = vmatpush1.msra.mxu0 0.0
        %4233 = vmatprep.subr.mxu0 0.0
        %4234 = vmatpush1.msra.mxu0 0.0
        %4235 = vmatprep.subr.mxu0 0.0
        %4236 = vmatpush1.msra.mxu0 %v4197
        %4237 = vmatprep.subr.mxu0 0.0
        %4238 = vmatpush1.msra.mxu0 %v4196
        %4239 = vmatprep.subr.mxu0 0.0
        %4240 = vmatpush1.msra.mxu0 %v4195
        %4241 = vmatprep.subr.mxu0 0.0
        %4242 = vmatpush1.msra.mxu0 %v4194
        %4243 = vmatprep.subr.mxu0 0.0
        %4244 = vmatpush2.msra.mxu0 0.0
        %4245 = vmatprep.subr.mxu0 0.0
        %4246 = vmatpush2.msra.mxu0 0.0
        %4247 = vmatprep.subr.mxu0 0.0
        %4248 = vmatpush2.msra.mxu0 0.0
        %4249 = vmatprep.subr.mxu0 0.0
        %4250 = vmatpush2.msra.mxu0 0.0
        %4251 = vmatprep.subr.mxu0 0.0
        %4252 = vmatpush2.msra.mxu0 0.0
        %4253 = vmatprep.subr.mxu0 0.0
        %4254 = vmatpush2.msra.mxu0 0.0
        %4255 = vmatprep.subr.mxu0 0.0
        %4256 = vmatpush2.msra.mxu0 0.0
        %4257 = vmatprep.subr.mxu0 0.0
        %4258 = vmatpush2.msra.mxu0 0.0
        %4259 = vmatprep.subr.mxu0 0.0
        %4260 = vmatpush2.msra.mxu0 0.0
        %4261 = vmatprep.subr.mxu0 0.0
        %4262 = vmatpush2.msra.mxu0 0.0
        %4263 = vmatprep.subr.mxu0 0.0
        %4264 = vmatpush2.msra.mxu0 0.0
        %4265 = vmatprep.subr.mxu0 0.0
        %4266 = vmatpush2.msra.mxu0 0.0
        %4267 = vmatprep.subr.mxu0 0.0
        %4268 = vmatpush2.msra.mxu0 0.0
        %4269 = vmatprep.subr.mxu0 0.0
        %4270 = vmatpush2.msra.mxu0 0.0
        %4271 = vmatprep.subr.mxu0 0.0
        %4272 = vmatpush2.msra.mxu0 0.0
        %4273 = vmatprep.subr.mxu0 0.0
        %4274 = vmatpush2.msra.mxu0 0.0
        %4275 = vmatprep.mubr.f32.mxu0 0.0
        %4276 = vmatmul.mubr.f32.gmra.mxu0 %v4206
        %v4277 = vpop.f32.mrf.mxu0
        %v4278 = vadd.f32 %v4203, %v4277
        %v4279 = vpop.f32.mrf.mxu0
        %4280 = vmatprep.mubr.f32.mxu0 0.0
        %4281 = vmatmul.mubr.f32.gmra.mxu0 %v4209
        %v4282 = vpop.f32.mrf.mxu0
        %v4283 = vadd.f32 %v4203, %v4282
        %v4284 = vpop.f32.mrf.mxu0
        %4285 = vdwg.mxu0
        %v4286 = vld [vmem:[%s2208] sm:$0xff]
        %v4287 = vld [vmem:[%s2208 + $0x8] sm:$0xff]
        %v4288 = vld [vmem:[%s2208 + $0x10] sm:$0xff]
        %v4289 = vld [vmem:[%s2208 + $0x18] sm:$0xff]
        %v4290 = vld [vmem:[%s2213] sm:$0x1]
        %v4292 = vlaneseq
        %v4293 = vshrl.u32 %v4292, 7
        %v4294 = vsub.s32 0, %v4293
        %v4295 = vrot.slane %v4290, %v4294
        %4297 = vmatprep.subr.mxu0 0.0
        %4298 = vmatpush1.msra.mxu0 0.0
        %4299 = vmatprep.subr.mxu0 0.0
        %4300 = vmatpush1.msra.mxu0 0.0
        %4301 = vmatprep.subr.mxu0 0.0
        %4302 = vmatpush1.msra.mxu0 0.0
        %4303 = vmatprep.subr.mxu0 0.0
        %4304 = vmatpush1.msra.mxu0 0.0
        %4305 = vmatprep.subr.mxu0 0.0
        %4306 = vmatpush1.msra.mxu0 0.0
        %4307 = vmatprep.subr.mxu0 0.0
        %4308 = vmatpush1.msra.mxu0 0.0
        %4309 = vmatprep.subr.mxu0 0.0
        %4310 = vmatpush1.msra.mxu0 0.0
        %4311 = vmatprep.subr.mxu0 0.0
        %4312 = vmatpush1.msra.mxu0 0.0
        %4313 = vmatprep.subr.mxu0 0.0
        %4314 = vmatpush1.msra.mxu0 0.0
        %4315 = vmatprep.subr.mxu0 0.0
        %4316 = vmatpush1.msra.mxu0 0.0
        %4317 = vmatprep.subr.mxu0 0.0
        %4318 = vmatpush1.msra.mxu0 0.0
        %4319 = vmatprep.subr.mxu0 0.0
        %4320 = vmatpush1.msra.mxu0 0.0
        %4321 = vmatprep.subr.mxu0 0.0
        %4322 = vmatpush1.msra.mxu0 %v4289
        %4323 = vmatprep.subr.mxu0 0.0
        %4324 = vmatpush1.msra.mxu0 %v4288
        %4325 = vmatprep.subr.mxu0 0.0
        %4326 = vmatpush1.msra.mxu0 %v4287
        %4327 = vmatprep.subr.mxu0 0.0
        %4328 = vmatpush1.msra.mxu0 %v4286
        %4329 = vmatprep.subr.mxu0 0.0
        %4330 = vmatpush2.msra.mxu0 0.0
        %4331 = vmatprep.subr.mxu0 0.0
        %4332 = vmatpush2.msra.mxu0 0.0
        %4333 = vmatprep.subr.mxu0 0.0
        %4334 = vmatpush2.msra.mxu0 0.0
        %4335 = vmatprep.subr.mxu0 0.0
        %4336 = vmatpush2.msra.mxu0 0.0
        %4337 = vmatprep.subr.mxu0 0.0
        %4338 = vmatpush2.msra.mxu0 0.0
        %4339 = vmatprep.subr.mxu0 0.0
        %4340 = vmatpush2.msra.mxu0 0.0
        %4341 = vmatprep.subr.mxu0 0.0
        %4342 = vmatpush2.msra.mxu0 0.0
        %4343 = vmatprep.subr.mxu0 0.0
        %4344 = vmatpush2.msra.mxu0 0.0
        %4345 = vmatprep.subr.mxu0 0.0
        %4346 = vmatpush2.msra.mxu0 0.0
        %4347 = vmatprep.subr.mxu0 0.0
        %4348 = vmatpush2.msra.mxu0 0.0
        %4349 = vmatprep.subr.mxu0 0.0
        %4350 = vmatpush2.msra.mxu0 0.0
        %4351 = vmatprep.subr.mxu0 0.0
        %4352 = vmatpush2.msra.mxu0 0.0
        %4353 = vmatprep.subr.mxu0 0.0
        %4354 = vmatpush2.msra.mxu0 0.0
        %4355 = vmatprep.subr.mxu0 0.0
        %4356 = vmatpush2.msra.mxu0 0.0
        %4357 = vmatprep.subr.mxu0 0.0
        %4358 = vmatpush2.msra.mxu0 0.0
        %4359 = vmatprep.subr.mxu0 0.0
        %4360 = vmatpush2.msra.mxu0 0.0
        %4361 = vmatprep.mubr.f32.mxu0 0.0
        %4362 = vmatmul.mubr.f32.gmra.mxu0 %v4206
        %v4363 = vpop.f32.mrf.mxu0
        %v4364 = vadd.f32 %v4295, %v4363
        %v4365 = vpop.f32.mrf.mxu0
        %4366 = vmatprep.mubr.f32.mxu0 0.0
        %4367 = vmatmul.mubr.f32.gmra.mxu0 %v4209
        %v4368 = vpop.f32.mrf.mxu0
        %v4369 = vadd.f32 %v4295, %v4368
        %v4370 = vpop.f32.mrf.mxu0
        %4371 = vdwg.mxu0
        %v4372 = vld [vmem:[%s2291] sm:$0xff]
        %v4373 = vld [vmem:[%s2291 + $0x8] sm:$0xff]
        %v4374 = vld [vmem:[%s2291 + $0x10] sm:$0xff]
        %v4375 = vld [vmem:[%s2291 + $0x18] sm:$0xff]
        %v4376 = vld [vmem:[%s2296] sm:$0x1]
        %v4378 = vlaneseq
        %v4379 = vshrl.u32 %v4378, 7
        %v4380 = vsub.s32 0, %v4379
        %v4381 = vrot.slane %v4376, %v4380
        %4383 = vmatprep.subr.mxu0 0.0
        %4384 = vmatpush1.msra.mxu0 0.0
        %4385 = vmatprep.subr.mxu0 0.0
        %4386 = vmatpush1.msra.mxu0 0.0
        %4387 = vmatprep.subr.mxu0 0.0
        %4388 = vmatpush1.msra.mxu0 0.0
        %4389 = vmatprep.subr.mxu0 0.0
        %4390 = vmatpush1.msra.mxu0 0.0
        %4391 = vmatprep.subr.mxu0 0.0
        %4392 = vmatpush1.msra.mxu0 0.0
        %4393 = vmatprep.subr.mxu0 0.0
        %4394 = vmatpush1.msra.mxu0 0.0
        %4395 = vmatprep.subr.mxu0 0.0
        %4396 = vmatpush1.msra.mxu0 0.0
        %4397 = vmatprep.subr.mxu0 0.0
        %4398 = vmatpush1.msra.mxu0 0.0
        %4399 = vmatprep.subr.mxu0 0.0
        %4400 = vmatpush1.msra.mxu0 0.0
        %4401 = vmatprep.subr.mxu0 0.0
        %4402 = vmatpush1.msra.mxu0 0.0
        %4403 = vmatprep.subr.mxu0 0.0
        %4404 = vmatpush1.msra.mxu0 0.0
        %4405 = vmatprep.subr.mxu0 0.0
        %4406 = vmatpush1.msra.mxu0 0.0
        %4407 = vmatprep.subr.mxu0 0.0
        %4408 = vmatpush1.msra.mxu0 %v4375
        %4409 = vmatprep.subr.mxu0 0.0
        %4410 = vmatpush1.msra.mxu0 %v4374
        %4411 = vmatprep.subr.mxu0 0.0
        %4412 = vmatpush1.msra.mxu0 %v4373
        %4413 = vmatprep.subr.mxu0 0.0
        %4414 = vmatpush1.msra.mxu0 %v4372
        %4415 = vmatprep.subr.mxu0 0.0
        %4416 = vmatpush2.msra.mxu0 0.0
        %4417 = vmatprep.subr.mxu0 0.0
        %4418 = vmatpush2.msra.mxu0 0.0
        %4419 = vmatprep.subr.mxu0 0.0
        %4420 = vmatpush2.msra.mxu0 0.0
        %4421 = vmatprep.subr.mxu0 0.0
        %4422 = vmatpush2.msra.mxu0 0.0
        %4423 = vmatprep.subr.mxu0 0.0
        %4424 = vmatpush2.msra.mxu0 0.0
        %4425 = vmatprep.subr.mxu0 0.0
        %4426 = vmatpush2.msra.mxu0 0.0
        %4427 = vmatprep.subr.mxu0 0.0
        %4428 = vmatpush2.msra.mxu0 0.0
        %4429 = vmatprep.subr.mxu0 0.0
        %4430 = vmatpush2.msra.mxu0 0.0
        %4431 = vmatprep.subr.mxu0 0.0
        %4432 = vmatpush2.msra.mxu0 0.0
        %4433 = vmatprep.subr.mxu0 0.0
        %4434 = vmatpush2.msra.mxu0 0.0
        %4435 = vmatprep.subr.mxu0 0.0
        %4436 = vmatpush2.msra.mxu0 0.0
        %4437 = vmatprep.subr.mxu0 0.0
        %4438 = vmatpush2.msra.mxu0 0.0
        %4439 = vmatprep.subr.mxu0 0.0
        %4440 = vmatpush2.msra.mxu0 0.0
        %4441 = vmatprep.subr.mxu0 0.0
        %4442 = vmatpush2.msra.mxu0 0.0
        %4443 = vmatprep.subr.mxu0 0.0
        %4444 = vmatpush2.msra.mxu0 0.0
        %4445 = vmatprep.subr.mxu0 0.0
        %4446 = vmatpush2.msra.mxu0 0.0
        %4447 = vmatprep.mubr.f32.mxu0 0.0
        %4448 = vmatmul.mubr.f32.gmra.mxu0 %v4206
        %v4449 = vpop.f32.mrf.mxu0
        %v4450 = vadd.f32 %v4381, %v4449
        %v4451 = vpop.f32.mrf.mxu0
        %4452 = vmatprep.mubr.f32.mxu0 0.0
        %4453 = vmatmul.mubr.f32.gmra.mxu0 %v4209
        %v4454 = vpop.f32.mrf.mxu0
        %v4455 = vadd.f32 %v4381, %v4454
        %v4456 = vpop.f32.mrf.mxu0
        %4457 = vdwg.mxu0
        %v4459 = vsel %vm1438, %v4278, 0
        %v4462 = vsel %vm1438, %v4283, 0
        %v4465 = vsel %vm1438, %v4364, 0
        %v4468 = vsel %vm1438, %v4369, 0
        %4470 = vmatprep.subr.mxu0 0.0
        %4471 = vmatpush1.xpose.msra.mxu0 0.0
        %4472 = vmatprep.subr.mxu0 0.0
        %4473 = vmatpush1.xpose.msra.mxu0 0.0
        %4474 = vmatprep.subr.mxu0 0.0
        %4475 = vmatpush1.xpose.msra.mxu0 0.0
        %4476 = vmatprep.subr.mxu0 0.0
        %4477 = vmatpush1.xpose.msra.mxu0 0.0
        %4478 = vmatprep.subr.mxu0 0.0
        %4479 = vmatpush1.xpose.msra.mxu0 0.0
        %4480 = vmatprep.subr.mxu0 0.0
        %4481 = vmatpush1.xpose.msra.mxu0 0.0
        %4482 = vmatprep.subr.mxu0 0.0
        %4483 = vmatpush1.xpose.msra.mxu0 0.0
        %4484 = vmatprep.subr.mxu0 0.0
        %4485 = vmatpush1.xpose.msra.mxu0 0.0
        %4486 = vmatprep.subr.mxu0 0.0
        %4487 = vmatpush1.xpose.msra.mxu0 0.0
        %4488 = vmatprep.subr.mxu0 0.0
        %4489 = vmatpush1.xpose.msra.mxu0 0.0
        %4490 = vmatprep.subr.mxu0 0.0
        %4491 = vmatpush1.xpose.msra.mxu0 0.0
        %4492 = vmatprep.subr.mxu0 0.0
        %4493 = vmatpush1.xpose.msra.mxu0 0.0
        %4494 = vmatprep.subr.mxu0 0.0
        %4495 = vmatpush1.xpose.msra.mxu0 0.0
        %4496 = vmatprep.subr.mxu0 0.0
        %4497 = vmatpush1.xpose.msra.mxu0 0.0
        %4498 = vmatprep.subr.mxu0 0.0
        %4499 = vmatpush1.xpose.msra.mxu0 %v4468
        %4500 = vmatprep.subr.mxu0 0.0
        %4501 = vmatpush1.xpose.msra.mxu0 %v4465
        %4502 = vmatprep.subr.mxu0 0.0
        %4503 = vmatpush2.xpose.msra.mxu0 0.0
        %4504 = vmatprep.subr.mxu0 0.0
        %4505 = vmatpush2.xpose.msra.mxu0 0.0
        %4506 = vmatprep.subr.mxu0 0.0
        %4507 = vmatpush2.xpose.msra.mxu0 0.0
        %4508 = vmatprep.subr.mxu0 0.0
        %4509 = vmatpush2.xpose.msra.mxu0 0.0
        %4510 = vmatprep.subr.mxu0 0.0
        %4511 = vmatpush2.xpose.msra.mxu0 0.0
        %4512 = vmatprep.subr.mxu0 0.0
        %4513 = vmatpush2.xpose.msra.mxu0 0.0
        %4514 = vmatprep.subr.mxu0 0.0
        %4515 = vmatpush2.xpose.msra.mxu0 0.0
        %4516 = vmatprep.subr.mxu0 0.0
        %4517 = vmatpush2.xpose.msra.mxu0 0.0
        %4518 = vmatprep.subr.mxu0 0.0
        %4519 = vmatpush2.xpose.msra.mxu0 0.0
        %4520 = vmatprep.subr.mxu0 0.0
        %4521 = vmatpush2.xpose.msra.mxu0 0.0
        %4522 = vmatprep.subr.mxu0 0.0
        %4523 = vmatpush2.xpose.msra.mxu0 0.0
        %4524 = vmatprep.subr.mxu0 0.0
        %4525 = vmatpush2.xpose.msra.mxu0 0.0
        %4526 = vmatprep.subr.mxu0 0.0
        %4527 = vmatpush2.xpose.msra.mxu0 0.0
        %4528 = vmatprep.subr.mxu0 0.0
        %4529 = vmatpush2.xpose.msra.mxu0 0.0
        %4530 = vmatprep.subr.mxu0 0.0
        %4531 = vmatpush2.xpose.msra.mxu0 0.0
        %4532 = vmatprep.subr.mxu0 0.0
        %4533 = vmatpush2.xpose.msra.mxu0 0.0
        %4534 = vmatprep.mubr.f32.mxu0 0.0
        %4535 = vmatmul.mubr.f32.gmra.mxu0 %v4459
        %v4536 = vpop.f32.mrf.mxu0
        %v4537 = vadd.f32 0.0, %v4536
        %v4538 = vpop.f32.mrf.mxu0
        %4539 = vmatprep.mubr.f32.mxu0 0.0
        %4540 = vmatmul.mubr.f32.gmra.mxu0 %v4462
        %v4541 = vpop.f32.mrf.mxu0
        %v4542 = vadd.f32 0.0, %v4541
        %v4543 = vpop.f32.mrf.mxu0
        %4544 = vdwg.mxu0
        %v4545 = vmul.f32 %v4537, %v975
        %v4546 = vmul.f32 %v4542, %v975
        %v4547 = vsel %vm1438, %v4545, -inf
        %4548 = vmax.xlane.f32.xlu0 %v4547
        %v4549 = vpop.xlane.xlu0 %4548
        %v4550 = vsel %vm1438, %v4546, -inf
        %4551 = vmax.xlane.f32.xlu0 %v4550
        %v4552 = vpop.xlane.xlu0 %4551
        %v4553 = vsub.f32 %v4545, %v4549
        %v4554 = vsub.f32 %v4546, %v4552
        %v4555 = vmul.f32 %v4553, 1.442695
        %v4556 = vpow.pop %v4555
        %v4557 = vmul.f32 %v4554, 1.442695
        %v4558 = vpow.pop %v4557
        %v4559 = vsel %vm1438, %v4556, 0.0
        %4560 = vadd.xlane.f32.xlu0 %v4559
        %v4561 = vpop.xlane.xlu0 %4560
        %v4562 = vsel %vm1438, %v4558, 0.0
        %4563 = vadd.xlane.f32.xlu0 %v4562
        %v4564 = vpop.xlane.xlu0 %4563
        %v4565 = vmul.f32 %v4556, %v975
        %v4566 = vmul.f32 %v4558, %v975
        %v4567 = vsel %vm1438, %v4565, 0.0
        %4568 = vadd.xlane.f32.xlu0 %v4567
        %v4569 = vpop.xlane.xlu0 %4568
        %v4570 = vsel %vm1438, %v4566, 0.0
        %4571 = vadd.xlane.f32.xlu0 %v4570
        %v4572 = vpop.xlane.xlu0 %4571
        %v4573 = vmul.f32 %v4561, 1e-13
        %v4574 = vmul.f32 %v4564, 1e-13
        %v4575 = vadd.f32 %v4569, %v4573
        %v4576 = vadd.f32 %v4572, %v4574
        %v4577 = vrcp.pop %v4575
        %v4578 = vrcp.pop %v4576
        %v4579 = vmul.f32 %v4565, %v4577
        %v4580 = vmul.f32 %v4566, %v4578
        %v4582 = vsel %vm1438, %v4579, 0
        %v4585 = vsel %vm1438, %v4580, 0
        %4587 = vmatprep.subr.mxu0 0.0
        %4588 = vmatpush1.msra.mxu0 0.0
        %4589 = vmatprep.subr.mxu0 0.0
        %4590 = vmatpush1.msra.mxu0 0.0
        %4591 = vmatprep.subr.mxu0 0.0
        %4592 = vmatpush1.msra.mxu0 0.0
        %4593 = vmatprep.subr.mxu0 0.0
        %4594 = vmatpush1.msra.mxu0 0.0
        %4595 = vmatprep.subr.mxu0 0.0
        %4596 = vmatpush1.msra.mxu0 0.0
        %4597 = vmatprep.subr.mxu0 0.0
        %4598 = vmatpush1.msra.mxu0 0.0
        %4599 = vmatprep.subr.mxu0 0.0
        %4600 = vmatpush1.msra.mxu0 0.0
        %4601 = vmatprep.subr.mxu0 0.0
        %4602 = vmatpush1.msra.mxu0 0.0
        %4603 = vmatprep.subr.mxu0 0.0
        %4604 = vmatpush1.msra.mxu0 0.0
        %4605 = vmatprep.subr.mxu0 0.0
        %4606 = vmatpush1.msra.mxu0 0.0
        %4607 = vmatprep.subr.mxu0 0.0
        %4608 = vmatpush1.msra.mxu0 0.0
        %4609 = vmatprep.subr.mxu0 0.0
        %4610 = vmatpush1.msra.mxu0 0.0
        %4611 = vmatprep.subr.mxu0 0.0
        %4612 = vmatpush1.msra.mxu0 0.0
        %4613 = vmatprep.subr.mxu0 0.0
        %4614 = vmatpush1.msra.mxu0 0.0
        %4615 = vmatprep.subr.mxu0 0.0
        %4616 = vmatpush1.msra.mxu0 %v4455
        %4617 = vmatprep.subr.mxu0 0.0
        %4618 = vmatpush1.msra.mxu0 %v4450
        %4619 = vmatprep.subr.mxu0 0.0
        %4620 = vmatpush2.msra.mxu0 0.0
        %4621 = vmatprep.subr.mxu0 0.0
        %4622 = vmatpush2.msra.mxu0 0.0
        %4623 = vmatprep.subr.mxu0 0.0
        %4624 = vmatpush2.msra.mxu0 0.0
        %4625 = vmatprep.subr.mxu0 0.0
        %4626 = vmatpush2.msra.mxu0 0.0
        %4627 = vmatprep.subr.mxu0 0.0
        %4628 = vmatpush2.msra.mxu0 0.0
        %4629 = vmatprep.subr.mxu0 0.0
        %4630 = vmatpush2.msra.mxu0 0.0
        %4631 = vmatprep.subr.mxu0 0.0
        %4632 = vmatpush2.msra.mxu0 0.0
        %4633 = vmatprep.subr.mxu0 0.0
        %4634 = vmatpush2.msra.mxu0 0.0
        %4635 = vmatprep.subr.mxu0 0.0
        %4636 = vmatpush2.msra.mxu0 0.0
        %4637 = vmatprep.subr.mxu0 0.0
        %4638 = vmatpush2.msra.mxu0 0.0
        %4639 = vmatprep.subr.mxu0 0.0
        %4640 = vmatpush2.msra.mxu0 0.0
        %4641 = vmatprep.subr.mxu0 0.0
        %4642 = vmatpush2.msra.mxu0 0.0
        %4643 = vmatprep.subr.mxu0 0.0
        %4644 = vmatpush2.msra.mxu0 0.0
        %4645 = vmatprep.subr.mxu0 0.0
        %4646 = vmatpush2.msra.mxu0 0.0
        %4647 = vmatprep.subr.mxu0 0.0
        %4648 = vmatpush2.msra.mxu0 0.0
        %4649 = vmatprep.subr.mxu0 0.0
        %4650 = vmatpush2.msra.mxu0 0.0
        %4651 = vmatprep.mubr.f32.mxu0 0.0
        %4652 = vmatmul.mubr.f32.gmra.mxu0 %v4582
        %v4653 = vpop.f32.mrf.mxu0
        %v4654 = vadd.f32 0.0, %v4653
        %v4655 = vpop.f32.mrf.mxu0
        %4656 = vmatprep.mubr.f32.mxu0 0.0
        %4657 = vmatmul.mubr.f32.gmra.mxu0 %v4585
        %v4658 = vpop.f32.mrf.mxu0
        %v4659 = vadd.f32 0.0, %v4658
        %v4660 = vpop.f32.mrf.mxu0
        %4661 = vdwg.mxu0
        %4662 = vrot.lane.b32.xlu0 %v4278, 112
        %v4663 = vpop.permute.xlu0 %4662
        %4664 = vrot.lane.b32.xlu0 %v4283, 112
        %v4665 = vpop.permute.xlu0 %4664
        %4666 = vrot.lane.b32.xlu0 %v4364, 112
        %v4667 = vpop.permute.xlu0 %4666
        %4668 = vrot.lane.b32.xlu0 %v4369, 112
        %v4669 = vpop.permute.xlu0 %4668
        %v4670 = vsel %vm1438, %v4663, 0
        %v4672 = vsel %vm1438, %v4665, 0
        %v4674 = vsel %vm1438, %v4667, 0
        %v4676 = vsel %vm1438, %v4669, 0
        %4678 = vmatprep.subr.mxu0 0.0
        %4679 = vmatpush1.xpose.msra.mxu0 0.0
        %4680 = vmatprep.subr.mxu0 0.0
        %4681 = vmatpush1.xpose.msra.mxu0 0.0
        %4682 = vmatprep.subr.mxu0 0.0
        %4683 = vmatpush1.xpose.msra.mxu0 0.0
        %4684 = vmatprep.subr.mxu0 0.0
        %4685 = vmatpush1.xpose.msra.mxu0 0.0
        %4686 = vmatprep.subr.mxu0 0.0
        %4687 = vmatpush1.xpose.msra.mxu0 0.0
        %4688 = vmatprep.subr.mxu0 0.0
        %4689 = vmatpush1.xpose.msra.mxu0 0.0
        %4690 = vmatprep.subr.mxu0 0.0
        %4691 = vmatpush1.xpose.msra.mxu0 0.0
        %4692 = vmatprep.subr.mxu0 0.0
        %4693 = vmatpush1.xpose.msra.mxu0 0.0
        %4694 = vmatprep.subr.mxu0 0.0
        %4695 = vmatpush1.xpose.msra.mxu0 0.0
        %4696 = vmatprep.subr.mxu0 0.0
        %4697 = vmatpush1.xpose.msra.mxu0 0.0
        %4698 = vmatprep.subr.mxu0 0.0
        %4699 = vmatpush1.xpose.msra.mxu0 0.0
        %4700 = vmatprep.subr.mxu0 0.0
        %4701 = vmatpush1.xpose.msra.mxu0 0.0
        %4702 = vmatprep.subr.mxu0 0.0
        %4703 = vmatpush1.xpose.msra.mxu0 0.0
        %4704 = vmatprep.subr.mxu0 0.0
        %4705 = vmatpush1.xpose.msra.mxu0 0.0
        %4706 = vmatprep.subr.mxu0 0.0
        %4707 = vmatpush1.xpose.msra.mxu0 %v4676
        %4708 = vmatprep.subr.mxu0 0.0
        %4709 = vmatpush1.xpose.msra.mxu0 %v4674
        %4710 = vmatprep.subr.mxu0 0.0
        %4711 = vmatpush2.xpose.msra.mxu0 0.0
        %4712 = vmatprep.subr.mxu0 0.0
        %4713 = vmatpush2.xpose.msra.mxu0 0.0
        %4714 = vmatprep.subr.mxu0 0.0
        %4715 = vmatpush2.xpose.msra.mxu0 0.0
        %4716 = vmatprep.subr.mxu0 0.0
        %4717 = vmatpush2.xpose.msra.mxu0 0.0
        %4718 = vmatprep.subr.mxu0 0.0
        %4719 = vmatpush2.xpose.msra.mxu0 0.0
        %4720 = vmatprep.subr.mxu0 0.0
        %4721 = vmatpush2.xpose.msra.mxu0 0.0
        %4722 = vmatprep.subr.mxu0 0.0
        %4723 = vmatpush2.xpose.msra.mxu0 0.0
        %4724 = vmatprep.subr.mxu0 0.0
        %4725 = vmatpush2.xpose.msra.mxu0 0.0
        %4726 = vmatprep.subr.mxu0 0.0
        %4727 = vmatpush2.xpose.msra.mxu0 0.0
        %4728 = vmatprep.subr.mxu0 0.0
        %4729 = vmatpush2.xpose.msra.mxu0 0.0
        %4730 = vmatprep.subr.mxu0 0.0
        %4731 = vmatpush2.xpose.msra.mxu0 0.0
        %4732 = vmatprep.subr.mxu0 0.0
        %4733 = vmatpush2.xpose.msra.mxu0 0.0
        %4734 = vmatprep.subr.mxu0 0.0
        %4735 = vmatpush2.xpose.msra.mxu0 0.0
        %4736 = vmatprep.subr.mxu0 0.0
        %4737 = vmatpush2.xpose.msra.mxu0 0.0
        %4738 = vmatprep.subr.mxu0 0.0
        %4739 = vmatpush2.xpose.msra.mxu0 0.0
        %4740 = vmatprep.subr.mxu0 0.0
        %4741 = vmatpush2.xpose.msra.mxu0 0.0
        %4742 = vmatprep.mubr.f32.mxu0 0.0
        %4743 = vmatmul.mubr.f32.gmra.mxu0 %v4670
        %v4744 = vpop.f32.mrf.mxu0
        %v4745 = vadd.f32 0.0, %v4744
        %v4746 = vpop.f32.mrf.mxu0
        %4747 = vmatprep.mubr.f32.mxu0 0.0
        %4748 = vmatmul.mubr.f32.gmra.mxu0 %v4672
        %v4749 = vpop.f32.mrf.mxu0
        %v4750 = vadd.f32 0.0, %v4749
        %v4751 = vpop.f32.mrf.mxu0
        %4752 = vdwg.mxu0
        %v4753 = vmul.f32 %v4745, %v975
        %v4754 = vmul.f32 %v4750, %v975
        %v4755 = vsel %vm1438, %v4753, -inf
        %4756 = vmax.xlane.f32.xlu0 %v4755
        %v4757 = vpop.xlane.xlu0 %4756
        %v4758 = vsel %vm1438, %v4754, -inf
        %4759 = vmax.xlane.f32.xlu0 %v4758
        %v4760 = vpop.xlane.xlu0 %4759
        %v4761 = vsub.f32 %v4753, %v4757
        %v4762 = vsub.f32 %v4754, %v4760
        %v4763 = vmul.f32 %v4761, 1.442695
        %v4764 = vpow.pop %v4763
        %v4765 = vmul.f32 %v4762, 1.442695
        %v4766 = vpow.pop %v4765
        %v4767 = vsel %vm1438, %v4764, 0.0
        %4768 = vadd.xlane.f32.xlu0 %v4767
        %v4769 = vpop.xlane.xlu0 %4768
        %v4770 = vsel %vm1438, %v4766, 0.0
        %4771 = vadd.xlane.f32.xlu0 %v4770
        %v4772 = vpop.xlane.xlu0 %4771
        %v4773 = vmul.f32 %v4764, %v975
        %v4774 = vmul.f32 %v4766, %v975
        %v4775 = vsel %vm1438, %v4773, 0.0
        %4776 = vadd.xlane.f32.xlu0 %v4775
        %v4777 = vpop.xlane.xlu0 %4776
        %v4778 = vsel %vm1438, %v4774, 0.0
        %4779 = vadd.xlane.f32.xlu0 %v4778
        %v4780 = vpop.xlane.xlu0 %4779
        %v4781 = vmul.f32 %v4769, 1e-13
        %v4782 = vmul.f32 %v4772, 1e-13
        %v4783 = vadd.f32 %v4777, %v4781
        %v4784 = vadd.f32 %v4780, %v4782
        %v4785 = vrcp.pop %v4783
        %v4786 = vrcp.pop %v4784
        %v4787 = vmul.f32 %v4773, %v4785
        %v4788 = vmul.f32 %v4774, %v4786
        %4791 = vrot.lane.b32.xlu0 %v4450, 112
        %v4792 = vpop.permute.xlu0 %4791
        %4793 = vrot.lane.b32.xlu0 %v4455, 112
        %v4794 = vpop.permute.xlu0 %4793
        %v4798 = vsel %vm1438, %v4787, 0
        %v4801 = vsel %vm1438, %v4788, 0
        %4803 = vmatprep.subr.mxu0 0.0
        %4804 = vmatpush1.msra.mxu0 0.0
        %4805 = vmatprep.subr.mxu0 0.0
        %4806 = vmatpush1.msra.mxu0 0.0
        %4807 = vmatprep.subr.mxu0 0.0
        %4808 = vmatpush1.msra.mxu0 0.0
        %4809 = vmatprep.subr.mxu0 0.0
        %4810 = vmatpush1.msra.mxu0 0.0
        %4811 = vmatprep.subr.mxu0 0.0
        %4812 = vmatpush1.msra.mxu0 0.0
        %4813 = vmatprep.subr.mxu0 0.0
        %4814 = vmatpush1.msra.mxu0 0.0
        %4815 = vmatprep.subr.mxu0 0.0
        %4816 = vmatpush1.msra.mxu0 0.0
        %4817 = vmatprep.subr.mxu0 0.0
        %4818 = vmatpush1.msra.mxu0 0.0
        %4819 = vmatprep.subr.mxu0 0.0
        %4820 = vmatpush1.msra.mxu0 0.0
        %4821 = vmatprep.subr.mxu0 0.0
        %4822 = vmatpush1.msra.mxu0 0.0
        %4823 = vmatprep.subr.mxu0 0.0
        %4824 = vmatpush1.msra.mxu0 0.0
        %4825 = vmatprep.subr.mxu0 0.0
        %4826 = vmatpush1.msra.mxu0 0.0
        %4827 = vmatprep.subr.mxu0 0.0
        %4828 = vmatpush1.msra.mxu0 0.0
        %4829 = vmatprep.subr.mxu0 0.0
        %4830 = vmatpush1.msra.mxu0 0.0
        %4831 = vmatprep.subr.mxu0 0.0
        %4832 = vmatpush1.msra.mxu0 %v4794
        %4833 = vmatprep.subr.mxu0 0.0
        %4834 = vmatpush1.msra.mxu0 %v4792
        %4835 = vmatprep.subr.mxu0 0.0
        %4836 = vmatpush2.msra.mxu0 0.0
        %4837 = vmatprep.subr.mxu0 0.0
        %4838 = vmatpush2.msra.mxu0 0.0
        %4839 = vmatprep.subr.mxu0 0.0
        %4840 = vmatpush2.msra.mxu0 0.0
        %4841 = vmatprep.subr.mxu0 0.0
        %4842 = vmatpush2.msra.mxu0 0.0
        %4843 = vmatprep.subr.mxu0 0.0
        %4844 = vmatpush2.msra.mxu0 0.0
        %4845 = vmatprep.subr.mxu0 0.0
        %4846 = vmatpush2.msra.mxu0 0.0
        %4847 = vmatprep.subr.mxu0 0.0
        %4848 = vmatpush2.msra.mxu0 0.0
        %4849 = vmatprep.subr.mxu0 0.0
        %4850 = vmatpush2.msra.mxu0 0.0
        %4851 = vmatprep.subr.mxu0 0.0
        %4852 = vmatpush2.msra.mxu0 0.0
        %4853 = vmatprep.subr.mxu0 0.0
        %4854 = vmatpush2.msra.mxu0 0.0
        %4855 = vmatprep.subr.mxu0 0.0
        %4856 = vmatpush2.msra.mxu0 0.0
        %4857 = vmatprep.subr.mxu0 0.0
        %4858 = vmatpush2.msra.mxu0 0.0
        %4859 = vmatprep.subr.mxu0 0.0
        %4860 = vmatpush2.msra.mxu0 0.0
        %4861 = vmatprep.subr.mxu0 0.0
        %4862 = vmatpush2.msra.mxu0 0.0
        %4863 = vmatprep.subr.mxu0 0.0
        %4864 = vmatpush2.msra.mxu0 0.0
        %4865 = vmatprep.subr.mxu0 0.0
        %4866 = vmatpush2.msra.mxu0 0.0
        %4867 = vmatprep.mubr.f32.mxu0 0.0
        %4868 = vmatmul.mubr.f32.gmra.mxu0 %v4798
        %v4869 = vpop.f32.mrf.mxu0
        %v4870 = vadd.f32 0.0, %v4869
        %v4871 = vpop.f32.mrf.mxu0
        %4872 = vmatprep.mubr.f32.mxu0 0.0
        %4873 = vmatmul.mubr.f32.gmra.mxu0 %v4801
        %v4874 = vpop.f32.mrf.mxu0
        %v4875 = vadd.f32 0.0, %v4874
        %v4876 = vpop.f32.mrf.mxu0
        %4877 = vdwg.mxu0
        %4880 = vrot.lane.b32.xlu0 %v4870, 16
        %v4881 = vpop.permute.xlu0 %4880
        %4882 = vrot.lane.b32.xlu0 %v4875, 16
        %v4883 = vpop.permute.xlu0 %4882
        %v4886 = vsel %vm1438, %v4654, %v4881
        %v4887 = vsel %vm1438, %v4659, %v4883
        %v4888 = vld [vmem:[%s2719] sm:$0xff]
        %v4889 = vld [vmem:[%s2719 + $0x8] sm:$0xff]
        %v4890 = vld [vmem:[%s2719 + $0x10] sm:$0xff]
        %v4891 = vld [vmem:[%s2719 + $0x18] sm:$0xff]
        %v4892 = vld [vmem:[%s2724] sm:$0x1]
        %v4894 = vlaneseq
        %v4895 = vshrl.u32 %v4894, 7
        %v4896 = vsub.s32 0, %v4895
        %v4897 = vrot.slane %v4892, %v4896
        %v4900 = vsel %vm990, %v4886, 0
        %v4903 = vsel %vm990, %v4887, 0
        %4905 = vmatprep.subr.mxu0 0.0
        %4906 = vmatpush1.msra.mxu0 0.0
        %4907 = vmatprep.subr.mxu0 0.0
        %4908 = vmatpush1.msra.mxu0 0.0
        %4909 = vmatprep.subr.mxu0 0.0
        %4910 = vmatpush1.msra.mxu0 0.0
        %4911 = vmatprep.subr.mxu0 0.0
        %4912 = vmatpush1.msra.mxu0 0.0
        %4913 = vmatprep.subr.mxu0 0.0
        %4914 = vmatpush1.msra.mxu0 0.0
        %4915 = vmatprep.subr.mxu0 0.0
        %4916 = vmatpush1.msra.mxu0 0.0
        %4917 = vmatprep.subr.mxu0 0.0
        %4918 = vmatpush1.msra.mxu0 0.0
        %4919 = vmatprep.subr.mxu0 0.0
        %4920 = vmatpush1.msra.mxu0 0.0
        %4921 = vmatprep.subr.mxu0 0.0
        %4922 = vmatpush1.msra.mxu0 0.0
        %4923 = vmatprep.subr.mxu0 0.0
        %4924 = vmatpush1.msra.mxu0 0.0
        %4925 = vmatprep.subr.mxu0 0.0
        %4926 = vmatpush1.msra.mxu0 0.0
        %4927 = vmatprep.subr.mxu0 0.0
        %4928 = vmatpush1.msra.mxu0 0.0
        %4929 = vmatprep.subr.mxu0 0.0
        %4930 = vmatpush1.msra.mxu0 %v4891
        %4931 = vmatprep.subr.mxu0 0.0
        %4932 = vmatpush1.msra.mxu0 %v4890
        %4933 = vmatprep.subr.mxu0 0.0
        %4934 = vmatpush1.msra.mxu0 %v4889
        %4935 = vmatprep.subr.mxu0 0.0
        %4936 = vmatpush1.msra.mxu0 %v4888
        %4937 = vmatprep.subr.mxu0 0.0
        %4938 = vmatpush2.msra.mxu0 0.0
        %4939 = vmatprep.subr.mxu0 0.0
        %4940 = vmatpush2.msra.mxu0 0.0
        %4941 = vmatprep.subr.mxu0 0.0
        %4942 = vmatpush2.msra.mxu0 0.0
        %4943 = vmatprep.subr.mxu0 0.0
        %4944 = vmatpush2.msra.mxu0 0.0
        %4945 = vmatprep.subr.mxu0 0.0
        %4946 = vmatpush2.msra.mxu0 0.0
        %4947 = vmatprep.subr.mxu0 0.0
        %4948 = vmatpush2.msra.mxu0 0.0
        %4949 = vmatprep.subr.mxu0 0.0
        %4950 = vmatpush2.msra.mxu0 0.0
        %4951 = vmatprep.subr.mxu0 0.0
        %4952 = vmatpush2.msra.mxu0 0.0
        %4953 = vmatprep.subr.mxu0 0.0
        %4954 = vmatpush2.msra.mxu0 0.0
        %4955 = vmatprep.subr.mxu0 0.0
        %4956 = vmatpush2.msra.mxu0 0.0
        %4957 = vmatprep.subr.mxu0 0.0
        %4958 = vmatpush2.msra.mxu0 0.0
        %4959 = vmatprep.subr.mxu0 0.0
        %4960 = vmatpush2.msra.mxu0 0.0
        %4961 = vmatprep.subr.mxu0 0.0
        %4962 = vmatpush2.msra.mxu0 0.0
        %4963 = vmatprep.subr.mxu0 0.0
        %4964 = vmatpush2.msra.mxu0 0.0
        %4965 = vmatprep.subr.mxu0 0.0
        %4966 = vmatpush2.msra.mxu0 0.0
        %4967 = vmatprep.subr.mxu0 0.0
        %4968 = vmatpush2.msra.mxu0 0.0
        %4969 = vmatprep.mubr.f32.mxu0 0.0
        %4970 = vmatmul.mubr.f32.gmra.mxu0 %v4900
        %v4971 = vpop.f32.mrf.mxu0
        %v4972 = vadd.f32 %v4897, %v4971
        %v4973 = vpop.f32.mrf.mxu0
        %4974 = vmatprep.mubr.f32.mxu0 0.0
        %4975 = vmatmul.mubr.f32.gmra.mxu0 %v4903
        %v4976 = vpop.f32.mrf.mxu0
        %v4977 = vadd.f32 %v4897, %v4976
        %v4978 = vpop.f32.mrf.mxu0
        %4979 = vdwg.mxu0
        %v4980 = vadd.f32 %v4972, %v4192
        %v4981 = vadd.f32 %v4977, %v4193
        %v4982 = vld [vmem:[%s2806] sm:$0x1]
        %v4983 = vld [vmem:[%s2808] sm:$0x1]
        %v4984 = vsel %vm990, %v4980, 0.0
        %4985 = vadd.xlane.f32.xlu0 %v4984
        %v4986 = vpop.xlane.xlu0 %4985
        %v4987 = vsel %vm990, %v4981, 0.0
        %4988 = vadd.xlane.f32.xlu0 %v4987
        %v4989 = vpop.xlane.xlu0 %4988
        %v4990 = vmul.f32 %v4986, %v1160
        %v4991 = vmul.f32 %v4989, %v1160
        %v4992 = vsub.f32 %v4980, %v4990
        %v4993 = vsub.f32 %v4981, %v4991
        %v4994 = vmul.f32 %v4992, %v4992
        %v4995 = vmul.f32 %v4993, %v4993
        %v4996 = vsel %vm990, %v4994, 0.0
        %4997 = vadd.xlane.f32.xlu0 %v4996
        %v4998 = vpop.xlane.xlu0 %4997
        %v4999 = vsel %vm990, %v4995, 0.0
        %5000 = vadd.xlane.f32.xlu0 %v4999
        %v5001 = vpop.xlane.xlu0 %5000
        %v5002 = vmul.f32 %v4998, 0.032258064
        %v5003 = vmul.f32 %v5001, 0.032258064
        %v5004 = vrsqrt.pop %v5002
        %v5005 = vmul.f32 %v5002, %v5004
        %vm5006 = vcmp.eq.f32.partialorder %v5002, inf
        %v5007 = vsel %vm5006, %v5002, %v5005
        %vm5008 = vcmp.eq.f32.partialorder %v5002, 0.0
        %v5009 = vand.u32 %v5002, 2147483648
        %v5010 = vsel %vm5008, %v5009, %v5007
        %v5011 = vrsqrt.pop %v5003
        %v5012 = vmul.f32 %v5003, %v5011
        %vm5013 = vcmp.eq.f32.partialorder %v5003, inf
        %v5014 = vsel %vm5013, %v5003, %v5012
        %vm5015 = vcmp.eq.f32.partialorder %v5003, 0.0
        %v5016 = vand.u32 %v5003, 2147483648
        %v5017 = vsel %vm5015, %v5016, %v5014
        %v5018 = vadd.f32 %v5010, 1e-06
        %v5019 = vadd.f32 %v5017, 1e-06
        %v5020 = vrcp.pop %v5018
        %v5021 = vrcp.pop %v5019
        %v5023 = vlaneseq
        %v5024 = vshrl.u32 %v5023, 7
        %v5025 = vsub.s32 0, %v5024
        %v5026 = vrot.slane %v4982, %v5025
        %v5028 = vmul.f32 %v5026, %v4992
        %v5029 = vmul.f32 %v5026, %v4993
        %v5030 = vmul.f32 %v5028, %v5020
        %v5031 = vmul.f32 %v5029, %v5021
        %v5033 = vlaneseq
        %v5034 = vshrl.u32 %v5033, 7
        %v5035 = vsub.s32 0, %v5034
        %v5036 = vrot.slane %v4983, %v5035
        %v5038 = vadd.f32 %v5030, %v5036
        %v5039 = vadd.f32 %v5031, %v5036
        %v5040 = vstv %s955
        %v5041 = vmul.f32 %v5040, %v957
        %s5042 = ssub.f32 1.0, %s955
        %v5043 = vstv %s5042
        %v5044 = vmul.f32 %v5043, %v2843
        %v5045 = vadd.f32 %v5041, %v5044
        %5047 = vset.pattern.permute.xlu0 0
        %5048 = vperm.xlu0 %5047, %v960
        %v5049 = vpop.permute.xlu0 %5048
        %v5051 = vmul.f32 %v5045, %v5049
        %v5052 = vmul.f32 %v5040, %v958
        %v5053 = vmul.f32 %v5040, %v959
        %v5054 = vmul.f32 %v5043, %v5038
        %v5055 = vmul.f32 %v5043, %v5039
        %v5056 = vadd.f32 %v5052, %v5054
        %v5057 = vadd.f32 %v5053, %v5055
        %5059 = vset.pattern.permute.xlu0 0
        %5060 = vperm.xlu0 %5059, %v962
        %v5061 = vpop.permute.xlu0 %5060
        %5064 = vset.pattern.permute.xlu0 0
        %5065 = vperm.xlu0 %5064, %v963
        %v5066 = vpop.permute.xlu0 %5065
        %v5068 = vmul.f32 %v5056, %v5061
        %v5069 = vmul.f32 %v5057, %v5066
        %v5070 = vmul.f32 %v5051, %v5051
        %v5071 = vsel %vm990, %v5070, 0.0
        %5072 = vadd.xlane.f32.xlu0 %v5071
        %v5073 = vpop.xlane.xlu0 %5072
        %v5074 = vrsqrt.pop %v5073
        %v5075 = vmul.f32 %v5073, %v5074
        %vm5076 = vcmp.eq.f32.partialorder %v5073, inf
        %v5077 = vsel %vm5076, %v5073, %v5075
        %vm5078 = vcmp.eq.f32.partialorder %v5073, 0.0
        %v5079 = vand.u32 %v5073, 2147483648
        %v5080 = vsel %vm5078, %v5079, %v5077
        %v5081 = vadd.f32 %v5080, 1e-13
        %v5082 = vrcp.pop %v5081
        %v5083 = vmul.f32 %v5051, %v5082
        %v5084 = vmul.f32 %v5068, %v5068
        %v5085 = vmul.f32 %v5069, %v5069
        %v5086 = vsel %vm990, %v5084, 0.0
        %5087 = vadd.xlane.f32.xlu0 %v5086
        %v5088 = vpop.xlane.xlu0 %5087
        %v5089 = vsel %vm990, %v5085, 0.0
        %5090 = vadd.xlane.f32.xlu0 %v5089
        %v5091 = vpop.xlane.xlu0 %5090
        %v5092 = vrsqrt.pop %v5088
        %v5093 = vmul.f32 %v5088, %v5092
        %vm5094 = vcmp.eq.f32.partialorder %v5088, inf
        %v5095 = vsel %vm5094, %v5088, %v5093
        %vm5096 = vcmp.eq.f32.partialorder %v5088, 0.0
        %v5097 = vand.u32 %v5088, 2147483648
        %v5098 = vsel %vm5096, %v5097, %v5095
        %v5099 = vrsqrt.pop %v5091
        %v5100 = vmul.f32 %v5091, %v5099
        %vm5101 = vcmp.eq.f32.partialorder %v5091, inf
        %v5102 = vsel %vm5101, %v5091, %v5100
        %vm5103 = vcmp.eq.f32.partialorder %v5091, 0.0
        %v5104 = vand.u32 %v5091, 2147483648
        %v5105 = vsel %vm5103, %v5104, %v5102
        %v5106 = vadd.f32 %v5098, 1e-13
        %v5107 = vadd.f32 %v5105, 1e-13
        %v5108 = vrcp.pop %v5106
        %v5109 = vmul.f32 %v5068, %v5108
        %v5110 = vrcp.pop %v5107
        %v5111 = vmul.f32 %v5069, %v5110
        %v5113 = vsel %vm990, %v5083, 0
        %v5116 = vsel %vm990, %v5109, 0
        %v5119 = vsel %vm990, %v5111, 0
        %5121 = vmatprep.subr.mxu0 0.0
        %5122 = vmatpush1.xpose.msra.mxu0 0.0
        %5123 = vmatprep.subr.mxu0 0.0
        %5124 = vmatpush1.xpose.msra.mxu0 0.0
        %5125 = vmatprep.subr.mxu0 0.0
        %5126 = vmatpush1.xpose.msra.mxu0 0.0
        %5127 = vmatprep.subr.mxu0 0.0
        %5128 = vmatpush1.xpose.msra.mxu0 0.0
        %5129 = vmatprep.subr.mxu0 0.0
        %5130 = vmatpush1.xpose.msra.mxu0 0.0
        %5131 = vmatprep.subr.mxu0 0.0
        %5132 = vmatpush1.xpose.msra.mxu0 0.0
        %5133 = vmatprep.subr.mxu0 0.0
        %5134 = vmatpush1.xpose.msra.mxu0 0.0
        %5135 = vmatprep.subr.mxu0 0.0
        %5136 = vmatpush1.xpose.msra.mxu0 0.0
        %5137 = vmatprep.subr.mxu0 0.0
        %5138 = vmatpush1.xpose.msra.mxu0 0.0
        %5139 = vmatprep.subr.mxu0 0.0
        %5140 = vmatpush1.xpose.msra.mxu0 0.0
        %5141 = vmatprep.subr.mxu0 0.0
        %5142 = vmatpush1.xpose.msra.mxu0 0.0
        %5143 = vmatprep.subr.mxu0 0.0
        %5144 = vmatpush1.xpose.msra.mxu0 0.0
        %5145 = vmatprep.subr.mxu0 0.0
        %5146 = vmatpush1.xpose.msra.mxu0 0.0
        %5147 = vmatprep.subr.mxu0 0.0
        %5148 = vmatpush1.xpose.msra.mxu0 0.0
        %5149 = vmatprep.subr.mxu0 0.0
        %5150 = vmatpush1.xpose.msra.mxu0 %v5119
        %5151 = vmatprep.subr.mxu0 0.0
        %5152 = vmatpush1.xpose.msra.mxu0 %v5116
        %5153 = vmatprep.subr.mxu0 0.0
        %5154 = vmatpush2.xpose.msra.mxu0 0.0
        %5155 = vmatprep.subr.mxu0 0.0
        %5156 = vmatpush2.xpose.msra.mxu0 0.0
        %5157 = vmatprep.subr.mxu0 0.0
        %5158 = vmatpush2.xpose.msra.mxu0 0.0
        %5159 = vmatprep.subr.mxu0 0.0
        %5160 = vmatpush2.xpose.msra.mxu0 0.0
        %5161 = vmatprep.subr.mxu0 0.0
        %5162 = vmatpush2.xpose.msra.mxu0 0.0
        %5163 = vmatprep.subr.mxu0 0.0
        %5164 = vmatpush2.xpose.msra.mxu0 0.0
        %5165 = vmatprep.subr.mxu0 0.0
        %5166 = vmatpush2.xpose.msra.mxu0 0.0
        %5167 = vmatprep.subr.mxu0 0.0
        %5168 = vmatpush2.xpose.msra.mxu0 0.0
        %5169 = vmatprep.subr.mxu0 0.0
        %5170 = vmatpush2.xpose.msra.mxu0 0.0
        %5171 = vmatprep.subr.mxu0 0.0
        %5172 = vmatpush2.xpose.msra.mxu0 0.0
        %5173 = vmatprep.subr.mxu0 0.0
        %5174 = vmatpush2.xpose.msra.mxu0 0.0
        %5175 = vmatprep.subr.mxu0 0.0
        %5176 = vmatpush2.xpose.msra.mxu0 0.0
        %5177 = vmatprep.subr.mxu0 0.0
        %5178 = vmatpush2.xpose.msra.mxu0 0.0
        %5179 = vmatprep.subr.mxu0 0.0
        %5180 = vmatpush2.xpose.msra.mxu0 0.0
        %5181 = vmatprep.subr.mxu0 0.0
        %5182 = vmatpush2.xpose.msra.mxu0 0.0
        %5183 = vmatprep.subr.mxu0 0.0
        %5184 = vmatpush2.xpose.msra.mxu0 0.0
        %5185 = vmatprep.mubr.f32.mxu0 0.0
        %5186 = vmatmul.mubr.f32.gmra.mxu0 %v5113
        %v5187 = vpop.f32.mrf.mxu0
        %v5188 = vadd.f32 0.0, %v5187
        %v5189 = vpop.f32.mrf.mxu0
        %5190 = vdwg.mxu0
        %v5191 = vmul.f32 %v5049, %v975
        %v5192 = vmul.f32 %v5188, %v5191
        %v5193 = vld [vmem:[%s8] sm:$0xff]
        %v5194 = vld [vmem:[%s8 + $0x8] sm:$0x7]
        %v5197 = vcombine.high %v5193, %v5193
        %v5199 = vunpack.c.l.s4 1966171168
        %v5200 = vunpack.c.0.s8 %v5199
        %v5201 = vlaneseq
        %v5202 = vshrl.u32 %v5201, 7
        %v5203 = vsub.s32 %v5200, %v5202
        %v5204 = vrot.slane %v5193, %v5203
        %v5206 = vunpack.c.l.s4 1966171168
        %v5207 = vunpack.c.0.s8 %v5206
        %v5208 = vlaneseq
        %v5209 = vshrl.u32 %v5208, 7
        %v5210 = vsub.s32 %v5207, %v5209
        %v5211 = vrot.slane %v5197, %v5210
        %v5212 = vcombine.high %v5204, %v5204
        %v5213 = vcombine.high %v5211, %v5211
        %v5215 = vunpack.c.l.s4 1966171168
        %v5216 = vunpack.c.0.s8 %v5215
        %v5217 = vlaneseq
        %v5218 = vshrl.u32 %v5217, 7
        %v5219 = vsub.s32 %v5216, %v5218
        %v5220 = vrot.slane %v5204, %v5219
        %v5222 = vunpack.c.l.s4 1966171168
        %v5223 = vunpack.c.0.s8 %v5222
        %v5224 = vlaneseq
        %v5225 = vshrl.u32 %v5224, 7
        %v5226 = vsub.s32 %v5223, %v5225
        %v5227 = vrot.slane %v5211, %v5226
        %v5229 = vunpack.c.l.s4 1966171168
        %v5230 = vunpack.c.0.s8 %v5229
        %v5231 = vlaneseq
        %v5232 = vshrl.u32 %v5231, 7
        %v5233 = vsub.s32 %v5230, %v5232
        %v5234 = vrot.slane %v5212, %v5233
        %v5236 = vunpack.c.l.s4 1966171168
        %v5237 = vunpack.c.0.s8 %v5236
        %v5238 = vlaneseq
        %v5239 = vshrl.u32 %v5238, 7
        %v5240 = vsub.s32 %v5237, %v5239
        %v5241 = vrot.slane %v5213, %v5240
        %v5242 = vcombine.high %v5220, %v5220
        %v5243 = vcombine.high %v5227, %v5227
        %v5244 = vcombine.high %v5234, %v5234
        %v5245 = vcombine.high %v5241, %v5241
        %v5247 = vunpack.c.l.s4 1966171168
        %v5248 = vunpack.c.0.s8 %v5247
        %v5249 = vlaneseq
        %v5250 = vshrl.u32 %v5249, 7
        %v5251 = vsub.s32 %v5248, %v5250
        %v5252 = vrot.slane %v5194, %v5251
        %v5253 = vcombine.high %v5252, %v5252
        %v5255 = vunpack.c.l.s4 1966171168
        %v5256 = vunpack.c.0.s8 %v5255
        %v5257 = vlaneseq
        %v5258 = vshrl.u32 %v5257, 7
        %v5259 = vsub.s32 %v5256, %v5258
        %v5260 = vrot.slane %v5252, %v5259
        %v5262 = vunpack.c.l.s4 1966171168
        %v5263 = vunpack.c.0.s8 %v5262
        %v5264 = vlaneseq
        %v5265 = vshrl.u32 %v5264, 7
        %v5266 = vsub.s32 %v5263, %v5265
        %v5267 = vrot.slane %v5253, %v5266
        %v5268 = vcombine.high %v5260, %v5260
        %v5269 = vld [vmem:[%s9] sm:$0xff]
        %v5270 = vld [vmem:[%s9 + $0x8] sm:$0x7]
        %v5273 = vcombine.high %v5269, %v5269
        %v5275 = vunpack.c.l.s4 1966171168
        %v5276 = vunpack.c.0.s8 %v5275
        %v5277 = vlaneseq
        %v5278 = vshrl.u32 %v5277, 7
        %v5279 = vsub.s32 %v5276, %v5278
        %v5280 = vrot.slane %v5269, %v5279
        %v5282 = vunpack.c.l.s4 1966171168
        %v5283 = vunpack.c.0.s8 %v5282
        %v5284 = vlaneseq
        %v5285 = vshrl.u32 %v5284, 7
        %v5286 = vsub.s32 %v5283, %v5285
        %v5287 = vrot.slane %v5273, %v5286
        %v5288 = vcombine.high %v5280, %v5280
        %v5289 = vcombine.high %v5287, %v5287
        %v5291 = vunpack.c.l.s4 1966171168
        %v5292 = vunpack.c.0.s8 %v5291
        %v5293 = vlaneseq
        %v5294 = vshrl.u32 %v5293, 7
        %v5295 = vsub.s32 %v5292, %v5294
        %v5296 = vrot.slane %v5280, %v5295
        %v5298 = vunpack.c.l.s4 1966171168
        %v5299 = vunpack.c.0.s8 %v5298
        %v5300 = vlaneseq
        %v5301 = vshrl.u32 %v5300, 7
        %v5302 = vsub.s32 %v5299, %v5301
        %v5303 = vrot.slane %v5287, %v5302
        %v5305 = vunpack.c.l.s4 1966171168
        %v5306 = vunpack.c.0.s8 %v5305
        %v5307 = vlaneseq
        %v5308 = vshrl.u32 %v5307, 7
        %v5309 = vsub.s32 %v5306, %v5308
        %v5310 = vrot.slane %v5288, %v5309
        %v5312 = vunpack.c.l.s4 1966171168
        %v5313 = vunpack.c.0.s8 %v5312
        %v5314 = vlaneseq
        %v5315 = vshrl.u32 %v5314, 7
        %v5316 = vsub.s32 %v5313, %v5315
        %v5317 = vrot.slane %v5289, %v5316
        %v5318 = vcombine.high %v5296, %v5296
        %v5319 = vcombine.high %v5303, %v5303
        %v5320 = vcombine.high %v5310, %v5310
        %v5321 = vcombine.high %v5317, %v5317
        %v5323 = vunpack.c.l.s4 1966171168
        %v5324 = vunpack.c.0.s8 %v5323
        %v5325 = vlaneseq
        %v5326 = vshrl.u32 %v5325, 7
        %v5327 = vsub.s32 %v5324, %v5326
        %v5328 = vrot.slane %v5270, %v5327
        %v5329 = vcombine.high %v5328, %v5328
        %v5331 = vunpack.c.l.s4 1966171168
        %v5332 = vunpack.c.0.s8 %v5331
        %v5333 = vlaneseq
        %v5334 = vshrl.u32 %v5333, 7
        %v5335 = vsub.s32 %v5332, %v5334
        %v5336 = vrot.slane %v5328, %v5335
        %v5338 = vunpack.c.l.s4 1966171168
        %v5339 = vunpack.c.0.s8 %v5338
        %v5340 = vlaneseq
        %v5341 = vshrl.u32 %v5340, 7
        %v5342 = vsub.s32 %v5339, %v5341
        %v5343 = vrot.slane %v5329, %v5342
        %v5344 = vcombine.high %v5336, %v5336
        %v5345 = vlaneseq
        %v5346 = vshrl.u32 %v5345, 7
        %v5347 = vsub.s32 0, %v5346
        %v5348 = vrot.slane %v5220, %v5347
        %v5349 = vlaneseq
        %v5350 = vshrl.u32 %v5349, 7
        %v5351 = vsub.s32 0, %v5350
        %v5352 = vrot.slane %v5234, %v5351
        %v5353 = vlaneseq
        %v5354 = vshrl.u32 %v5353, 7
        %v5355 = vsub.s32 0, %v5354
        %v5356 = vrot.slane %v5242, %v5355
        %v5357 = vlaneseq
        %v5358 = vshrl.u32 %v5357, 7
        %v5359 = vsub.s32 0, %v5358
        %v5360 = vrot.slane %v5244, %v5359
        %v5361 = vlaneseq
        %v5362 = vshrl.u32 %v5361, 7
        %v5363 = vsub.s32 0, %v5362
        %v5364 = vrot.slane %v5227, %v5363
        %v5365 = vlaneseq
        %v5366 = vshrl.u32 %v5365, 7
        %v5367 = vsub.s32 0, %v5366
        %v5368 = vrot.slane %v5241, %v5367
        %v5369 = vlaneseq
        %v5370 = vshrl.u32 %v5369, 7
        %v5371 = vsub.s32 0, %v5370
        %v5372 = vrot.slane %v5243, %v5371
        %v5373 = vlaneseq
        %v5374 = vshrl.u32 %v5373, 7
        %v5375 = vsub.s32 0, %v5374
        %v5376 = vrot.slane %v5245, %v5375
        %v5377 = vlaneseq
        %v5378 = vshrl.u32 %v5377, 7
        %v5379 = vsub.s32 0, %v5378
        %v5380 = vrot.slane %v5260, %v5379
        %v5381 = vlaneseq
        %v5382 = vshrl.u32 %v5381, 7
        %v5383 = vsub.s32 0, %v5382
        %v5384 = vrot.slane %v5267, %v5383
        %v5385 = vlaneseq
        %v5386 = vshrl.u32 %v5385, 7
        %v5387 = vsub.s32 0, %v5386
        %v5388 = vrot.slane %v5268, %v5387
        %5389 = vset.pattern.permute.xlu0 0
        %5390 = vperm.xlu0 %5389, %v5348
        %v5391 = vpop.permute.xlu0 %5390
        %5393 = vset.pattern.permute.xlu0 0
        %5394 = vperm.xlu0 %5393, %v5352
        %v5395 = vpop.permute.xlu0 %5394
        %5397 = vset.pattern.permute.xlu0 0
        %5398 = vperm.xlu0 %5397, %v5356
        %v5399 = vpop.permute.xlu0 %5398
        %5401 = vset.pattern.permute.xlu0 0
        %5402 = vperm.xlu0 %5401, %v5360
        %v5403 = vpop.permute.xlu0 %5402
        %5405 = vset.pattern.permute.xlu0 0
        %5406 = vperm.xlu0 %5405, %v5364
        %v5407 = vpop.permute.xlu0 %5406
        %5409 = vset.pattern.permute.xlu0 0
        %5410 = vperm.xlu0 %5409, %v5368
        %v5411 = vpop.permute.xlu0 %5410
        %5413 = vset.pattern.permute.xlu0 0
        %5414 = vperm.xlu0 %5413, %v5372
        %v5415 = vpop.permute.xlu0 %5414
        %5417 = vset.pattern.permute.xlu0 0
        %5418 = vperm.xlu0 %5417, %v5376
        %v5419 = vpop.permute.xlu0 %5418
        %5421 = vset.pattern.permute.xlu0 0
        %5422 = vperm.xlu0 %5421, %v5380
        %v5423 = vpop.permute.xlu0 %5422
        %5425 = vset.pattern.permute.xlu0 0
        %5426 = vperm.xlu0 %5425, %v5384
        %v5427 = vpop.permute.xlu0 %5426
        %5429 = vset.pattern.permute.xlu0 0
        %5430 = vperm.xlu0 %5429, %v5388
        %v5431 = vpop.permute.xlu0 %5430
        %v5433 = vsub.f32 %v5192, %v5391
        %v5434 = vsub.f32 %v5192, %v5395
        %v5435 = vsub.f32 %v5192, %v5399
        %v5436 = vsub.f32 %v5192, %v5403
        %v5437 = vsub.f32 %v5192, %v5407
        %v5438 = vsub.f32 %v5192, %v5411
        %v5439 = vsub.f32 %v5192, %v5415
        %v5440 = vsub.f32 %v5192, %v5419
        %v5441 = vsub.f32 %v5192, %v5423
        %v5442 = vsub.f32 %v5192, %v5427
        %v5443 = vsub.f32 %v5192, %v5431
        %v5444 = vmul.f32 %v5433, %v5433
        %v5445 = vmul.f32 %v5434, %v5434
        %v5446 = vmul.f32 %v5435, %v5435
        %v5447 = vmul.f32 %v5436, %v5436
        %v5448 = vmul.f32 %v5437, %v5437
        %v5449 = vmul.f32 %v5438, %v5438
        %v5450 = vmul.f32 %v5439, %v5439
        %v5451 = vmul.f32 %v5440, %v5440
        %v5452 = vmul.f32 %v5441, %v5441
        %v5453 = vmul.f32 %v5442, %v5442
        %v5454 = vmul.f32 %v5443, %v5443
        %v5455 = vsub.f32 0.0, %v5444
        %v5456 = vsub.f32 0.0, %v5445
        %v5457 = vsub.f32 0.0, %v5446
        %v5458 = vsub.f32 0.0, %v5447
        %v5459 = vsub.f32 0.0, %v5448
        %v5460 = vsub.f32 0.0, %v5449
        %v5461 = vsub.f32 0.0, %v5450
        %v5462 = vsub.f32 0.0, %v5451
        %v5463 = vsub.f32 0.0, %v5452
        %v5464 = vsub.f32 0.0, %v5453
        %v5465 = vsub.f32 0.0, %v5454
        %v5466 = vlaneseq
        %v5467 = vshrl.u32 %v5466, 7
        %v5468 = vsub.s32 0, %v5467
        %v5469 = vrot.slane %v5296, %v5468
        %v5470 = vlaneseq
        %v5471 = vshrl.u32 %v5470, 7
        %v5472 = vsub.s32 0, %v5471
        %v5473 = vrot.slane %v5310, %v5472
        %v5474 = vlaneseq
        %v5475 = vshrl.u32 %v5474, 7
        %v5476 = vsub.s32 0, %v5475
        %v5477 = vrot.slane %v5318, %v5476
        %v5478 = vlaneseq
        %v5479 = vshrl.u32 %v5478, 7
        %v5480 = vsub.s32 0, %v5479
        %v5481 = vrot.slane %v5320, %v5480
        %v5482 = vlaneseq
        %v5483 = vshrl.u32 %v5482, 7
        %v5484 = vsub.s32 0, %v5483
        %v5485 = vrot.slane %v5303, %v5484
        %v5486 = vlaneseq
        %v5487 = vshrl.u32 %v5486, 7
        %v5488 = vsub.s32 0, %v5487
        %v5489 = vrot.slane %v5317, %v5488
        %v5490 = vlaneseq
        %v5491 = vshrl.u32 %v5490, 7
        %v5492 = vsub.s32 0, %v5491
        %v5493 = vrot.slane %v5319, %v5492
        %v5494 = vlaneseq
        %v5495 = vshrl.u32 %v5494, 7
        %v5496 = vsub.s32 0, %v5495
        %v5497 = vrot.slane %v5321, %v5496
        %v5498 = vlaneseq
        %v5499 = vshrl.u32 %v5498, 7
        %v5500 = vsub.s32 0, %v5499
        %v5501 = vrot.slane %v5336, %v5500
        %v5502 = vlaneseq
        %v5503 = vshrl.u32 %v5502, 7
        %v5504 = vsub.s32 0, %v5503
        %v5505 = vrot.slane %v5343, %v5504
        %v5506 = vlaneseq
        %v5507 = vshrl.u32 %v5506, 7
        %v5508 = vsub.s32 0, %v5507
        %v5509 = vrot.slane %v5344, %v5508
        %5510 = vset.pattern.permute.xlu0 0
        %5511 = vperm.xlu0 %5510, %v5469
        %v5512 = vpop.permute.xlu0 %5511
        %5514 = vset.pattern.permute.xlu0 0
        %5515 = vperm.xlu0 %5514, %v5473
        %v5516 = vpop.permute.xlu0 %5515
        %5518 = vset.pattern.permute.xlu0 0
        %5519 = vperm.xlu0 %5518, %v5477
        %v5520 = vpop.permute.xlu0 %5519
        %5522 = vset.pattern.permute.xlu0 0
        %5523 = vperm.xlu0 %5522, %v5481
        %v5524 = vpop.permute.xlu0 %5523
        %5526 = vset.pattern.permute.xlu0 0
        %5527 = vperm.xlu0 %5526, %v5485
        %v5528 = vpop.permute.xlu0 %5527
        %5530 = vset.pattern.permute.xlu0 0
        %5531 = vperm.xlu0 %5530, %v5489
        %v5532 = vpop.permute.xlu0 %5531
        %5534 = vset.pattern.permute.xlu0 0
        %5535 = vperm.xlu0 %5534, %v5493
        %v5536 = vpop.permute.xlu0 %5535
        %5538 = vset.pattern.permute.xlu0 0
        %5539 = vperm.xlu0 %5538, %v5497
        %v5540 = vpop.permute.xlu0 %5539
        %5542 = vset.pattern.permute.xlu0 0
        %5543 = vperm.xlu0 %5542, %v5501
        %v5544 = vpop.permute.xlu0 %5543
        %5546 = vset.pattern.permute.xlu0 0
        %5547 = vperm.xlu0 %5546, %v5505
        %v5548 = vpop.permute.xlu0 %5547
        %5550 = vset.pattern.permute.xlu0 0
        %5551 = vperm.xlu0 %5550, %v5509
        %v5552 = vpop.permute.xlu0 %5551
        %v5554 = vmul.f32 %v5455, %v5512
        %v5555 = vmul.f32 %v5456, %v5516
        %v5556 = vmul.f32 %v5457, %v5520
        %v5557 = vmul.f32 %v5458, %v5524
        %v5558 = vmul.f32 %v5459, %v5528
        %v5559 = vmul.f32 %v5460, %v5532
        %v5560 = vmul.f32 %v5461, %v5536
        %v5561 = vmul.f32 %v5462, %v5540
        %v5562 = vmul.f32 %v5463, %v5544
        %v5563 = vmul.f32 %v5464, %v5548
        %v5564 = vmul.f32 %v5465, %v5552
        %v5565 = vmul.f32 %v5554, 1.442695
        %v5566 = vpow.pop %v5565
        %v5567 = vmul.f32 %v5555, 1.442695
        %v5568 = vpow.pop %v5567
        %v5569 = vmul.f32 %v5556, 1.442695
        %v5570 = vpow.pop %v5569
        %v5571 = vmul.f32 %v5557, 1.442695
        %v5572 = vpow.pop %v5571
        %v5573 = vmul.f32 %v5558, 1.442695
        %v5574 = vpow.pop %v5573
        %v5575 = vmul.f32 %v5559, 1.442695
        %v5576 = vpow.pop %v5575
        %v5577 = vmul.f32 %v5560, 1.442695
        %v5578 = vpow.pop %v5577
        %v5579 = vmul.f32 %v5561, 1.442695
        %v5580 = vpow.pop %v5579
        %v5581 = vmul.f32 %v5562, 1.442695
        %v5582 = vpow.pop %v5581
        %v5583 = vmul.f32 %v5563, 1.442695
        %v5584 = vpow.pop %v5583
        %v5585 = vmul.f32 %v5564, 1.442695
        %v5586 = vpow.pop %v5585
        %v5587 = vmul.f32 %v5566, %v5191
        %v5588 = vmul.f32 %v5568, %v5191
        %v5589 = vmul.f32 %v5570, %v5191
        %v5590 = vmul.f32 %v5572, %v5191
        %v5591 = vmul.f32 %v5574, %v5191
        %v5592 = vmul.f32 %v5576, %v5191
        %v5593 = vmul.f32 %v5578, %v5191
        %v5594 = vmul.f32 %v5580, %v5191
        %v5595 = vmul.f32 %v5582, %v5191
        %v5596 = vmul.f32 %v5584, %v5191
        %v5597 = vmul.f32 %v5586, %v5191
        %v5598 = vsel %vm1438, %v5587, 0.0
        %5599 = vadd.xlane.f32.xlu0 %v5598
        %v5600 = vpop.xlane.xlu0 %5599
        %v5601 = vsel %vm1438, %v5588, 0.0
        %5602 = vadd.xlane.f32.xlu0 %v5601
        %v5603 = vpop.xlane.xlu0 %5602
        %v5604 = vsel %vm1438, %v5589, 0.0
        %5605 = vadd.xlane.f32.xlu0 %v5604
        %v5606 = vpop.xlane.xlu0 %5605
        %v5607 = vsel %vm1438, %v5590, 0.0
        %5608 = vadd.xlane.f32.xlu0 %v5607
        %v5609 = vpop.xlane.xlu0 %5608
        %v5610 = vsel %vm1438, %v5591, 0.0
        %5611 = vadd.xlane.f32.xlu0 %v5610
        %v5612 = vpop.xlane.xlu0 %5611
        %v5613 = vsel %vm1438, %v5592, 0.0
        %5614 = vadd.xlane.f32.xlu0 %v5613
        %v5615 = vpop.xlane.xlu0 %5614
        %v5616 = vsel %vm1438, %v5593, 0.0
        %5617 = vadd.xlane.f32.xlu0 %v5616
        %v5618 = vpop.xlane.xlu0 %5617
        %v5619 = vsel %vm1438, %v5594, 0.0
        %5620 = vadd.xlane.f32.xlu0 %v5619
        %v5621 = vpop.xlane.xlu0 %5620
        %v5622 = vsel %vm1438, %v5595, 0.0
        %5623 = vadd.xlane.f32.xlu0 %v5622
        %v5624 = vpop.xlane.xlu0 %5623
        %v5625 = vsel %vm1438, %v5596, 0.0
        %5626 = vadd.xlane.f32.xlu0 %v5625
        %v5627 = vpop.xlane.xlu0 %5626
        %v5628 = vsel %vm1438, %v5597, 0.0
        %5629 = vadd.xlane.f32.xlu0 %v5628
        %v5630 = vpop.xlane.xlu0 %5629
        %v5631 = vmax.f32 %v5600, 1e-10
        %v5632 = vmax.f32 %v5603, 1e-10
        %v5633 = vmax.f32 %v5606, 1e-10
        %v5634 = vmax.f32 %v5609, 1e-10
        %v5635 = vmax.f32 %v5612, 1e-10
        %v5636 = vmax.f32 %v5615, 1e-10
        %v5637 = vmax.f32 %v5618, 1e-10
        %v5638 = vmax.f32 %v5621, 1e-10
        %v5639 = vmax.f32 %v5624, 1e-10
        %v5640 = vmax.f32 %v5627, 1e-10
        %v5641 = vmax.f32 %v5630, 1e-10
        %v5642 = vlog2.pop %v5631
        %v5643 = vmul.f32 %v5642, 0.6931472
        %v5644 = vlog2.pop %v5632
        %v5645 = vmul.f32 %v5644, 0.6931472
        %v5646 = vlog2.pop %v5633
        %v5647 = vmul.f32 %v5646, 0.6931472
        %v5648 = vlog2.pop %v5634
        %v5649 = vmul.f32 %v5648, 0.6931472
        %v5650 = vlog2.pop %v5635
        %v5651 = vmul.f32 %v5650, 0.6931472
        %v5652 = vlog2.pop %v5636
        %v5653 = vmul.f32 %v5652, 0.6931472
        %v5654 = vlog2.pop %v5637
        %v5655 = vmul.f32 %v5654, 0.6931472
        %v5656 = vlog2.pop %v5638
        %v5657 = vmul.f32 %v5656, 0.6931472
        %v5658 = vlog2.pop %v5639
        %v5659 = vmul.f32 %v5658, 0.6931472
        %v5660 = vlog2.pop %v5640
        %v5661 = vmul.f32 %v5660, 0.6931472
        %v5662 = vlog2.pop %v5641
        %v5663 = vmul.f32 %v5662, 0.6931472
        %v5664 = vmul.f32 %v5643, 1.442695
        %v5665 = vmul.f32 %v5645, 1.442695
        %v5666 = vmul.f32 %v5647, 1.442695
        %v5667 = vmul.f32 %v5649, 1.442695
        %v5668 = vmul.f32 %v5651, 1.442695
        %v5669 = vmul.f32 %v5653, 1.442695
        %v5670 = vmul.f32 %v5655, 1.442695
        %v5671 = vmul.f32 %v5657, 1.442695
        %v5672 = vmul.f32 %v5659, 1.442695
        %v5673 = vmul.f32 %v5661, 1.442695
        %v5674 = vmul.f32 %v5663, 1.442695
        %v5675 = vstv %s956
        %v5676 = vmul.f32 %v5664, %v5675
        %v5677 = vmul.f32 %v5665, %v5675
        %v5678 = vmul.f32 %v5666, %v5675
        %v5679 = vmul.f32 %v5667, %v5675
        %v5680 = vmul.f32 %v5668, %v5675
        %v5681 = vmul.f32 %v5669, %v5675
        %v5682 = vmul.f32 %v5670, %v5675
        %v5683 = vmul.f32 %v5671, %v5675
        %v5684 = vmul.f32 %v5672, %v5675
        %v5685 = vmul.f32 %v5673, %v5675
        %v5686 = vmul.f32 %v5674, %v5675
        %5688 = vbcast.lane.b32.xlu0 %v969, 256
        %v5689 = vpop.permute.xlu0 %5688
        %v5691 = vmul.f32 %v5676, %v5689
        %v5692 = vmul.f32 %v5677, %v5689
        %v5693 = vmul.f32 %v5678, %v5689
        %v5694 = vmul.f32 %v5679, %v5689
        %v5695 = vmul.f32 %v5680, %v5689
        %v5696 = vmul.f32 %v5681, %v5689
        %v5697 = vmul.f32 %v5682, %v5689
        %v5698 = vmul.f32 %v5683, %v5689
        %v5699 = vmul.f32 %v5684, %v5689
        %v5700 = vmul.f32 %v5685, %v5689
        %v5701 = vmul.f32 %v5686, %v5689
        %5713 = vset.pattern.permute.xlu0 0
        %5714 = vperm.xlu0 %5713, %v5691
        %v5715 = vpop.permute.xlu0 %5714
        %5716 = vset.pattern.permute.xlu0 0
        %5717 = vperm.xlu0 %5716, %v5692
        %v5718 = vpop.permute.xlu0 %5717
        %5719 = vset.pattern.permute.xlu0 0
        %5720 = vperm.xlu0 %5719, %v5693
        %v5721 = vpop.permute.xlu0 %5720
        %5722 = vset.pattern.permute.xlu0 0
        %5723 = vperm.xlu0 %5722, %v5694
        %v5724 = vpop.permute.xlu0 %5723
        %5725 = vset.pattern.permute.xlu0 0
        %5726 = vperm.xlu0 %5725, %v5695
        %v5727 = vpop.permute.xlu0 %5726
        %5728 = vset.pattern.permute.xlu0 0
        %5729 = vperm.xlu0 %5728, %v5696
        %v5730 = vpop.permute.xlu0 %5729
        %5731 = vset.pattern.permute.xlu0 0
        %5732 = vperm.xlu0 %5731, %v5697
        %v5733 = vpop.permute.xlu0 %5732
        %5734 = vset.pattern.permute.xlu0 0
        %5735 = vperm.xlu0 %5734, %v5698
        %v5736 = vpop.permute.xlu0 %5735
        %5737 = vset.pattern.permute.xlu0 0
        %5738 = vperm.xlu0 %5737, %v5699
        %v5739 = vpop.permute.xlu0 %5738
        %5740 = vset.pattern.permute.xlu0 0
        %5741 = vperm.xlu0 %5740, %v5700
        %v5742 = vpop.permute.xlu0 %5741
        %5743 = vset.pattern.permute.xlu0 0
        %5744 = vperm.xlu0 %5743, %v5701
        %v5745 = vpop.permute.xlu0 %5744
        %v5746 = vlaneseq
        %v5747 = vand.u32 %v5746, 127
        %v5748 = vlaneseq
        %v5749 = vshrl.u32 %v5748, 7
        %v5750 = vsub.s32 %v5747, %v5749
        %v5751 = vrot.slane %v5715, %v5750
        %v5752 = vlaneseq
        %v5753 = vshrl.u32 %v5752, 7
        %v5754 = vsub.s32 %v5747, %v5753
        %v5755 = vrot.slane %v5718, %v5754
        %v5756 = vlaneseq
        %v5757 = vshrl.u32 %v5756, 7
        %v5758 = vsub.s32 %v5747, %v5757
        %v5759 = vrot.slane %v5721, %v5758
        %v5760 = vlaneseq
        %v5761 = vshrl.u32 %v5760, 7
        %v5762 = vsub.s32 %v5747, %v5761
        %v5763 = vrot.slane %v5724, %v5762
        %v5764 = vlaneseq
        %v5765 = vshrl.u32 %v5764, 7
        %v5766 = vsub.s32 %v5747, %v5765
        %v5767 = vrot.slane %v5727, %v5766
        %v5768 = vlaneseq
        %v5769 = vshrl.u32 %v5768, 7
        %v5770 = vsub.s32 %v5747, %v5769
        %v5771 = vrot.slane %v5730, %v5770
        %v5772 = vlaneseq
        %v5773 = vshrl.u32 %v5772, 7
        %v5774 = vsub.s32 %v5747, %v5773
        %v5775 = vrot.slane %v5733, %v5774
        %v5776 = vlaneseq
        %v5777 = vshrl.u32 %v5776, 7
        %v5778 = vsub.s32 %v5747, %v5777
        %v5779 = vrot.slane %v5736, %v5778
        %v5780 = vlaneseq
        %v5781 = vshrl.u32 %v5780, 7
        %v5782 = vsub.s32 %v5747, %v5781
        %v5783 = vrot.slane %v5739, %v5782
        %v5784 = vlaneseq
        %v5785 = vshrl.u32 %v5784, 7
        %v5786 = vsub.s32 %v5747, %v5785
        %v5787 = vrot.slane %v5742, %v5786
        %v5788 = vlaneseq
        %v5789 = vshrl.u32 %v5788, 7
        %v5790 = vsub.s32 %v5747, %v5789
        %v5791 = vrot.slane %v5745, %v5790
        %vm5792 = vcmask 1041409
        %v5793 = vsel %vm5792, %v5755, %v5751
        %vm5794 = vcmask 1042434
        %v5795 = vsel %vm5794, %v5759, %v5793
        %vm5796 = vcmask 1043459
        %v5797 = vsel %vm5796, %v5763, %v5795
        %vm5798 = vcmask 1044484
        %v5799 = vsel %vm5798, %v5767, %v5797
        %vm5800 = vcmask 1045509
        %v5801 = vsel %vm5800, %v5771, %v5799
        %vm5802 = vcmask 1046534
        %v5803 = vsel %vm5802, %v5775, %v5801
        %vm5804 = vcmask 1047559
        %v5805 = vsel %vm5804, %v5779, %v5803
        %v5806 = vsel %vm5792, %v5787, %v5783
        %v5807 = vsel %vm5794, %v5791, %v5806
        %v5810 = vsel %vm1516, %v5805, 0.0
        %5811 = vadd.xlane.f32.xlu0 %v5810
        %v5812 = vpop.xlane.xlu0 %5811
        %vm5813 = vcmask 59392
        %v5814 = vsel %vm5813, %v5807, 0.0
        %5815 = vadd.xlane.f32.xlu0 %v5814
        %v5816 = vpop.xlane.xlu0 %5815
        %vm5817 = vcmask 7168
        %5818 = vst.msk [vmem:[%s949] sm:$0xff] %vm5817, %v5812
        %vm5819 = vcmask 2048
        %5820 = vst.msk [vmem:[%s949 + $0x8] sm:$0x7] %vm5819, %v5816
        %vm5821 = vcmask 122880
        %v5822 = vsel %vm5821, %v964, 0.0
        %5823 = vadd.xlane.f32.xlu0 %v5822
        %v5824 = vpop.xlane.xlu0 %5823
        %v5825 = vadd.f32 %v5824, 1.0
        %v5826 = vrcp.pop %v5825
        %v5827 = vlaneseq
        %v5828 = vshrl.u32 %v5827, 7
        %v5829 = vsub.s32 0, %v5828
        %v5830 = vrot.slane %v5826, %v5829
        %v5831 = vmul.f32 %v5600, %v5830
        %v5832 = vmul.f32 %v5603, %v5830
        %v5833 = vmul.f32 %v5606, %v5830
        %v5834 = vmul.f32 %v5609, %v5830
        %v5835 = vmul.f32 %v5612, %v5830
        %v5836 = vmul.f32 %v5615, %v5830
        %v5837 = vmul.f32 %v5618, %v5830
        %v5838 = vmul.f32 %v5621, %v5830
        %v5839 = vmul.f32 %v5624, %v5830
        %v5840 = vmul.f32 %v5627, %v5830
        %v5841 = vmul.f32 %v5630, %v5830
        %v5842 = vmul.f32 %v5831, %v5675
        %v5843 = vmul.f32 %v5832, %v5675
        %v5844 = vmul.f32 %v5833, %v5675
        %v5845 = vmul.f32 %v5834, %v5675
        %v5846 = vmul.f32 %v5835, %v5675
        %v5847 = vmul.f32 %v5836, %v5675
        %v5848 = vmul.f32 %v5837, %v5675
        %v5849 = vmul.f32 %v5838, %v5675
        %v5850 = vmul.f32 %v5839, %v5675
        %v5851 = vmul.f32 %v5840, %v5675
        %v5852 = vmul.f32 %v5841, %v5675
        %v5853 = vmul.f32 %v5842, %v5689
        %v5854 = vmul.f32 %v5843, %v5689
        %v5855 = vmul.f32 %v5844, %v5689
        %v5856 = vmul.f32 %v5845, %v5689
        %v5857 = vmul.f32 %v5846, %v5689
        %v5858 = vmul.f32 %v5847, %v5689
        %v5859 = vmul.f32 %v5848, %v5689
        %v5860 = vmul.f32 %v5849, %v5689
        %v5861 = vmul.f32 %v5850, %v5689
        %v5862 = vmul.f32 %v5851, %v5689
        %v5863 = vmul.f32 %v5852, %v5689
        %5875 = vset.pattern.permute.xlu0 0
        %5876 = vperm.xlu0 %5875, %v5853
        %v5877 = vpop.permute.xlu0 %5876
        %5878 = vset.pattern.permute.xlu0 0
        %5879 = vperm.xlu0 %5878, %v5854
        %v5880 = vpop.permute.xlu0 %5879
        %5881 = vset.pattern.permute.xlu0 0
        %5882 = vperm.xlu0 %5881, %v5855
        %v5883 = vpop.permute.xlu0 %5882
        %5884 = vset.pattern.permute.xlu0 0
        %5885 = vperm.xlu0 %5884, %v5856
        %v5886 = vpop.permute.xlu0 %5885
        %5887 = vset.pattern.permute.xlu0 0
        %5888 = vperm.xlu0 %5887, %v5857
        %v5889 = vpop.permute.xlu0 %5888
        %5890 = vset.pattern.permute.xlu0 0
        %5891 = vperm.xlu0 %5890, %v5858
        %v5892 = vpop.permute.xlu0 %5891
        %5893 = vset.pattern.permute.xlu0 0
        %5894 = vperm.xlu0 %5893, %v5859
        %v5895 = vpop.permute.xlu0 %5894
        %5896 = vset.pattern.permute.xlu0 0
        %5897 = vperm.xlu0 %5896, %v5860
        %v5898 = vpop.permute.xlu0 %5897
        %5899 = vset.pattern.permute.xlu0 0
        %5900 = vperm.xlu0 %5899, %v5861
        %v5901 = vpop.permute.xlu0 %5900
        %5902 = vset.pattern.permute.xlu0 0
        %5903 = vperm.xlu0 %5902, %v5862
        %v5904 = vpop.permute.xlu0 %5903
        %5905 = vset.pattern.permute.xlu0 0
        %5906 = vperm.xlu0 %5905, %v5863
        %v5907 = vpop.permute.xlu0 %5906
        %v5908 = vlaneseq
        %v5909 = vshrl.u32 %v5908, 7
        %v5910 = vsub.s32 %v5747, %v5909
        %v5911 = vrot.slane %v5877, %v5910
        %v5912 = vlaneseq
        %v5913 = vshrl.u32 %v5912, 7
        %v5914 = vsub.s32 %v5747, %v5913
        %v5915 = vrot.slane %v5880, %v5914
        %v5916 = vlaneseq
        %v5917 = vshrl.u32 %v5916, 7
        %v5918 = vsub.s32 %v5747, %v5917
        %v5919 = vrot.slane %v5883, %v5918
        %v5920 = vlaneseq
        %v5921 = vshrl.u32 %v5920, 7
        %v5922 = vsub.s32 %v5747, %v5921
        %v5923 = vrot.slane %v5886, %v5922
        %v5924 = vlaneseq
        %v5925 = vshrl.u32 %v5924, 7
        %v5926 = vsub.s32 %v5747, %v5925
        %v5927 = vrot.slane %v5889, %v5926
        %v5928 = vlaneseq
        %v5929 = vshrl.u32 %v5928, 7
        %v5930 = vsub.s32 %v5747, %v5929
        %v5931 = vrot.slane %v5892, %v5930
        %v5932 = vlaneseq
        %v5933 = vshrl.u32 %v5932, 7
        %v5934 = vsub.s32 %v5747, %v5933
        %v5935 = vrot.slane %v5895, %v5934
        %v5936 = vlaneseq
        %v5937 = vshrl.u32 %v5936, 7
        %v5938 = vsub.s32 %v5747, %v5937
        %v5939 = vrot.slane %v5898, %v5938
        %v5940 = vlaneseq
        %v5941 = vshrl.u32 %v5940, 7
        %v5942 = vsub.s32 %v5747, %v5941
        %v5943 = vrot.slane %v5901, %v5942
        %v5944 = vlaneseq
        %v5945 = vshrl.u32 %v5944, 7
        %v5946 = vsub.s32 %v5747, %v5945
        %v5947 = vrot.slane %v5904, %v5946
        %v5948 = vlaneseq
        %v5949 = vshrl.u32 %v5948, 7
        %v5950 = vsub.s32 %v5747, %v5949
        %v5951 = vrot.slane %v5907, %v5950
        %v5952 = vsel %vm5792, %v5915, %v5911
        %v5953 = vsel %vm5794, %v5919, %v5952
        %v5954 = vsel %vm5796, %v5923, %v5953
        %v5955 = vsel %vm5798, %v5927, %v5954
        %v5956 = vsel %vm5800, %v5931, %v5955
        %v5957 = vsel %vm5802, %v5935, %v5956
        %v5958 = vsel %vm5804, %v5939, %v5957
        %v5959 = vsel %vm5792, %v5947, %v5943
        %v5960 = vsel %vm5794, %v5951, %v5959
        %v5963 = vsel %vm1516, %v5958, 0.0
        %5964 = vadd.xlane.f32.xlu0 %v5963
        %v5965 = vpop.xlane.xlu0 %5964
        %v5966 = vsel %vm5813, %v5960, 0.0
        %5967 = vadd.xlane.f32.xlu0 %v5966
        %v5968 = vpop.xlane.xlu0 %5967
        %5969 = vst.msk [vmem:[%s954] sm:$0xff] %vm5817, %v5965
        %5970 = vst.msk [vmem:[%s954 + $0x8] sm:$0x7] %vm5819, %v5968
        %p5971 = scmp.lt.s32.totalorder %s41, 1
        %s5972 = scalar_select %p5971, %s41, 1
        %s5973 = smul.addr %s5972, 2
        %s5974 = smul.addr %s5973, 8
        %s5975 = scalar_lea.vmem %s27, %s5974
        %p5976 = scmp.lt.s32.totalorder %s41, 1
        %s5977 = scalar_select %p5976, %s41, 1
        %s5978 = smul.addr %s5977, 2
        %s5979 = smul.addr %s5978, 8
        %s5980 = scalar_lea.vmem %s28, %s5979
        // Predicated region
        $region133: #{_lambda_.1} parent=127 // pred_check
          %p5981 = pneg %p656
        $region134: #{_lambda_.1} parent=127 // pred_check_branch
          %5983 = sbr.rel (%p5981) target = $region136
        $region135: #{_lambda_.1} parent=127 // pred_region
          _
        $region136: #{_lambda_.1} parent=127 // pred_fallthru
          _
        // Predicated region
        $region137: #{_lambda_.1} parent=127 // pred_check
          %p5984 = pneg %p682
        $region138: #{_lambda_.1} parent=127 // pred_check_branch
          %5986 = sbr.rel (%p5984) target = $region140
        $region139: #{_lambda_.1} parent=127 // pred_region
          _
        $region140: #{_lambda_.1} parent=127 // pred_fallthru
          _
      $region128: #{_lambda_.1} parent=5 // pred_fallthru
        _
      %p5987 = scmp.le.s32.totalorder 2, %s36
      // Predicated region
      $region141: #{_lambda_.1} parent=5 // pred_check
        %p5988 = pneg %p5987
      $region142: #{_lambda_.1} parent=5 // pred_check_branch
        %5990 = sbr.rel (%p5988) target = $region144
      $region143: #{_lambda_.1} parent=5 // pred_region
        %s5991 = ssub.s32 %s36, 2
        // Predicated region
        $region145: #{_lambda_.1} parent=143 // pred_check
          %p5992 = pneg %p662
        $region146: #{_lambda_.1} parent=143 // pred_check_branch
          %5994 = sbr.rel (%p5992) target = $region148
        $region147: #{_lambda_.1} parent=143 // pred_region
          %p5995 = scmp.lt.s32.totalorder %s42, 1
          %s5996 = scalar_select %p5995, %s42, 1
          %s5997 = smul.addr %s5996, 2
          %s5998 = smul.addr %s5997, 8
          %s5999 = scalar_lea.vmem %s27, %s5998
        $region148: #{_lambda_.1} parent=143 // pred_fallthru
          _
        // Predicated region
        $region149: #{_lambda_.1} parent=143 // pred_check
          %p6000 = pneg %p688
        $region150: #{_lambda_.1} parent=143 // pred_check_branch
          %6002 = sbr.rel (%p6000) target = $region152
        $region151: #{_lambda_.1} parent=143 // pred_region
          %p6003 = scmp.lt.s32.totalorder %s42, 1
          %s6004 = scalar_select %p6003, %s42, 1
          %s6005 = smul.addr %s6004, 2
          %s6006 = smul.addr %s6005, 8
          %s6007 = scalar_lea.vmem %s28, %s6006
        $region152: #{_lambda_.1} parent=143 // pred_fallthru
          _
      $region144: #{_lambda_.1} parent=5 // pred_fallthru
        _
    $region6: #{_lambda_.1} parent=1 // loop_footer
      %s40 = sadd.s32 1, %s36
    $region7: #{_lambda_.1} parent=1 // loop_footer_branch
      %35 = sbr.rel target = $region3
    $region8: #{_lambda_.1} parent=1 // loop_exit
      _
    %6008 = vsyncpa [#allocation3], 1
    %s6009 = scalar_lea.sflag [#allocation3], 1
    %6010 = vsyncpa %s6009, 1

</llo_original>
